<compile_context>
chip_gen: v7x
topology: tpu7x:2x2x1
jax: 0.10.0
libtpu: 0.0.40
codegen_flags: <defaults>
</compile_context>

<pallas_src>
import jax
import jax.numpy as jnp
from jax.experimental import pallas as pl
from jax.experimental.pallas import tpu as pltpu

CPAD = 128  # lane-dense channel padding carried through the whole network


def _round_up(x, m):
    return ((x + m - 1) // m) * m


def _pick_t_win(m_win, target=128):
    """Largest divisor of m_win that is <= target and a multiple of 8 (else m_win).

    target=128 -> 16*128=2048 matmul rows per grid step (amortizes per-step overhead)
    while keeping >=2 'parallel' steps for v7x's two TensorCores on real batches."""
    for t in range(min(m_win, target), 0, -1):
        if m_win % t == 0 and t % 8 == 0:
            return t
    return m_win  # single full-extent block is always a legal BlockSpec


# ----------------------------- Pallas kernels ------------------------------

def _pool16_tree(acc, t_win):
    """acc: (16*t_win, CPAD) f32, rows grouped as 4x4 pool windows -> (t_win, CPAD) max.

    Log2 tree of element-wise maximums (VPU) instead of an axis-1 XLU reduction."""
    a = acc.reshape(t_win, 16, CPAD)
    a = jnp.maximum(a[:, :8, :], a[:, 8:, :])
    a = jnp.maximum(a[:, :4, :], a[:, 4:, :])
    a = jnp.maximum(a[:, :2, :], a[:, 2:, :])
    return jnp.maximum(a[:, 0, :], a[:, 1, :])


def _conv_relu_pool_kernel(x_ref, w_ref, b_ref, o_ref):
    # x_ref: (16*t_win, Kp) bf16 im2col patches (window-major rows)
    # w_ref: (Kp, CPAD) bf16   b_ref: (1, CPAD) f32   o_ref: (t_win, CPAD) f32
    acc = jnp.dot(x_ref[...], w_ref[...], preferred_element_type=jnp.float32)
    acc = jnp.maximum(acc + b_ref[...], 0.0)            # bias + ReLU in f32
    o_ref[...] = _pool16_tree(acc, o_ref.shape[0])      # fused MaxPool2d(4, 4)


def _conv_relu_pool_head_kernel(x_ref, w_ref, b_ref, wh_ref, bh_ref, o_ref):
    # conv3 + ReLU + pool + folded fc1/fc2/fc3 + LogSoftmax, all in one kernel.
    acc = jnp.dot(x_ref[...], w_ref[...], preferred_element_type=jnp.float32)
    acc = jnp.maximum(acc + b_ref[...], 0.0)
    feat = _pool16_tree(acc, o_ref.shape[0])            # (N, CPAD); cols >= 20 are zero
    logits = jnp.dot(feat, wh_ref[...], preferred_element_type=jnp.float32) + bh_ref[...]
    m = jnp.max(logits, axis=-1, keepdims=True)         # LogSoftmax(dim=1), only real classes
    s = logits - m
    lse = jnp.log(jnp.sum(jnp.exp(s), axis=-1, keepdims=True))
    o_ref[...] = s - lse


# ------------------------------- glue (JAX) --------------------------------

def _im2col_windows(x_nhwc, kh, kw, stride, pad):
    """Im2col with rows ordered so each 4x4 MaxPool window is 16 consecutive rows.

    Returns (patches (m_win*16, Kp) bf16, m_win, pooled_H, pooled_W)."""
    N, H, W, C = x_nhwc.shape
    xp = jnp.pad(x_nhwc, ((0, 0), (pad, pad), (pad, pad), (0, 0)))
    Hp, Wp = H + 2 * pad, W + 2 * pad
    Ho = (Hp - kh) // stride + 1
    Wo = (Wp - kw) // stride + 1
    Hq, Wq = Ho // 4, Wo // 4          # floor-mode pooled extent (matches PyTorch MaxPool2d)
    Hop, Wop = 4 * Hq, 4 * Wq          # conv positions actually consumed by the pool
    cols = []
    for i in range(kh):
        for j in range(kw):
            cols.append(xp[:, i:i + stride * Hop:stride, j:j + stride * Wop:stride, :])
    patches = jnp.stack(cols, axis=3)                          # (N, Hop, Wop, kh*kw, C)
    patches = patches.reshape(N, Hq, 4, Wq, 4, kh * kw * C)
    patches = patches.transpose(0, 1, 3, 2, 4, 5)              # (N, Hq, Wq, 4, 4, K)
    m_win = N * Hq * Wq
    K = kh * kw * C
    Kp = _round_up(K, 128)
    patches = patches.reshape(m_win * 16, K)
    if Kp != K:
        patches = jnp.pad(patches, ((0, 0), (0, Kp - K)))
    return patches.astype(jnp.bfloat16), m_win, Hq, Wq


def conv_relu_pool(x_nhwc, w_mat, bias, *, kh, kw, stride, pad, t_win_target=128):
    """One fused Conv2d + ReLU + MaxPool(4,4) stage. Output: (N, Hq, Wq, CPAD) f32."""
    N = x_nhwc.shape[0]
    patches, m_win, Hq, Wq = _im2col_windows(x_nhwc, kh, kw, stride, pad)
    Kp = patches.shape[1]
    assert w_mat.shape == (Kp, CPAD), (w_mat.shape, Kp)
    t_win = _pick_t_win(m_win, t_win_target)
    out = pl.pallas_call(
        _conv_relu_pool_kernel,
        out_shape=jax.ShapeDtypeStruct((m_win, CPAD), jnp.float32),
        grid=(m_win // t_win,),
        in_specs=[
            pl.BlockSpec((16 * t_win, Kp), lambda i: (i, 0)),
            pl.BlockSpec((Kp, CPAD), lambda i: (0, 0)),
            pl.BlockSpec((1, CPAD), lambda i: (0, 0)),
        ],
        out_specs=pl.BlockSpec((t_win, CPAD), lambda i: (i, 0)),
        compiler_params=pltpu.CompilerParams(dimension_semantics=("parallel",)),
    )(patches, w_mat, bias)
    return out.reshape(N, Hq, Wq, CPAD)


def conv_relu_pool_head(x_nhwc, w_mat, bias, wh, bh, *, kh, kw, stride, pad):
    """Fused conv3 + ReLU + MaxPool(4,4) + (fc1@fc2@fc3) + LogSoftmax -> (N, classes)."""
    N = x_nhwc.shape[0]
    patches, m_win, Hq, Wq = _im2col_windows(x_nhwc, kh, kw, stride, pad)
    assert Hq == 1 and Wq == 1, "flatten(x,1) must see a 1x1x20 map (e.g. 112x112 input)"
    Kp = patches.shape[1]
    assert w_mat.shape == (Kp, CPAD), (w_mat.shape, Kp)
    classes = wh.shape[1]
    return pl.pallas_call(
        _conv_relu_pool_head_kernel,
        out_shape=jax.ShapeDtypeStruct((N, classes), jnp.float32),
        grid=(1,),
        in_specs=[
            pl.BlockSpec((16 * m_win, Kp), lambda i: (0, 0)),
            pl.BlockSpec((Kp, CPAD), lambda i: (0, 0)),
            pl.BlockSpec((1, CPAD), lambda i: (0, 0)),
            pl.BlockSpec((CPAD, classes), lambda i: (0, 0)),
            pl.BlockSpec((1, classes), lambda i: (0, 0)),
        ],
        out_specs=pl.BlockSpec((N, classes), lambda i: (0, 0)),
    )(patches, w_mat, bias, wh, bh)


# ------------------------------ parameters ---------------------------------

def init_params(key, num_channels, classes):
    keys = jax.random.split(key, 12)

    def u(k, shape, fan_in):
        bound = 1.0 / jnp.sqrt(jnp.float32(fan_in))
        return jax.random.uniform(k, shape, jnp.float32, -bound, bound)

    p = {}
    p["conv1_w"] = u(keys[0], (60, num_channels, 5, 5), num_channels * 25)
    p["conv1_b"] = u(keys[1], (60,), num_channels * 25)
    p["conv2_w"] = u(keys[2], (50, 60, 3, 3), 60 * 9)
    p["conv2_b"] = u(keys[3], (50,), 60 * 9)
    p["conv3_w"] = u(keys[4], (20, 50, 3, 3), 50 * 9)
    p["conv3_b"] = u(keys[5], (20,), 50 * 9)
    # Linear weights stored as (in, out) so y = x @ W + b
    p["fc1_w"] = u(keys[6], (20, 10), 20)
    p["fc1_b"] = u(keys[7], (10,), 20)
    p["fc2_w"] = u(keys[8], (10, 4), 10)
    p["fc2_b"] = u(keys[9], (4,), 10)
    p["fc3_w"] = u(keys[10], (4, classes), 4)
    p["fc3_b"] = u(keys[11], (classes,), 4)
    return p


def _prep_conv(w_oihw, b, cin_carry):
    """OIHW conv weight -> lane-dense (round_up(KH*KW*cin_carry,128), 128) bf16 matrix."""
    Cout, Cin, KH, KW = w_oihw.shape
    w = jnp.transpose(w_oihw, (2, 3, 1, 0))                               # (KH, KW, Cin, Cout)
    w = jnp.pad(w, ((0, 0), (0, 0), (0, cin_carry - Cin), (0, CPAD - Cout)))
    w = w.reshape(KH * KW * cin_carry, CPAD)
    Kp = _round_up(w.shape[0], 128)
    w = jnp.pad(w, ((0, Kp - w.shape[0]), (0, 0)))
    bpad = jnp.pad(b, (0, CPAD - Cout)).reshape(1, CPAD).astype(jnp.float32)
    return w.astype(jnp.bfloat16), bpad


def prepare_params(p, num_channels):
    """One-time weight layout prep: transpose/pad conv weights, fold the linear head."""
    prep = {}
    prep["c1_w"], prep["c1_b"] = _prep_conv(p["conv1_w"], p["conv1_b"], num_channels)
    prep["c2_w"], prep["c2_b"] = _prep_conv(p["conv2_w"], p["conv2_b"], CPAD)
    prep["c3_w"], prep["c3_b"] = _prep_conv(p["conv3_w"], p["conv3_b"], CPAD)
    # fc1 -> fc2 -> fc3 have NO nonlinearity in between (matches the PyTorch forward),
    # so fold them into a single affine map applied in the conv3 kernel's epilogue.
    w_head = p["fc1_w"] @ p["fc2_w"] @ p["fc3_w"]                          # (20, classes)
    b_head = (p["fc1_b"] @ p["fc2_w"] + p["fc2_b"]) @ p["fc3_w"] + p["fc3_b"]
    prep["fc_w"] = jnp.pad(w_head, ((0, CPAD - w_head.shape[0]), (0, 0))).astype(jnp.float32)
    prep["fc_b"] = b_head.reshape(1, -1).astype(jnp.float32)
    return prep


# -------------------------------- forward ----------------------------------

def new_cnn3_forward(x_nchw, prep):
    x = jnp.transpose(x_nchw, (0, 2, 3, 1)).astype(jnp.float32)           # NCHW -> NHWC
    x = conv_relu_pool(x, prep["c1_w"], prep["c1_b"], kh=5, kw=5, stride=2, pad=10)
    x = conv_relu_pool(x, prep["c2_w"], prep["c2_b"], kh=3, kw=3, stride=1, pad=1)
    return conv_relu_pool_head(x, prep["c3_w"], prep["c3_b"],
                               prep["fc_w"], prep["fc_b"],
                               kh=3, kw=3, stride=1, pad=1)


if __name__ == "__main__":
    num_channels, classes = 3, 5
    key = jax.random.PRNGKey(0)
    k_params, k_x = jax.random.split(key)
    params = init_params(k_params, num_channels, classes)
    prep = prepare_params(params, num_channels)
    # 112x112 is the smallest natural input for this module:
    # conv1(s=2,p=10) -> 64x64, three MaxPool(4) stages -> 1x1x20 -> fc1(in=20) works.
    x = jax.random.normal(k_x, (2, num_channels, 112, 112), jnp.float32)

    out = jax.jit(lambda xx: new_cnn3_forward(xx, prep))(x)
    out = jax.block_until_ready(out)
    assert out.shape == (2, classes), out.shape
    assert bool(jnp.all(jnp.isfinite(out)))
    print("KERNEL_OK")
</pallas_src>

<mosaic_0001>
module attributes {stable_mosaic.version = 11 : i64} {
  func.func @_conv_relu_pool_kernel(%arg0: i32, %arg1: memref<2048x128xbf16, #tpu.memory_space<vmem>>, %arg2: memref<128x128xbf16, #tpu.memory_space<vmem>>, %arg3: memref<1x128xf32, #tpu.memory_space<vmem>>, %arg4: memref<128x128xf32, #tpu.memory_space<vmem>>) attributes {dimension_semantics = [#tpu.dimension_semantics<parallel>], iteration_bounds = array<i64: 4>, scalar_prefetch = 0 : i64, scratch_operands = 0 : i64, tpu.core_type = #tpu.core_type<tc>, window_params = [{transform_indices = @transform_0, window_bounds = array<i64: 2048, 128>}, {pipeline_mode = #tpu.pipeline_mode<synchronous>, transform_indices = @transform_1, window_bounds = array<i64: 128, 128>}, {pipeline_mode = #tpu.pipeline_mode<synchronous>, transform_indices = @transform_2, window_bounds = array<i64: 1, 128>}, {transform_indices = @transform_3, window_bounds = array<i64: 128, 128>}]} {
    %c0 = arith.constant 0 : index
    %c0_0 = arith.constant 0 : index
    %0 = vector.load %arg1[%c0, %c0_0] : memref<2048x128xbf16, #tpu.memory_space<vmem>>, vector<2048x128xbf16>
    %c0_1 = arith.constant 0 : index
    %c0_2 = arith.constant 0 : index
    %1 = vector.load %arg2[%c0_1, %c0_2] : memref<128x128xbf16, #tpu.memory_space<vmem>>, vector<128x128xbf16>
    %cst = arith.constant dense<0.000000e+00> : vector<2048x128xf32>
    %2 = tpu.matmul %0, %1, %cst {dimension_numbers = #tpu.dot_dimension_numbers<[1], [0], [0], [1], [0, 0, 1, 1], [], []>} : vector<2048x128xbf16>, vector<128x128xbf16>, vector<2048x128xf32> -> vector<2048x128xf32>
    %c0_3 = arith.constant 0 : index
    %c0_4 = arith.constant 0 : index
    %3 = vector.load %arg3[%c0_3, %c0_4] : memref<1x128xf32, #tpu.memory_space<vmem>>, vector<1x128xf32>
    %4 = vector.broadcast %3 : vector<1x128xf32> to vector<2048x128xf32>
    %5 = arith.addf %2, %4 : vector<2048x128xf32>
    %cst_5 = arith.constant 0.000000e+00 : f32
    %6 = vector.broadcast %cst_5 : f32 to vector<2048x128xf32>
    %7 = arith.maximumf %5, %6 : vector<2048x128xf32>
    %8 = vector.shape_cast %7 : vector<2048x128xf32> to vector<128x16x128xf32>
    %9 = vector.extract_strided_slice %8 {offsets = [0, 0, 0], sizes = [128, 8, 128], strides = [1, 1, 1]} : vector<128x16x128xf32> to vector<128x8x128xf32>
    %10 = vector.extract_strided_slice %8 {offsets = [0, 8, 0], sizes = [128, 8, 128], strides = [1, 1, 1]} : vector<128x16x128xf32> to vector<128x8x128xf32>
    %11 = arith.maximumf %9, %10 : vector<128x8x128xf32>
    %12 = vector.extract_strided_slice %11 {offsets = [0, 0, 0], sizes = [128, 4, 128], strides = [1, 1, 1]} : vector<128x8x128xf32> to vector<128x4x128xf32>
    %13 = vector.extract_strided_slice %11 {offsets = [0, 4, 0], sizes = [128, 4, 128], strides = [1, 1, 1]} : vector<128x8x128xf32> to vector<128x4x128xf32>
    %14 = arith.maximumf %12, %13 : vector<128x4x128xf32>
    %15 = vector.extract_strided_slice %14 {offsets = [0, 0, 0], sizes = [128, 2, 128], strides = [1, 1, 1]} : vector<128x4x128xf32> to vector<128x2x128xf32>
    %16 = vector.extract_strided_slice %14 {offsets = [0, 2, 0], sizes = [128, 2, 128], strides = [1, 1, 1]} : vector<128x4x128xf32> to vector<128x2x128xf32>
    %17 = arith.maximumf %15, %16 : vector<128x2x128xf32>
    %18 = vector.extract_strided_slice %17 {offsets = [0, 0, 0], sizes = [128, 1, 128], strides = [1, 1, 1]} : vector<128x2x128xf32> to vector<128x1x128xf32>
    %19 = vector.shape_cast %18 : vector<128x1x128xf32> to vector<128x128xf32>
    %20 = vector.extract_strided_slice %17 {offsets = [0, 1, 0], sizes = [128, 1, 128], strides = [1, 1, 1]} : vector<128x2x128xf32> to vector<128x1x128xf32>
    %21 = vector.shape_cast %20 : vector<128x1x128xf32> to vector<128x128xf32>
    %22 = arith.maximumf %19, %21 : vector<128x128xf32>
    %c0_6 = arith.constant 0 : index
    %c0_7 = arith.constant 0 : index
    %23 = vector.load %arg4[%c0_6, %c0_7] : memref<128x128xf32, #tpu.memory_space<vmem>>, vector<128x128xf32>
    tpu.vector_store %arg4[%c0_6, %c0_7], %22 {strides = array<i32>} : memref<128x128xf32, #tpu.memory_space<vmem>>, vector<128x128xf32>,
    return
  }
  func.func @transform_0(%arg0: i32) -> (i32, i32) {
    %c0_i32 = arith.constant 0 : i32
    %c0_i32_0 = arith.constant 0 : i32
    return %arg0, %c0_i32 : i32, i32
  }
  func.func @transform_1(%arg0: i32) -> (i32, i32) {
    %c0_i32 = arith.constant 0 : i32
    %c0_i32_0 = arith.constant 0 : i32
    %c0_i32_1 = arith.constant 0 : i32
    return %c0_i32, %c0_i32_0 : i32, i32
  }
  func.func @transform_2(%arg0: i32) -> (i32, i32) {
    %c0_i32 = arith.constant 0 : i32
    %c0_i32_0 = arith.constant 0 : i32
    %c0_i32_1 = arith.constant 0 : i32
    return %c0_i32, %c0_i32_0 : i32, i32
  }
  func.func @transform_3(%arg0: i32) -> (i32, i32) {
    %c0_i32 = arith.constant 0 : i32
    %c0_i32_0 = arith.constant 0 : i32
    return %arg0, %c0_i32 : i32, i32
  }
}

module attributes {stable_mosaic.version = 11 : i64} {
  func.func @_conv_relu_pool_kernel(%arg0: i32, %arg1: memref<512x1152xbf16, #tpu.memory_space<vmem>>, %arg2: memref<1152x128xbf16, #tpu.memory_space<vmem>>, %arg3: memref<1x128xf32, #tpu.memory_space<vmem>>, %arg4: memref<32x128xf32, #tpu.memory_space<vmem>>) attributes {dimension_semantics = [#tpu.dimension_semantics<parallel>], iteration_bounds = array<i64: 1>, scalar_prefetch = 0 : i64, scratch_operands = 0 : i64, tpu.core_type = #tpu.core_type<tc>, window_params = [{transform_indices = @transform_0, window_bounds = array<i64: 512, 1152>}, {pipeline_mode = #tpu.pipeline_mode<synchronous>, transform_indices = @transform_1, window_bounds = array<i64: 1152, 128>}, {pipeline_mode = #tpu.pipeline_mode<synchronous>, transform_indices = @transform_2, window_bounds = array<i64: 1, 128>}, {transform_indices = @transform_3, window_bounds = array<i64: 32, 128>}]} {
    %c0 = arith.constant 0 : index
    %c0_0 = arith.constant 0 : index
    %0 = vector.load %arg1[%c0, %c0_0] : memref<512x1152xbf16, #tpu.memory_space<vmem>>, vector<512x1152xbf16>
    %c0_1 = arith.constant 0 : index
    %c0_2 = arith.constant 0 : index
    %1 = vector.load %arg2[%c0_1, %c0_2] : memref<1152x128xbf16, #tpu.memory_space<vmem>>, vector<1152x128xbf16>
    %cst = arith.constant dense<0.000000e+00> : vector<512x128xf32>
    %2 = tpu.matmul %0, %1, %cst {dimension_numbers = #tpu.dot_dimension_numbers<[1], [0], [0], [1], [0, 0, 1, 1], [], []>} : vector<512x1152xbf16>, vector<1152x128xbf16>, vector<512x128xf32> -> vector<512x128xf32>
    %c0_3 = arith.constant 0 : index
    %c0_4 = arith.constant 0 : index
    %3 = vector.load %arg3[%c0_3, %c0_4] : memref<1x128xf32, #tpu.memory_space<vmem>>, vector<1x128xf32>
    %4 = vector.broadcast %3 : vector<1x128xf32> to vector<512x128xf32>
    %5 = arith.addf %2, %4 : vector<512x128xf32>
    %cst_5 = arith.constant 0.000000e+00 : f32
    %6 = vector.broadcast %cst_5 : f32 to vector<512x128xf32>
    %7 = arith.maximumf %5, %6 : vector<512x128xf32>
    %8 = vector.shape_cast %7 : vector<512x128xf32> to vector<32x16x128xf32>
    %9 = vector.extract_strided_slice %8 {offsets = [0, 0, 0], sizes = [32, 8, 128], strides = [1, 1, 1]} : vector<32x16x128xf32> to vector<32x8x128xf32>
    %10 = vector.extract_strided_slice %8 {offsets = [0, 8, 0], sizes = [32, 8, 128], strides = [1, 1, 1]} : vector<32x16x128xf32> to vector<32x8x128xf32>
    %11 = arith.maximumf %9, %10 : vector<32x8x128xf32>
    %12 = vector.extract_strided_slice %11 {offsets = [0, 0, 0], sizes = [32, 4, 128], strides = [1, 1, 1]} : vector<32x8x128xf32> to vector<32x4x128xf32>
    %13 = vector.extract_strided_slice %11 {offsets = [0, 4, 0], sizes = [32, 4, 128], strides = [1, 1, 1]} : vector<32x8x128xf32> to vector<32x4x128xf32>
    %14 = arith.maximumf %12, %13 : vector<32x4x128xf32>
    %15 = vector.extract_strided_slice %14 {offsets = [0, 0, 0], sizes = [32, 2, 128], strides = [1, 1, 1]} : vector<32x4x128xf32> to vector<32x2x128xf32>
    %16 = vector.extract_strided_slice %14 {offsets = [0, 2, 0], sizes = [32, 2, 128], strides = [1, 1, 1]} : vector<32x4x128xf32> to vector<32x2x128xf32>
    %17 = arith.maximumf %15, %16 : vector<32x2x128xf32>
    %18 = vector.extract_strided_slice %17 {offsets = [0, 0, 0], sizes = [32, 1, 128], strides = [1, 1, 1]} : vector<32x2x128xf32> to vector<32x1x128xf32>
    %19 = vector.shape_cast %18 : vector<32x1x128xf32> to vector<32x128xf32>
    %20 = vector.extract_strided_slice %17 {offsets = [0, 1, 0], sizes = [32, 1, 128], strides = [1, 1, 1]} : vector<32x2x128xf32> to vector<32x1x128xf32>
    %21 = vector.shape_cast %20 : vector<32x1x128xf32> to vector<32x128xf32>
    %22 = arith.maximumf %19, %21 : vector<32x128xf32>
    %c0_6 = arith.constant 0 : index
    %c0_7 = arith.constant 0 : index
    %23 = vector.load %arg4[%c0_6, %c0_7] : memref<32x128xf32, #tpu.memory_space<vmem>>, vector<32x128xf32>
    tpu.vector_store %arg4[%c0_6, %c0_7], %22 {strides = array<i32>} : memref<32x128xf32, #tpu.memory_space<vmem>>, vector<32x128xf32>,
    return
  }
  func.func @transform_0(%arg0: i32) -> (i32, i32) {
    %c0_i32 = arith.constant 0 : i32
    %c0_i32_0 = arith.constant 0 : i32
    return %arg0, %c0_i32 : i32, i32
  }
  func.func @transform_1(%arg0: i32) -> (i32, i32) {
    %c0_i32 = arith.constant 0 : i32
    %c0_i32_0 = arith.constant 0 : i32
    %c0_i32_1 = arith.constant 0 : i32
    return %c0_i32, %c0_i32_0 : i32, i32
  }
  func.func @transform_2(%arg0: i32) -> (i32, i32) {
    %c0_i32 = arith.constant 0 : i32
    %c0_i32_0 = arith.constant 0 : i32
    %c0_i32_1 = arith.constant 0 : i32
    return %c0_i32, %c0_i32_0 : i32, i32
  }
  func.func @transform_3(%arg0: i32) -> (i32, i32) {
    %c0_i32 = arith.constant 0 : i32
    %c0_i32_0 = arith.constant 0 : i32
    return %arg0, %c0_i32 : i32, i32
  }
}

module attributes {stable_mosaic.version = 11 : i64} {
  func.func @_conv_relu_pool_head_kernel(%arg0: i32, %arg1: memref<32x1152xbf16, #tpu.memory_space<vmem>>, %arg2: memref<1152x128xbf16, #tpu.memory_space<vmem>>, %arg3: memref<1x128xf32, #tpu.memory_space<vmem>>, %arg4: memref<128x5xf32, #tpu.memory_space<vmem>>, %arg5: memref<1x5xf32, #tpu.memory_space<vmem>>, %arg6: memref<2x5xf32, #tpu.memory_space<vmem>>) attributes {dimension_semantics = [#tpu.dimension_semantics<arbitrary>], iteration_bounds = array<i64: 1>, scalar_prefetch = 0 : i64, scratch_operands = 0 : i64, tpu.core_type = #tpu.core_type<tc>, window_params = [{pipeline_mode = #tpu.pipeline_mode<synchronous>, transform_indices = @transform_0, window_bounds = array<i64: 32, 1152>}, {pipeline_mode = #tpu.pipeline_mode<synchronous>, transform_indices = @transform_1, window_bounds = array<i64: 1152, 128>}, {pipeline_mode = #tpu.pipeline_mode<synchronous>, transform_indices = @transform_2, window_bounds = array<i64: 1, 128>}, {pipeline_mode = #tpu.pipeline_mode<synchronous>, transform_indices = @transform_3, window_bounds = array<i64: 128, 5>}, {pipeline_mode = #tpu.pipeline_mode<synchronous>, transform_indices = @transform_4, window_bounds = array<i64: 1, 5>}, {pipeline_mode = #tpu.pipeline_mode<synchronous>, transform_indices = @transform_5, window_bounds = array<i64: 2, 5>}]} {
    %c0 = arith.constant 0 : index
    %c0_0 = arith.constant 0 : index
    %0 = vector.load %arg1[%c0, %c0_0] : memref<32x1152xbf16, #tpu.memory_space<vmem>>, vector<32x1152xbf16>
    %c0_1 = arith.constant 0 : index
    %c0_2 = arith.constant 0 : index
    %1 = vector.load %arg2[%c0_1, %c0_2] : memref<1152x128xbf16, #tpu.memory_space<vmem>>, vector<1152x128xbf16>
    %cst = arith.constant dense<0.000000e+00> : vector<32x128xf32>
    %2 = tpu.matmul %0, %1, %cst {dimension_numbers = #tpu.dot_dimension_numbers<[1], [0], [0], [1], [0, 0, 1, 1], [], []>} : vector<32x1152xbf16>, vector<1152x128xbf16>, vector<32x128xf32> -> vector<32x128xf32>
    %c0_3 = arith.constant 0 : index
    %c0_4 = arith.constant 0 : index
    %3 = vector.load %arg3[%c0_3, %c0_4] : memref<1x128xf32, #tpu.memory_space<vmem>>, vector<1x128xf32>
    %4 = vector.broadcast %3 : vector<1x128xf32> to vector<32x128xf32>
    %5 = arith.addf %2, %4 : vector<32x128xf32>
    %cst_5 = arith.constant 0.000000e+00 : f32
    %6 = vector.broadcast %cst_5 : f32 to vector<32x128xf32>
    %7 = arith.maximumf %5, %6 : vector<32x128xf32>
    %8 = vector.shape_cast %7 : vector<32x128xf32> to vector<2x16x128xf32>
    %9 = vector.extract_strided_slice %8 {offsets = [0, 0, 0], sizes = [2, 8, 128], strides = [1, 1, 1]} : vector<2x16x128xf32> to vector<2x8x128xf32>
    %10 = vector.extract_strided_slice %8 {offsets = [0, 8, 0], sizes = [2, 8, 128], strides = [1, 1, 1]} : vector<2x16x128xf32> to vector<2x8x128xf32>
    %11 = arith.maximumf %9, %10 : vector<2x8x128xf32>
    %12 = vector.extract_strided_slice %11 {offsets = [0, 0, 0], sizes = [2, 4, 128], strides = [1, 1, 1]} : vector<2x8x128xf32> to vector<2x4x128xf32>
    %13 = vector.extract_strided_slice %11 {offsets = [0, 4, 0], sizes = [2, 4, 128], strides = [1, 1, 1]} : vector<2x8x128xf32> to vector<2x4x128xf32>
    %14 = arith.maximumf %12, %13 : vector<2x4x128xf32>
    %15 = vector.extract_strided_slice %14 {offsets = [0, 0, 0], sizes = [2, 2, 128], strides = [1, 1, 1]} : vector<2x4x128xf32> to vector<2x2x128xf32>
    %16 = vector.extract_strided_slice %14 {offsets = [0, 2, 0], sizes = [2, 2, 128], strides = [1, 1, 1]} : vector<2x4x128xf32> to vector<2x2x128xf32>
    %17 = arith.maximumf %15, %16 : vector<2x2x128xf32>
    %18 = vector.extract_strided_slice %17 {offsets = [0, 0, 0], sizes = [2, 1, 128], strides = [1, 1, 1]} : vector<2x2x128xf32> to vector<2x1x128xf32>
    %19 = vector.shape_cast %18 : vector<2x1x128xf32> to vector<2x128xf32>
    %20 = vector.extract_strided_slice %17 {offsets = [0, 1, 0], sizes = [2, 1, 128], strides = [1, 1, 1]} : vector<2x2x128xf32> to vector<2x1x128xf32>
    %21 = vector.shape_cast %20 : vector<2x1x128xf32> to vector<2x128xf32>
    %22 = arith.maximumf %19, %21 : vector<2x128xf32>
    %c0_6 = arith.constant 0 : index
    %c0_7 = arith.constant 0 : index
    %23 = vector.load %arg4[%c0_6, %c0_7] : memref<128x5xf32, #tpu.memory_space<vmem>>, vector<128x5xf32>
    %cst_8 = arith.constant dense<0.000000e+00> : vector<2x5xf32>
    %24 = tpu.matmul %22, %23, %cst_8 {dimension_numbers = #tpu.dot_dimension_numbers<[1], [0], [0], [1], [0, 0, 1, 1], [], []>} : vector<2x128xf32>, vector<128x5xf32>, vector<2x5xf32> -> vector<2x5xf32>
    %c0_9 = arith.constant 0 : index
    %c0_10 = arith.constant 0 : index
    %25 = vector.load %arg5[%c0_9, %c0_10] : memref<1x5xf32, #tpu.memory_space<vmem>>, vector<1x5xf32>
    %26 = vector.broadcast %25 : vector<1x5xf32> to vector<2x5xf32>
    %27 = arith.addf %24, %26 : vector<2x5xf32>
    %cst_11 = arith.constant dense<0xFF800000> : vector<2xf32>
    %28 = vector.multi_reduction <maximumf>, %27, %cst_11 [1] : vector<2x5xf32> to vector<2xf32>
    %29 = vector.shape_cast %28 : vector<2xf32> to vector<2x1xf32>
    %30 = vector.broadcast %29 : vector<2x1xf32> to vector<2x5xf32>
    %31 = arith.subf %27, %30 : vector<2x5xf32>
    %32 = math.exp %31 : vector<2x5xf32>
    %cst_12 = arith.constant dense<0.000000e+00> : vector<2xf32>
    %33 = vector.multi_reduction <add>, %32, %cst_12 [1] : vector<2x5xf32> to vector<2xf32>
    %34 = vector.shape_cast %33 : vector<2xf32> to vector<2x1xf32>
    %35 = math.log %34 : vector<2x1xf32>
    %36 = vector.broadcast %35 : vector<2x1xf32> to vector<2x5xf32>
    %37 = arith.subf %31, %36 : vector<2x5xf32>
    %c0_13 = arith.constant 0 : index
    %c0_14 = arith.constant 0 : index
    %38 = vector.load %arg6[%c0_13, %c0_14] : memref<2x5xf32, #tpu.memory_space<vmem>>, vector<2x5xf32>
    tpu.vector_store %arg6[%c0_13, %c0_14], %37 {strides = array<i32>} : memref<2x5xf32, #tpu.memory_space<vmem>>, vector<2x5xf32>,
    return
  }
  func.func @transform_0(%arg0: i32) -> (i32, i32) {
    %c0_i32 = arith.constant 0 : i32
    %c0_i32_0 = arith.constant 0 : i32
    %c0_i32_1 = arith.constant 0 : i32
    return %c0_i32, %c0_i32_0 : i32, i32
  }
  func.func @transform_1(%arg0: i32) -> (i32, i32) {
    %c0_i32 = arith.constant 0 : i32
    %c0_i32_0 = arith.constant 0 : i32
    %c0_i32_1 = arith.constant 0 : i32
    return %c0_i32, %c0_i32_0 : i32, i32
  }
  func.func @transform_2(%arg0: i32) -> (i32, i32) {
    %c0_i32 = arith.constant 0 : i32
    %c0_i32_0 = arith.constant 0 : i32
    %c0_i32_1 = arith.constant 0 : i32
    return %c0_i32, %c0_i32_0 : i32, i32
  }
  func.func @transform_3(%arg0: i32) -> (i32, i32) {
    %c0_i32 = arith.constant 0 : i32
    %c0_i32_0 = arith.constant 0 : i32
    %c0_i32_1 = arith.constant 0 : i32
    return %c0_i32, %c0_i32_0 : i32, i32
  }
  func.func @transform_4(%arg0: i32) -> (i32, i32) {
    %c0_i32 = arith.constant 0 : i32
    %c0_i32_0 = arith.constant 0 : i32
    %c0_i32_1 = arith.constant 0 : i32
    return %c0_i32, %c0_i32_0 : i32, i32
  }
  func.func @transform_5(%arg0: i32) -> (i32, i32) {
    %c0_i32 = arith.constant 0 : i32
    %c0_i32_0 = arith.constant 0 : i32
    %c0_i32_1 = arith.constant 0 : i32
    return %c0_i32, %c0_i32_0 : i32, i32
  }
}

</mosaic_0001>

<llo_original>
// kernel: _lambda_.3
$region0: #{_lambda_.3}
  #allocation0 [shape = 'u32[]', space=smem, size = 0x4, offset = 0x4, fixed_abs, tag = 'smem constant byte address 0x4 - core index']
  #allocation1 [shape = 'u32[144,128]{1,0:T(1,128)}', space=vmem, size = 0x12000, scoped, tag = 'internal scratch']
  %s0 = inlined_call_operand.vmem [shape: bf16[8192,128], index: 0, kind: input, shape index: {}]
  %s1 = inlined_call_operand.vmem [shape: bf16[128,128], index: 1, kind: input, shape index: {}]
  %s2 = inlined_call_operand.vmem [shape: f32[1,128], index: 2, kind: input, shape index: {}]
  %s3 = inlined_call_operand.vmem [shape: f32[512,128], index: 3, kind: output, shape index: {}]
  %s4 = sld [smem:[#allocation0]]
  $region45: #{_lambda_.3} parent=0
    _
  %s6 = ssub.s32 1, %s4
  %s7 = scalar_select 0, %s6, %s4
  loop: start=0, step=1, limit=6
  $region2: #{_lambda_.3} parent=0 // loop_pre_header
    _
  $region3: #{_lambda_.3} parent=0 // loop_header
    %s9 = sphi 0, %s13
    %p10 = scmp.ge.s32.totalorder %s9, 6
    %s19 = sphi 0, %s21
    %s22 = sphi 0, %s19
    %s23 = sphi 0, %s22
    %s39 = sphi 0, %s23
    %s43 = sphi 0, %s43
    %s45 = sphi 0, %s43
    %s46 = sphi 0, %s45
    %s60 = sphi 0, %s46
    %s64 = sphi 0, %s64
    %s66 = sphi 0, %s64
    %s67 = sphi 0, %s66
    %s81 = sphi 0, %s67
    %s87 = sphi 0, %s89
    %s90 = sphi 0, %s87
    %s91 = sphi 0, %s90
    %s107 = sphi 0, %s91
  $region4: #{_lambda_.3} parent=0 // loop_header_branch
    %12 = sbr.rel (%p10) target = $region8
  $region5: #{_lambda_.3} parent=0 // loop_body
    %s14 = ssub.s32 %s9, 1
    %s15 = ssub.s32 %s9, 2
    %s16 = sadd.s32 %s9, 1
    %s17 = ssub.s32 %s9, %s16
    %p18 = scmp.eq.s32.totalorder %s17, 0
    %s20 = sadd.s32 %s19, 1
    %s21 = scalar_select %p18, %s19, %s20
    %p24 = pneg %p18
    %p25 = scmp.eq.s32.totalorder %s9, 3
    %p26 = por %p24, %p25
    %p27 = scmp.ne.s32.totalorder %s19, %s22
    %p28 = scmp.eq.s32.totalorder %s9, 0
    %p29 = por %p27, %p28
    %p30 = scmp.ne.s32.totalorder %s19, %s22
    %p31 = scmp.eq.s32.totalorder %s14, 3
    %p32 = por %p30, %p31
    %p33 = scmp.ne.s32.totalorder %s22, %s23
    %p34 = scmp.eq.s32.totalorder %s14, 0
    %p35 = por %p33, %p34
    %p36 = scmp.ne.s32.totalorder %s22, %s23
    %p37 = scmp.eq.s32.totalorder %s15, 3
    %p38 = por %p36, %p37
    %p40 = scmp.ne.s32.totalorder %s23, %s39
    %p41 = scmp.eq.s32.totalorder %s15, 0
    %p42 = por %p40, %p41
    %s44 = sadd.s32 %s43, 1
    %p47 = scmp.eq.s32.totalorder %s9, 3
    %p48 = scmp.ne.s32.totalorder %s43, %s45
    %p49 = scmp.eq.s32.totalorder %s9, 0
    %p50 = por %p48, %p49
    %p51 = scmp.ne.s32.totalorder %s43, %s45
    %p52 = scmp.eq.s32.totalorder %s14, 3
    %p53 = por %p51, %p52
    %p54 = scmp.ne.s32.totalorder %s45, %s46
    %p55 = scmp.eq.s32.totalorder %s14, 0
    %p56 = por %p54, %p55
    %p57 = scmp.ne.s32.totalorder %s45, %s46
    %p58 = scmp.eq.s32.totalorder %s15, 3
    %p59 = por %p57, %p58
    %p61 = scmp.ne.s32.totalorder %s46, %s60
    %p62 = scmp.eq.s32.totalorder %s15, 0
    %p63 = por %p61, %p62
    %s65 = sadd.s32 %s64, 1
    %p68 = scmp.eq.s32.totalorder %s9, 3
    %p69 = scmp.ne.s32.totalorder %s64, %s66
    %p70 = scmp.eq.s32.totalorder %s9, 0
    %p71 = por %p69, %p70
    %p72 = scmp.ne.s32.totalorder %s64, %s66
    %p73 = scmp.eq.s32.totalorder %s14, 3
    %p74 = por %p72, %p73
    %p75 = scmp.ne.s32.totalorder %s66, %s67
    %p76 = scmp.eq.s32.totalorder %s14, 0
    %p77 = por %p75, %p76
    %p78 = scmp.ne.s32.totalorder %s66, %s67
    %p79 = scmp.eq.s32.totalorder %s15, 3
    %p80 = por %p78, %p79
    %p82 = scmp.ne.s32.totalorder %s67, %s81
    %p83 = scmp.eq.s32.totalorder %s15, 0
    %p84 = por %p82, %p83
    %s85 = ssub.s32 %s9, %s16
    %p86 = scmp.eq.s32.totalorder %s85, 0
    %s88 = sadd.s32 %s87, 1
    %s89 = scalar_select %p86, %s87, %s88
    %p92 = pneg %p86
    %p93 = scmp.eq.s32.totalorder %s9, 3
    %p94 = por %p92, %p93
    %p95 = scmp.ne.s32.totalorder %s87, %s90
    %p96 = scmp.eq.s32.totalorder %s9, 0
    %p97 = por %p95, %p96
    %p98 = scmp.ne.s32.totalorder %s87, %s90
    %p99 = scmp.eq.s32.totalorder %s14, 3
    %p100 = por %p98, %p99
    %p101 = scmp.ne.s32.totalorder %s90, %s91
    %p102 = scmp.eq.s32.totalorder %s14, 0
    %p103 = por %p101, %p102
    %p104 = scmp.ne.s32.totalorder %s90, %s91
    %p105 = scmp.eq.s32.totalorder %s15, 3
    %p106 = por %p104, %p105
    %p108 = scmp.ne.s32.totalorder %s91, %s107
    %p109 = scmp.eq.s32.totalorder %s15, 0
    %p110 = por %p108, %p109
    %p111 = scmp.le.s32.totalorder 1, %s9
    %p112 = scmp.lt.s32.totalorder %s9, 5
    %p113 = pnand %p111, %p112
    %p114 = pneg %p113
    // Predicated region
    $region9: #{_lambda_.3} parent=5 // pred_check
      _
    $region10: #{_lambda_.3} parent=5 // pred_check_branch
      %116 = sbr.rel (%p113) target = $region12
    $region11: #{_lambda_.3} parent=5 // pred_region
      %s117 = ssub.s32 %s9, 1
      // Predicated region
      $region13: #{_lambda_.3} parent=11 // pred_check
        %p118 = pneg %p56
      $region14: #{_lambda_.3} parent=11 // pred_check_branch
        %120 = sbr.rel (%p118) target = $region16
      $region15: #{_lambda_.3} parent=11 // pred_region
        _
      $region16: #{_lambda_.3} parent=11 // pred_fallthru
        _
      // Predicated region
      $region17: #{_lambda_.3} parent=11 // pred_check
        %p121 = pneg %p77
      $region18: #{_lambda_.3} parent=11 // pred_check_branch
        %123 = sbr.rel (%p121) target = $region20
      $region19: #{_lambda_.3} parent=11 // pred_region
        _
      $region20: #{_lambda_.3} parent=11 // pred_fallthru
        _
    $region12: #{_lambda_.3} parent=5 // pred_fallthru
      _
    %p124 = scmp.lt.s32.totalorder %s9, 4
    // Predicated region
    $region21: #{_lambda_.3} parent=5 // pred_check
      %p125 = pneg %p124
    $region22: #{_lambda_.3} parent=5 // pred_check_branch
      %127 = sbr.rel (%p125) target = $region24
    $region23: #{_lambda_.3} parent=5 // pred_region
      // Predicated region
      $region25: #{_lambda_.3} parent=23 // pred_check
        %p128 = pneg %p29
      $region26: #{_lambda_.3} parent=23 // pred_check_branch
        %130 = sbr.rel (%p128) target = $region28
      $region27: #{_lambda_.3} parent=23 // pred_region
        %s131 = smul.u32 256, %s9
        %p132 = scmp.lt.s32.totalorder %s131, 1023
        %s133 = scalar_select %p132, %s131, 1023
        %s134 = smul.addr %s133, 4
        %s135 = scalar_lea.vmem %s0, %s134
        %s136 = smul.u32 256, %s9
      $region28: #{_lambda_.3} parent=23 // pred_fallthru
        _
    $region24: #{_lambda_.3} parent=5 // pred_fallthru
      _
    %p137 = scmp.le.s32.totalorder 1, %s9
    %p138 = scmp.lt.s32.totalorder %s9, 5
    %p139 = pnand %p137, %p138
    %p140 = pneg %p139
    // Predicated region
    $region29: #{_lambda_.3} parent=5 // pred_check
      _
    $region30: #{_lambda_.3} parent=5 // pred_check_branch
      %142 = sbr.rel (%p139) target = $region32
    $region31: #{_lambda_.3} parent=5 // pred_region
      %s143 = ssub.s32 %s9, 1
      %s144 = smul.u32 256, %s14
      %p145 = scmp.lt.s32.totalorder %s144, 1023
      %s146 = scalar_select %p145, %s144, 1023
      %s147 = smul.addr %s146, 4
      %s148 = scalar_lea.vmem %s0, %s147
      %p149 = pneg %p35
      %p150 = pneg %p32
      %p151 = pneg %p56
      %p152 = pneg %p53
      %p153 = pneg %p77
      %p154 = pneg %p74
      %p155 = pneg %p103
      %p156 = pneg %p100
      %s157 = smul.u32 16, %s14
      %p158 = scmp.lt.s32.totalorder %s157, 63
      %s159 = scalar_select %p158, %s157, 63
      %s160 = smul.addr %s159, 8
      %s161 = scalar_lea.vmem %s3, %s160
      %s162 = smul.u32 256, %s14
      %p163 = scmp.lt.s32.totalorder %s162, 1023
      %s164 = scalar_select %p163, %s162, 1023
      %s165 = smul.addr %s164, 4
      %s166 = scalar_lea.vmem %s0, %s165
      %s167 = smul.u32 256, %s14
      %s168 = smul.u32 16, %s14
      %p169 = scmp.lt.s32.totalorder %s168, 63
      %s170 = scalar_select %p169, %s168, 63
      %s171 = smul.addr %s170, 8
      %s172 = scalar_lea.vmem %s3, %s171
      %s173 = smul.u32 16, %s14
      %v175 = vld [vmem:[%s166] sm:$0xf]
      %v176 = vld [vmem:[%s166 + $0x4] sm:$0xf]
      %v177 = vld [vmem:[%s166 + $0x8] sm:$0xf]
      %v178 = vld [vmem:[%s166 + $0xc] sm:$0xf]
      %v179 = vld [vmem:[%s166 + $0x10] sm:$0xf]
      %v180 = vld [vmem:[%s166 + $0x14] sm:$0xf]
      %v181 = vld [vmem:[%s166 + $0x18] sm:$0xf]
      %v182 = vld [vmem:[%s166 + $0x1c] sm:$0xf]
      %v183 = vld [vmem:[%s166 + $0x20] sm:$0xf]
      %v184 = vld [vmem:[%s166 + $0x24] sm:$0xf]
      %v185 = vld [vmem:[%s166 + $0x28] sm:$0xf]
      %v186 = vld [vmem:[%s166 + $0x2c] sm:$0xf]
      %v187 = vld [vmem:[%s166 + $0x30] sm:$0xf]
      %v188 = vld [vmem:[%s166 + $0x34] sm:$0xf]
      %v189 = vld [vmem:[%s166 + $0x38] sm:$0xf]
      %v190 = vld [vmem:[%s166 + $0x3c] sm:$0xf]
      %v191 = vld [vmem:[%s166 + $0x40] sm:$0xf]
      %v192 = vld [vmem:[%s166 + $0x44] sm:$0xf]
      %v193 = vld [vmem:[%s166 + $0x48] sm:$0xf]
      %v194 = vld [vmem:[%s166 + $0x4c] sm:$0xf]
      %v195 = vld [vmem:[%s166 + $0x50] sm:$0xf]
      %v196 = vld [vmem:[%s166 + $0x54] sm:$0xf]
      %v197 = vld [vmem:[%s166 + $0x58] sm:$0xf]
      %v198 = vld [vmem:[%s166 + $0x5c] sm:$0xf]
      %v199 = vld [vmem:[%s166 + $0x60] sm:$0xf]
      %v200 = vld [vmem:[%s166 + $0x64] sm:$0xf]
      %v201 = vld [vmem:[%s166 + $0x68] sm:$0xf]
      %v202 = vld [vmem:[%s166 + $0x6c] sm:$0xf]
      %v203 = vld [vmem:[%s166 + $0x70] sm:$0xf]
      %v204 = vld [vmem:[%s166 + $0x74] sm:$0xf]
      %v205 = vld [vmem:[%s166 + $0x78] sm:$0xf]
      %v206 = vld [vmem:[%s166 + $0x7c] sm:$0xf]
      %v207 = vld [vmem:[%s166 + $0x80] sm:$0xf]
      %v208 = vld [vmem:[%s166 + $0x84] sm:$0xf]
      %v209 = vld [vmem:[%s166 + $0x88] sm:$0xf]
      %v210 = vld [vmem:[%s166 + $0x8c] sm:$0xf]
      %v211 = vld [vmem:[%s166 + $0x90] sm:$0xf]
      %v212 = vld [vmem:[%s166 + $0x94] sm:$0xf]
      %v213 = vld [vmem:[%s166 + $0x98] sm:$0xf]
      %v214 = vld [vmem:[%s166 + $0x9c] sm:$0xf]
      %v215 = vld [vmem:[%s166 + $0xa0] sm:$0xf]
      %v216 = vld [vmem:[%s166 + $0xa4] sm:$0xf]
      %v217 = vld [vmem:[%s166 + $0xa8] sm:$0xf]
      %v218 = vld [vmem:[%s166 + $0xac] sm:$0xf]
      %v219 = vld [vmem:[%s166 + $0xb0] sm:$0xf]
      %v220 = vld [vmem:[%s166 + $0xb4] sm:$0xf]
      %v221 = vld [vmem:[%s166 + $0xb8] sm:$0xf]
      %v222 = vld [vmem:[%s166 + $0xbc] sm:$0xf]
      %v223 = vld [vmem:[%s166 + $0xc0] sm:$0xf]
      %v224 = vld [vmem:[%s166 + $0xc4] sm:$0xf]
      %v225 = vld [vmem:[%s166 + $0xc8] sm:$0xf]
      %v226 = vld [vmem:[%s166 + $0xcc] sm:$0xf]
      %v227 = vld [vmem:[%s166 + $0xd0] sm:$0xf]
      %v228 = vld [vmem:[%s166 + $0xd4] sm:$0xf]
      %v229 = vld [vmem:[%s166 + $0xd8] sm:$0xf]
      %v230 = vld [vmem:[%s166 + $0xdc] sm:$0xf]
      %v231 = vld [vmem:[%s166 + $0xe0] sm:$0xf]
      %v232 = vld [vmem:[%s166 + $0xe4] sm:$0xf]
      %v233 = vld [vmem:[%s166 + $0xe8] sm:$0xf]
      %v234 = vld [vmem:[%s166 + $0xec] sm:$0xf]
      %v235 = vld [vmem:[%s166 + $0xf0] sm:$0xf]
      %v236 = vld [vmem:[%s166 + $0xf4] sm:$0xf]
      %v237 = vld [vmem:[%s166 + $0xf8] sm:$0xf]
      %v238 = vld [vmem:[%s166 + $0xfc] sm:$0xf]
      %v239 = vld [vmem:[%s166 + $0x100] sm:$0xf]
      %v240 = vld [vmem:[%s166 + $0x104] sm:$0xf]
      %v241 = vld [vmem:[%s166 + $0x108] sm:$0xf]
      %v242 = vld [vmem:[%s166 + $0x10c] sm:$0xf]
      %v243 = vld [vmem:[%s166 + $0x110] sm:$0xf]
      %v244 = vld [vmem:[%s166 + $0x114] sm:$0xf]
      %v245 = vld [vmem:[%s166 + $0x118] sm:$0xf]
      %v246 = vld [vmem:[%s166 + $0x11c] sm:$0xf]
      %v247 = vld [vmem:[%s166 + $0x120] sm:$0xf]
      %v248 = vld [vmem:[%s166 + $0x124] sm:$0xf]
      %v249 = vld [vmem:[%s166 + $0x128] sm:$0xf]
      %v250 = vld [vmem:[%s166 + $0x12c] sm:$0xf]
      %v251 = vld [vmem:[%s166 + $0x130] sm:$0xf]
      %v252 = vld [vmem:[%s166 + $0x134] sm:$0xf]
      %v253 = vld [vmem:[%s166 + $0x138] sm:$0xf]
      %v254 = vld [vmem:[%s166 + $0x13c] sm:$0xf]
      %v255 = vld [vmem:[%s166 + $0x140] sm:$0xf]
      %v256 = vld [vmem:[%s166 + $0x144] sm:$0xf]
      %v257 = vld [vmem:[%s166 + $0x148] sm:$0xf]
      %v258 = vld [vmem:[%s166 + $0x14c] sm:$0xf]
      %v259 = vld [vmem:[%s166 + $0x150] sm:$0xf]
      %v260 = vld [vmem:[%s166 + $0x154] sm:$0xf]
      %v261 = vld [vmem:[%s166 + $0x158] sm:$0xf]
      %v262 = vld [vmem:[%s166 + $0x15c] sm:$0xf]
      %v263 = vld [vmem:[%s166 + $0x160] sm:$0xf]
      %v264 = vld [vmem:[%s166 + $0x164] sm:$0xf]
      %v265 = vld [vmem:[%s166 + $0x168] sm:$0xf]
      %v266 = vld [vmem:[%s166 + $0x16c] sm:$0xf]
      %v267 = vld [vmem:[%s166 + $0x170] sm:$0xf]
      %v268 = vld [vmem:[%s166 + $0x174] sm:$0xf]
      %v269 = vld [vmem:[%s166 + $0x178] sm:$0xf]
      %v270 = vld [vmem:[%s166 + $0x17c] sm:$0xf]
      %v271 = vld [vmem:[%s166 + $0x180] sm:$0xf]
      %v272 = vld [vmem:[%s166 + $0x184] sm:$0xf]
      %v273 = vld [vmem:[%s166 + $0x188] sm:$0xf]
      %v274 = vld [vmem:[%s166 + $0x18c] sm:$0xf]
      %v275 = vld [vmem:[%s166 + $0x190] sm:$0xf]
      %v276 = vld [vmem:[%s166 + $0x194] sm:$0xf]
      %v277 = vld [vmem:[%s166 + $0x198] sm:$0xf]
      %v278 = vld [vmem:[%s166 + $0x19c] sm:$0xf]
      %v279 = vld [vmem:[%s166 + $0x1a0] sm:$0xf]
      %v280 = vld [vmem:[%s166 + $0x1a4] sm:$0xf]
      %v281 = vld [vmem:[%s166 + $0x1a8] sm:$0xf]
      %v282 = vld [vmem:[%s166 + $0x1ac] sm:$0xf]
      %v283 = vld [vmem:[%s166 + $0x1b0] sm:$0xf]
      %v284 = vld [vmem:[%s166 + $0x1b4] sm:$0xf]
      %v285 = vld [vmem:[%s166 + $0x1b8] sm:$0xf]
      %v286 = vld [vmem:[%s166 + $0x1bc] sm:$0xf]
      %v287 = vld [vmem:[%s166 + $0x1c0] sm:$0xf]
      %v288 = vld [vmem:[%s166 + $0x1c4] sm:$0xf]
      %v289 = vld [vmem:[%s166 + $0x1c8] sm:$0xf]
      %v290 = vld [vmem:[%s166 + $0x1cc] sm:$0xf]
      %v291 = vld [vmem:[%s166 + $0x1d0] sm:$0xf]
      %v292 = vld [vmem:[%s166 + $0x1d4] sm:$0xf]
      %v293 = vld [vmem:[%s166 + $0x1d8] sm:$0xf]
      %v294 = vld [vmem:[%s166 + $0x1dc] sm:$0xf]
      %v295 = vld [vmem:[%s166 + $0x1e0] sm:$0xf]
      %v296 = vld [vmem:[%s166 + $0x1e4] sm:$0xf]
      %v297 = vld [vmem:[%s166 + $0x1e8] sm:$0xf]
      %v298 = vld [vmem:[%s166 + $0x1ec] sm:$0xf]
      %v299 = vld [vmem:[%s166 + $0x1f0] sm:$0xf]
      %v300 = vld [vmem:[%s166 + $0x1f4] sm:$0xf]
      %v301 = vld [vmem:[%s166 + $0x1f8] sm:$0xf]
      %v302 = vld [vmem:[%s166 + $0x1fc] sm:$0xf]
      %v303 = vld [vmem:[%s166 + $0x200] sm:$0xf]
      %v304 = vld [vmem:[%s166 + $0x204] sm:$0xf]
      %v305 = vld [vmem:[%s166 + $0x208] sm:$0xf]
      %v306 = vld [vmem:[%s166 + $0x20c] sm:$0xf]
      %v307 = vld [vmem:[%s166 + $0x210] sm:$0xf]
      %v308 = vld [vmem:[%s166 + $0x214] sm:$0xf]
      %v309 = vld [vmem:[%s166 + $0x218] sm:$0xf]
      %v310 = vld [vmem:[%s166 + $0x21c] sm:$0xf]
      %v311 = vld [vmem:[%s166 + $0x220] sm:$0xf]
      %v312 = vld [vmem:[%s166 + $0x224] sm:$0xf]
      %v313 = vld [vmem:[%s166 + $0x228] sm:$0xf]
      %v314 = vld [vmem:[%s166 + $0x22c] sm:$0xf]
      %v315 = vld [vmem:[%s166 + $0x230] sm:$0xf]
      %v316 = vld [vmem:[%s166 + $0x234] sm:$0xf]
      %v317 = vld [vmem:[%s166 + $0x238] sm:$0xf]
      %v318 = vld [vmem:[%s166 + $0x23c] sm:$0xf]
      %v319 = vld [vmem:[%s166 + $0x240] sm:$0xf]
      %v320 = vld [vmem:[%s166 + $0x244] sm:$0xf]
      %v321 = vld [vmem:[%s166 + $0x248] sm:$0xf]
      %v322 = vld [vmem:[%s166 + $0x24c] sm:$0xf]
      %v323 = vld [vmem:[%s166 + $0x250] sm:$0xf]
      %v324 = vld [vmem:[%s166 + $0x254] sm:$0xf]
      %v325 = vld [vmem:[%s166 + $0x258] sm:$0xf]
      %v326 = vld [vmem:[%s166 + $0x25c] sm:$0xf]
      %v327 = vld [vmem:[%s166 + $0x260] sm:$0xf]
      %v328 = vld [vmem:[%s166 + $0x264] sm:$0xf]
      %v329 = vld [vmem:[%s166 + $0x268] sm:$0xf]
      %v330 = vld [vmem:[%s166 + $0x26c] sm:$0xf]
      %v331 = vld [vmem:[%s166 + $0x270] sm:$0xf]
      %v332 = vld [vmem:[%s166 + $0x274] sm:$0xf]
      %v333 = vld [vmem:[%s166 + $0x278] sm:$0xf]
      %v334 = vld [vmem:[%s166 + $0x27c] sm:$0xf]
      %v335 = vld [vmem:[%s166 + $0x280] sm:$0xf]
      %v336 = vld [vmem:[%s166 + $0x284] sm:$0xf]
      %v337 = vld [vmem:[%s166 + $0x288] sm:$0xf]
      %v338 = vld [vmem:[%s166 + $0x28c] sm:$0xf]
      %v339 = vld [vmem:[%s166 + $0x290] sm:$0xf]
      %v340 = vld [vmem:[%s166 + $0x294] sm:$0xf]
      %v341 = vld [vmem:[%s166 + $0x298] sm:$0xf]
      %v342 = vld [vmem:[%s166 + $0x29c] sm:$0xf]
      %v343 = vld [vmem:[%s166 + $0x2a0] sm:$0xf]
      %v344 = vld [vmem:[%s166 + $0x2a4] sm:$0xf]
      %v345 = vld [vmem:[%s166 + $0x2a8] sm:$0xf]
      %v346 = vld [vmem:[%s166 + $0x2ac] sm:$0xf]
      %v347 = vld [vmem:[%s166 + $0x2b0] sm:$0xf]
      %v348 = vld [vmem:[%s166 + $0x2b4] sm:$0xf]
      %v349 = vld [vmem:[%s166 + $0x2b8] sm:$0xf]
      %v350 = vld [vmem:[%s166 + $0x2bc] sm:$0xf]
      %v351 = vld [vmem:[%s166 + $0x2c0] sm:$0xf]
      %v352 = vld [vmem:[%s166 + $0x2c4] sm:$0xf]
      %v353 = vld [vmem:[%s166 + $0x2c8] sm:$0xf]
      %v354 = vld [vmem:[%s166 + $0x2cc] sm:$0xf]
      %v355 = vld [vmem:[%s166 + $0x2d0] sm:$0xf]
      %v356 = vld [vmem:[%s166 + $0x2d4] sm:$0xf]
      %v357 = vld [vmem:[%s166 + $0x2d8] sm:$0xf]
      %v358 = vld [vmem:[%s166 + $0x2dc] sm:$0xf]
      %v359 = vld [vmem:[%s166 + $0x2e0] sm:$0xf]
      %v360 = vld [vmem:[%s166 + $0x2e4] sm:$0xf]
      %v361 = vld [vmem:[%s166 + $0x2e8] sm:$0xf]
      %v362 = vld [vmem:[%s166 + $0x2ec] sm:$0xf]
      %v363 = vld [vmem:[%s166 + $0x2f0] sm:$0xf]
      %v364 = vld [vmem:[%s166 + $0x2f4] sm:$0xf]
      %v365 = vld [vmem:[%s166 + $0x2f8] sm:$0xf]
      %v366 = vld [vmem:[%s166 + $0x2fc] sm:$0xf]
      %v367 = vld [vmem:[%s166 + $0x300] sm:$0xf]
      %v368 = vld [vmem:[%s166 + $0x304] sm:$0xf]
      %v369 = vld [vmem:[%s166 + $0x308] sm:$0xf]
      %v370 = vld [vmem:[%s166 + $0x30c] sm:$0xf]
      %v371 = vld [vmem:[%s166 + $0x310] sm:$0xf]
      %v372 = vld [vmem:[%s166 + $0x314] sm:$0xf]
      %v373 = vld [vmem:[%s166 + $0x318] sm:$0xf]
      %v374 = vld [vmem:[%s166 + $0x31c] sm:$0xf]
      %v375 = vld [vmem:[%s166 + $0x320] sm:$0xf]
      %v376 = vld [vmem:[%s166 + $0x324] sm:$0xf]
      %v377 = vld [vmem:[%s166 + $0x328] sm:$0xf]
      %v378 = vld [vmem:[%s166 + $0x32c] sm:$0xf]
      %v379 = vld [vmem:[%s166 + $0x330] sm:$0xf]
      %v380 = vld [vmem:[%s166 + $0x334] sm:$0xf]
      %v381 = vld [vmem:[%s166 + $0x338] sm:$0xf]
      %v382 = vld [vmem:[%s166 + $0x33c] sm:$0xf]
      %v383 = vld [vmem:[%s166 + $0x340] sm:$0xf]
      %v384 = vld [vmem:[%s166 + $0x344] sm:$0xf]
      %v385 = vld [vmem:[%s166 + $0x348] sm:$0xf]
      %v386 = vld [vmem:[%s166 + $0x34c] sm:$0xf]
      %v387 = vld [vmem:[%s166 + $0x350] sm:$0xf]
      %v388 = vld [vmem:[%s166 + $0x354] sm:$0xf]
      %v389 = vld [vmem:[%s166 + $0x358] sm:$0xf]
      %v390 = vld [vmem:[%s166 + $0x35c] sm:$0xf]
      %v391 = vld [vmem:[%s166 + $0x360] sm:$0xf]
      %v392 = vld [vmem:[%s166 + $0x364] sm:$0xf]
      %v393 = vld [vmem:[%s166 + $0x368] sm:$0xf]
      %v394 = vld [vmem:[%s166 + $0x36c] sm:$0xf]
      %v395 = vld [vmem:[%s166 + $0x370] sm:$0xf]
      %v396 = vld [vmem:[%s166 + $0x374] sm:$0xf]
      %v397 = vld [vmem:[%s166 + $0x378] sm:$0xf]
      %v398 = vld [vmem:[%s166 + $0x37c] sm:$0xf]
      %v399 = vld [vmem:[%s166 + $0x380] sm:$0xf]
      %v400 = vld [vmem:[%s166 + $0x384] sm:$0xf]
      %v401 = vld [vmem:[%s166 + $0x388] sm:$0xf]
      %v402 = vld [vmem:[%s166 + $0x38c] sm:$0xf]
      %v403 = vld [vmem:[%s166 + $0x390] sm:$0xf]
      %v404 = vld [vmem:[%s166 + $0x394] sm:$0xf]
      %v405 = vld [vmem:[%s166 + $0x398] sm:$0xf]
      %v406 = vld [vmem:[%s166 + $0x39c] sm:$0xf]
      %v407 = vld [vmem:[%s166 + $0x3a0] sm:$0xf]
      %v408 = vld [vmem:[%s166 + $0x3a4] sm:$0xf]
      %v409 = vld [vmem:[%s166 + $0x3a8] sm:$0xf]
      %v410 = vld [vmem:[%s166 + $0x3ac] sm:$0xf]
      %v411 = vld [vmem:[%s166 + $0x3b0] sm:$0xf]
      %v412 = vld [vmem:[%s166 + $0x3b4] sm:$0xf]
      %v413 = vld [vmem:[%s166 + $0x3b8] sm:$0xf]
      %v414 = vld [vmem:[%s166 + $0x3bc] sm:$0xf]
      %v415 = vld [vmem:[%s166 + $0x3c0] sm:$0xf]
      %v416 = vld [vmem:[%s166 + $0x3c4] sm:$0xf]
      %v417 = vld [vmem:[%s166 + $0x3c8] sm:$0xf]
      %v418 = vld [vmem:[%s166 + $0x3cc] sm:$0xf]
      %v419 = vld [vmem:[%s166 + $0x3d0] sm:$0xf]
      %v420 = vld [vmem:[%s166 + $0x3d4] sm:$0xf]
      %v421 = vld [vmem:[%s166 + $0x3d8] sm:$0xf]
      %v422 = vld [vmem:[%s166 + $0x3dc] sm:$0xf]
      %v423 = vld [vmem:[%s166 + $0x3e0] sm:$0xf]
      %v424 = vld [vmem:[%s166 + $0x3e4] sm:$0xf]
      %v425 = vld [vmem:[%s166 + $0x3e8] sm:$0xf]
      %v426 = vld [vmem:[%s166 + $0x3ec] sm:$0xf]
      %v427 = vld [vmem:[%s166 + $0x3f0] sm:$0xf]
      %v428 = vld [vmem:[%s166 + $0x3f4] sm:$0xf]
      %v429 = vld [vmem:[%s166 + $0x3f8] sm:$0xf]
      %v430 = vld [vmem:[%s166 + $0x3fc] sm:$0xf]
      %v431 = vld [vmem:[%s1] sm:$0xf]
      %v432 = vld [vmem:[%s1 + $0x4] sm:$0xf]
      %v433 = vld [vmem:[%s1 + $0x8] sm:$0xf]
      %v434 = vld [vmem:[%s1 + $0xc] sm:$0xf]
      %v435 = vld [vmem:[%s1 + $0x10] sm:$0xf]
      %v436 = vld [vmem:[%s1 + $0x14] sm:$0xf]
      %v437 = vld [vmem:[%s1 + $0x18] sm:$0xf]
      %v438 = vld [vmem:[%s1 + $0x1c] sm:$0xf]
      %v439 = vld [vmem:[%s1 + $0x20] sm:$0xf]
      %v440 = vld [vmem:[%s1 + $0x24] sm:$0xf]
      %v441 = vld [vmem:[%s1 + $0x28] sm:$0xf]
      %v442 = vld [vmem:[%s1 + $0x2c] sm:$0xf]
      %v443 = vld [vmem:[%s1 + $0x30] sm:$0xf]
      %v444 = vld [vmem:[%s1 + $0x34] sm:$0xf]
      %v445 = vld [vmem:[%s1 + $0x38] sm:$0xf]
      %v446 = vld [vmem:[%s1 + $0x3c] sm:$0xf]
      %v447 = vld [vmem:[%s2] sm:$0x1]
      %v449 = vlaneseq
      %v450 = vshrl.u32 %v449, 7
      %v451 = vsub.s32 0, %v450
      %v452 = vrot.slane %v447, %v451
      %v710 = vunpack.c.l.b16 %v175
      %v711 = vunpack.c.l.b16 %v176
      %v712 = vunpack.c.l.b16 %v177
      %v713 = vunpack.c.l.b16 %v178
      %v714 = vunpack.c.l.b16 %v179
      %v715 = vunpack.c.l.b16 %v180
      %v716 = vunpack.c.l.b16 %v181
      %v717 = vunpack.c.l.b16 %v182
      %v718 = vunpack.c.l.b16 %v183
      %v719 = vunpack.c.l.b16 %v184
      %v720 = vunpack.c.l.b16 %v185
      %v721 = vunpack.c.l.b16 %v186
      %v722 = vunpack.c.l.b16 %v187
      %v723 = vunpack.c.l.b16 %v188
      %v724 = vunpack.c.l.b16 %v189
      %v725 = vunpack.c.l.b16 %v190
      %v726 = vunpack.c.l.b16 %v191
      %v727 = vunpack.c.l.b16 %v192
      %v728 = vunpack.c.l.b16 %v193
      %v729 = vunpack.c.l.b16 %v194
      %v730 = vunpack.c.l.b16 %v195
      %v731 = vunpack.c.l.b16 %v196
      %v732 = vunpack.c.l.b16 %v197
      %v733 = vunpack.c.l.b16 %v198
      %v734 = vunpack.c.l.b16 %v199
      %v735 = vunpack.c.l.b16 %v200
      %v736 = vunpack.c.l.b16 %v201
      %v737 = vunpack.c.l.b16 %v202
      %v738 = vunpack.c.l.b16 %v203
      %v739 = vunpack.c.l.b16 %v204
      %v740 = vunpack.c.l.b16 %v205
      %v741 = vunpack.c.l.b16 %v206
      %v742 = vunpack.c.l.b16 %v207
      %v743 = vunpack.c.l.b16 %v208
      %v744 = vunpack.c.l.b16 %v209
      %v745 = vunpack.c.l.b16 %v210
      %v746 = vunpack.c.l.b16 %v211
      %v747 = vunpack.c.l.b16 %v212
      %v748 = vunpack.c.l.b16 %v213
      %v749 = vunpack.c.l.b16 %v214
      %v750 = vunpack.c.l.b16 %v215
      %v751 = vunpack.c.l.b16 %v216
      %v752 = vunpack.c.l.b16 %v217
      %v753 = vunpack.c.l.b16 %v218
      %v754 = vunpack.c.l.b16 %v219
      %v755 = vunpack.c.l.b16 %v220
      %v756 = vunpack.c.l.b16 %v221
      %v757 = vunpack.c.l.b16 %v222
      %v758 = vunpack.c.l.b16 %v223
      %v759 = vunpack.c.l.b16 %v224
      %v760 = vunpack.c.l.b16 %v225
      %v761 = vunpack.c.l.b16 %v226
      %v762 = vunpack.c.l.b16 %v227
      %v763 = vunpack.c.l.b16 %v228
      %v764 = vunpack.c.l.b16 %v229
      %v765 = vunpack.c.l.b16 %v230
      %v766 = vunpack.c.l.b16 %v231
      %v767 = vunpack.c.l.b16 %v232
      %v768 = vunpack.c.l.b16 %v233
      %v769 = vunpack.c.l.b16 %v234
      %v770 = vunpack.c.l.b16 %v235
      %v771 = vunpack.c.l.b16 %v236
      %v772 = vunpack.c.l.b16 %v237
      %v773 = vunpack.c.l.b16 %v238
      %v774 = vunpack.c.l.b16 %v239
      %v775 = vunpack.c.l.b16 %v240
      %v776 = vunpack.c.l.b16 %v241
      %v777 = vunpack.c.l.b16 %v242
      %v778 = vunpack.c.l.b16 %v243
      %v779 = vunpack.c.l.b16 %v244
      %v780 = vunpack.c.l.b16 %v245
      %v781 = vunpack.c.l.b16 %v246
      %v782 = vunpack.c.l.b16 %v247
      %v783 = vunpack.c.l.b16 %v248
      %v784 = vunpack.c.l.b16 %v249
      %v785 = vunpack.c.l.b16 %v250
      %v786 = vunpack.c.l.b16 %v251
      %v787 = vunpack.c.l.b16 %v252
      %v788 = vunpack.c.l.b16 %v253
      %v789 = vunpack.c.l.b16 %v254
      %v790 = vunpack.c.l.b16 %v255
      %v791 = vunpack.c.l.b16 %v256
      %v792 = vunpack.c.l.b16 %v257
      %v793 = vunpack.c.l.b16 %v258
      %v794 = vunpack.c.l.b16 %v259
      %v795 = vunpack.c.l.b16 %v260
      %v796 = vunpack.c.l.b16 %v261
      %v797 = vunpack.c.l.b16 %v262
      %v798 = vunpack.c.l.b16 %v263
      %v799 = vunpack.c.l.b16 %v264
      %v800 = vunpack.c.l.b16 %v265
      %v801 = vunpack.c.l.b16 %v266
      %v802 = vunpack.c.l.b16 %v267
      %v803 = vunpack.c.l.b16 %v268
      %v804 = vunpack.c.l.b16 %v269
      %v805 = vunpack.c.l.b16 %v270
      %v806 = vunpack.c.l.b16 %v271
      %v807 = vunpack.c.l.b16 %v272
      %v808 = vunpack.c.l.b16 %v273
      %v809 = vunpack.c.l.b16 %v274
      %v810 = vunpack.c.l.b16 %v275
      %v811 = vunpack.c.l.b16 %v276
      %v812 = vunpack.c.l.b16 %v277
      %v813 = vunpack.c.l.b16 %v278
      %v814 = vunpack.c.l.b16 %v279
      %v815 = vunpack.c.l.b16 %v280
      %v816 = vunpack.c.l.b16 %v281
      %v817 = vunpack.c.l.b16 %v282
      %v818 = vunpack.c.l.b16 %v283
      %v819 = vunpack.c.l.b16 %v284
      %v820 = vunpack.c.l.b16 %v285
      %v821 = vunpack.c.l.b16 %v286
      %v822 = vunpack.c.l.b16 %v287
      %v823 = vunpack.c.l.b16 %v288
      %v824 = vunpack.c.l.b16 %v289
      %v825 = vunpack.c.l.b16 %v290
      %v826 = vunpack.c.l.b16 %v291
      %v827 = vunpack.c.l.b16 %v292
      %v828 = vunpack.c.l.b16 %v293
      %v829 = vunpack.c.l.b16 %v294
      %v830 = vunpack.c.l.b16 %v295
      %v831 = vunpack.c.l.b16 %v296
      %v832 = vunpack.c.l.b16 %v297
      %v833 = vunpack.c.l.b16 %v298
      %v834 = vunpack.c.l.b16 %v299
      %v835 = vunpack.c.l.b16 %v300
      %v836 = vunpack.c.l.b16 %v301
      %v837 = vunpack.c.l.b16 %v302
      %v838 = vunpack.c.l.b16 %v303
      %v839 = vunpack.c.l.b16 %v304
      %v840 = vunpack.c.l.b16 %v305
      %v841 = vunpack.c.l.b16 %v306
      %v842 = vunpack.c.l.b16 %v307
      %v843 = vunpack.c.l.b16 %v308
      %v844 = vunpack.c.l.b16 %v309
      %v845 = vunpack.c.l.b16 %v310
      %v846 = vunpack.c.l.b16 %v311
      %v847 = vunpack.c.l.b16 %v312
      %v848 = vunpack.c.l.b16 %v313
      %v849 = vunpack.c.l.b16 %v314
      %v850 = vunpack.c.l.b16 %v315
      %v851 = vunpack.c.l.b16 %v316
      %v852 = vunpack.c.l.b16 %v317
      %v853 = vunpack.c.l.b16 %v318
      %v854 = vunpack.c.l.b16 %v319
      %v855 = vunpack.c.l.b16 %v320
      %v856 = vunpack.c.l.b16 %v321
      %v857 = vunpack.c.l.b16 %v322
      %v858 = vunpack.c.l.b16 %v323
      %v859 = vunpack.c.l.b16 %v324
      %v860 = vunpack.c.l.b16 %v325
      %v861 = vunpack.c.l.b16 %v326
      %v862 = vunpack.c.l.b16 %v327
      %v863 = vunpack.c.l.b16 %v328
      %v864 = vunpack.c.l.b16 %v329
      %v865 = vunpack.c.l.b16 %v330
      %v866 = vunpack.c.l.b16 %v331
      %v867 = vunpack.c.l.b16 %v332
      %v868 = vunpack.c.l.b16 %v333
      %v869 = vunpack.c.l.b16 %v334
      %v870 = vunpack.c.l.b16 %v335
      %v871 = vunpack.c.l.b16 %v336
      %v872 = vunpack.c.l.b16 %v337
      %v873 = vunpack.c.l.b16 %v338
      %v874 = vunpack.c.l.b16 %v339
      %v875 = vunpack.c.l.b16 %v340
      %v876 = vunpack.c.l.b16 %v341
      %v877 = vunpack.c.l.b16 %v342
      %v878 = vunpack.c.l.b16 %v343
      %v879 = vunpack.c.l.b16 %v344
      %v880 = vunpack.c.l.b16 %v345
      %v881 = vunpack.c.l.b16 %v346
      %v882 = vunpack.c.l.b16 %v347
      %v883 = vunpack.c.l.b16 %v348
      %v884 = vunpack.c.l.b16 %v349
      %v885 = vunpack.c.l.b16 %v350
      %v886 = vunpack.c.l.b16 %v351
      %v887 = vunpack.c.l.b16 %v352
      %v888 = vunpack.c.l.b16 %v353
      %v889 = vunpack.c.l.b16 %v354
      %v890 = vunpack.c.l.b16 %v355
      %v891 = vunpack.c.l.b16 %v356
      %v892 = vunpack.c.l.b16 %v357
      %v893 = vunpack.c.l.b16 %v358
      %v894 = vunpack.c.l.b16 %v359
      %v895 = vunpack.c.l.b16 %v360
      %v896 = vunpack.c.l.b16 %v361
      %v897 = vunpack.c.l.b16 %v362
      %v898 = vunpack.c.l.b16 %v363
      %v899 = vunpack.c.l.b16 %v364
      %v900 = vunpack.c.l.b16 %v365
      %v901 = vunpack.c.l.b16 %v366
      %v902 = vunpack.c.l.b16 %v367
      %v903 = vunpack.c.l.b16 %v368
      %v904 = vunpack.c.l.b16 %v369
      %v905 = vunpack.c.l.b16 %v370
      %v906 = vunpack.c.l.b16 %v371
      %v907 = vunpack.c.l.b16 %v372
      %v908 = vunpack.c.l.b16 %v373
      %v909 = vunpack.c.l.b16 %v374
      %v910 = vunpack.c.l.b16 %v375
      %v911 = vunpack.c.l.b16 %v376
      %v912 = vunpack.c.l.b16 %v377
      %v913 = vunpack.c.l.b16 %v378
      %v914 = vunpack.c.l.b16 %v379
      %v915 = vunpack.c.l.b16 %v380
      %v916 = vunpack.c.l.b16 %v381
      %v917 = vunpack.c.l.b16 %v382
      %v918 = vunpack.c.l.b16 %v383
      %v919 = vunpack.c.l.b16 %v384
      %v920 = vunpack.c.l.b16 %v385
      %v921 = vunpack.c.l.b16 %v386
      %v922 = vunpack.c.l.b16 %v387
      %v923 = vunpack.c.l.b16 %v388
      %v924 = vunpack.c.l.b16 %v389
      %v925 = vunpack.c.l.b16 %v390
      %v926 = vunpack.c.l.b16 %v391
      %v927 = vunpack.c.l.b16 %v392
      %v928 = vunpack.c.l.b16 %v393
      %v929 = vunpack.c.l.b16 %v394
      %v930 = vunpack.c.l.b16 %v395
      %v931 = vunpack.c.l.b16 %v396
      %v932 = vunpack.c.l.b16 %v397
      %v933 = vunpack.c.l.b16 %v398
      %v934 = vunpack.c.l.b16 %v399
      %v935 = vunpack.c.l.b16 %v400
      %v936 = vunpack.c.l.b16 %v401
      %v937 = vunpack.c.l.b16 %v402
      %v938 = vunpack.c.l.b16 %v403
      %v939 = vunpack.c.l.b16 %v404
      %v940 = vunpack.c.l.b16 %v405
      %v941 = vunpack.c.l.b16 %v406
      %v942 = vunpack.c.l.b16 %v407
      %v943 = vunpack.c.l.b16 %v408
      %v944 = vunpack.c.l.b16 %v409
      %v945 = vunpack.c.l.b16 %v410
      %v946 = vunpack.c.l.b16 %v411
      %v947 = vunpack.c.l.b16 %v412
      %v948 = vunpack.c.l.b16 %v413
      %v949 = vunpack.c.l.b16 %v414
      %v950 = vunpack.c.l.b16 %v415
      %v951 = vunpack.c.l.b16 %v416
      %v952 = vunpack.c.l.b16 %v417
      %v953 = vunpack.c.l.b16 %v418
      %v954 = vunpack.c.l.b16 %v419
      %v955 = vunpack.c.l.b16 %v420
      %v956 = vunpack.c.l.b16 %v421
      %v957 = vunpack.c.l.b16 %v422
      %v958 = vunpack.c.l.b16 %v423
      %v959 = vunpack.c.l.b16 %v424
      %v960 = vunpack.c.l.b16 %v425
      %v961 = vunpack.c.l.b16 %v426
      %v962 = vunpack.c.l.b16 %v427
      %v963 = vunpack.c.l.b16 %v428
      %v964 = vunpack.c.l.b16 %v429
      %v965 = vunpack.c.l.b16 %v430
      %v966 = vpack.c.b16 %v711, %v710
      %v967 = vpack.c.b16 %v713, %v712
      %v968 = vpack.c.b16 %v715, %v714
      %v969 = vpack.c.b16 %v717, %v716
      %v970 = vpack.c.b16 %v719, %v718
      %v971 = vpack.c.b16 %v721, %v720
      %v972 = vpack.c.b16 %v723, %v722
      %v973 = vpack.c.b16 %v725, %v724
      %v974 = vpack.c.b16 %v727, %v726
      %v975 = vpack.c.b16 %v729, %v728
      %v976 = vpack.c.b16 %v731, %v730
      %v977 = vpack.c.b16 %v733, %v732
      %v978 = vpack.c.b16 %v735, %v734
      %v979 = vpack.c.b16 %v737, %v736
      %v980 = vpack.c.b16 %v739, %v738
      %v981 = vpack.c.b16 %v741, %v740
      %v982 = vpack.c.b16 %v743, %v742
      %v983 = vpack.c.b16 %v745, %v744
      %v984 = vpack.c.b16 %v747, %v746
      %v985 = vpack.c.b16 %v749, %v748
      %v986 = vpack.c.b16 %v751, %v750
      %v987 = vpack.c.b16 %v753, %v752
      %v988 = vpack.c.b16 %v755, %v754
      %v989 = vpack.c.b16 %v757, %v756
      %v990 = vpack.c.b16 %v759, %v758
      %v991 = vpack.c.b16 %v761, %v760
      %v992 = vpack.c.b16 %v763, %v762
      %v993 = vpack.c.b16 %v765, %v764
      %v994 = vpack.c.b16 %v767, %v766
      %v995 = vpack.c.b16 %v769, %v768
      %v996 = vpack.c.b16 %v771, %v770
      %v997 = vpack.c.b16 %v773, %v772
      %v998 = vpack.c.b16 %v775, %v774
      %v999 = vpack.c.b16 %v777, %v776
      %v1000 = vpack.c.b16 %v779, %v778
      %v1001 = vpack.c.b16 %v781, %v780
      %v1002 = vpack.c.b16 %v783, %v782
      %v1003 = vpack.c.b16 %v785, %v784
      %v1004 = vpack.c.b16 %v787, %v786
      %v1005 = vpack.c.b16 %v789, %v788
      %v1006 = vpack.c.b16 %v791, %v790
      %v1007 = vpack.c.b16 %v793, %v792
      %v1008 = vpack.c.b16 %v795, %v794
      %v1009 = vpack.c.b16 %v797, %v796
      %v1010 = vpack.c.b16 %v799, %v798
      %v1011 = vpack.c.b16 %v801, %v800
      %v1012 = vpack.c.b16 %v803, %v802
      %v1013 = vpack.c.b16 %v805, %v804
      %v1014 = vpack.c.b16 %v807, %v806
      %v1015 = vpack.c.b16 %v809, %v808
      %v1016 = vpack.c.b16 %v811, %v810
      %v1017 = vpack.c.b16 %v813, %v812
      %v1018 = vpack.c.b16 %v815, %v814
      %v1019 = vpack.c.b16 %v817, %v816
      %v1020 = vpack.c.b16 %v819, %v818
      %v1021 = vpack.c.b16 %v821, %v820
      %v1022 = vpack.c.b16 %v823, %v822
      %v1023 = vpack.c.b16 %v825, %v824
      %v1024 = vpack.c.b16 %v827, %v826
      %v1025 = vpack.c.b16 %v829, %v828
      %v1026 = vpack.c.b16 %v831, %v830
      %v1027 = vpack.c.b16 %v833, %v832
      %v1028 = vpack.c.b16 %v835, %v834
      %v1029 = vpack.c.b16 %v837, %v836
      %v1030 = vpack.c.b16 %v839, %v838
      %v1031 = vpack.c.b16 %v841, %v840
      %v1032 = vpack.c.b16 %v843, %v842
      %v1033 = vpack.c.b16 %v845, %v844
      %v1034 = vpack.c.b16 %v847, %v846
      %v1035 = vpack.c.b16 %v849, %v848
      %v1036 = vpack.c.b16 %v851, %v850
      %v1037 = vpack.c.b16 %v853, %v852
      %v1038 = vpack.c.b16 %v855, %v854
      %v1039 = vpack.c.b16 %v857, %v856
      %v1040 = vpack.c.b16 %v859, %v858
      %v1041 = vpack.c.b16 %v861, %v860
      %v1042 = vpack.c.b16 %v863, %v862
      %v1043 = vpack.c.b16 %v865, %v864
      %v1044 = vpack.c.b16 %v867, %v866
      %v1045 = vpack.c.b16 %v869, %v868
      %v1046 = vpack.c.b16 %v871, %v870
      %v1047 = vpack.c.b16 %v873, %v872
      %v1048 = vpack.c.b16 %v875, %v874
      %v1049 = vpack.c.b16 %v877, %v876
      %v1050 = vpack.c.b16 %v879, %v878
      %v1051 = vpack.c.b16 %v881, %v880
      %v1052 = vpack.c.b16 %v883, %v882
      %v1053 = vpack.c.b16 %v885, %v884
      %v1054 = vpack.c.b16 %v887, %v886
      %v1055 = vpack.c.b16 %v889, %v888
      %v1056 = vpack.c.b16 %v891, %v890
      %v1057 = vpack.c.b16 %v893, %v892
      %v1058 = vpack.c.b16 %v895, %v894
      %v1059 = vpack.c.b16 %v897, %v896
      %v1060 = vpack.c.b16 %v899, %v898
      %v1061 = vpack.c.b16 %v901, %v900
      %v1062 = vpack.c.b16 %v903, %v902
      %v1063 = vpack.c.b16 %v905, %v904
      %v1064 = vpack.c.b16 %v907, %v906
      %v1065 = vpack.c.b16 %v909, %v908
      %v1066 = vpack.c.b16 %v911, %v910
      %v1067 = vpack.c.b16 %v913, %v912
      %v1068 = vpack.c.b16 %v915, %v914
      %v1069 = vpack.c.b16 %v917, %v916
      %v1070 = vpack.c.b16 %v919, %v918
      %v1071 = vpack.c.b16 %v921, %v920
      %v1072 = vpack.c.b16 %v923, %v922
      %v1073 = vpack.c.b16 %v925, %v924
      %v1074 = vpack.c.b16 %v927, %v926
      %v1075 = vpack.c.b16 %v929, %v928
      %v1076 = vpack.c.b16 %v931, %v930
      %v1077 = vpack.c.b16 %v933, %v932
      %v1078 = vpack.c.b16 %v935, %v934
      %v1079 = vpack.c.b16 %v937, %v936
      %v1080 = vpack.c.b16 %v939, %v938
      %v1081 = vpack.c.b16 %v941, %v940
      %v1082 = vpack.c.b16 %v943, %v942
      %v1083 = vpack.c.b16 %v945, %v944
      %v1084 = vpack.c.b16 %v947, %v946
      %v1085 = vpack.c.b16 %v949, %v948
      %v1086 = vpack.c.b16 %v951, %v950
      %v1087 = vpack.c.b16 %v953, %v952
      %v1088 = vpack.c.b16 %v955, %v954
      %v1089 = vpack.c.b16 %v957, %v956
      %v1090 = vpack.c.b16 %v959, %v958
      %v1091 = vpack.c.b16 %v961, %v960
      %v1092 = vpack.c.b16 %v963, %v962
      %v1093 = vpack.c.b16 %v965, %v964
      %v1238 = vunpack.c.l.b16 %v431
      %v1239 = vunpack.c.l.b16 %v432
      %v1240 = vunpack.c.l.b16 %v433
      %v1241 = vunpack.c.l.b16 %v434
      %v1242 = vunpack.c.l.b16 %v435
      %v1243 = vunpack.c.l.b16 %v436
      %v1244 = vunpack.c.l.b16 %v437
      %v1245 = vunpack.c.l.b16 %v438
      %v1246 = vunpack.c.l.b16 %v439
      %v1247 = vunpack.c.l.b16 %v440
      %v1248 = vunpack.c.l.b16 %v441
      %v1249 = vunpack.c.l.b16 %v442
      %v1250 = vunpack.c.l.b16 %v443
      %v1251 = vunpack.c.l.b16 %v444
      %v1252 = vunpack.c.l.b16 %v445
      %v1253 = vunpack.c.l.b16 %v446
      %v1254 = vpack.c.b16 %v1239, %v1238
      %v1255 = vpack.c.b16 %v1241, %v1240
      %v1256 = vpack.c.b16 %v1243, %v1242
      %v1257 = vpack.c.b16 %v1245, %v1244
      %v1258 = vpack.c.b16 %v1247, %v1246
      %v1259 = vpack.c.b16 %v1249, %v1248
      %v1260 = vpack.c.b16 %v1251, %v1250
      %v1261 = vpack.c.b16 %v1253, %v1252
      %1270 = vmatprep.subr.bf16.mxu0 0
      %1271 = vmatpush1.bf16.msra.mxu0 %v1254
      %1272 = vmatprep.subr.bf16.mxu0 0
      %1273 = vmatpush1.bf16.msra.mxu0 %v1255
      %1274 = vmatprep.subr.bf16.mxu0 0
      %1275 = vmatpush1.bf16.msra.mxu0 %v1256
      %1276 = vmatprep.subr.bf16.mxu0 0
      %1277 = vmatpush1.bf16.msra.mxu0 %v1257
      %1278 = vmatprep.subr.bf16.mxu0 0
      %1279 = vmatpush1.bf16.msra.mxu0 %v1258
      %1280 = vmatprep.subr.bf16.mxu0 0
      %1281 = vmatpush1.bf16.msra.mxu0 %v1259
      %1282 = vmatprep.subr.bf16.mxu0 0
      %1283 = vmatpush1.bf16.msra.mxu0 %v1260
      %1284 = vmatprep.subr.bf16.mxu0 0
      %1285 = vmatpush1.bf16.msra.mxu0 %v1261
      %1286 = vmatprep.subr.bf16.mxu0 0
      %1287 = vmatpush1.bf16.msra.mxu0 0
      %1288 = vmatprep.subr.bf16.mxu0 0
      %1289 = vmatpush1.bf16.msra.mxu0 0
      %1290 = vmatprep.subr.bf16.mxu0 0
      %1291 = vmatpush1.bf16.msra.mxu0 0
      %1292 = vmatprep.subr.bf16.mxu0 0
      %1293 = vmatpush1.bf16.msra.mxu0 0
      %1294 = vmatprep.subr.bf16.mxu0 0
      %1295 = vmatpush1.bf16.msra.mxu0 0
      %1296 = vmatprep.subr.bf16.mxu0 0
      %1297 = vmatpush1.bf16.msra.mxu0 0
      %1298 = vmatprep.subr.bf16.mxu0 0
      %1299 = vmatpush1.bf16.msra.mxu0 0
      %1300 = vmatprep.subr.bf16.mxu0 0
      %1301 = vmatpush1.bf16.msra.mxu0 0
      %1302 = vmatprep.mubr.bf16.mxu0 0
      %1303 = vmatmul.mubr.bf16.gmra.mrb[0].mxu0 %v966
      %v1304 = vpop.f32.mrb[0].mxu0
      %v1305 = vadd.f32 %v452, %v1304
      %v1306 = vpop.f32.mrb[0].mxu0
      %v1307 = vpop.f32.mrb[0].mxu0
      %v1308 = vadd.f32 %v452, %v1307
      %v1309 = vpop.f32.mrb[0].mxu0
      %1310 = vmatprep.mubr.bf16.mxu0 0
      %1311 = vmatmul.mubr.bf16.gmra.mrb[0].mxu0 %v967
      %v1312 = vpop.f32.mrb[0].mxu0
      %v1313 = vadd.f32 %v452, %v1312
      %v1314 = vpop.f32.mrb[0].mxu0
      %v1315 = vpop.f32.mrb[0].mxu0
      %v1316 = vadd.f32 %v452, %v1315
      %v1317 = vpop.f32.mrb[0].mxu0
      %1318 = vmatprep.mubr.bf16.mxu0 0
      %1319 = vmatmul.mubr.bf16.gmra.mrb[0].mxu0 %v968
      %v1320 = vpop.f32.mrb[0].mxu0
      %v1321 = vadd.f32 %v452, %v1320
      %v1322 = vpop.f32.mrb[0].mxu0
      %v1323 = vpop.f32.mrb[0].mxu0
      %v1324 = vadd.f32 %v452, %v1323
      %v1325 = vpop.f32.mrb[0].mxu0
      %1326 = vmatprep.mubr.bf16.mxu0 0
      %1327 = vmatmul.mubr.bf16.gmra.mrb[0].mxu0 %v969
      %v1328 = vpop.f32.mrb[0].mxu0
      %v1329 = vadd.f32 %v452, %v1328
      %v1330 = vpop.f32.mrb[0].mxu0
      %v1331 = vpop.f32.mrb[0].mxu0
      %v1332 = vadd.f32 %v452, %v1331
      %v1333 = vpop.f32.mrb[0].mxu0
      %1334 = vmatprep.mubr.bf16.mxu0 0
      %1335 = vmatmul.mubr.bf16.gmra.mrb[0].mxu0 %v970
      %v1336 = vpop.f32.mrb[0].mxu0
      %v1337 = vadd.f32 %v452, %v1336
      %v1338 = vpop.f32.mrb[0].mxu0
      %v1339 = vpop.f32.mrb[0].mxu0
      %v1340 = vadd.f32 %v452, %v1339
      %v1341 = vpop.f32.mrb[0].mxu0
      %1342 = vmatprep.mubr.bf16.mxu0 0
      %1343 = vmatmul.mubr.bf16.gmra.mrb[0].mxu0 %v971
      %v1344 = vpop.f32.mrb[0].mxu0
      %v1345 = vadd.f32 %v452, %v1344
      %v1346 = vpop.f32.mrb[0].mxu0
      %v1347 = vpop.f32.mrb[0].mxu0
      %v1348 = vadd.f32 %v452, %v1347
      %v1349 = vpop.f32.mrb[0].mxu0
      %1350 = vmatprep.mubr.bf16.mxu0 0
      %1351 = vmatmul.mubr.bf16.gmra.mrb[0].mxu0 %v972
      %v1352 = vpop.f32.mrb[0].mxu0
      %v1353 = vadd.f32 %v452, %v1352
      %v1354 = vpop.f32.mrb[0].mxu0
      %v1355 = vpop.f32.mrb[0].mxu0
      %v1356 = vadd.f32 %v452, %v1355
      %v1357 = vpop.f32.mrb[0].mxu0
      %1358 = vmatprep.mubr.bf16.mxu0 0
      %1359 = vmatmul.mubr.bf16.gmra.mrb[0].mxu0 %v973
      %v1360 = vpop.f32.mrb[0].mxu0
      %v1361 = vadd.f32 %v452, %v1360
      %v1362 = vpop.f32.mrb[0].mxu0
      %v1363 = vpop.f32.mrb[0].mxu0
      %v1364 = vadd.f32 %v452, %v1363
      %v1365 = vpop.f32.mrb[0].mxu0
      %1366 = vmatprep.mubr.bf16.mxu0 0
      %1367 = vmatmul.mubr.bf16.gmra.mrb[0].mxu0 %v974
      %v1368 = vpop.f32.mrb[0].mxu0
      %v1369 = vadd.f32 %v452, %v1368
      %v1370 = vpop.f32.mrb[0].mxu0
      %v1371 = vpop.f32.mrb[0].mxu0
      %v1372 = vadd.f32 %v452, %v1371
      %v1373 = vpop.f32.mrb[0].mxu0
      %1374 = vmatprep.mubr.bf16.mxu0 0
      %1375 = vmatmul.mubr.bf16.gmra.mrb[0].mxu0 %v975
      %v1376 = vpop.f32.mrb[0].mxu0
      %v1377 = vadd.f32 %v452, %v1376
      %v1378 = vpop.f32.mrb[0].mxu0
      %v1379 = vpop.f32.mrb[0].mxu0
      %v1380 = vadd.f32 %v452, %v1379
      %v1381 = vpop.f32.mrb[0].mxu0
      %1382 = vmatprep.mubr.bf16.mxu0 0
      %1383 = vmatmul.mubr.bf16.gmra.mrb[0].mxu0 %v976
      %v1384 = vpop.f32.mrb[0].mxu0
      %v1385 = vadd.f32 %v452, %v1384
      %v1386 = vpop.f32.mrb[0].mxu0
      %v1387 = vpop.f32.mrb[0].mxu0
      %v1388 = vadd.f32 %v452, %v1387
      %v1389 = vpop.f32.mrb[0].mxu0
      %1390 = vmatprep.mubr.bf16.mxu0 0
      %1391 = vmatmul.mubr.bf16.gmra.mrb[0].mxu0 %v977
      %v1392 = vpop.f32.mrb[0].mxu0
      %v1393 = vadd.f32 %v452, %v1392
      %v1394 = vpop.f32.mrb[0].mxu0
      %v1395 = vpop.f32.mrb[0].mxu0
      %v1396 = vadd.f32 %v452, %v1395
      %v1397 = vpop.f32.mrb[0].mxu0
      %1398 = vmatprep.mubr.bf16.mxu0 0
      %1399 = vmatmul.mubr.bf16.gmra.mrb[0].mxu0 %v978
      %v1400 = vpop.f32.mrb[0].mxu0
      %v1401 = vadd.f32 %v452, %v1400
      %v1402 = vpop.f32.mrb[0].mxu0
      %v1403 = vpop.f32.mrb[0].mxu0
      %v1404 = vadd.f32 %v452, %v1403
      %v1405 = vpop.f32.mrb[0].mxu0
      %1406 = vmatprep.mubr.bf16.mxu0 0
      %1407 = vmatmul.mubr.bf16.gmra.mrb[0].mxu0 %v979
      %v1408 = vpop.f32.mrb[0].mxu0
      %v1409 = vadd.f32 %v452, %v1408
      %v1410 = vpop.f32.mrb[0].mxu0
      %v1411 = vpop.f32.mrb[0].mxu0
      %v1412 = vadd.f32 %v452, %v1411
      %v1413 = vpop.f32.mrb[0].mxu0
      %1414 = vmatprep.mubr.bf16.mxu0 0
      %1415 = vmatmul.mubr.bf16.gmra.mrb[0].mxu0 %v980
      %v1416 = vpop.f32.mrb[0].mxu0
      %v1417 = vadd.f32 %v452, %v1416
      %v1418 = vpop.f32.mrb[0].mxu0
      %v1419 = vpop.f32.mrb[0].mxu0
      %v1420 = vadd.f32 %v452, %v1419
      %v1421 = vpop.f32.mrb[0].mxu0
      %1422 = vmatprep.mubr.bf16.mxu0 0
      %1423 = vmatmul.mubr.bf16.gmra.mrb[0].mxu0 %v981
      %v1424 = vpop.f32.mrb[0].mxu0
      %v1425 = vadd.f32 %v452, %v1424
      %v1426 = vpop.f32.mrb[0].mxu0
      %v1427 = vpop.f32.mrb[0].mxu0
      %v1428 = vadd.f32 %v452, %v1427
      %v1429 = vpop.f32.mrb[0].mxu0
      %1430 = vmatprep.mubr.bf16.mxu0 0
      %1431 = vmatmul.mubr.bf16.gmra.mrb[0].mxu0 %v982
      %v1432 = vpop.f32.mrb[0].mxu0
      %v1433 = vadd.f32 %v452, %v1432
      %v1434 = vpop.f32.mrb[0].mxu0
      %v1435 = vpop.f32.mrb[0].mxu0
      %v1436 = vadd.f32 %v452, %v1435
      %v1437 = vpop.f32.mrb[0].mxu0
      %1438 = vmatprep.mubr.bf16.mxu0 0
      %1439 = vmatmul.mubr.bf16.gmra.mrb[0].mxu0 %v983
      %v1440 = vpop.f32.mrb[0].mxu0
      %v1441 = vadd.f32 %v452, %v1440
      %v1442 = vpop.f32.mrb[0].mxu0
      %v1443 = vpop.f32.mrb[0].mxu0
      %v1444 = vadd.f32 %v452, %v1443
      %v1445 = vpop.f32.mrb[0].mxu0
      %1446 = vmatprep.mubr.bf16.mxu0 0
      %1447 = vmatmul.mubr.bf16.gmra.mrb[0].mxu0 %v984
      %v1448 = vpop.f32.mrb[0].mxu0
      %v1449 = vadd.f32 %v452, %v1448
      %v1450 = vpop.f32.mrb[0].mxu0
      %v1451 = vpop.f32.mrb[0].mxu0
      %v1452 = vadd.f32 %v452, %v1451
      %v1453 = vpop.f32.mrb[0].mxu0
      %1454 = vmatprep.mubr.bf16.mxu0 0
      %1455 = vmatmul.mubr.bf16.gmra.mrb[0].mxu0 %v985
      %v1456 = vpop.f32.mrb[0].mxu0
      %v1457 = vadd.f32 %v452, %v1456
      %v1458 = vpop.f32.mrb[0].mxu0
      %v1459 = vpop.f32.mrb[0].mxu0
      %v1460 = vadd.f32 %v452, %v1459
      %v1461 = vpop.f32.mrb[0].mxu0
      %1462 = vmatprep.mubr.bf16.mxu0 0
      %1463 = vmatmul.mubr.bf16.gmra.mrb[0].mxu0 %v986
      %v1464 = vpop.f32.mrb[0].mxu0
      %v1465 = vadd.f32 %v452, %v1464
      %v1466 = vpop.f32.mrb[0].mxu0
      %v1467 = vpop.f32.mrb[0].mxu0
      %v1468 = vadd.f32 %v452, %v1467
      %v1469 = vpop.f32.mrb[0].mxu0
      %1470 = vmatprep.mubr.bf16.mxu0 0
      %1471 = vmatmul.mubr.bf16.gmra.mrb[0].mxu0 %v987
      %v1472 = vpop.f32.mrb[0].mxu0
      %v1473 = vadd.f32 %v452, %v1472
      %v1474 = vpop.f32.mrb[0].mxu0
      %v1475 = vpop.f32.mrb[0].mxu0
      %v1476 = vadd.f32 %v452, %v1475
      %v1477 = vpop.f32.mrb[0].mxu0
      %1478 = vmatprep.mubr.bf16.mxu0 0
      %1479 = vmatmul.mubr.bf16.gmra.mrb[0].mxu0 %v988
      %v1480 = vpop.f32.mrb[0].mxu0
      %v1481 = vadd.f32 %v452, %v1480
      %v1482 = vpop.f32.mrb[0].mxu0
      %v1483 = vpop.f32.mrb[0].mxu0
      %v1484 = vadd.f32 %v452, %v1483
      %v1485 = vpop.f32.mrb[0].mxu0
      %1486 = vmatprep.mubr.bf16.mxu0 0
      %1487 = vmatmul.mubr.bf16.gmra.mrb[0].mxu0 %v989
      %v1488 = vpop.f32.mrb[0].mxu0
      %v1489 = vadd.f32 %v452, %v1488
      %v1490 = vpop.f32.mrb[0].mxu0
      %v1491 = vpop.f32.mrb[0].mxu0
      %v1492 = vadd.f32 %v452, %v1491
      %v1493 = vpop.f32.mrb[0].mxu0
      %1494 = vmatprep.mubr.bf16.mxu0 0
      %1495 = vmatmul.mubr.bf16.gmra.mrb[0].mxu0 %v990
      %v1496 = vpop.f32.mrb[0].mxu0
      %v1497 = vadd.f32 %v452, %v1496
      %v1498 = vpop.f32.mrb[0].mxu0
      %v1499 = vpop.f32.mrb[0].mxu0
      %v1500 = vadd.f32 %v452, %v1499
      %v1501 = vpop.f32.mrb[0].mxu0
      %1502 = vmatprep.mubr.bf16.mxu0 0
      %1503 = vmatmul.mubr.bf16.gmra.mrb[0].mxu0 %v991
      %v1504 = vpop.f32.mrb[0].mxu0
      %v1505 = vadd.f32 %v452, %v1504
      %v1506 = vpop.f32.mrb[0].mxu0
      %v1507 = vpop.f32.mrb[0].mxu0
      %v1508 = vadd.f32 %v452, %v1507
      %v1509 = vpop.f32.mrb[0].mxu0
      %1510 = vmatprep.mubr.bf16.mxu0 0
      %1511 = vmatmul.mubr.bf16.gmra.mrb[0].mxu0 %v992
      %v1512 = vpop.f32.mrb[0].mxu0
      %v1513 = vadd.f32 %v452, %v1512
      %v1514 = vpop.f32.mrb[0].mxu0
      %v1515 = vpop.f32.mrb[0].mxu0
      %v1516 = vadd.f32 %v452, %v1515
      %v1517 = vpop.f32.mrb[0].mxu0
      %1518 = vmatprep.mubr.bf16.mxu0 0
      %1519 = vmatmul.mubr.bf16.gmra.mrb[0].mxu0 %v993
      %v1520 = vpop.f32.mrb[0].mxu0
      %v1521 = vadd.f32 %v452, %v1520
      %v1522 = vpop.f32.mrb[0].mxu0
      %v1523 = vpop.f32.mrb[0].mxu0
      %v1524 = vadd.f32 %v452, %v1523
      %v1525 = vpop.f32.mrb[0].mxu0
      %1526 = vmatprep.mubr.bf16.mxu0 0
      %1527 = vmatmul.mubr.bf16.gmra.mrb[0].mxu0 %v994
      %v1528 = vpop.f32.mrb[0].mxu0
      %v1529 = vadd.f32 %v452, %v1528
      %v1530 = vpop.f32.mrb[0].mxu0
      %v1531 = vpop.f32.mrb[0].mxu0
      %v1532 = vadd.f32 %v452, %v1531
      %v1533 = vpop.f32.mrb[0].mxu0
      %1534 = vmatprep.mubr.bf16.mxu0 0
      %1535 = vmatmul.mubr.bf16.gmra.mrb[0].mxu0 %v995
      %v1536 = vpop.f32.mrb[0].mxu0
      %v1537 = vadd.f32 %v452, %v1536
      %v1538 = vpop.f32.mrb[0].mxu0
      %v1539 = vpop.f32.mrb[0].mxu0
      %v1540 = vadd.f32 %v452, %v1539
      %v1541 = vpop.f32.mrb[0].mxu0
      %1542 = vmatprep.mubr.bf16.mxu0 0
      %1543 = vmatmul.mubr.bf16.gmra.mrb[0].mxu0 %v996
      %v1544 = vpop.f32.mrb[0].mxu0
      %v1545 = vadd.f32 %v452, %v1544
      %v1546 = vpop.f32.mrb[0].mxu0
      %v1547 = vpop.f32.mrb[0].mxu0
      %v1548 = vadd.f32 %v452, %v1547
      %v1549 = vpop.f32.mrb[0].mxu0
      %1550 = vmatprep.mubr.bf16.mxu0 0
      %1551 = vmatmul.mubr.bf16.gmra.mrb[0].mxu0 %v997
      %v1552 = vpop.f32.mrb[0].mxu0
      %v1553 = vadd.f32 %v452, %v1552
      %v1554 = vpop.f32.mrb[0].mxu0
      %v1555 = vpop.f32.mrb[0].mxu0
      %v1556 = vadd.f32 %v452, %v1555
      %v1557 = vpop.f32.mrb[0].mxu0
      %1558 = vmatprep.mubr.bf16.mxu0 0
      %1559 = vmatmul.mubr.bf16.gmra.mrb[0].mxu0 %v998
      %v1560 = vpop.f32.mrb[0].mxu0
      %v1561 = vadd.f32 %v452, %v1560
      %v1562 = vpop.f32.mrb[0].mxu0
      %v1563 = vpop.f32.mrb[0].mxu0
      %v1564 = vadd.f32 %v452, %v1563
      %v1565 = vpop.f32.mrb[0].mxu0
      %1566 = vmatprep.mubr.bf16.mxu0 0
      %1567 = vmatmul.mubr.bf16.gmra.mrb[0].mxu0 %v999
      %v1568 = vpop.f32.mrb[0].mxu0
      %v1569 = vadd.f32 %v452, %v1568
      %v1570 = vpop.f32.mrb[0].mxu0
      %v1571 = vpop.f32.mrb[0].mxu0
      %v1572 = vadd.f32 %v452, %v1571
      %v1573 = vpop.f32.mrb[0].mxu0
      %1574 = vmatprep.mubr.bf16.mxu0 0
      %1575 = vmatmul.mubr.bf16.gmra.mrb[0].mxu0 %v1000
      %v1576 = vpop.f32.mrb[0].mxu0
      %v1577 = vadd.f32 %v452, %v1576
      %v1578 = vpop.f32.mrb[0].mxu0
      %v1579 = vpop.f32.mrb[0].mxu0
      %v1580 = vadd.f32 %v452, %v1579
      %v1581 = vpop.f32.mrb[0].mxu0
      %1582 = vmatprep.mubr.bf16.mxu0 0
      %1583 = vmatmul.mubr.bf16.gmra.mrb[0].mxu0 %v1001
      %v1584 = vpop.f32.mrb[0].mxu0
      %v1585 = vadd.f32 %v452, %v1584
      %v1586 = vpop.f32.mrb[0].mxu0
      %v1587 = vpop.f32.mrb[0].mxu0
      %v1588 = vadd.f32 %v452, %v1587
      %v1589 = vpop.f32.mrb[0].mxu0
      %1590 = vmatprep.mubr.bf16.mxu0 0
      %1591 = vmatmul.mubr.bf16.gmra.mrb[0].mxu0 %v1002
      %v1592 = vpop.f32.mrb[0].mxu0
      %v1593 = vadd.f32 %v452, %v1592
      %v1594 = vpop.f32.mrb[0].mxu0
      %v1595 = vpop.f32.mrb[0].mxu0
      %v1596 = vadd.f32 %v452, %v1595
      %v1597 = vpop.f32.mrb[0].mxu0
      %1598 = vmatprep.mubr.bf16.mxu0 0
      %1599 = vmatmul.mubr.bf16.gmra.mrb[0].mxu0 %v1003
      %v1600 = vpop.f32.mrb[0].mxu0
      %v1601 = vadd.f32 %v452, %v1600
      %v1602 = vpop.f32.mrb[0].mxu0
      %v1603 = vpop.f32.mrb[0].mxu0
      %v1604 = vadd.f32 %v452, %v1603
      %v1605 = vpop.f32.mrb[0].mxu0
      %1606 = vmatprep.mubr.bf16.mxu0 0
      %1607 = vmatmul.mubr.bf16.gmra.mrb[0].mxu0 %v1004
      %v1608 = vpop.f32.mrb[0].mxu0
      %v1609 = vadd.f32 %v452, %v1608
      %v1610 = vpop.f32.mrb[0].mxu0
      %v1611 = vpop.f32.mrb[0].mxu0
      %v1612 = vadd.f32 %v452, %v1611
      %v1613 = vpop.f32.mrb[0].mxu0
      %1614 = vmatprep.mubr.bf16.mxu0 0
      %1615 = vmatmul.mubr.bf16.gmra.mrb[0].mxu0 %v1005
      %v1616 = vpop.f32.mrb[0].mxu0
      %v1617 = vadd.f32 %v452, %v1616
      %v1618 = vpop.f32.mrb[0].mxu0
      %v1619 = vpop.f32.mrb[0].mxu0
      %v1620 = vadd.f32 %v452, %v1619
      %v1621 = vpop.f32.mrb[0].mxu0
      %1622 = vmatprep.mubr.bf16.mxu0 0
      %1623 = vmatmul.mubr.bf16.gmra.mrb[0].mxu0 %v1006
      %v1624 = vpop.f32.mrb[0].mxu0
      %v1625 = vadd.f32 %v452, %v1624
      %v1626 = vpop.f32.mrb[0].mxu0
      %v1627 = vpop.f32.mrb[0].mxu0
      %v1628 = vadd.f32 %v452, %v1627
      %v1629 = vpop.f32.mrb[0].mxu0
      %1630 = vmatprep.mubr.bf16.mxu0 0
      %1631 = vmatmul.mubr.bf16.gmra.mrb[0].mxu0 %v1007
      %v1632 = vpop.f32.mrb[0].mxu0
      %v1633 = vadd.f32 %v452, %v1632
      %v1634 = vpop.f32.mrb[0].mxu0
      %v1635 = vpop.f32.mrb[0].mxu0
      %v1636 = vadd.f32 %v452, %v1635
      %v1637 = vpop.f32.mrb[0].mxu0
      %1638 = vmatprep.mubr.bf16.mxu0 0
      %1639 = vmatmul.mubr.bf16.gmra.mrb[0].mxu0 %v1008
      %v1640 = vpop.f32.mrb[0].mxu0
      %v1641 = vadd.f32 %v452, %v1640
      %v1642 = vpop.f32.mrb[0].mxu0
      %v1643 = vpop.f32.mrb[0].mxu0
      %v1644 = vadd.f32 %v452, %v1643
      %v1645 = vpop.f32.mrb[0].mxu0
      %1646 = vmatprep.mubr.bf16.mxu0 0
      %1647 = vmatmul.mubr.bf16.gmra.mrb[0].mxu0 %v1009
      %v1648 = vpop.f32.mrb[0].mxu0
      %v1649 = vadd.f32 %v452, %v1648
      %v1650 = vpop.f32.mrb[0].mxu0
      %v1651 = vpop.f32.mrb[0].mxu0
      %v1652 = vadd.f32 %v452, %v1651
      %v1653 = vpop.f32.mrb[0].mxu0
      %1654 = vmatprep.mubr.bf16.mxu0 0
      %1655 = vmatmul.mubr.bf16.gmra.mrb[0].mxu0 %v1010
      %v1656 = vpop.f32.mrb[0].mxu0
      %v1657 = vadd.f32 %v452, %v1656
      %v1658 = vpop.f32.mrb[0].mxu0
      %v1659 = vpop.f32.mrb[0].mxu0
      %v1660 = vadd.f32 %v452, %v1659
      %v1661 = vpop.f32.mrb[0].mxu0
      %1662 = vmatprep.mubr.bf16.mxu0 0
      %1663 = vmatmul.mubr.bf16.gmra.mrb[0].mxu0 %v1011
      %v1664 = vpop.f32.mrb[0].mxu0
      %v1665 = vadd.f32 %v452, %v1664
      %v1666 = vpop.f32.mrb[0].mxu0
      %v1667 = vpop.f32.mrb[0].mxu0
      %v1668 = vadd.f32 %v452, %v1667
      %v1669 = vpop.f32.mrb[0].mxu0
      %1670 = vmatprep.mubr.bf16.mxu0 0
      %1671 = vmatmul.mubr.bf16.gmra.mrb[0].mxu0 %v1012
      %v1672 = vpop.f32.mrb[0].mxu0
      %v1673 = vadd.f32 %v452, %v1672
      %v1674 = vpop.f32.mrb[0].mxu0
      %v1675 = vpop.f32.mrb[0].mxu0
      %v1676 = vadd.f32 %v452, %v1675
      %v1677 = vpop.f32.mrb[0].mxu0
      %1678 = vmatprep.mubr.bf16.mxu0 0
      %1679 = vmatmul.mubr.bf16.gmra.mrb[0].mxu0 %v1013
      %v1680 = vpop.f32.mrb[0].mxu0
      %v1681 = vadd.f32 %v452, %v1680
      %v1682 = vpop.f32.mrb[0].mxu0
      %v1683 = vpop.f32.mrb[0].mxu0
      %v1684 = vadd.f32 %v452, %v1683
      %v1685 = vpop.f32.mrb[0].mxu0
      %1686 = vmatprep.mubr.bf16.mxu0 0
      %1687 = vmatmul.mubr.bf16.gmra.mrb[0].mxu0 %v1014
      %v1688 = vpop.f32.mrb[0].mxu0
      %v1689 = vadd.f32 %v452, %v1688
      %v1690 = vpop.f32.mrb[0].mxu0
      %v1691 = vpop.f32.mrb[0].mxu0
      %v1692 = vadd.f32 %v452, %v1691
      %v1693 = vpop.f32.mrb[0].mxu0
      %1694 = vmatprep.mubr.bf16.mxu0 0
      %1695 = vmatmul.mubr.bf16.gmra.mrb[0].mxu0 %v1015
      %v1696 = vpop.f32.mrb[0].mxu0
      %v1697 = vadd.f32 %v452, %v1696
      %v1698 = vpop.f32.mrb[0].mxu0
      %v1699 = vpop.f32.mrb[0].mxu0
      %v1700 = vadd.f32 %v452, %v1699
      %v1701 = vpop.f32.mrb[0].mxu0
      %1702 = vmatprep.mubr.bf16.mxu0 0
      %1703 = vmatmul.mubr.bf16.gmra.mrb[0].mxu0 %v1016
      %v1704 = vpop.f32.mrb[0].mxu0
      %v1705 = vadd.f32 %v452, %v1704
      %v1706 = vpop.f32.mrb[0].mxu0
      %v1707 = vpop.f32.mrb[0].mxu0
      %v1708 = vadd.f32 %v452, %v1707
      %v1709 = vpop.f32.mrb[0].mxu0
      %1710 = vmatprep.mubr.bf16.mxu0 0
      %1711 = vmatmul.mubr.bf16.gmra.mrb[0].mxu0 %v1017
      %v1712 = vpop.f32.mrb[0].mxu0
      %v1713 = vadd.f32 %v452, %v1712
      %v1714 = vpop.f32.mrb[0].mxu0
      %v1715 = vpop.f32.mrb[0].mxu0
      %v1716 = vadd.f32 %v452, %v1715
      %v1717 = vpop.f32.mrb[0].mxu0
      %1718 = vmatprep.mubr.bf16.mxu0 0
      %1719 = vmatmul.mubr.bf16.gmra.mrb[0].mxu0 %v1018
      %v1720 = vpop.f32.mrb[0].mxu0
      %v1721 = vadd.f32 %v452, %v1720
      %v1722 = vpop.f32.mrb[0].mxu0
      %v1723 = vpop.f32.mrb[0].mxu0
      %v1724 = vadd.f32 %v452, %v1723
      %v1725 = vpop.f32.mrb[0].mxu0
      %1726 = vmatprep.mubr.bf16.mxu0 0
      %1727 = vmatmul.mubr.bf16.gmra.mrb[0].mxu0 %v1019
      %v1728 = vpop.f32.mrb[0].mxu0
      %v1729 = vadd.f32 %v452, %v1728
      %v1730 = vpop.f32.mrb[0].mxu0
      %v1731 = vpop.f32.mrb[0].mxu0
      %v1732 = vadd.f32 %v452, %v1731
      %v1733 = vpop.f32.mrb[0].mxu0
      %1734 = vmatprep.mubr.bf16.mxu0 0
      %1735 = vmatmul.mubr.bf16.gmra.mrb[0].mxu0 %v1020
      %v1736 = vpop.f32.mrb[0].mxu0
      %v1737 = vadd.f32 %v452, %v1736
      %v1738 = vpop.f32.mrb[0].mxu0
      %v1739 = vpop.f32.mrb[0].mxu0
      %v1740 = vadd.f32 %v452, %v1739
      %v1741 = vpop.f32.mrb[0].mxu0
      %1742 = vmatprep.mubr.bf16.mxu0 0
      %1743 = vmatmul.mubr.bf16.gmra.mrb[0].mxu0 %v1021
      %v1744 = vpop.f32.mrb[0].mxu0
      %v1745 = vadd.f32 %v452, %v1744
      %v1746 = vpop.f32.mrb[0].mxu0
      %v1747 = vpop.f32.mrb[0].mxu0
      %v1748 = vadd.f32 %v452, %v1747
      %v1749 = vpop.f32.mrb[0].mxu0
      %1750 = vmatprep.mubr.bf16.mxu0 0
      %1751 = vmatmul.mubr.bf16.gmra.mrb[0].mxu0 %v1022
      %v1752 = vpop.f32.mrb[0].mxu0
      %v1753 = vadd.f32 %v452, %v1752
      %v1754 = vpop.f32.mrb[0].mxu0
      %v1755 = vpop.f32.mrb[0].mxu0
      %v1756 = vadd.f32 %v452, %v1755
      %v1757 = vpop.f32.mrb[0].mxu0
      %1758 = vmatprep.mubr.bf16.mxu0 0
      %1759 = vmatmul.mubr.bf16.gmra.mrb[0].mxu0 %v1023
      %v1760 = vpop.f32.mrb[0].mxu0
      %v1761 = vadd.f32 %v452, %v1760
      %v1762 = vpop.f32.mrb[0].mxu0
      %v1763 = vpop.f32.mrb[0].mxu0
      %v1764 = vadd.f32 %v452, %v1763
      %v1765 = vpop.f32.mrb[0].mxu0
      %1766 = vmatprep.mubr.bf16.mxu0 0
      %1767 = vmatmul.mubr.bf16.gmra.mrb[0].mxu0 %v1024
      %v1768 = vpop.f32.mrb[0].mxu0
      %v1769 = vadd.f32 %v452, %v1768
      %v1770 = vpop.f32.mrb[0].mxu0
      %v1771 = vpop.f32.mrb[0].mxu0
      %v1772 = vadd.f32 %v452, %v1771
      %v1773 = vpop.f32.mrb[0].mxu0
      %1774 = vmatprep.mubr.bf16.mxu0 0
      %1775 = vmatmul.mubr.bf16.gmra.mrb[0].mxu0 %v1025
      %v1776 = vpop.f32.mrb[0].mxu0
      %v1777 = vadd.f32 %v452, %v1776
      %v1778 = vpop.f32.mrb[0].mxu0
      %v1779 = vpop.f32.mrb[0].mxu0
      %v1780 = vadd.f32 %v452, %v1779
      %v1781 = vpop.f32.mrb[0].mxu0
      %1782 = vmatprep.mubr.bf16.mxu0 0
      %1783 = vmatmul.mubr.bf16.gmra.mrb[0].mxu0 %v1026
      %v1784 = vpop.f32.mrb[0].mxu0
      %v1785 = vadd.f32 %v452, %v1784
      %v1786 = vpop.f32.mrb[0].mxu0
      %v1787 = vpop.f32.mrb[0].mxu0
      %v1788 = vadd.f32 %v452, %v1787
      %v1789 = vpop.f32.mrb[0].mxu0
      %1790 = vmatprep.mubr.bf16.mxu0 0
      %1791 = vmatmul.mubr.bf16.gmra.mrb[0].mxu0 %v1027
      %v1792 = vpop.f32.mrb[0].mxu0
      %v1793 = vadd.f32 %v452, %v1792
      %v1794 = vpop.f32.mrb[0].mxu0
      %v1795 = vpop.f32.mrb[0].mxu0
      %v1796 = vadd.f32 %v452, %v1795
      %v1797 = vpop.f32.mrb[0].mxu0
      %1798 = vmatprep.mubr.bf16.mxu0 0
      %1799 = vmatmul.mubr.bf16.gmra.mrb[0].mxu0 %v1028
      %v1800 = vpop.f32.mrb[0].mxu0
      %v1801 = vadd.f32 %v452, %v1800
      %v1802 = vpop.f32.mrb[0].mxu0
      %v1803 = vpop.f32.mrb[0].mxu0
      %v1804 = vadd.f32 %v452, %v1803
      %v1805 = vpop.f32.mrb[0].mxu0
      %1806 = vmatprep.mubr.bf16.mxu0 0
      %1807 = vmatmul.mubr.bf16.gmra.mrb[0].mxu0 %v1029
      %v1808 = vpop.f32.mrb[0].mxu0
      %v1809 = vadd.f32 %v452, %v1808
      %v1810 = vpop.f32.mrb[0].mxu0
      %v1811 = vpop.f32.mrb[0].mxu0
      %v1812 = vadd.f32 %v452, %v1811
      %v1813 = vpop.f32.mrb[0].mxu0
      %1814 = vmatprep.mubr.bf16.mxu0 0
      %1815 = vmatmul.mubr.bf16.gmra.mrb[0].mxu0 %v1030
      %v1816 = vpop.f32.mrb[0].mxu0
      %v1817 = vadd.f32 %v452, %v1816
      %v1818 = vpop.f32.mrb[0].mxu0
      %v1819 = vpop.f32.mrb[0].mxu0
      %v1820 = vadd.f32 %v452, %v1819
      %v1821 = vpop.f32.mrb[0].mxu0
      %1822 = vmatprep.mubr.bf16.mxu0 0
      %1823 = vmatmul.mubr.bf16.gmra.mrb[0].mxu0 %v1031
      %v1824 = vpop.f32.mrb[0].mxu0
      %v1825 = vadd.f32 %v452, %v1824
      %v1826 = vpop.f32.mrb[0].mxu0
      %v1827 = vpop.f32.mrb[0].mxu0
      %v1828 = vadd.f32 %v452, %v1827
      %v1829 = vpop.f32.mrb[0].mxu0
      %1830 = vmatprep.mubr.bf16.mxu0 0
      %1831 = vmatmul.mubr.bf16.gmra.mrb[0].mxu0 %v1032
      %v1832 = vpop.f32.mrb[0].mxu0
      %v1833 = vadd.f32 %v452, %v1832
      %v1834 = vpop.f32.mrb[0].mxu0
      %v1835 = vpop.f32.mrb[0].mxu0
      %v1836 = vadd.f32 %v452, %v1835
      %v1837 = vpop.f32.mrb[0].mxu0
      %1838 = vmatprep.mubr.bf16.mxu0 0
      %1839 = vmatmul.mubr.bf16.gmra.mrb[0].mxu0 %v1033
      %v1840 = vpop.f32.mrb[0].mxu0
      %v1841 = vadd.f32 %v452, %v1840
      %v1842 = vpop.f32.mrb[0].mxu0
      %v1843 = vpop.f32.mrb[0].mxu0
      %v1844 = vadd.f32 %v452, %v1843
      %v1845 = vpop.f32.mrb[0].mxu0
      %1846 = vmatprep.mubr.bf16.mxu0 0
      %1847 = vmatmul.mubr.bf16.gmra.mrb[0].mxu0 %v1034
      %v1848 = vpop.f32.mrb[0].mxu0
      %v1849 = vadd.f32 %v452, %v1848
      %v1850 = vpop.f32.mrb[0].mxu0
      %v1851 = vpop.f32.mrb[0].mxu0
      %v1852 = vadd.f32 %v452, %v1851
      %v1853 = vpop.f32.mrb[0].mxu0
      %1854 = vmatprep.mubr.bf16.mxu0 0
      %1855 = vmatmul.mubr.bf16.gmra.mrb[0].mxu0 %v1035
      %v1856 = vpop.f32.mrb[0].mxu0
      %v1857 = vadd.f32 %v452, %v1856
      %v1858 = vpop.f32.mrb[0].mxu0
      %v1859 = vpop.f32.mrb[0].mxu0
      %v1860 = vadd.f32 %v452, %v1859
      %v1861 = vpop.f32.mrb[0].mxu0
      %1862 = vmatprep.mubr.bf16.mxu0 0
      %1863 = vmatmul.mubr.bf16.gmra.mrb[0].mxu0 %v1036
      %v1864 = vpop.f32.mrb[0].mxu0
      %v1865 = vadd.f32 %v452, %v1864
      %v1866 = vpop.f32.mrb[0].mxu0
      %v1867 = vpop.f32.mrb[0].mxu0
      %v1868 = vadd.f32 %v452, %v1867
      %v1869 = vpop.f32.mrb[0].mxu0
      %1870 = vmatprep.mubr.bf16.mxu0 0
      %1871 = vmatmul.mubr.bf16.gmra.mrb[0].mxu0 %v1037
      %v1872 = vpop.f32.mrb[0].mxu0
      %v1873 = vadd.f32 %v452, %v1872
      %v1874 = vpop.f32.mrb[0].mxu0
      %v1875 = vpop.f32.mrb[0].mxu0
      %v1876 = vadd.f32 %v452, %v1875
      %v1877 = vpop.f32.mrb[0].mxu0
      %1878 = vmatprep.mubr.bf16.mxu0 0
      %1879 = vmatmul.mubr.bf16.gmra.mrb[0].mxu0 %v1038
      %v1880 = vpop.f32.mrb[0].mxu0
      %v1881 = vadd.f32 %v452, %v1880
      %v1882 = vpop.f32.mrb[0].mxu0
      %v1883 = vpop.f32.mrb[0].mxu0
      %v1884 = vadd.f32 %v452, %v1883
      %v1885 = vpop.f32.mrb[0].mxu0
      %1886 = vmatprep.mubr.bf16.mxu0 0
      %1887 = vmatmul.mubr.bf16.gmra.mrb[0].mxu0 %v1039
      %v1888 = vpop.f32.mrb[0].mxu0
      %v1889 = vadd.f32 %v452, %v1888
      %v1890 = vpop.f32.mrb[0].mxu0
      %v1891 = vpop.f32.mrb[0].mxu0
      %v1892 = vadd.f32 %v452, %v1891
      %v1893 = vpop.f32.mrb[0].mxu0
      %1894 = vmatprep.mubr.bf16.mxu0 0
      %1895 = vmatmul.mubr.bf16.gmra.mrb[0].mxu0 %v1040
      %v1896 = vpop.f32.mrb[0].mxu0
      %v1897 = vadd.f32 %v452, %v1896
      %v1898 = vpop.f32.mrb[0].mxu0
      %v1899 = vpop.f32.mrb[0].mxu0
      %v1900 = vadd.f32 %v452, %v1899
      %v1901 = vpop.f32.mrb[0].mxu0
      %1902 = vmatprep.mubr.bf16.mxu0 0
      %1903 = vmatmul.mubr.bf16.gmra.mrb[0].mxu0 %v1041
      %v1904 = vpop.f32.mrb[0].mxu0
      %v1905 = vadd.f32 %v452, %v1904
      %v1906 = vpop.f32.mrb[0].mxu0
      %v1907 = vpop.f32.mrb[0].mxu0
      %v1908 = vadd.f32 %v452, %v1907
      %v1909 = vpop.f32.mrb[0].mxu0
      %1910 = vmatprep.mubr.bf16.mxu0 0
      %1911 = vmatmul.mubr.bf16.gmra.mrb[0].mxu0 %v1042
      %v1912 = vpop.f32.mrb[0].mxu0
      %v1913 = vadd.f32 %v452, %v1912
      %v1914 = vpop.f32.mrb[0].mxu0
      %v1915 = vpop.f32.mrb[0].mxu0
      %v1916 = vadd.f32 %v452, %v1915
      %v1917 = vpop.f32.mrb[0].mxu0
      %1918 = vmatprep.mubr.bf16.mxu0 0
      %1919 = vmatmul.mubr.bf16.gmra.mrb[0].mxu0 %v1043
      %v1920 = vpop.f32.mrb[0].mxu0
      %v1921 = vadd.f32 %v452, %v1920
      %v1922 = vpop.f32.mrb[0].mxu0
      %v1923 = vpop.f32.mrb[0].mxu0
      %v1924 = vadd.f32 %v452, %v1923
      %v1925 = vpop.f32.mrb[0].mxu0
      %1926 = vmatprep.mubr.bf16.mxu0 0
      %1927 = vmatmul.mubr.bf16.gmra.mrb[0].mxu0 %v1044
      %v1928 = vpop.f32.mrb[0].mxu0
      %v1929 = vadd.f32 %v452, %v1928
      %v1930 = vpop.f32.mrb[0].mxu0
      %v1931 = vpop.f32.mrb[0].mxu0
      %v1932 = vadd.f32 %v452, %v1931
      %v1933 = vpop.f32.mrb[0].mxu0
      %1934 = vmatprep.mubr.bf16.mxu0 0
      %1935 = vmatmul.mubr.bf16.gmra.mrb[0].mxu0 %v1045
      %v1936 = vpop.f32.mrb[0].mxu0
      %v1937 = vadd.f32 %v452, %v1936
      %v1938 = vpop.f32.mrb[0].mxu0
      %v1939 = vpop.f32.mrb[0].mxu0
      %v1940 = vadd.f32 %v452, %v1939
      %v1941 = vpop.f32.mrb[0].mxu0
      %1942 = vmatprep.mubr.bf16.mxu0 0
      %1943 = vmatmul.mubr.bf16.gmra.mrb[0].mxu0 %v1046
      %v1944 = vpop.f32.mrb[0].mxu0
      %v1945 = vadd.f32 %v452, %v1944
      %v1946 = vpop.f32.mrb[0].mxu0
      %v1947 = vpop.f32.mrb[0].mxu0
      %v1948 = vadd.f32 %v452, %v1947
      %v1949 = vpop.f32.mrb[0].mxu0
      %1950 = vmatprep.mubr.bf16.mxu0 0
      %1951 = vmatmul.mubr.bf16.gmra.mrb[0].mxu0 %v1047
      %v1952 = vpop.f32.mrb[0].mxu0
      %v1953 = vadd.f32 %v452, %v1952
      %v1954 = vpop.f32.mrb[0].mxu0
      %v1955 = vpop.f32.mrb[0].mxu0
      %v1956 = vadd.f32 %v452, %v1955
      %v1957 = vpop.f32.mrb[0].mxu0
      %1958 = vmatprep.mubr.bf16.mxu0 0
      %1959 = vmatmul.mubr.bf16.gmra.mrb[0].mxu0 %v1048
      %v1960 = vpop.f32.mrb[0].mxu0
      %v1961 = vadd.f32 %v452, %v1960
      %v1962 = vpop.f32.mrb[0].mxu0
      %v1963 = vpop.f32.mrb[0].mxu0
      %v1964 = vadd.f32 %v452, %v1963
      %v1965 = vpop.f32.mrb[0].mxu0
      %1966 = vmatprep.mubr.bf16.mxu0 0
      %1967 = vmatmul.mubr.bf16.gmra.mrb[0].mxu0 %v1049
      %v1968 = vpop.f32.mrb[0].mxu0
      %v1969 = vadd.f32 %v452, %v1968
      %v1970 = vpop.f32.mrb[0].mxu0
      %v1971 = vpop.f32.mrb[0].mxu0
      %v1972 = vadd.f32 %v452, %v1971
      %v1973 = vpop.f32.mrb[0].mxu0
      %1974 = vmatprep.mubr.bf16.mxu0 0
      %1975 = vmatmul.mubr.bf16.gmra.mrb[0].mxu0 %v1050
      %v1976 = vpop.f32.mrb[0].mxu0
      %v1977 = vadd.f32 %v452, %v1976
      %v1978 = vpop.f32.mrb[0].mxu0
      %v1979 = vpop.f32.mrb[0].mxu0
      %v1980 = vadd.f32 %v452, %v1979
      %v1981 = vpop.f32.mrb[0].mxu0
      %1982 = vmatprep.mubr.bf16.mxu0 0
      %1983 = vmatmul.mubr.bf16.gmra.mrb[0].mxu0 %v1051
      %v1984 = vpop.f32.mrb[0].mxu0
      %v1985 = vadd.f32 %v452, %v1984
      %v1986 = vpop.f32.mrb[0].mxu0
      %v1987 = vpop.f32.mrb[0].mxu0
      %v1988 = vadd.f32 %v452, %v1987
      %v1989 = vpop.f32.mrb[0].mxu0
      %1990 = vmatprep.mubr.bf16.mxu0 0
      %1991 = vmatmul.mubr.bf16.gmra.mrb[0].mxu0 %v1052
      %v1992 = vpop.f32.mrb[0].mxu0
      %v1993 = vadd.f32 %v452, %v1992
      %v1994 = vpop.f32.mrb[0].mxu0
      %v1995 = vpop.f32.mrb[0].mxu0
      %v1996 = vadd.f32 %v452, %v1995
      %v1997 = vpop.f32.mrb[0].mxu0
      %1998 = vmatprep.mubr.bf16.mxu0 0
      %1999 = vmatmul.mubr.bf16.gmra.mrb[0].mxu0 %v1053
      %v2000 = vpop.f32.mrb[0].mxu0
      %v2001 = vadd.f32 %v452, %v2000
      %v2002 = vpop.f32.mrb[0].mxu0
      %v2003 = vpop.f32.mrb[0].mxu0
      %v2004 = vadd.f32 %v452, %v2003
      %v2005 = vpop.f32.mrb[0].mxu0
      %2006 = vmatprep.mubr.bf16.mxu0 0
      %2007 = vmatmul.mubr.bf16.gmra.mrb[0].mxu0 %v1054
      %v2008 = vpop.f32.mrb[0].mxu0
      %v2009 = vadd.f32 %v452, %v2008
      %v2010 = vpop.f32.mrb[0].mxu0
      %v2011 = vpop.f32.mrb[0].mxu0
      %v2012 = vadd.f32 %v452, %v2011
      %v2013 = vpop.f32.mrb[0].mxu0
      %2014 = vmatprep.mubr.bf16.mxu0 0
      %2015 = vmatmul.mubr.bf16.gmra.mrb[0].mxu0 %v1055
      %v2016 = vpop.f32.mrb[0].mxu0
      %v2017 = vadd.f32 %v452, %v2016
      %v2018 = vpop.f32.mrb[0].mxu0
      %v2019 = vpop.f32.mrb[0].mxu0
      %v2020 = vadd.f32 %v452, %v2019
      %v2021 = vpop.f32.mrb[0].mxu0
      %2022 = vmatprep.mubr.bf16.mxu0 0
      %2023 = vmatmul.mubr.bf16.gmra.mrb[0].mxu0 %v1056
      %v2024 = vpop.f32.mrb[0].mxu0
      %v2025 = vadd.f32 %v452, %v2024
      %v2026 = vpop.f32.mrb[0].mxu0
      %v2027 = vpop.f32.mrb[0].mxu0
      %v2028 = vadd.f32 %v452, %v2027
      %v2029 = vpop.f32.mrb[0].mxu0
      %2030 = vmatprep.mubr.bf16.mxu0 0
      %2031 = vmatmul.mubr.bf16.gmra.mrb[0].mxu0 %v1057
      %v2032 = vpop.f32.mrb[0].mxu0
      %v2033 = vadd.f32 %v452, %v2032
      %v2034 = vpop.f32.mrb[0].mxu0
      %v2035 = vpop.f32.mrb[0].mxu0
      %v2036 = vadd.f32 %v452, %v2035
      %v2037 = vpop.f32.mrb[0].mxu0
      %2038 = vmatprep.mubr.bf16.mxu0 0
      %2039 = vmatmul.mubr.bf16.gmra.mrb[0].mxu0 %v1058
      %v2040 = vpop.f32.mrb[0].mxu0
      %v2041 = vadd.f32 %v452, %v2040
      %v2042 = vpop.f32.mrb[0].mxu0
      %v2043 = vpop.f32.mrb[0].mxu0
      %v2044 = vadd.f32 %v452, %v2043
      %v2045 = vpop.f32.mrb[0].mxu0
      %2046 = vmatprep.mubr.bf16.mxu0 0
      %2047 = vmatmul.mubr.bf16.gmra.mrb[0].mxu0 %v1059
      %v2048 = vpop.f32.mrb[0].mxu0
      %v2049 = vadd.f32 %v452, %v2048
      %v2050 = vpop.f32.mrb[0].mxu0
      %v2051 = vpop.f32.mrb[0].mxu0
      %v2052 = vadd.f32 %v452, %v2051
      %v2053 = vpop.f32.mrb[0].mxu0
      %2054 = vmatprep.mubr.bf16.mxu0 0
      %2055 = vmatmul.mubr.bf16.gmra.mrb[0].mxu0 %v1060
      %v2056 = vpop.f32.mrb[0].mxu0
      %v2057 = vadd.f32 %v452, %v2056
      %v2058 = vpop.f32.mrb[0].mxu0
      %v2059 = vpop.f32.mrb[0].mxu0
      %v2060 = vadd.f32 %v452, %v2059
      %v2061 = vpop.f32.mrb[0].mxu0
      %2062 = vmatprep.mubr.bf16.mxu0 0
      %2063 = vmatmul.mubr.bf16.gmra.mrb[0].mxu0 %v1061
      %v2064 = vpop.f32.mrb[0].mxu0
      %v2065 = vadd.f32 %v452, %v2064
      %v2066 = vpop.f32.mrb[0].mxu0
      %v2067 = vpop.f32.mrb[0].mxu0
      %v2068 = vadd.f32 %v452, %v2067
      %v2069 = vpop.f32.mrb[0].mxu0
      %2070 = vmatprep.mubr.bf16.mxu0 0
      %2071 = vmatmul.mubr.bf16.gmra.mrb[0].mxu0 %v1062
      %v2072 = vpop.f32.mrb[0].mxu0
      %v2073 = vadd.f32 %v452, %v2072
      %v2074 = vpop.f32.mrb[0].mxu0
      %v2075 = vpop.f32.mrb[0].mxu0
      %v2076 = vadd.f32 %v452, %v2075
      %v2077 = vpop.f32.mrb[0].mxu0
      %2078 = vmatprep.mubr.bf16.mxu0 0
      %2079 = vmatmul.mubr.bf16.gmra.mrb[0].mxu0 %v1063
      %v2080 = vpop.f32.mrb[0].mxu0
      %v2081 = vadd.f32 %v452, %v2080
      %v2082 = vpop.f32.mrb[0].mxu0
      %v2083 = vpop.f32.mrb[0].mxu0
      %v2084 = vadd.f32 %v452, %v2083
      %v2085 = vpop.f32.mrb[0].mxu0
      %2086 = vmatprep.mubr.bf16.mxu0 0
      %2087 = vmatmul.mubr.bf16.gmra.mrb[0].mxu0 %v1064
      %v2088 = vpop.f32.mrb[0].mxu0
      %v2089 = vadd.f32 %v452, %v2088
      %v2090 = vpop.f32.mrb[0].mxu0
      %v2091 = vpop.f32.mrb[0].mxu0
      %v2092 = vadd.f32 %v452, %v2091
      %v2093 = vpop.f32.mrb[0].mxu0
      %2094 = vmatprep.mubr.bf16.mxu0 0
      %2095 = vmatmul.mubr.bf16.gmra.mrb[0].mxu0 %v1065
      %v2096 = vpop.f32.mrb[0].mxu0
      %v2097 = vadd.f32 %v452, %v2096
      %v2098 = vpop.f32.mrb[0].mxu0
      %v2099 = vpop.f32.mrb[0].mxu0
      %v2100 = vadd.f32 %v452, %v2099
      %v2101 = vpop.f32.mrb[0].mxu0
      %2102 = vmatprep.mubr.bf16.mxu0 0
      %2103 = vmatmul.mubr.bf16.gmra.mrb[0].mxu0 %v1066
      %v2104 = vpop.f32.mrb[0].mxu0
      %v2105 = vadd.f32 %v452, %v2104
      %v2106 = vpop.f32.mrb[0].mxu0
      %v2107 = vpop.f32.mrb[0].mxu0
      %v2108 = vadd.f32 %v452, %v2107
      %v2109 = vpop.f32.mrb[0].mxu0
      %2110 = vmatprep.mubr.bf16.mxu0 0
      %2111 = vmatmul.mubr.bf16.gmra.mrb[0].mxu0 %v1067
      %v2112 = vpop.f32.mrb[0].mxu0
      %v2113 = vadd.f32 %v452, %v2112
      %v2114 = vpop.f32.mrb[0].mxu0
      %v2115 = vpop.f32.mrb[0].mxu0
      %v2116 = vadd.f32 %v452, %v2115
      %v2117 = vpop.f32.mrb[0].mxu0
      %2118 = vmatprep.mubr.bf16.mxu0 0
      %2119 = vmatmul.mubr.bf16.gmra.mrb[0].mxu0 %v1068
      %v2120 = vpop.f32.mrb[0].mxu0
      %v2121 = vadd.f32 %v452, %v2120
      %v2122 = vpop.f32.mrb[0].mxu0
      %v2123 = vpop.f32.mrb[0].mxu0
      %v2124 = vadd.f32 %v452, %v2123
      %v2125 = vpop.f32.mrb[0].mxu0
      %2126 = vmatprep.mubr.bf16.mxu0 0
      %2127 = vmatmul.mubr.bf16.gmra.mrb[0].mxu0 %v1069
      %v2128 = vpop.f32.mrb[0].mxu0
      %v2129 = vadd.f32 %v452, %v2128
      %v2130 = vpop.f32.mrb[0].mxu0
      %v2131 = vpop.f32.mrb[0].mxu0
      %v2132 = vadd.f32 %v452, %v2131
      %v2133 = vpop.f32.mrb[0].mxu0
      %2134 = vmatprep.mubr.bf16.mxu0 0
      %2135 = vmatmul.mubr.bf16.gmra.mrb[0].mxu0 %v1070
      %v2136 = vpop.f32.mrb[0].mxu0
      %v2137 = vadd.f32 %v452, %v2136
      %v2138 = vpop.f32.mrb[0].mxu0
      %v2139 = vpop.f32.mrb[0].mxu0
      %v2140 = vadd.f32 %v452, %v2139
      %v2141 = vpop.f32.mrb[0].mxu0
      %2142 = vmatprep.mubr.bf16.mxu0 0
      %2143 = vmatmul.mubr.bf16.gmra.mrb[0].mxu0 %v1071
      %v2144 = vpop.f32.mrb[0].mxu0
      %v2145 = vadd.f32 %v452, %v2144
      %v2146 = vpop.f32.mrb[0].mxu0
      %v2147 = vpop.f32.mrb[0].mxu0
      %v2148 = vadd.f32 %v452, %v2147
      %v2149 = vpop.f32.mrb[0].mxu0
      %2150 = vmatprep.mubr.bf16.mxu0 0
      %2151 = vmatmul.mubr.bf16.gmra.mrb[0].mxu0 %v1072
      %v2152 = vpop.f32.mrb[0].mxu0
      %v2153 = vadd.f32 %v452, %v2152
      %v2154 = vpop.f32.mrb[0].mxu0
      %v2155 = vpop.f32.mrb[0].mxu0
      %v2156 = vadd.f32 %v452, %v2155
      %v2157 = vpop.f32.mrb[0].mxu0
      %2158 = vmatprep.mubr.bf16.mxu0 0
      %2159 = vmatmul.mubr.bf16.gmra.mrb[0].mxu0 %v1073
      %v2160 = vpop.f32.mrb[0].mxu0
      %v2161 = vadd.f32 %v452, %v2160
      %v2162 = vpop.f32.mrb[0].mxu0
      %v2163 = vpop.f32.mrb[0].mxu0
      %v2164 = vadd.f32 %v452, %v2163
      %v2165 = vpop.f32.mrb[0].mxu0
      %2166 = vmatprep.mubr.bf16.mxu0 0
      %2167 = vmatmul.mubr.bf16.gmra.mrb[0].mxu0 %v1074
      %v2168 = vpop.f32.mrb[0].mxu0
      %v2169 = vadd.f32 %v452, %v2168
      %v2170 = vpop.f32.mrb[0].mxu0
      %v2171 = vpop.f32.mrb[0].mxu0
      %v2172 = vadd.f32 %v452, %v2171
      %v2173 = vpop.f32.mrb[0].mxu0
      %2174 = vmatprep.mubr.bf16.mxu0 0
      %2175 = vmatmul.mubr.bf16.gmra.mrb[0].mxu0 %v1075
      %v2176 = vpop.f32.mrb[0].mxu0
      %v2177 = vadd.f32 %v452, %v2176
      %v2178 = vpop.f32.mrb[0].mxu0
      %v2179 = vpop.f32.mrb[0].mxu0
      %v2180 = vadd.f32 %v452, %v2179
      %v2181 = vpop.f32.mrb[0].mxu0
      %2182 = vmatprep.mubr.bf16.mxu0 0
      %2183 = vmatmul.mubr.bf16.gmra.mrb[0].mxu0 %v1076
      %v2184 = vpop.f32.mrb[0].mxu0
      %v2185 = vadd.f32 %v452, %v2184
      %v2186 = vpop.f32.mrb[0].mxu0
      %v2187 = vpop.f32.mrb[0].mxu0
      %v2188 = vadd.f32 %v452, %v2187
      %v2189 = vpop.f32.mrb[0].mxu0
      %2190 = vmatprep.mubr.bf16.mxu0 0
      %2191 = vmatmul.mubr.bf16.gmra.mrb[0].mxu0 %v1077
      %v2192 = vpop.f32.mrb[0].mxu0
      %v2193 = vadd.f32 %v452, %v2192
      %v2194 = vpop.f32.mrb[0].mxu0
      %v2195 = vpop.f32.mrb[0].mxu0
      %v2196 = vadd.f32 %v452, %v2195
      %v2197 = vpop.f32.mrb[0].mxu0
      %2198 = vmatprep.mubr.bf16.mxu0 0
      %2199 = vmatmul.mubr.bf16.gmra.mrb[0].mxu0 %v1078
      %v2200 = vpop.f32.mrb[0].mxu0
      %v2201 = vadd.f32 %v452, %v2200
      %v2202 = vpop.f32.mrb[0].mxu0
      %v2203 = vpop.f32.mrb[0].mxu0
      %v2204 = vadd.f32 %v452, %v2203
      %v2205 = vpop.f32.mrb[0].mxu0
      %2206 = vmatprep.mubr.bf16.mxu0 0
      %2207 = vmatmul.mubr.bf16.gmra.mrb[0].mxu0 %v1079
      %v2208 = vpop.f32.mrb[0].mxu0
      %v2209 = vadd.f32 %v452, %v2208
      %v2210 = vpop.f32.mrb[0].mxu0
      %v2211 = vpop.f32.mrb[0].mxu0
      %v2212 = vadd.f32 %v452, %v2211
      %v2213 = vpop.f32.mrb[0].mxu0
      %2214 = vmatprep.mubr.bf16.mxu0 0
      %2215 = vmatmul.mubr.bf16.gmra.mrb[0].mxu0 %v1080
      %v2216 = vpop.f32.mrb[0].mxu0
      %v2217 = vadd.f32 %v452, %v2216
      %v2218 = vpop.f32.mrb[0].mxu0
      %v2219 = vpop.f32.mrb[0].mxu0
      %v2220 = vadd.f32 %v452, %v2219
      %v2221 = vpop.f32.mrb[0].mxu0
      %2222 = vmatprep.mubr.bf16.mxu0 0
      %2223 = vmatmul.mubr.bf16.gmra.mrb[0].mxu0 %v1081
      %v2224 = vpop.f32.mrb[0].mxu0
      %v2225 = vadd.f32 %v452, %v2224
      %v2226 = vpop.f32.mrb[0].mxu0
      %v2227 = vpop.f32.mrb[0].mxu0
      %v2228 = vadd.f32 %v452, %v2227
      %v2229 = vpop.f32.mrb[0].mxu0
      %2230 = vmatprep.mubr.bf16.mxu0 0
      %2231 = vmatmul.mubr.bf16.gmra.mrb[0].mxu0 %v1082
      %v2232 = vpop.f32.mrb[0].mxu0
      %v2233 = vadd.f32 %v452, %v2232
      %v2234 = vpop.f32.mrb[0].mxu0
      %v2235 = vpop.f32.mrb[0].mxu0
      %v2236 = vadd.f32 %v452, %v2235
      %v2237 = vpop.f32.mrb[0].mxu0
      %2238 = vmatprep.mubr.bf16.mxu0 0
      %2239 = vmatmul.mubr.bf16.gmra.mrb[0].mxu0 %v1083
      %v2240 = vpop.f32.mrb[0].mxu0
      %v2241 = vadd.f32 %v452, %v2240
      %v2242 = vpop.f32.mrb[0].mxu0
      %v2243 = vpop.f32.mrb[0].mxu0
      %v2244 = vadd.f32 %v452, %v2243
      %v2245 = vpop.f32.mrb[0].mxu0
      %2246 = vmatprep.mubr.bf16.mxu0 0
      %2247 = vmatmul.mubr.bf16.gmra.mrb[0].mxu0 %v1084
      %v2248 = vpop.f32.mrb[0].mxu0
      %v2249 = vadd.f32 %v452, %v2248
      %v2250 = vpop.f32.mrb[0].mxu0
      %v2251 = vpop.f32.mrb[0].mxu0
      %v2252 = vadd.f32 %v452, %v2251
      %v2253 = vpop.f32.mrb[0].mxu0
      %2254 = vmatprep.mubr.bf16.mxu0 0
      %2255 = vmatmul.mubr.bf16.gmra.mrb[0].mxu0 %v1085
      %v2256 = vpop.f32.mrb[0].mxu0
      %v2257 = vadd.f32 %v452, %v2256
      %v2258 = vpop.f32.mrb[0].mxu0
      %v2259 = vpop.f32.mrb[0].mxu0
      %v2260 = vadd.f32 %v452, %v2259
      %v2261 = vpop.f32.mrb[0].mxu0
      %2262 = vmatprep.mubr.bf16.mxu0 0
      %2263 = vmatmul.mubr.bf16.gmra.mrb[0].mxu0 %v1086
      %v2264 = vpop.f32.mrb[0].mxu0
      %v2265 = vadd.f32 %v452, %v2264
      %v2266 = vpop.f32.mrb[0].mxu0
      %v2267 = vpop.f32.mrb[0].mxu0
      %v2268 = vadd.f32 %v452, %v2267
      %v2269 = vpop.f32.mrb[0].mxu0
      %2270 = vmatprep.mubr.bf16.mxu0 0
      %2271 = vmatmul.mubr.bf16.gmra.mrb[0].mxu0 %v1087
      %v2272 = vpop.f32.mrb[0].mxu0
      %v2273 = vadd.f32 %v452, %v2272
      %v2274 = vpop.f32.mrb[0].mxu0
      %v2275 = vpop.f32.mrb[0].mxu0
      %v2276 = vadd.f32 %v452, %v2275
      %v2277 = vpop.f32.mrb[0].mxu0
      %2278 = vmatprep.mubr.bf16.mxu0 0
      %2279 = vmatmul.mubr.bf16.gmra.mrb[0].mxu0 %v1088
      %v2280 = vpop.f32.mrb[0].mxu0
      %v2281 = vadd.f32 %v452, %v2280
      %v2282 = vpop.f32.mrb[0].mxu0
      %v2283 = vpop.f32.mrb[0].mxu0
      %v2284 = vadd.f32 %v452, %v2283
      %v2285 = vpop.f32.mrb[0].mxu0
      %2286 = vmatprep.mubr.bf16.mxu0 0
      %2287 = vmatmul.mubr.bf16.gmra.mrb[0].mxu0 %v1089
      %v2288 = vpop.f32.mrb[0].mxu0
      %v2289 = vadd.f32 %v452, %v2288
      %v2290 = vpop.f32.mrb[0].mxu0
      %v2291 = vpop.f32.mrb[0].mxu0
      %v2292 = vadd.f32 %v452, %v2291
      %v2293 = vpop.f32.mrb[0].mxu0
      %2294 = vmatprep.mubr.bf16.mxu0 0
      %2295 = vmatmul.mubr.bf16.gmra.mrb[0].mxu0 %v1090
      %v2296 = vpop.f32.mrb[0].mxu0
      %v2297 = vadd.f32 %v452, %v2296
      %v2298 = vpop.f32.mrb[0].mxu0
      %v2299 = vpop.f32.mrb[0].mxu0
      %v2300 = vadd.f32 %v452, %v2299
      %v2301 = vpop.f32.mrb[0].mxu0
      %2302 = vmatprep.mubr.bf16.mxu0 0
      %2303 = vmatmul.mubr.bf16.gmra.mrb[0].mxu0 %v1091
      %v2304 = vpop.f32.mrb[0].mxu0
      %v2305 = vadd.f32 %v452, %v2304
      %v2306 = vpop.f32.mrb[0].mxu0
      %v2307 = vpop.f32.mrb[0].mxu0
      %v2308 = vadd.f32 %v452, %v2307
      %v2309 = vpop.f32.mrb[0].mxu0
      %2310 = vmatprep.mubr.bf16.mxu0 0
      %2311 = vmatmul.mubr.bf16.gmra.mrb[0].mxu0 %v1092
      %v2312 = vpop.f32.mrb[0].mxu0
      %v2313 = vadd.f32 %v452, %v2312
      %v2314 = vpop.f32.mrb[0].mxu0
      %v2315 = vpop.f32.mrb[0].mxu0
      %v2316 = vadd.f32 %v452, %v2315
      %v2317 = vpop.f32.mrb[0].mxu0
      %2318 = vmatprep.mubr.bf16.mxu0 0
      %2319 = vmatmul.mubr.bf16.gmra.mrb[0].mxu0 %v1093
      %v2320 = vpop.f32.mrb[0].mxu0
      %v2321 = vadd.f32 %v452, %v2320
      %v2322 = vpop.f32.mrb[0].mxu0
      %v2323 = vpop.f32.mrb[0].mxu0
      %v2324 = vadd.f32 %v452, %v2323
      %v2325 = vpop.f32.mrb[0].mxu0
      %2326 = vdwg.mxu0
      %v2327 = vmax.f32 %v1305, 0.0
      %v2328 = vmax.f32 %v1308, 0.0
      %v2329 = vmax.f32 %v1313, 0.0
      %v2330 = vmax.f32 %v1316, 0.0
      %v2331 = vmax.f32 %v1321, 0.0
      %v2332 = vmax.f32 %v1324, 0.0
      %v2333 = vmax.f32 %v1329, 0.0
      %v2334 = vmax.f32 %v1332, 0.0
      %v2335 = vmax.f32 %v1337, 0.0
      %v2336 = vmax.f32 %v1340, 0.0
      %v2337 = vmax.f32 %v1345, 0.0
      %v2338 = vmax.f32 %v1348, 0.0
      %v2339 = vmax.f32 %v1353, 0.0
      %v2340 = vmax.f32 %v1356, 0.0
      %v2341 = vmax.f32 %v1361, 0.0
      %v2342 = vmax.f32 %v1364, 0.0
      %v2343 = vmax.f32 %v1369, 0.0
      %v2344 = vmax.f32 %v1372, 0.0
      %v2345 = vmax.f32 %v1377, 0.0
      %v2346 = vmax.f32 %v1380, 0.0
      %v2347 = vmax.f32 %v1385, 0.0
      %v2348 = vmax.f32 %v1388, 0.0
      %v2349 = vmax.f32 %v1393, 0.0
      %v2350 = vmax.f32 %v1396, 0.0
      %v2351 = vmax.f32 %v1401, 0.0
      %v2352 = vmax.f32 %v1404, 0.0
      %v2353 = vmax.f32 %v1409, 0.0
      %v2354 = vmax.f32 %v1412, 0.0
      %v2355 = vmax.f32 %v1417, 0.0
      %v2356 = vmax.f32 %v1420, 0.0
      %v2357 = vmax.f32 %v1425, 0.0
      %v2358 = vmax.f32 %v1428, 0.0
      %v2359 = vmax.f32 %v1433, 0.0
      %v2360 = vmax.f32 %v1436, 0.0
      %v2361 = vmax.f32 %v1441, 0.0
      %v2362 = vmax.f32 %v1444, 0.0
      %v2363 = vmax.f32 %v1449, 0.0
      %v2364 = vmax.f32 %v1452, 0.0
      %v2365 = vmax.f32 %v1457, 0.0
      %v2366 = vmax.f32 %v1460, 0.0
      %v2367 = vmax.f32 %v1465, 0.0
      %v2368 = vmax.f32 %v1468, 0.0
      %v2369 = vmax.f32 %v1473, 0.0
      %v2370 = vmax.f32 %v1476, 0.0
      %v2371 = vmax.f32 %v1481, 0.0
      %v2372 = vmax.f32 %v1484, 0.0
      %v2373 = vmax.f32 %v1489, 0.0
      %v2374 = vmax.f32 %v1492, 0.0
      %v2375 = vmax.f32 %v1497, 0.0
      %v2376 = vmax.f32 %v1500, 0.0
      %v2377 = vmax.f32 %v1505, 0.0
      %v2378 = vmax.f32 %v1508, 0.0
      %v2379 = vmax.f32 %v1513, 0.0
      %v2380 = vmax.f32 %v1516, 0.0
      %v2381 = vmax.f32 %v1521, 0.0
      %v2382 = vmax.f32 %v1524, 0.0
      %v2383 = vmax.f32 %v1529, 0.0
      %v2384 = vmax.f32 %v1532, 0.0
      %v2385 = vmax.f32 %v1537, 0.0
      %v2386 = vmax.f32 %v1540, 0.0
      %v2387 = vmax.f32 %v1545, 0.0
      %v2388 = vmax.f32 %v1548, 0.0
      %v2389 = vmax.f32 %v1553, 0.0
      %v2390 = vmax.f32 %v1556, 0.0
      %v2391 = vmax.f32 %v1561, 0.0
      %v2392 = vmax.f32 %v1564, 0.0
      %v2393 = vmax.f32 %v1569, 0.0
      %v2394 = vmax.f32 %v1572, 0.0
      %v2395 = vmax.f32 %v1577, 0.0
      %v2396 = vmax.f32 %v1580, 0.0
      %v2397 = vmax.f32 %v1585, 0.0
      %v2398 = vmax.f32 %v1588, 0.0
      %v2399 = vmax.f32 %v1593, 0.0
      %v2400 = vmax.f32 %v1596, 0.0
      %v2401 = vmax.f32 %v1601, 0.0
      %v2402 = vmax.f32 %v1604, 0.0
      %v2403 = vmax.f32 %v1609, 0.0
      %v2404 = vmax.f32 %v1612, 0.0
      %v2405 = vmax.f32 %v1617, 0.0
      %v2406 = vmax.f32 %v1620, 0.0
      %v2407 = vmax.f32 %v1625, 0.0
      %v2408 = vmax.f32 %v1628, 0.0
      %v2409 = vmax.f32 %v1633, 0.0
      %v2410 = vmax.f32 %v1636, 0.0
      %v2411 = vmax.f32 %v1641, 0.0
      %v2412 = vmax.f32 %v1644, 0.0
      %v2413 = vmax.f32 %v1649, 0.0
      %v2414 = vmax.f32 %v1652, 0.0
      %v2415 = vmax.f32 %v1657, 0.0
      %v2416 = vmax.f32 %v1660, 0.0
      %v2417 = vmax.f32 %v1665, 0.0
      %v2418 = vmax.f32 %v1668, 0.0
      %v2419 = vmax.f32 %v1673, 0.0
      %v2420 = vmax.f32 %v1676, 0.0
      %v2421 = vmax.f32 %v1681, 0.0
      %v2422 = vmax.f32 %v1684, 0.0
      %v2423 = vmax.f32 %v1689, 0.0
      %v2424 = vmax.f32 %v1692, 0.0
      %v2425 = vmax.f32 %v1697, 0.0
      %v2426 = vmax.f32 %v1700, 0.0
      %v2427 = vmax.f32 %v1705, 0.0
      %v2428 = vmax.f32 %v1708, 0.0
      %v2429 = vmax.f32 %v1713, 0.0
      %v2430 = vmax.f32 %v1716, 0.0
      %v2431 = vmax.f32 %v1721, 0.0
      %v2432 = vmax.f32 %v1724, 0.0
      %v2433 = vmax.f32 %v1729, 0.0
      %v2434 = vmax.f32 %v1732, 0.0
      %v2435 = vmax.f32 %v1737, 0.0
      %v2436 = vmax.f32 %v1740, 0.0
      %v2437 = vmax.f32 %v1745, 0.0
      %v2438 = vmax.f32 %v1748, 0.0
      %v2439 = vmax.f32 %v1753, 0.0
      %v2440 = vmax.f32 %v1756, 0.0
      %v2441 = vmax.f32 %v1761, 0.0
      %v2442 = vmax.f32 %v1764, 0.0
      %v2443 = vmax.f32 %v1769, 0.0
      %v2444 = vmax.f32 %v1772, 0.0
      %v2445 = vmax.f32 %v1777, 0.0
      %v2446 = vmax.f32 %v1780, 0.0
      %v2447 = vmax.f32 %v1785, 0.0
      %v2448 = vmax.f32 %v1788, 0.0
      %v2449 = vmax.f32 %v1793, 0.0
      %v2450 = vmax.f32 %v1796, 0.0
      %v2451 = vmax.f32 %v1801, 0.0
      %v2452 = vmax.f32 %v1804, 0.0
      %v2453 = vmax.f32 %v1809, 0.0
      %v2454 = vmax.f32 %v1812, 0.0
      %v2455 = vmax.f32 %v1817, 0.0
      %v2456 = vmax.f32 %v1820, 0.0
      %v2457 = vmax.f32 %v1825, 0.0
      %v2458 = vmax.f32 %v1828, 0.0
      %v2459 = vmax.f32 %v1833, 0.0
      %v2460 = vmax.f32 %v1836, 0.0
      %v2461 = vmax.f32 %v1841, 0.0
      %v2462 = vmax.f32 %v1844, 0.0
      %v2463 = vmax.f32 %v1849, 0.0
      %v2464 = vmax.f32 %v1852, 0.0
      %v2465 = vmax.f32 %v1857, 0.0
      %v2466 = vmax.f32 %v1860, 0.0
      %v2467 = vmax.f32 %v1865, 0.0
      %v2468 = vmax.f32 %v1868, 0.0
      %v2469 = vmax.f32 %v1873, 0.0
      %v2470 = vmax.f32 %v1876, 0.0
      %v2471 = vmax.f32 %v1881, 0.0
      %v2472 = vmax.f32 %v1884, 0.0
      %v2473 = vmax.f32 %v1889, 0.0
      %v2474 = vmax.f32 %v1892, 0.0
      %v2475 = vmax.f32 %v1897, 0.0
      %v2476 = vmax.f32 %v1900, 0.0
      %v2477 = vmax.f32 %v1905, 0.0
      %v2478 = vmax.f32 %v1908, 0.0
      %v2479 = vmax.f32 %v1913, 0.0
      %v2480 = vmax.f32 %v1916, 0.0
      %v2481 = vmax.f32 %v1921, 0.0
      %v2482 = vmax.f32 %v1924, 0.0
      %v2483 = vmax.f32 %v1929, 0.0
      %v2484 = vmax.f32 %v1932, 0.0
      %v2485 = vmax.f32 %v1937, 0.0
      %v2486 = vmax.f32 %v1940, 0.0
      %v2487 = vmax.f32 %v1945, 0.0
      %v2488 = vmax.f32 %v1948, 0.0
      %v2489 = vmax.f32 %v1953, 0.0
      %v2490 = vmax.f32 %v1956, 0.0
      %v2491 = vmax.f32 %v1961, 0.0
      %v2492 = vmax.f32 %v1964, 0.0
      %v2493 = vmax.f32 %v1969, 0.0
      %v2494 = vmax.f32 %v1972, 0.0
      %v2495 = vmax.f32 %v1977, 0.0
      %v2496 = vmax.f32 %v1980, 0.0
      %v2497 = vmax.f32 %v1985, 0.0
      %v2498 = vmax.f32 %v1988, 0.0
      %v2499 = vmax.f32 %v1993, 0.0
      %v2500 = vmax.f32 %v1996, 0.0
      %v2501 = vmax.f32 %v2001, 0.0
      %v2502 = vmax.f32 %v2004, 0.0
      %v2503 = vmax.f32 %v2009, 0.0
      %v2504 = vmax.f32 %v2012, 0.0
      %v2505 = vmax.f32 %v2017, 0.0
      %v2506 = vmax.f32 %v2020, 0.0
      %v2507 = vmax.f32 %v2025, 0.0
      %v2508 = vmax.f32 %v2028, 0.0
      %v2509 = vmax.f32 %v2033, 0.0
      %v2510 = vmax.f32 %v2036, 0.0
      %v2511 = vmax.f32 %v2041, 0.0
      %v2512 = vmax.f32 %v2044, 0.0
      %v2513 = vmax.f32 %v2049, 0.0
      %v2514 = vmax.f32 %v2052, 0.0
      %v2515 = vmax.f32 %v2057, 0.0
      %v2516 = vmax.f32 %v2060, 0.0
      %v2517 = vmax.f32 %v2065, 0.0
      %v2518 = vmax.f32 %v2068, 0.0
      %v2519 = vmax.f32 %v2073, 0.0
      %v2520 = vmax.f32 %v2076, 0.0
      %v2521 = vmax.f32 %v2081, 0.0
      %v2522 = vmax.f32 %v2084, 0.0
      %v2523 = vmax.f32 %v2089, 0.0
      %v2524 = vmax.f32 %v2092, 0.0
      %v2525 = vmax.f32 %v2097, 0.0
      %v2526 = vmax.f32 %v2100, 0.0
      %v2527 = vmax.f32 %v2105, 0.0
      %v2528 = vmax.f32 %v2108, 0.0
      %v2529 = vmax.f32 %v2113, 0.0
      %v2530 = vmax.f32 %v2116, 0.0
      %v2531 = vmax.f32 %v2121, 0.0
      %v2532 = vmax.f32 %v2124, 0.0
      %v2533 = vmax.f32 %v2129, 0.0
      %v2534 = vmax.f32 %v2132, 0.0
      %v2535 = vmax.f32 %v2137, 0.0
      %v2536 = vmax.f32 %v2140, 0.0
      %v2537 = vmax.f32 %v2145, 0.0
      %v2538 = vmax.f32 %v2148, 0.0
      %v2539 = vmax.f32 %v2153, 0.0
      %v2540 = vmax.f32 %v2156, 0.0
      %v2541 = vmax.f32 %v2161, 0.0
      %v2542 = vmax.f32 %v2164, 0.0
      %v2543 = vmax.f32 %v2169, 0.0
      %v2544 = vmax.f32 %v2172, 0.0
      %v2545 = vmax.f32 %v2177, 0.0
      %v2546 = vmax.f32 %v2180, 0.0
      %v2547 = vmax.f32 %v2185, 0.0
      %v2548 = vmax.f32 %v2188, 0.0
      %v2549 = vmax.f32 %v2193, 0.0
      %v2550 = vmax.f32 %v2196, 0.0
      %v2551 = vmax.f32 %v2201, 0.0
      %v2552 = vmax.f32 %v2204, 0.0
      %v2553 = vmax.f32 %v2209, 0.0
      %v2554 = vmax.f32 %v2212, 0.0
      %v2555 = vmax.f32 %v2217, 0.0
      %v2556 = vmax.f32 %v2220, 0.0
      %v2557 = vmax.f32 %v2225, 0.0
      %v2558 = vmax.f32 %v2228, 0.0
      %v2559 = vmax.f32 %v2233, 0.0
      %v2560 = vmax.f32 %v2236, 0.0
      %v2561 = vmax.f32 %v2241, 0.0
      %v2562 = vmax.f32 %v2244, 0.0
      %v2563 = vmax.f32 %v2249, 0.0
      %v2564 = vmax.f32 %v2252, 0.0
      %v2565 = vmax.f32 %v2257, 0.0
      %v2566 = vmax.f32 %v2260, 0.0
      %v2567 = vmax.f32 %v2265, 0.0
      %v2568 = vmax.f32 %v2268, 0.0
      %v2569 = vmax.f32 %v2273, 0.0
      %v2570 = vmax.f32 %v2276, 0.0
      %v2571 = vmax.f32 %v2281, 0.0
      %v2572 = vmax.f32 %v2284, 0.0
      %v2573 = vmax.f32 %v2289, 0.0
      %v2574 = vmax.f32 %v2292, 0.0
      %v2575 = vmax.f32 %v2297, 0.0
      %v2576 = vmax.f32 %v2300, 0.0
      %v2577 = vmax.f32 %v2305, 0.0
      %v2578 = vmax.f32 %v2308, 0.0
      %v2579 = vmax.f32 %v2313, 0.0
      %v2580 = vmax.f32 %v2316, 0.0
      %v2581 = vmax.f32 %v2321, 0.0
      %v2582 = vmax.f32 %v2324, 0.0
      %v2583 = vmax.f32 %v2327, %v2328
      %v2584 = vmax.f32 %v2329, %v2330
      %v2585 = vmax.f32 %v2331, %v2332
      %v2586 = vmax.f32 %v2333, %v2334
      %v2587 = vmax.f32 %v2335, %v2336
      %v2588 = vmax.f32 %v2337, %v2338
      %v2589 = vmax.f32 %v2339, %v2340
      %v2590 = vmax.f32 %v2341, %v2342
      %v2591 = vmax.f32 %v2343, %v2344
      %v2592 = vmax.f32 %v2345, %v2346
      %v2593 = vmax.f32 %v2347, %v2348
      %v2594 = vmax.f32 %v2349, %v2350
      %v2595 = vmax.f32 %v2351, %v2352
      %v2596 = vmax.f32 %v2353, %v2354
      %v2597 = vmax.f32 %v2355, %v2356
      %v2598 = vmax.f32 %v2357, %v2358
      %v2599 = vmax.f32 %v2359, %v2360
      %v2600 = vmax.f32 %v2361, %v2362
      %v2601 = vmax.f32 %v2363, %v2364
      %v2602 = vmax.f32 %v2365, %v2366
      %v2603 = vmax.f32 %v2367, %v2368
      %v2604 = vmax.f32 %v2369, %v2370
      %v2605 = vmax.f32 %v2371, %v2372
      %v2606 = vmax.f32 %v2373, %v2374
      %v2607 = vmax.f32 %v2375, %v2376
      %v2608 = vmax.f32 %v2377, %v2378
      %v2609 = vmax.f32 %v2379, %v2380
      %v2610 = vmax.f32 %v2381, %v2382
      %v2611 = vmax.f32 %v2383, %v2384
      %v2612 = vmax.f32 %v2385, %v2386
      %v2613 = vmax.f32 %v2387, %v2388
      %v2614 = vmax.f32 %v2389, %v2390
      %v2615 = vmax.f32 %v2391, %v2392
      %v2616 = vmax.f32 %v2393, %v2394
      %v2617 = vmax.f32 %v2395, %v2396
      %v2618 = vmax.f32 %v2397, %v2398
      %v2619 = vmax.f32 %v2399, %v2400
      %v2620 = vmax.f32 %v2401, %v2402
      %v2621 = vmax.f32 %v2403, %v2404
      %v2622 = vmax.f32 %v2405, %v2406
      %v2623 = vmax.f32 %v2407, %v2408
      %v2624 = vmax.f32 %v2409, %v2410
      %v2625 = vmax.f32 %v2411, %v2412
      %v2626 = vmax.f32 %v2413, %v2414
      %v2627 = vmax.f32 %v2415, %v2416
      %v2628 = vmax.f32 %v2417, %v2418
      %v2629 = vmax.f32 %v2419, %v2420
      %v2630 = vmax.f32 %v2421, %v2422
      %v2631 = vmax.f32 %v2423, %v2424
      %v2632 = vmax.f32 %v2425, %v2426
      %v2633 = vmax.f32 %v2427, %v2428
      %v2634 = vmax.f32 %v2429, %v2430
      %v2635 = vmax.f32 %v2431, %v2432
      %v2636 = vmax.f32 %v2433, %v2434
      %v2637 = vmax.f32 %v2435, %v2436
      %v2638 = vmax.f32 %v2437, %v2438
      %v2639 = vmax.f32 %v2439, %v2440
      %v2640 = vmax.f32 %v2441, %v2442
      %v2641 = vmax.f32 %v2443, %v2444
      %v2642 = vmax.f32 %v2445, %v2446
      %v2643 = vmax.f32 %v2447, %v2448
      %v2644 = vmax.f32 %v2449, %v2450
      %v2645 = vmax.f32 %v2451, %v2452
      %v2646 = vmax.f32 %v2453, %v2454
      %v2647 = vmax.f32 %v2455, %v2456
      %v2648 = vmax.f32 %v2457, %v2458
      %v2649 = vmax.f32 %v2459, %v2460
      %v2650 = vmax.f32 %v2461, %v2462
      %v2651 = vmax.f32 %v2463, %v2464
      %v2652 = vmax.f32 %v2465, %v2466
      %v2653 = vmax.f32 %v2467, %v2468
      %v2654 = vmax.f32 %v2469, %v2470
      %v2655 = vmax.f32 %v2471, %v2472
      %v2656 = vmax.f32 %v2473, %v2474
      %v2657 = vmax.f32 %v2475, %v2476
      %v2658 = vmax.f32 %v2477, %v2478
      %v2659 = vmax.f32 %v2479, %v2480
      %v2660 = vmax.f32 %v2481, %v2482
      %v2661 = vmax.f32 %v2483, %v2484
      %v2662 = vmax.f32 %v2485, %v2486
      %v2663 = vmax.f32 %v2487, %v2488
      %v2664 = vmax.f32 %v2489, %v2490
      %v2665 = vmax.f32 %v2491, %v2492
      %v2666 = vmax.f32 %v2493, %v2494
      %v2667 = vmax.f32 %v2495, %v2496
      %v2668 = vmax.f32 %v2497, %v2498
      %v2669 = vmax.f32 %v2499, %v2500
      %v2670 = vmax.f32 %v2501, %v2502
      %v2671 = vmax.f32 %v2503, %v2504
      %v2672 = vmax.f32 %v2505, %v2506
      %v2673 = vmax.f32 %v2507, %v2508
      %v2674 = vmax.f32 %v2509, %v2510
      %v2675 = vmax.f32 %v2511, %v2512
      %v2676 = vmax.f32 %v2513, %v2514
      %v2677 = vmax.f32 %v2515, %v2516
      %v2678 = vmax.f32 %v2517, %v2518
      %v2679 = vmax.f32 %v2519, %v2520
      %v2680 = vmax.f32 %v2521, %v2522
      %v2681 = vmax.f32 %v2523, %v2524
      %v2682 = vmax.f32 %v2525, %v2526
      %v2683 = vmax.f32 %v2527, %v2528
      %v2684 = vmax.f32 %v2529, %v2530
      %v2685 = vmax.f32 %v2531, %v2532
      %v2686 = vmax.f32 %v2533, %v2534
      %v2687 = vmax.f32 %v2535, %v2536
      %v2688 = vmax.f32 %v2537, %v2538
      %v2689 = vmax.f32 %v2539, %v2540
      %v2690 = vmax.f32 %v2541, %v2542
      %v2691 = vmax.f32 %v2543, %v2544
      %v2692 = vmax.f32 %v2545, %v2546
      %v2693 = vmax.f32 %v2547, %v2548
      %v2694 = vmax.f32 %v2549, %v2550
      %v2695 = vmax.f32 %v2551, %v2552
      %v2696 = vmax.f32 %v2553, %v2554
      %v2697 = vmax.f32 %v2555, %v2556
      %v2698 = vmax.f32 %v2557, %v2558
      %v2699 = vmax.f32 %v2559, %v2560
      %v2700 = vmax.f32 %v2561, %v2562
      %v2701 = vmax.f32 %v2563, %v2564
      %v2702 = vmax.f32 %v2565, %v2566
      %v2703 = vmax.f32 %v2567, %v2568
      %v2704 = vmax.f32 %v2569, %v2570
      %v2705 = vmax.f32 %v2571, %v2572
      %v2706 = vmax.f32 %v2573, %v2574
      %v2707 = vmax.f32 %v2575, %v2576
      %v2708 = vmax.f32 %v2577, %v2578
      %v2709 = vmax.f32 %v2579, %v2580
      %v2710 = vmax.f32 %v2581, %v2582
      %v2839 = vrot.slane %v2583, 4
      %v2840 = vrot.slane %v2584, 4
      %v2841 = vrot.slane %v2585, 4
      %v2842 = vrot.slane %v2586, 4
      %v2843 = vrot.slane %v2587, 4
      %v2844 = vrot.slane %v2588, 4
      %v2845 = vrot.slane %v2589, 4
      %v2846 = vrot.slane %v2590, 4
      %v2847 = vrot.slane %v2591, 4
      %v2848 = vrot.slane %v2592, 4
      %v2849 = vrot.slane %v2593, 4
      %v2850 = vrot.slane %v2594, 4
      %v2851 = vrot.slane %v2595, 4
      %v2852 = vrot.slane %v2596, 4
      %v2853 = vrot.slane %v2597, 4
      %v2854 = vrot.slane %v2598, 4
      %v2855 = vrot.slane %v2599, 4
      %v2856 = vrot.slane %v2600, 4
      %v2857 = vrot.slane %v2601, 4
      %v2858 = vrot.slane %v2602, 4
      %v2859 = vrot.slane %v2603, 4
      %v2860 = vrot.slane %v2604, 4
      %v2861 = vrot.slane %v2605, 4
      %v2862 = vrot.slane %v2606, 4
      %v2863 = vrot.slane %v2607, 4
      %v2864 = vrot.slane %v2608, 4
      %v2865 = vrot.slane %v2609, 4
      %v2866 = vrot.slane %v2610, 4
      %v2867 = vrot.slane %v2611, 4
      %v2868 = vrot.slane %v2612, 4
      %v2869 = vrot.slane %v2613, 4
      %v2870 = vrot.slane %v2614, 4
      %v2871 = vrot.slane %v2615, 4
      %v2872 = vrot.slane %v2616, 4
      %v2873 = vrot.slane %v2617, 4
      %v2874 = vrot.slane %v2618, 4
      %v2875 = vrot.slane %v2619, 4
      %v2876 = vrot.slane %v2620, 4
      %v2877 = vrot.slane %v2621, 4
      %v2878 = vrot.slane %v2622, 4
      %v2879 = vrot.slane %v2623, 4
      %v2880 = vrot.slane %v2624, 4
      %v2881 = vrot.slane %v2625, 4
      %v2882 = vrot.slane %v2626, 4
      %v2883 = vrot.slane %v2627, 4
      %v2884 = vrot.slane %v2628, 4
      %v2885 = vrot.slane %v2629, 4
      %v2886 = vrot.slane %v2630, 4
      %v2887 = vrot.slane %v2631, 4
      %v2888 = vrot.slane %v2632, 4
      %v2889 = vrot.slane %v2633, 4
      %v2890 = vrot.slane %v2634, 4
      %v2891 = vrot.slane %v2635, 4
      %v2892 = vrot.slane %v2636, 4
      %v2893 = vrot.slane %v2637, 4
      %v2894 = vrot.slane %v2638, 4
      %v2895 = vrot.slane %v2639, 4
      %v2896 = vrot.slane %v2640, 4
      %v2897 = vrot.slane %v2641, 4
      %v2898 = vrot.slane %v2642, 4
      %v2899 = vrot.slane %v2643, 4
      %v2900 = vrot.slane %v2644, 4
      %v2901 = vrot.slane %v2645, 4
      %v2902 = vrot.slane %v2646, 4
      %v2903 = vrot.slane %v2647, 4
      %v2904 = vrot.slane %v2648, 4
      %v2905 = vrot.slane %v2649, 4
      %v2906 = vrot.slane %v2650, 4
      %v2907 = vrot.slane %v2651, 4
      %v2908 = vrot.slane %v2652, 4
      %v2909 = vrot.slane %v2653, 4
      %v2910 = vrot.slane %v2654, 4
      %v2911 = vrot.slane %v2655, 4
      %v2912 = vrot.slane %v2656, 4
      %v2913 = vrot.slane %v2657, 4
      %v2914 = vrot.slane %v2658, 4
      %v2915 = vrot.slane %v2659, 4
      %v2916 = vrot.slane %v2660, 4
      %v2917 = vrot.slane %v2661, 4
      %v2918 = vrot.slane %v2662, 4
      %v2919 = vrot.slane %v2663, 4
      %v2920 = vrot.slane %v2664, 4
      %v2921 = vrot.slane %v2665, 4
      %v2922 = vrot.slane %v2666, 4
      %v2923 = vrot.slane %v2667, 4
      %v2924 = vrot.slane %v2668, 4
      %v2925 = vrot.slane %v2669, 4
      %v2926 = vrot.slane %v2670, 4
      %v2927 = vrot.slane %v2671, 4
      %v2928 = vrot.slane %v2672, 4
      %v2929 = vrot.slane %v2673, 4
      %v2930 = vrot.slane %v2674, 4
      %v2931 = vrot.slane %v2675, 4
      %v2932 = vrot.slane %v2676, 4
      %v2933 = vrot.slane %v2677, 4
      %v2934 = vrot.slane %v2678, 4
      %v2935 = vrot.slane %v2679, 4
      %v2936 = vrot.slane %v2680, 4
      %v2937 = vrot.slane %v2681, 4
      %v2938 = vrot.slane %v2682, 4
      %v2939 = vrot.slane %v2683, 4
      %v2940 = vrot.slane %v2684, 4
      %v2941 = vrot.slane %v2685, 4
      %v2942 = vrot.slane %v2686, 4
      %v2943 = vrot.slane %v2687, 4
      %v2944 = vrot.slane %v2688, 4
      %v2945 = vrot.slane %v2689, 4
      %v2946 = vrot.slane %v2690, 4
      %v2947 = vrot.slane %v2691, 4
      %v2948 = vrot.slane %v2692, 4
      %v2949 = vrot.slane %v2693, 4
      %v2950 = vrot.slane %v2694, 4
      %v2951 = vrot.slane %v2695, 4
      %v2952 = vrot.slane %v2696, 4
      %v2953 = vrot.slane %v2697, 4
      %v2954 = vrot.slane %v2698, 4
      %v2955 = vrot.slane %v2699, 4
      %v2956 = vrot.slane %v2700, 4
      %v2957 = vrot.slane %v2701, 4
      %v2958 = vrot.slane %v2702, 4
      %v2959 = vrot.slane %v2703, 4
      %v2960 = vrot.slane %v2704, 4
      %v2961 = vrot.slane %v2705, 4
      %v2962 = vrot.slane %v2706, 4
      %v2963 = vrot.slane %v2707, 4
      %v2964 = vrot.slane %v2708, 4
      %v2965 = vrot.slane %v2709, 4
      %v2966 = vrot.slane %v2710, 4
      %v3095 = vmax.f32 %v2583, %v2839
      %v3096 = vmax.f32 %v2584, %v2840
      %v3097 = vmax.f32 %v2585, %v2841
      %v3098 = vmax.f32 %v2586, %v2842
      %v3099 = vmax.f32 %v2587, %v2843
      %v3100 = vmax.f32 %v2588, %v2844
      %v3101 = vmax.f32 %v2589, %v2845
      %v3102 = vmax.f32 %v2590, %v2846
      %v3103 = vmax.f32 %v2591, %v2847
      %v3104 = vmax.f32 %v2592, %v2848
      %v3105 = vmax.f32 %v2593, %v2849
      %v3106 = vmax.f32 %v2594, %v2850
      %v3107 = vmax.f32 %v2595, %v2851
      %v3108 = vmax.f32 %v2596, %v2852
      %v3109 = vmax.f32 %v2597, %v2853
      %v3110 = vmax.f32 %v2598, %v2854
      %v3111 = vmax.f32 %v2599, %v2855
      %v3112 = vmax.f32 %v2600, %v2856
      %v3113 = vmax.f32 %v2601, %v2857
      %v3114 = vmax.f32 %v2602, %v2858
      %v3115 = vmax.f32 %v2603, %v2859
      %v3116 = vmax.f32 %v2604, %v2860
      %v3117 = vmax.f32 %v2605, %v2861
      %v3118 = vmax.f32 %v2606, %v2862
      %v3119 = vmax.f32 %v2607, %v2863
      %v3120 = vmax.f32 %v2608, %v2864
      %v3121 = vmax.f32 %v2609, %v2865
      %v3122 = vmax.f32 %v2610, %v2866
      %v3123 = vmax.f32 %v2611, %v2867
      %v3124 = vmax.f32 %v2612, %v2868
      %v3125 = vmax.f32 %v2613, %v2869
      %v3126 = vmax.f32 %v2614, %v2870
      %v3127 = vmax.f32 %v2615, %v2871
      %v3128 = vmax.f32 %v2616, %v2872
      %v3129 = vmax.f32 %v2617, %v2873
      %v3130 = vmax.f32 %v2618, %v2874
      %v3131 = vmax.f32 %v2619, %v2875
      %v3132 = vmax.f32 %v2620, %v2876
      %v3133 = vmax.f32 %v2621, %v2877
      %v3134 = vmax.f32 %v2622, %v2878
      %v3135 = vmax.f32 %v2623, %v2879
      %v3136 = vmax.f32 %v2624, %v2880
      %v3137 = vmax.f32 %v2625, %v2881
      %v3138 = vmax.f32 %v2626, %v2882
      %v3139 = vmax.f32 %v2627, %v2883
      %v3140 = vmax.f32 %v2628, %v2884
      %v3141 = vmax.f32 %v2629, %v2885
      %v3142 = vmax.f32 %v2630, %v2886
      %v3143 = vmax.f32 %v2631, %v2887
      %v3144 = vmax.f32 %v2632, %v2888
      %v3145 = vmax.f32 %v2633, %v2889
      %v3146 = vmax.f32 %v2634, %v2890
      %v3147 = vmax.f32 %v2635, %v2891
      %v3148 = vmax.f32 %v2636, %v2892
      %v3149 = vmax.f32 %v2637, %v2893
      %v3150 = vmax.f32 %v2638, %v2894
      %v3151 = vmax.f32 %v2639, %v2895
      %v3152 = vmax.f32 %v2640, %v2896
      %v3153 = vmax.f32 %v2641, %v2897
      %v3154 = vmax.f32 %v2642, %v2898
      %v3155 = vmax.f32 %v2643, %v2899
      %v3156 = vmax.f32 %v2644, %v2900
      %v3157 = vmax.f32 %v2645, %v2901
      %v3158 = vmax.f32 %v2646, %v2902
      %v3159 = vmax.f32 %v2647, %v2903
      %v3160 = vmax.f32 %v2648, %v2904
      %v3161 = vmax.f32 %v2649, %v2905
      %v3162 = vmax.f32 %v2650, %v2906
      %v3163 = vmax.f32 %v2651, %v2907
      %v3164 = vmax.f32 %v2652, %v2908
      %v3165 = vmax.f32 %v2653, %v2909
      %v3166 = vmax.f32 %v2654, %v2910
      %v3167 = vmax.f32 %v2655, %v2911
      %v3168 = vmax.f32 %v2656, %v2912
      %v3169 = vmax.f32 %v2657, %v2913
      %v3170 = vmax.f32 %v2658, %v2914
      %v3171 = vmax.f32 %v2659, %v2915
      %v3172 = vmax.f32 %v2660, %v2916
      %v3173 = vmax.f32 %v2661, %v2917
      %v3174 = vmax.f32 %v2662, %v2918
      %v3175 = vmax.f32 %v2663, %v2919
      %v3176 = vmax.f32 %v2664, %v2920
      %v3177 = vmax.f32 %v2665, %v2921
      %v3178 = vmax.f32 %v2666, %v2922
      %v3179 = vmax.f32 %v2667, %v2923
      %v3180 = vmax.f32 %v2668, %v2924
      %v3181 = vmax.f32 %v2669, %v2925
      %v3182 = vmax.f32 %v2670, %v2926
      %v3183 = vmax.f32 %v2671, %v2927
      %v3184 = vmax.f32 %v2672, %v2928
      %v3185 = vmax.f32 %v2673, %v2929
      %v3186 = vmax.f32 %v2674, %v2930
      %v3187 = vmax.f32 %v2675, %v2931
      %v3188 = vmax.f32 %v2676, %v2932
      %v3189 = vmax.f32 %v2677, %v2933
      %v3190 = vmax.f32 %v2678, %v2934
      %v3191 = vmax.f32 %v2679, %v2935
      %v3192 = vmax.f32 %v2680, %v2936
      %v3193 = vmax.f32 %v2681, %v2937
      %v3194 = vmax.f32 %v2682, %v2938
      %v3195 = vmax.f32 %v2683, %v2939
      %v3196 = vmax.f32 %v2684, %v2940
      %v3197 = vmax.f32 %v2685, %v2941
      %v3198 = vmax.f32 %v2686, %v2942
      %v3199 = vmax.f32 %v2687, %v2943
      %v3200 = vmax.f32 %v2688, %v2944
      %v3201 = vmax.f32 %v2689, %v2945
      %v3202 = vmax.f32 %v2690, %v2946
      %v3203 = vmax.f32 %v2691, %v2947
      %v3204 = vmax.f32 %v2692, %v2948
      %v3205 = vmax.f32 %v2693, %v2949
      %v3206 = vmax.f32 %v2694, %v2950
      %v3207 = vmax.f32 %v2695, %v2951
      %v3208 = vmax.f32 %v2696, %v2952
      %v3209 = vmax.f32 %v2697, %v2953
      %v3210 = vmax.f32 %v2698, %v2954
      %v3211 = vmax.f32 %v2699, %v2955
      %v3212 = vmax.f32 %v2700, %v2956
      %v3213 = vmax.f32 %v2701, %v2957
      %v3214 = vmax.f32 %v2702, %v2958
      %v3215 = vmax.f32 %v2703, %v2959
      %v3216 = vmax.f32 %v2704, %v2960
      %v3217 = vmax.f32 %v2705, %v2961
      %v3218 = vmax.f32 %v2706, %v2962
      %v3219 = vmax.f32 %v2707, %v2963
      %v3220 = vmax.f32 %v2708, %v2964
      %v3221 = vmax.f32 %v2709, %v2965
      %v3222 = vmax.f32 %v2710, %v2966
      %v3351 = vrot.slane %v3095, 2
      %v3352 = vrot.slane %v3096, 2
      %v3353 = vrot.slane %v3097, 2
      %v3354 = vrot.slane %v3098, 2
      %v3355 = vrot.slane %v3099, 2
      %v3356 = vrot.slane %v3100, 2
      %v3357 = vrot.slane %v3101, 2
      %v3358 = vrot.slane %v3102, 2
      %v3359 = vrot.slane %v3103, 2
      %v3360 = vrot.slane %v3104, 2
      %v3361 = vrot.slane %v3105, 2
      %v3362 = vrot.slane %v3106, 2
      %v3363 = vrot.slane %v3107, 2
      %v3364 = vrot.slane %v3108, 2
      %v3365 = vrot.slane %v3109, 2
      %v3366 = vrot.slane %v3110, 2
      %v3367 = vrot.slane %v3111, 2
      %v3368 = vrot.slane %v3112, 2
      %v3369 = vrot.slane %v3113, 2
      %v3370 = vrot.slane %v3114, 2
      %v3371 = vrot.slane %v3115, 2
      %v3372 = vrot.slane %v3116, 2
      %v3373 = vrot.slane %v3117, 2
      %v3374 = vrot.slane %v3118, 2
      %v3375 = vrot.slane %v3119, 2
      %v3376 = vrot.slane %v3120, 2
      %v3377 = vrot.slane %v3121, 2
      %v3378 = vrot.slane %v3122, 2
      %v3379 = vrot.slane %v3123, 2
      %v3380 = vrot.slane %v3124, 2
      %v3381 = vrot.slane %v3125, 2
      %v3382 = vrot.slane %v3126, 2
      %v3383 = vrot.slane %v3127, 2
      %v3384 = vrot.slane %v3128, 2
      %v3385 = vrot.slane %v3129, 2
      %v3386 = vrot.slane %v3130, 2
      %v3387 = vrot.slane %v3131, 2
      %v3388 = vrot.slane %v3132, 2
      %v3389 = vrot.slane %v3133, 2
      %v3390 = vrot.slane %v3134, 2
      %v3391 = vrot.slane %v3135, 2
      %v3392 = vrot.slane %v3136, 2
      %v3393 = vrot.slane %v3137, 2
      %v3394 = vrot.slane %v3138, 2
      %v3395 = vrot.slane %v3139, 2
      %v3396 = vrot.slane %v3140, 2
      %v3397 = vrot.slane %v3141, 2
      %v3398 = vrot.slane %v3142, 2
      %v3399 = vrot.slane %v3143, 2
      %v3400 = vrot.slane %v3144, 2
      %v3401 = vrot.slane %v3145, 2
      %v3402 = vrot.slane %v3146, 2
      %v3403 = vrot.slane %v3147, 2
      %v3404 = vrot.slane %v3148, 2
      %v3405 = vrot.slane %v3149, 2
      %v3406 = vrot.slane %v3150, 2
      %v3407 = vrot.slane %v3151, 2
      %v3408 = vrot.slane %v3152, 2
      %v3409 = vrot.slane %v3153, 2
      %v3410 = vrot.slane %v3154, 2
      %v3411 = vrot.slane %v3155, 2
      %v3412 = vrot.slane %v3156, 2
      %v3413 = vrot.slane %v3157, 2
      %v3414 = vrot.slane %v3158, 2
      %v3415 = vrot.slane %v3159, 2
      %v3416 = vrot.slane %v3160, 2
      %v3417 = vrot.slane %v3161, 2
      %v3418 = vrot.slane %v3162, 2
      %v3419 = vrot.slane %v3163, 2
      %v3420 = vrot.slane %v3164, 2
      %v3421 = vrot.slane %v3165, 2
      %v3422 = vrot.slane %v3166, 2
      %v3423 = vrot.slane %v3167, 2
      %v3424 = vrot.slane %v3168, 2
      %v3425 = vrot.slane %v3169, 2
      %v3426 = vrot.slane %v3170, 2
      %v3427 = vrot.slane %v3171, 2
      %v3428 = vrot.slane %v3172, 2
      %v3429 = vrot.slane %v3173, 2
      %v3430 = vrot.slane %v3174, 2
      %v3431 = vrot.slane %v3175, 2
      %v3432 = vrot.slane %v3176, 2
      %v3433 = vrot.slane %v3177, 2
      %v3434 = vrot.slane %v3178, 2
      %v3435 = vrot.slane %v3179, 2
      %v3436 = vrot.slane %v3180, 2
      %v3437 = vrot.slane %v3181, 2
      %v3438 = vrot.slane %v3182, 2
      %v3439 = vrot.slane %v3183, 2
      %v3440 = vrot.slane %v3184, 2
      %v3441 = vrot.slane %v3185, 2
      %v3442 = vrot.slane %v3186, 2
      %v3443 = vrot.slane %v3187, 2
      %v3444 = vrot.slane %v3188, 2
      %v3445 = vrot.slane %v3189, 2
      %v3446 = vrot.slane %v3190, 2
      %v3447 = vrot.slane %v3191, 2
      %v3448 = vrot.slane %v3192, 2
      %v3449 = vrot.slane %v3193, 2
      %v3450 = vrot.slane %v3194, 2
      %v3451 = vrot.slane %v3195, 2
      %v3452 = vrot.slane %v3196, 2
      %v3453 = vrot.slane %v3197, 2
      %v3454 = vrot.slane %v3198, 2
      %v3455 = vrot.slane %v3199, 2
      %v3456 = vrot.slane %v3200, 2
      %v3457 = vrot.slane %v3201, 2
      %v3458 = vrot.slane %v3202, 2
      %v3459 = vrot.slane %v3203, 2
      %v3460 = vrot.slane %v3204, 2
      %v3461 = vrot.slane %v3205, 2
      %v3462 = vrot.slane %v3206, 2
      %v3463 = vrot.slane %v3207, 2
      %v3464 = vrot.slane %v3208, 2
      %v3465 = vrot.slane %v3209, 2
      %v3466 = vrot.slane %v3210, 2
      %v3467 = vrot.slane %v3211, 2
      %v3468 = vrot.slane %v3212, 2
      %v3469 = vrot.slane %v3213, 2
      %v3470 = vrot.slane %v3214, 2
      %v3471 = vrot.slane %v3215, 2
      %v3472 = vrot.slane %v3216, 2
      %v3473 = vrot.slane %v3217, 2
      %v3474 = vrot.slane %v3218, 2
      %v3475 = vrot.slane %v3219, 2
      %v3476 = vrot.slane %v3220, 2
      %v3477 = vrot.slane %v3221, 2
      %v3478 = vrot.slane %v3222, 2
      %v3607 = vmax.f32 %v3095, %v3351
      %v3608 = vmax.f32 %v3096, %v3352
      %v3609 = vmax.f32 %v3097, %v3353
      %v3610 = vmax.f32 %v3098, %v3354
      %v3611 = vmax.f32 %v3099, %v3355
      %v3612 = vmax.f32 %v3100, %v3356
      %v3613 = vmax.f32 %v3101, %v3357
      %v3614 = vmax.f32 %v3102, %v3358
      %v3615 = vmax.f32 %v3103, %v3359
      %v3616 = vmax.f32 %v3104, %v3360
      %v3617 = vmax.f32 %v3105, %v3361
      %v3618 = vmax.f32 %v3106, %v3362
      %v3619 = vmax.f32 %v3107, %v3363
      %v3620 = vmax.f32 %v3108, %v3364
      %v3621 = vmax.f32 %v3109, %v3365
      %v3622 = vmax.f32 %v3110, %v3366
      %v3623 = vmax.f32 %v3111, %v3367
      %v3624 = vmax.f32 %v3112, %v3368
      %v3625 = vmax.f32 %v3113, %v3369
      %v3626 = vmax.f32 %v3114, %v3370
      %v3627 = vmax.f32 %v3115, %v3371
      %v3628 = vmax.f32 %v3116, %v3372
      %v3629 = vmax.f32 %v3117, %v3373
      %v3630 = vmax.f32 %v3118, %v3374
      %v3631 = vmax.f32 %v3119, %v3375
      %v3632 = vmax.f32 %v3120, %v3376
      %v3633 = vmax.f32 %v3121, %v3377
      %v3634 = vmax.f32 %v3122, %v3378
      %v3635 = vmax.f32 %v3123, %v3379
      %v3636 = vmax.f32 %v3124, %v3380
      %v3637 = vmax.f32 %v3125, %v3381
      %v3638 = vmax.f32 %v3126, %v3382
      %v3639 = vmax.f32 %v3127, %v3383
      %v3640 = vmax.f32 %v3128, %v3384
      %v3641 = vmax.f32 %v3129, %v3385
      %v3642 = vmax.f32 %v3130, %v3386
      %v3643 = vmax.f32 %v3131, %v3387
      %v3644 = vmax.f32 %v3132, %v3388
      %v3645 = vmax.f32 %v3133, %v3389
      %v3646 = vmax.f32 %v3134, %v3390
      %v3647 = vmax.f32 %v3135, %v3391
      %v3648 = vmax.f32 %v3136, %v3392
      %v3649 = vmax.f32 %v3137, %v3393
      %v3650 = vmax.f32 %v3138, %v3394
      %v3651 = vmax.f32 %v3139, %v3395
      %v3652 = vmax.f32 %v3140, %v3396
      %v3653 = vmax.f32 %v3141, %v3397
      %v3654 = vmax.f32 %v3142, %v3398
      %v3655 = vmax.f32 %v3143, %v3399
      %v3656 = vmax.f32 %v3144, %v3400
      %v3657 = vmax.f32 %v3145, %v3401
      %v3658 = vmax.f32 %v3146, %v3402
      %v3659 = vmax.f32 %v3147, %v3403
      %v3660 = vmax.f32 %v3148, %v3404
      %v3661 = vmax.f32 %v3149, %v3405
      %v3662 = vmax.f32 %v3150, %v3406
      %v3663 = vmax.f32 %v3151, %v3407
      %v3664 = vmax.f32 %v3152, %v3408
      %v3665 = vmax.f32 %v3153, %v3409
      %v3666 = vmax.f32 %v3154, %v3410
      %v3667 = vmax.f32 %v3155, %v3411
      %v3668 = vmax.f32 %v3156, %v3412
      %v3669 = vmax.f32 %v3157, %v3413
      %v3670 = vmax.f32 %v3158, %v3414
      %v3671 = vmax.f32 %v3159, %v3415
      %v3672 = vmax.f32 %v3160, %v3416
      %v3673 = vmax.f32 %v3161, %v3417
      %v3674 = vmax.f32 %v3162, %v3418
      %v3675 = vmax.f32 %v3163, %v3419
      %v3676 = vmax.f32 %v3164, %v3420
      %v3677 = vmax.f32 %v3165, %v3421
      %v3678 = vmax.f32 %v3166, %v3422
      %v3679 = vmax.f32 %v3167, %v3423
      %v3680 = vmax.f32 %v3168, %v3424
      %v3681 = vmax.f32 %v3169, %v3425
      %v3682 = vmax.f32 %v3170, %v3426
      %v3683 = vmax.f32 %v3171, %v3427
      %v3684 = vmax.f32 %v3172, %v3428
      %v3685 = vmax.f32 %v3173, %v3429
      %v3686 = vmax.f32 %v3174, %v3430
      %v3687 = vmax.f32 %v3175, %v3431
      %v3688 = vmax.f32 %v3176, %v3432
      %v3689 = vmax.f32 %v3177, %v3433
      %v3690 = vmax.f32 %v3178, %v3434
      %v3691 = vmax.f32 %v3179, %v3435
      %v3692 = vmax.f32 %v3180, %v3436
      %v3693 = vmax.f32 %v3181, %v3437
      %v3694 = vmax.f32 %v3182, %v3438
      %v3695 = vmax.f32 %v3183, %v3439
      %v3696 = vmax.f32 %v3184, %v3440
      %v3697 = vmax.f32 %v3185, %v3441
      %v3698 = vmax.f32 %v3186, %v3442
      %v3699 = vmax.f32 %v3187, %v3443
      %v3700 = vmax.f32 %v3188, %v3444
      %v3701 = vmax.f32 %v3189, %v3445
      %v3702 = vmax.f32 %v3190, %v3446
      %v3703 = vmax.f32 %v3191, %v3447
      %v3704 = vmax.f32 %v3192, %v3448
      %v3705 = vmax.f32 %v3193, %v3449
      %v3706 = vmax.f32 %v3194, %v3450
      %v3707 = vmax.f32 %v3195, %v3451
      %v3708 = vmax.f32 %v3196, %v3452
      %v3709 = vmax.f32 %v3197, %v3453
      %v3710 = vmax.f32 %v3198, %v3454
      %v3711 = vmax.f32 %v3199, %v3455
      %v3712 = vmax.f32 %v3200, %v3456
      %v3713 = vmax.f32 %v3201, %v3457
      %v3714 = vmax.f32 %v3202, %v3458
      %v3715 = vmax.f32 %v3203, %v3459
      %v3716 = vmax.f32 %v3204, %v3460
      %v3717 = vmax.f32 %v3205, %v3461
      %v3718 = vmax.f32 %v3206, %v3462
      %v3719 = vmax.f32 %v3207, %v3463
      %v3720 = vmax.f32 %v3208, %v3464
      %v3721 = vmax.f32 %v3209, %v3465
      %v3722 = vmax.f32 %v3210, %v3466
      %v3723 = vmax.f32 %v3211, %v3467
      %v3724 = vmax.f32 %v3212, %v3468
      %v3725 = vmax.f32 %v3213, %v3469
      %v3726 = vmax.f32 %v3214, %v3470
      %v3727 = vmax.f32 %v3215, %v3471
      %v3728 = vmax.f32 %v3216, %v3472
      %v3729 = vmax.f32 %v3217, %v3473
      %v3730 = vmax.f32 %v3218, %v3474
      %v3731 = vmax.f32 %v3219, %v3475
      %v3732 = vmax.f32 %v3220, %v3476
      %v3733 = vmax.f32 %v3221, %v3477
      %v3734 = vmax.f32 %v3222, %v3478
      %v3863 = vrot.slane %v3607, 1
      %v3864 = vrot.slane %v3608, 1
      %v3865 = vrot.slane %v3609, 1
      %v3866 = vrot.slane %v3610, 1
      %v3867 = vrot.slane %v3611, 1
      %v3868 = vrot.slane %v3612, 1
      %v3869 = vrot.slane %v3613, 1
      %v3870 = vrot.slane %v3614, 1
      %v3871 = vrot.slane %v3615, 1
      %v3872 = vrot.slane %v3616, 1
      %v3873 = vrot.slane %v3617, 1
      %v3874 = vrot.slane %v3618, 1
      %v3875 = vrot.slane %v3619, 1
      %v3876 = vrot.slane %v3620, 1
      %v3877 = vrot.slane %v3621, 1
      %v3878 = vrot.slane %v3622, 1
      %v3879 = vrot.slane %v3623, 1
      %v3880 = vrot.slane %v3624, 1
      %v3881 = vrot.slane %v3625, 1
      %v3882 = vrot.slane %v3626, 1
      %v3883 = vrot.slane %v3627, 1
      %v3884 = vrot.slane %v3628, 1
      %v3885 = vrot.slane %v3629, 1
      %v3886 = vrot.slane %v3630, 1
      %v3887 = vrot.slane %v3631, 1
      %v3888 = vrot.slane %v3632, 1
      %v3889 = vrot.slane %v3633, 1
      %v3890 = vrot.slane %v3634, 1
      %v3891 = vrot.slane %v3635, 1
      %v3892 = vrot.slane %v3636, 1
      %v3893 = vrot.slane %v3637, 1
      %v3894 = vrot.slane %v3638, 1
      %v3895 = vrot.slane %v3639, 1
      %v3896 = vrot.slane %v3640, 1
      %v3897 = vrot.slane %v3641, 1
      %v3898 = vrot.slane %v3642, 1
      %v3899 = vrot.slane %v3643, 1
      %v3900 = vrot.slane %v3644, 1
      %v3901 = vrot.slane %v3645, 1
      %v3902 = vrot.slane %v3646, 1
      %v3903 = vrot.slane %v3647, 1
      %v3904 = vrot.slane %v3648, 1
      %v3905 = vrot.slane %v3649, 1
      %v3906 = vrot.slane %v3650, 1
      %v3907 = vrot.slane %v3651, 1
      %v3908 = vrot.slane %v3652, 1
      %v3909 = vrot.slane %v3653, 1
      %v3910 = vrot.slane %v3654, 1
      %v3911 = vrot.slane %v3655, 1
      %v3912 = vrot.slane %v3656, 1
      %v3913 = vrot.slane %v3657, 1
      %v3914 = vrot.slane %v3658, 1
      %v3915 = vrot.slane %v3659, 1
      %v3916 = vrot.slane %v3660, 1
      %v3917 = vrot.slane %v3661, 1
      %v3918 = vrot.slane %v3662, 1
      %v3919 = vrot.slane %v3663, 1
      %v3920 = vrot.slane %v3664, 1
      %v3921 = vrot.slane %v3665, 1
      %v3922 = vrot.slane %v3666, 1
      %v3923 = vrot.slane %v3667, 1
      %v3924 = vrot.slane %v3668, 1
      %v3925 = vrot.slane %v3669, 1
      %v3926 = vrot.slane %v3670, 1
      %v3927 = vrot.slane %v3671, 1
      %v3928 = vrot.slane %v3672, 1
      %v3929 = vrot.slane %v3673, 1
      %v3930 = vrot.slane %v3674, 1
      %v3931 = vrot.slane %v3675, 1
      %v3932 = vrot.slane %v3676, 1
      %v3933 = vrot.slane %v3677, 1
      %v3934 = vrot.slane %v3678, 1
      %v3935 = vrot.slane %v3679, 1
      %v3936 = vrot.slane %v3680, 1
      %v3937 = vrot.slane %v3681, 1
      %v3938 = vrot.slane %v3682, 1
      %v3939 = vrot.slane %v3683, 1
      %v3940 = vrot.slane %v3684, 1
      %v3941 = vrot.slane %v3685, 1
      %v3942 = vrot.slane %v3686, 1
      %v3943 = vrot.slane %v3687, 1
      %v3944 = vrot.slane %v3688, 1
      %v3945 = vrot.slane %v3689, 1
      %v3946 = vrot.slane %v3690, 1
      %v3947 = vrot.slane %v3691, 1
      %v3948 = vrot.slane %v3692, 1
      %v3949 = vrot.slane %v3693, 1
      %v3950 = vrot.slane %v3694, 1
      %v3951 = vrot.slane %v3695, 1
      %v3952 = vrot.slane %v3696, 1
      %v3953 = vrot.slane %v3697, 1
      %v3954 = vrot.slane %v3698, 1
      %v3955 = vrot.slane %v3699, 1
      %v3956 = vrot.slane %v3700, 1
      %v3957 = vrot.slane %v3701, 1
      %v3958 = vrot.slane %v3702, 1
      %v3959 = vrot.slane %v3703, 1
      %v3960 = vrot.slane %v3704, 1
      %v3961 = vrot.slane %v3705, 1
      %v3962 = vrot.slane %v3706, 1
      %v3963 = vrot.slane %v3707, 1
      %v3964 = vrot.slane %v3708, 1
      %v3965 = vrot.slane %v3709, 1
      %v3966 = vrot.slane %v3710, 1
      %v3967 = vrot.slane %v3711, 1
      %v3968 = vrot.slane %v3712, 1
      %v3969 = vrot.slane %v3713, 1
      %v3970 = vrot.slane %v3714, 1
      %v3971 = vrot.slane %v3715, 1
      %v3972 = vrot.slane %v3716, 1
      %v3973 = vrot.slane %v3717, 1
      %v3974 = vrot.slane %v3718, 1
      %v3975 = vrot.slane %v3719, 1
      %v3976 = vrot.slane %v3720, 1
      %v3977 = vrot.slane %v3721, 1
      %v3978 = vrot.slane %v3722, 1
      %v3979 = vrot.slane %v3723, 1
      %v3980 = vrot.slane %v3724, 1
      %v3981 = vrot.slane %v3725, 1
      %v3982 = vrot.slane %v3726, 1
      %v3983 = vrot.slane %v3727, 1
      %v3984 = vrot.slane %v3728, 1
      %v3985 = vrot.slane %v3729, 1
      %v3986 = vrot.slane %v3730, 1
      %v3987 = vrot.slane %v3731, 1
      %v3988 = vrot.slane %v3732, 1
      %v3989 = vrot.slane %v3733, 1
      %v3990 = vrot.slane %v3734, 1
      %v4119 = vmax.f32 %v3607, %v3863
      %v4120 = vmax.f32 %v3608, %v3864
      %v4121 = vmax.f32 %v3609, %v3865
      %v4122 = vmax.f32 %v3610, %v3866
      %v4123 = vmax.f32 %v3611, %v3867
      %v4124 = vmax.f32 %v3612, %v3868
      %v4125 = vmax.f32 %v3613, %v3869
      %v4126 = vmax.f32 %v3614, %v3870
      %v4127 = vmax.f32 %v3615, %v3871
      %v4128 = vmax.f32 %v3616, %v3872
      %v4129 = vmax.f32 %v3617, %v3873
      %v4130 = vmax.f32 %v3618, %v3874
      %v4131 = vmax.f32 %v3619, %v3875
      %v4132 = vmax.f32 %v3620, %v3876
      %v4133 = vmax.f32 %v3621, %v3877
      %v4134 = vmax.f32 %v3622, %v3878
      %v4135 = vmax.f32 %v3623, %v3879
      %v4136 = vmax.f32 %v3624, %v3880
      %v4137 = vmax.f32 %v3625, %v3881
      %v4138 = vmax.f32 %v3626, %v3882
      %v4139 = vmax.f32 %v3627, %v3883
      %v4140 = vmax.f32 %v3628, %v3884
      %v4141 = vmax.f32 %v3629, %v3885
      %v4142 = vmax.f32 %v3630, %v3886
      %v4143 = vmax.f32 %v3631, %v3887
      %v4144 = vmax.f32 %v3632, %v3888
      %v4145 = vmax.f32 %v3633, %v3889
      %v4146 = vmax.f32 %v3634, %v3890
      %v4147 = vmax.f32 %v3635, %v3891
      %v4148 = vmax.f32 %v3636, %v3892
      %v4149 = vmax.f32 %v3637, %v3893
      %v4150 = vmax.f32 %v3638, %v3894
      %v4151 = vmax.f32 %v3639, %v3895
      %v4152 = vmax.f32 %v3640, %v3896
      %v4153 = vmax.f32 %v3641, %v3897
      %v4154 = vmax.f32 %v3642, %v3898
      %v4155 = vmax.f32 %v3643, %v3899
      %v4156 = vmax.f32 %v3644, %v3900
      %v4157 = vmax.f32 %v3645, %v3901
      %v4158 = vmax.f32 %v3646, %v3902
      %v4159 = vmax.f32 %v3647, %v3903
      %v4160 = vmax.f32 %v3648, %v3904
      %v4161 = vmax.f32 %v3649, %v3905
      %v4162 = vmax.f32 %v3650, %v3906
      %v4163 = vmax.f32 %v3651, %v3907
      %v4164 = vmax.f32 %v3652, %v3908
      %v4165 = vmax.f32 %v3653, %v3909
      %v4166 = vmax.f32 %v3654, %v3910
      %v4167 = vmax.f32 %v3655, %v3911
      %v4168 = vmax.f32 %v3656, %v3912
      %v4169 = vmax.f32 %v3657, %v3913
      %v4170 = vmax.f32 %v3658, %v3914
      %v4171 = vmax.f32 %v3659, %v3915
      %v4172 = vmax.f32 %v3660, %v3916
      %v4173 = vmax.f32 %v3661, %v3917
      %v4174 = vmax.f32 %v3662, %v3918
      %v4175 = vmax.f32 %v3663, %v3919
      %v4176 = vmax.f32 %v3664, %v3920
      %v4177 = vmax.f32 %v3665, %v3921
      %v4178 = vmax.f32 %v3666, %v3922
      %v4179 = vmax.f32 %v3667, %v3923
      %v4180 = vmax.f32 %v3668, %v3924
      %v4181 = vmax.f32 %v3669, %v3925
      %v4182 = vmax.f32 %v3670, %v3926
      %v4183 = vmax.f32 %v3671, %v3927
      %v4184 = vmax.f32 %v3672, %v3928
      %v4185 = vmax.f32 %v3673, %v3929
      %v4186 = vmax.f32 %v3674, %v3930
      %v4187 = vmax.f32 %v3675, %v3931
      %v4188 = vmax.f32 %v3676, %v3932
      %v4189 = vmax.f32 %v3677, %v3933
      %v4190 = vmax.f32 %v3678, %v3934
      %v4191 = vmax.f32 %v3679, %v3935
      %v4192 = vmax.f32 %v3680, %v3936
      %v4193 = vmax.f32 %v3681, %v3937
      %v4194 = vmax.f32 %v3682, %v3938
      %v4195 = vmax.f32 %v3683, %v3939
      %v4196 = vmax.f32 %v3684, %v3940
      %v4197 = vmax.f32 %v3685, %v3941
      %v4198 = vmax.f32 %v3686, %v3942
      %v4199 = vmax.f32 %v3687, %v3943
      %v4200 = vmax.f32 %v3688, %v3944
      %v4201 = vmax.f32 %v3689, %v3945
      %v4202 = vmax.f32 %v3690, %v3946
      %v4203 = vmax.f32 %v3691, %v3947
      %v4204 = vmax.f32 %v3692, %v3948
      %v4205 = vmax.f32 %v3693, %v3949
      %v4206 = vmax.f32 %v3694, %v3950
      %v4207 = vmax.f32 %v3695, %v3951
      %v4208 = vmax.f32 %v3696, %v3952
      %v4209 = vmax.f32 %v3697, %v3953
      %v4210 = vmax.f32 %v3698, %v3954
      %v4211 = vmax.f32 %v3699, %v3955
      %v4212 = vmax.f32 %v3700, %v3956
      %v4213 = vmax.f32 %v3701, %v3957
      %v4214 = vmax.f32 %v3702, %v3958
      %v4215 = vmax.f32 %v3703, %v3959
      %v4216 = vmax.f32 %v3704, %v3960
      %v4217 = vmax.f32 %v3705, %v3961
      %v4218 = vmax.f32 %v3706, %v3962
      %v4219 = vmax.f32 %v3707, %v3963
      %v4220 = vmax.f32 %v3708, %v3964
      %v4221 = vmax.f32 %v3709, %v3965
      %v4222 = vmax.f32 %v3710, %v3966
      %v4223 = vmax.f32 %v3711, %v3967
      %v4224 = vmax.f32 %v3712, %v3968
      %v4225 = vmax.f32 %v3713, %v3969
      %v4226 = vmax.f32 %v3714, %v3970
      %v4227 = vmax.f32 %v3715, %v3971
      %v4228 = vmax.f32 %v3716, %v3972
      %v4229 = vmax.f32 %v3717, %v3973
      %v4230 = vmax.f32 %v3718, %v3974
      %v4231 = vmax.f32 %v3719, %v3975
      %v4232 = vmax.f32 %v3720, %v3976
      %v4233 = vmax.f32 %v3721, %v3977
      %v4234 = vmax.f32 %v3722, %v3978
      %v4235 = vmax.f32 %v3723, %v3979
      %v4236 = vmax.f32 %v3724, %v3980
      %v4237 = vmax.f32 %v3725, %v3981
      %v4238 = vmax.f32 %v3726, %v3982
      %v4239 = vmax.f32 %v3727, %v3983
      %v4240 = vmax.f32 %v3728, %v3984
      %v4241 = vmax.f32 %v3729, %v3985
      %v4242 = vmax.f32 %v3730, %v3986
      %v4243 = vmax.f32 %v3731, %v3987
      %v4244 = vmax.f32 %v3732, %v3988
      %v4245 = vmax.f32 %v3733, %v3989
      %v4246 = vmax.f32 %v3734, %v3990
      %v4375 = vrot.slane %v4120, 7
      %vm4376 = vcmask 1041409
      %v4377 = vsel %vm4376, %v4375, %v4119
      %v4378 = vrot.slane %v4121, 6
      %vm4379 = vcmask 1042434
      %v4380 = vsel %vm4379, %v4378, %v4377
      %v4381 = vrot.slane %v4122, 5
      %vm4382 = vcmask 1043459
      %v4383 = vsel %vm4382, %v4381, %v4380
      %v4384 = vrot.slane %v4123, 4
      %vm4385 = vcmask 1044484
      %v4386 = vsel %vm4385, %v4384, %v4383
      %v4387 = vrot.slane %v4124, 3
      %vm4388 = vcmask 1045509
      %v4389 = vsel %vm4388, %v4387, %v4386
      %v4390 = vrot.slane %v4125, 2
      %vm4391 = vcmask 1046534
      %v4392 = vsel %vm4391, %v4390, %v4389
      %v4393 = vrot.slane %v4126, 1
      %vm4394 = vcmask 1047559
      %v4395 = vsel %vm4394, %v4393, %v4392
      %v4396 = vrot.slane %v4128, 7
      %v4397 = vsel %vm4376, %v4396, %v4127
      %v4398 = vrot.slane %v4129, 6
      %v4399 = vsel %vm4379, %v4398, %v4397
      %v4400 = vrot.slane %v4130, 5
      %v4401 = vsel %vm4382, %v4400, %v4399
      %v4402 = vrot.slane %v4131, 4
      %v4403 = vsel %vm4385, %v4402, %v4401
      %v4404 = vrot.slane %v4132, 3
      %v4405 = vsel %vm4388, %v4404, %v4403
      %v4406 = vrot.slane %v4133, 2
      %v4407 = vsel %vm4391, %v4406, %v4405
      %v4408 = vrot.slane %v4134, 1
      %v4409 = vsel %vm4394, %v4408, %v4407
      %v4410 = vrot.slane %v4136, 7
      %v4411 = vsel %vm4376, %v4410, %v4135
      %v4412 = vrot.slane %v4137, 6
      %v4413 = vsel %vm4379, %v4412, %v4411
      %v4414 = vrot.slane %v4138, 5
      %v4415 = vsel %vm4382, %v4414, %v4413
      %v4416 = vrot.slane %v4139, 4
      %v4417 = vsel %vm4385, %v4416, %v4415
      %v4418 = vrot.slane %v4140, 3
      %v4419 = vsel %vm4388, %v4418, %v4417
      %v4420 = vrot.slane %v4141, 2
      %v4421 = vsel %vm4391, %v4420, %v4419
      %v4422 = vrot.slane %v4142, 1
      %v4423 = vsel %vm4394, %v4422, %v4421
      %v4424 = vrot.slane %v4144, 7
      %v4425 = vsel %vm4376, %v4424, %v4143
      %v4426 = vrot.slane %v4145, 6
      %v4427 = vsel %vm4379, %v4426, %v4425
      %v4428 = vrot.slane %v4146, 5
      %v4429 = vsel %vm4382, %v4428, %v4427
      %v4430 = vrot.slane %v4147, 4
      %v4431 = vsel %vm4385, %v4430, %v4429
      %v4432 = vrot.slane %v4148, 3
      %v4433 = vsel %vm4388, %v4432, %v4431
      %v4434 = vrot.slane %v4149, 2
      %v4435 = vsel %vm4391, %v4434, %v4433
      %v4436 = vrot.slane %v4150, 1
      %v4437 = vsel %vm4394, %v4436, %v4435
      %v4438 = vrot.slane %v4152, 7
      %v4439 = vsel %vm4376, %v4438, %v4151
      %v4440 = vrot.slane %v4153, 6
      %v4441 = vsel %vm4379, %v4440, %v4439
      %v4442 = vrot.slane %v4154, 5
      %v4443 = vsel %vm4382, %v4442, %v4441
      %v4444 = vrot.slane %v4155, 4
      %v4445 = vsel %vm4385, %v4444, %v4443
      %v4446 = vrot.slane %v4156, 3
      %v4447 = vsel %vm4388, %v4446, %v4445
      %v4448 = vrot.slane %v4157, 2
      %v4449 = vsel %vm4391, %v4448, %v4447
      %v4450 = vrot.slane %v4158, 1
      %v4451 = vsel %vm4394, %v4450, %v4449
      %v4452 = vrot.slane %v4160, 7
      %v4453 = vsel %vm4376, %v4452, %v4159
      %v4454 = vrot.slane %v4161, 6
      %v4455 = vsel %vm4379, %v4454, %v4453
      %v4456 = vrot.slane %v4162, 5
      %v4457 = vsel %vm4382, %v4456, %v4455
      %v4458 = vrot.slane %v4163, 4
      %v4459 = vsel %vm4385, %v4458, %v4457
      %v4460 = vrot.slane %v4164, 3
      %v4461 = vsel %vm4388, %v4460, %v4459
      %v4462 = vrot.slane %v4165, 2
      %v4463 = vsel %vm4391, %v4462, %v4461
      %v4464 = vrot.slane %v4166, 1
      %v4465 = vsel %vm4394, %v4464, %v4463
      %v4466 = vrot.slane %v4168, 7
      %v4467 = vsel %vm4376, %v4466, %v4167
      %v4468 = vrot.slane %v4169, 6
      %v4469 = vsel %vm4379, %v4468, %v4467
      %v4470 = vrot.slane %v4170, 5
      %v4471 = vsel %vm4382, %v4470, %v4469
      %v4472 = vrot.slane %v4171, 4
      %v4473 = vsel %vm4385, %v4472, %v4471
      %v4474 = vrot.slane %v4172, 3
      %v4475 = vsel %vm4388, %v4474, %v4473
      %v4476 = vrot.slane %v4173, 2
      %v4477 = vsel %vm4391, %v4476, %v4475
      %v4478 = vrot.slane %v4174, 1
      %v4479 = vsel %vm4394, %v4478, %v4477
      %v4480 = vrot.slane %v4176, 7
      %v4481 = vsel %vm4376, %v4480, %v4175
      %v4482 = vrot.slane %v4177, 6
      %v4483 = vsel %vm4379, %v4482, %v4481
      %v4484 = vrot.slane %v4178, 5
      %v4485 = vsel %vm4382, %v4484, %v4483
      %v4486 = vrot.slane %v4179, 4
      %v4487 = vsel %vm4385, %v4486, %v4485
      %v4488 = vrot.slane %v4180, 3
      %v4489 = vsel %vm4388, %v4488, %v4487
      %v4490 = vrot.slane %v4181, 2
      %v4491 = vsel %vm4391, %v4490, %v4489
      %v4492 = vrot.slane %v4182, 1
      %v4493 = vsel %vm4394, %v4492, %v4491
      %v4494 = vrot.slane %v4184, 7
      %v4495 = vsel %vm4376, %v4494, %v4183
      %v4496 = vrot.slane %v4185, 6
      %v4497 = vsel %vm4379, %v4496, %v4495
      %v4498 = vrot.slane %v4186, 5
      %v4499 = vsel %vm4382, %v4498, %v4497
      %v4500 = vrot.slane %v4187, 4
      %v4501 = vsel %vm4385, %v4500, %v4499
      %v4502 = vrot.slane %v4188, 3
      %v4503 = vsel %vm4388, %v4502, %v4501
      %v4504 = vrot.slane %v4189, 2
      %v4505 = vsel %vm4391, %v4504, %v4503
      %v4506 = vrot.slane %v4190, 1
      %v4507 = vsel %vm4394, %v4506, %v4505
      %v4508 = vrot.slane %v4192, 7
      %v4509 = vsel %vm4376, %v4508, %v4191
      %v4510 = vrot.slane %v4193, 6
      %v4511 = vsel %vm4379, %v4510, %v4509
      %v4512 = vrot.slane %v4194, 5
      %v4513 = vsel %vm4382, %v4512, %v4511
      %v4514 = vrot.slane %v4195, 4
      %v4515 = vsel %vm4385, %v4514, %v4513
      %v4516 = vrot.slane %v4196, 3
      %v4517 = vsel %vm4388, %v4516, %v4515
      %v4518 = vrot.slane %v4197, 2
      %v4519 = vsel %vm4391, %v4518, %v4517
      %v4520 = vrot.slane %v4198, 1
      %v4521 = vsel %vm4394, %v4520, %v4519
      %v4522 = vrot.slane %v4200, 7
      %v4523 = vsel %vm4376, %v4522, %v4199
      %v4524 = vrot.slane %v4201, 6
      %v4525 = vsel %vm4379, %v4524, %v4523
      %v4526 = vrot.slane %v4202, 5
      %v4527 = vsel %vm4382, %v4526, %v4525
      %v4528 = vrot.slane %v4203, 4
      %v4529 = vsel %vm4385, %v4528, %v4527
      %v4530 = vrot.slane %v4204, 3
      %v4531 = vsel %vm4388, %v4530, %v4529
      %v4532 = vrot.slane %v4205, 2
      %v4533 = vsel %vm4391, %v4532, %v4531
      %v4534 = vrot.slane %v4206, 1
      %v4535 = vsel %vm4394, %v4534, %v4533
      %v4536 = vrot.slane %v4208, 7
      %v4537 = vsel %vm4376, %v4536, %v4207
      %v4538 = vrot.slane %v4209, 6
      %v4539 = vsel %vm4379, %v4538, %v4537
      %v4540 = vrot.slane %v4210, 5
      %v4541 = vsel %vm4382, %v4540, %v4539
      %v4542 = vrot.slane %v4211, 4
      %v4543 = vsel %vm4385, %v4542, %v4541
      %v4544 = vrot.slane %v4212, 3
      %v4545 = vsel %vm4388, %v4544, %v4543
      %v4546 = vrot.slane %v4213, 2
      %v4547 = vsel %vm4391, %v4546, %v4545
      %v4548 = vrot.slane %v4214, 1
      %v4549 = vsel %vm4394, %v4548, %v4547
      %v4550 = vrot.slane %v4216, 7
      %v4551 = vsel %vm4376, %v4550, %v4215
      %v4552 = vrot.slane %v4217, 6
      %v4553 = vsel %vm4379, %v4552, %v4551
      %v4554 = vrot.slane %v4218, 5
      %v4555 = vsel %vm4382, %v4554, %v4553
      %v4556 = vrot.slane %v4219, 4
      %v4557 = vsel %vm4385, %v4556, %v4555
      %v4558 = vrot.slane %v4220, 3
      %v4559 = vsel %vm4388, %v4558, %v4557
      %v4560 = vrot.slane %v4221, 2
      %v4561 = vsel %vm4391, %v4560, %v4559
      %v4562 = vrot.slane %v4222, 1
      %v4563 = vsel %vm4394, %v4562, %v4561
      %v4564 = vrot.slane %v4224, 7
      %v4565 = vsel %vm4376, %v4564, %v4223
      %v4566 = vrot.slane %v4225, 6
      %v4567 = vsel %vm4379, %v4566, %v4565
      %v4568 = vrot.slane %v4226, 5
      %v4569 = vsel %vm4382, %v4568, %v4567
      %v4570 = vrot.slane %v4227, 4
      %v4571 = vsel %vm4385, %v4570, %v4569
      %v4572 = vrot.slane %v4228, 3
      %v4573 = vsel %vm4388, %v4572, %v4571
      %v4574 = vrot.slane %v4229, 2
      %v4575 = vsel %vm4391, %v4574, %v4573
      %v4576 = vrot.slane %v4230, 1
      %v4577 = vsel %vm4394, %v4576, %v4575
      %v4578 = vrot.slane %v4232, 7
      %v4579 = vsel %vm4376, %v4578, %v4231
      %v4580 = vrot.slane %v4233, 6
      %v4581 = vsel %vm4379, %v4580, %v4579
      %v4582 = vrot.slane %v4234, 5
      %v4583 = vsel %vm4382, %v4582, %v4581
      %v4584 = vrot.slane %v4235, 4
      %v4585 = vsel %vm4385, %v4584, %v4583
      %v4586 = vrot.slane %v4236, 3
      %v4587 = vsel %vm4388, %v4586, %v4585
      %v4588 = vrot.slane %v4237, 2
      %v4589 = vsel %vm4391, %v4588, %v4587
      %v4590 = vrot.slane %v4238, 1
      %v4591 = vsel %vm4394, %v4590, %v4589
      %v4592 = vrot.slane %v4240, 7
      %v4593 = vsel %vm4376, %v4592, %v4239
      %v4594 = vrot.slane %v4241, 6
      %v4595 = vsel %vm4379, %v4594, %v4593
      %v4596 = vrot.slane %v4242, 5
      %v4597 = vsel %vm4382, %v4596, %v4595
      %v4598 = vrot.slane %v4243, 4
      %v4599 = vsel %vm4385, %v4598, %v4597
      %v4600 = vrot.slane %v4244, 3
      %v4601 = vsel %vm4388, %v4600, %v4599
      %v4602 = vrot.slane %v4245, 2
      %v4603 = vsel %vm4391, %v4602, %v4601
      %v4604 = vrot.slane %v4246, 1
      %v4605 = vsel %vm4394, %v4604, %v4603
      %4622 = vst [vmem:[%s172] sm:$0xff] %v4395
      %4623 = vst [vmem:[%s172 + $0x8] sm:$0xff] %v4409
      %4624 = vst [vmem:[%s172 + $0x10] sm:$0xff] %v4423
      %4625 = vst [vmem:[%s172 + $0x18] sm:$0xff] %v4437
      %4626 = vst [vmem:[%s172 + $0x20] sm:$0xff] %v4451
      %4627 = vst [vmem:[%s172 + $0x28] sm:$0xff] %v4465
      %4628 = vst [vmem:[%s172 + $0x30] sm:$0xff] %v4479
      %4629 = vst [vmem:[%s172 + $0x38] sm:$0xff] %v4493
      %4630 = vst [vmem:[%s172 + $0x40] sm:$0xff] %v4507
      %4631 = vst [vmem:[%s172 + $0x48] sm:$0xff] %v4521
      %4632 = vst [vmem:[%s172 + $0x50] sm:$0xff] %v4535
      %4633 = vst [vmem:[%s172 + $0x58] sm:$0xff] %v4549
      %4634 = vst [vmem:[%s172 + $0x60] sm:$0xff] %v4563
      %4635 = vst [vmem:[%s172 + $0x68] sm:$0xff] %v4577
      %4636 = vst [vmem:[%s172 + $0x70] sm:$0xff] %v4591
      %4637 = vst [vmem:[%s172 + $0x78] sm:$0xff] %v4605
      %s4638 = smul.u32 16, %s14
      %p4639 = scmp.lt.s32.totalorder %s4638, 63
      %s4640 = scalar_select %p4639, %s4638, 63
      %s4641 = smul.addr %s4640, 8
      %s4642 = scalar_lea.vmem %s3, %s4641
      // Predicated region
      $region33: #{_lambda_.3} parent=31 // pred_check
        %p4643 = pneg %p100
      $region34: #{_lambda_.3} parent=31 // pred_check_branch
        %4645 = sbr.rel (%p4643) target = $region36
      $region35: #{_lambda_.3} parent=31 // pred_region
        %s4646 = smul.u32 16, %s14
      $region36: #{_lambda_.3} parent=31 // pred_fallthru
        _
    $region32: #{_lambda_.3} parent=5 // pred_fallthru
      _
    %p4647 = scmp.le.s32.totalorder 2, %s9
    // Predicated region
    $region37: #{_lambda_.3} parent=5 // pred_check
      %p4648 = pneg %p4647
    $region38: #{_lambda_.3} parent=5 // pred_check_branch
      %4650 = sbr.rel (%p4648) target = $region40
    $region39: #{_lambda_.3} parent=5 // pred_region
      %s4651 = ssub.s32 %s9, 2
      // Predicated region
      $region41: #{_lambda_.3} parent=39 // pred_check
        %p4652 = pneg %p106
      $region42: #{_lambda_.3} parent=39 // pred_check_branch
        %4654 = sbr.rel (%p4652) target = $region44
      $region43: #{_lambda_.3} parent=39 // pred_region
        %s4655 = smul.u32 16, %s15
        %p4656 = scmp.lt.s32.totalorder %s4655, 63
        %s4657 = scalar_select %p4656, %s4655, 63
        %s4658 = smul.addr %s4657, 8
        %s4659 = scalar_lea.vmem %s3, %s4658
      $region44: #{_lambda_.3} parent=39 // pred_fallthru
        _
    $region40: #{_lambda_.3} parent=5 // pred_fallthru
      _
  $region6: #{_lambda_.3} parent=0 // loop_footer
    %s13 = sadd.s32 1, %s9
  $region7: #{_lambda_.3} parent=0 // loop_footer_branch
    %8 = sbr.rel target = $region3
  $region8: #{_lambda_.3} parent=0 // loop_exit
    _

// kernel: _lambda_.4
$region0: #{_lambda_.4}
  #allocation0 [shape = 'u32[]', space=smem, size = 0x4, offset = 0x4, fixed_abs, tag = 'smem constant byte address 0x4 - core index']
  #allocation1 [shape = 'u32[144,128]{1,0:T(1,128)}', space=vmem, size = 0x12000, scoped, tag = 'internal scratch']
  %s0 = inlined_call_operand.vmem [shape: bf16[512,1152], index: 0, kind: input, shape index: {}]
  %s1 = inlined_call_operand.vmem [shape: bf16[1152,128], index: 1, kind: input, shape index: {}]
  %s2 = inlined_call_operand.vmem [shape: f32[1,128], index: 2, kind: input, shape index: {}]
  %s3 = inlined_call_operand.vmem [shape: f32[32,128], index: 3, kind: output, shape index: {}]
  %s4 = sld [smem:[#allocation0]]
  $region22: #{_lambda_.4} parent=0
    _
  %s6 = ssub.s32 1, %s4
  %s7 = scalar_select 0, %s6, %s4
  // Predicated region
  $region2: #{_lambda_.4} parent=0 // pred_check
    _
  $region3: #{_lambda_.4} parent=0 // pred_check_branch
    %9 = sbr.rel (0) target = $region5
  $region4: #{_lambda_.4} parent=0 // pred_region
    _
  $region5: #{_lambda_.4} parent=0 // pred_fallthru
    _
  // Predicated region
  $region6: #{_lambda_.4} parent=0 // pred_check
    _
  $region7: #{_lambda_.4} parent=0 // pred_check_branch
    %11 = sbr.rel (0) target = $region9
  $region8: #{_lambda_.4} parent=0 // pred_region
    _
  $region9: #{_lambda_.4} parent=0 // pred_fallthru
    _
  // Predicated region
  $region10: #{_lambda_.4} parent=0 // pred_check
    _
  $region11: #{_lambda_.4} parent=0 // pred_check_branch
    %13 = sbr.rel (0) target = $region13
  $region12: #{_lambda_.4} parent=0 // pred_region
    _
  $region13: #{_lambda_.4} parent=0 // pred_fallthru
    _
  %v15 = vld [vmem:[%s0] sm:$0xff]
  %v16 = vld [vmem:[%s0 + $0x8] sm:$0xff]
  %v17 = vld [vmem:[%s0 + $0x10] sm:$0xff]
  %v18 = vld [vmem:[%s0 + $0x18] sm:$0xff]
  %v19 = vld [vmem:[%s0 + $0x20] sm:$0xf]
  %v20 = vld [vmem:[%s0 + $0x24] sm:$0xff]
  %v21 = vld [vmem:[%s0 + $0x2c] sm:$0xff]
  %v22 = vld [vmem:[%s0 + $0x34] sm:$0xff]
  %v23 = vld [vmem:[%s0 + $0x3c] sm:$0xff]
  %v24 = vld [vmem:[%s0 + $0x44] sm:$0xf]
  %v25 = vld [vmem:[%s0 + $0x48] sm:$0xff]
  %v26 = vld [vmem:[%s0 + $0x50] sm:$0xff]
  %v27 = vld [vmem:[%s0 + $0x58] sm:$0xff]
  %v28 = vld [vmem:[%s0 + $0x60] sm:$0xff]
  %v29 = vld [vmem:[%s0 + $0x68] sm:$0xf]
  %v30 = vld [vmem:[%s0 + $0x6c] sm:$0xff]
  %v31 = vld [vmem:[%s0 + $0x74] sm:$0xff]
  %v32 = vld [vmem:[%s0 + $0x7c] sm:$0xff]
  %v33 = vld [vmem:[%s0 + $0x84] sm:$0xff]
  %v34 = vld [vmem:[%s0 + $0x8c] sm:$0xf]
  %v35 = vld [vmem:[%s0 + $0x90] sm:$0xff]
  %v36 = vld [vmem:[%s0 + $0x98] sm:$0xff]
  %v37 = vld [vmem:[%s0 + $0xa0] sm:$0xff]
  %v38 = vld [vmem:[%s0 + $0xa8] sm:$0xff]
  %v39 = vld [vmem:[%s0 + $0xb0] sm:$0xf]
  %v40 = vld [vmem:[%s0 + $0xb4] sm:$0xff]
  %v41 = vld [vmem:[%s0 + $0xbc] sm:$0xff]
  %v42 = vld [vmem:[%s0 + $0xc4] sm:$0xff]
  %v43 = vld [vmem:[%s0 + $0xcc] sm:$0xff]
  %v44 = vld [vmem:[%s0 + $0xd4] sm:$0xf]
  %v45 = vld [vmem:[%s0 + $0xd8] sm:$0xff]
  %v46 = vld [vmem:[%s0 + $0xe0] sm:$0xff]
  %v47 = vld [vmem:[%s0 + $0xe8] sm:$0xff]
  %v48 = vld [vmem:[%s0 + $0xf0] sm:$0xff]
  %v49 = vld [vmem:[%s0 + $0xf8] sm:$0xf]
  %v50 = vld [vmem:[%s0 + $0xfc] sm:$0xff]
  %v51 = vld [vmem:[%s0 + $0x104] sm:$0xff]
  %v52 = vld [vmem:[%s0 + $0x10c] sm:$0xff]
  %v53 = vld [vmem:[%s0 + $0x114] sm:$0xff]
  %v54 = vld [vmem:[%s0 + $0x11c] sm:$0xf]
  %v55 = vld [vmem:[%s0 + $0x120] sm:$0xff]
  %v56 = vld [vmem:[%s0 + $0x128] sm:$0xff]
  %v57 = vld [vmem:[%s0 + $0x130] sm:$0xff]
  %v58 = vld [vmem:[%s0 + $0x138] sm:$0xff]
  %v59 = vld [vmem:[%s0 + $0x140] sm:$0xf]
  %v60 = vld [vmem:[%s0 + $0x144] sm:$0xff]
  %v61 = vld [vmem:[%s0 + $0x14c] sm:$0xff]
  %v62 = vld [vmem:[%s0 + $0x154] sm:$0xff]
  %v63 = vld [vmem:[%s0 + $0x15c] sm:$0xff]
  %v64 = vld [vmem:[%s0 + $0x164] sm:$0xf]
  %v65 = vld [vmem:[%s0 + $0x168] sm:$0xff]
  %v66 = vld [vmem:[%s0 + $0x170] sm:$0xff]
  %v67 = vld [vmem:[%s0 + $0x178] sm:$0xff]
  %v68 = vld [vmem:[%s0 + $0x180] sm:$0xff]
  %v69 = vld [vmem:[%s0 + $0x188] sm:$0xf]
  %v70 = vld [vmem:[%s0 + $0x18c] sm:$0xff]
  %v71 = vld [vmem:[%s0 + $0x194] sm:$0xff]
  %v72 = vld [vmem:[%s0 + $0x19c] sm:$0xff]
  %v73 = vld [vmem:[%s0 + $0x1a4] sm:$0xff]
  %v74 = vld [vmem:[%s0 + $0x1ac] sm:$0xf]
  %v75 = vld [vmem:[%s0 + $0x1b0] sm:$0xff]
  %v76 = vld [vmem:[%s0 + $0x1b8] sm:$0xff]
  %v77 = vld [vmem:[%s0 + $0x1c0] sm:$0xff]
  %v78 = vld [vmem:[%s0 + $0x1c8] sm:$0xff]
  %v79 = vld [vmem:[%s0 + $0x1d0] sm:$0xf]
  %v80 = vld [vmem:[%s0 + $0x1d4] sm:$0xff]
  %v81 = vld [vmem:[%s0 + $0x1dc] sm:$0xff]
  %v82 = vld [vmem:[%s0 + $0x1e4] sm:$0xff]
  %v83 = vld [vmem:[%s0 + $0x1ec] sm:$0xff]
  %v84 = vld [vmem:[%s0 + $0x1f4] sm:$0xf]
  %v85 = vld [vmem:[%s0 + $0x1f8] sm:$0xff]
  %v86 = vld [vmem:[%s0 + $0x200] sm:$0xff]
  %v87 = vld [vmem:[%s0 + $0x208] sm:$0xff]
  %v88 = vld [vmem:[%s0 + $0x210] sm:$0xff]
  %v89 = vld [vmem:[%s0 + $0x218] sm:$0xf]
  %v90 = vld [vmem:[%s0 + $0x21c] sm:$0xff]
  %v91 = vld [vmem:[%s0 + $0x224] sm:$0xff]
  %v92 = vld [vmem:[%s0 + $0x22c] sm:$0xff]
  %v93 = vld [vmem:[%s0 + $0x234] sm:$0xff]
  %v94 = vld [vmem:[%s0 + $0x23c] sm:$0xf]
  %v95 = vld [vmem:[%s0 + $0x240] sm:$0xff]
  %v96 = vld [vmem:[%s0 + $0x248] sm:$0xff]
  %v97 = vld [vmem:[%s0 + $0x250] sm:$0xff]
  %v98 = vld [vmem:[%s0 + $0x258] sm:$0xff]
  %v99 = vld [vmem:[%s0 + $0x260] sm:$0xf]
  %v100 = vld [vmem:[%s0 + $0x264] sm:$0xff]
  %v101 = vld [vmem:[%s0 + $0x26c] sm:$0xff]
  %v102 = vld [vmem:[%s0 + $0x274] sm:$0xff]
  %v103 = vld [vmem:[%s0 + $0x27c] sm:$0xff]
  %v104 = vld [vmem:[%s0 + $0x284] sm:$0xf]
  %v105 = vld [vmem:[%s0 + $0x288] sm:$0xff]
  %v106 = vld [vmem:[%s0 + $0x290] sm:$0xff]
  %v107 = vld [vmem:[%s0 + $0x298] sm:$0xff]
  %v108 = vld [vmem:[%s0 + $0x2a0] sm:$0xff]
  %v109 = vld [vmem:[%s0 + $0x2a8] sm:$0xf]
  %v110 = vld [vmem:[%s0 + $0x2ac] sm:$0xff]
  %v111 = vld [vmem:[%s0 + $0x2b4] sm:$0xff]
  %v112 = vld [vmem:[%s0 + $0x2bc] sm:$0xff]
  %v113 = vld [vmem:[%s0 + $0x2c4] sm:$0xff]
  %v114 = vld [vmem:[%s0 + $0x2cc] sm:$0xf]
  %v115 = vld [vmem:[%s0 + $0x2d0] sm:$0xff]
  %v116 = vld [vmem:[%s0 + $0x2d8] sm:$0xff]
  %v117 = vld [vmem:[%s0 + $0x2e0] sm:$0xff]
  %v118 = vld [vmem:[%s0 + $0x2e8] sm:$0xff]
  %v119 = vld [vmem:[%s0 + $0x2f0] sm:$0xf]
  %v120 = vld [vmem:[%s0 + $0x2f4] sm:$0xff]
  %v121 = vld [vmem:[%s0 + $0x2fc] sm:$0xff]
  %v122 = vld [vmem:[%s0 + $0x304] sm:$0xff]
  %v123 = vld [vmem:[%s0 + $0x30c] sm:$0xff]
  %v124 = vld [vmem:[%s0 + $0x314] sm:$0xf]
  %v125 = vld [vmem:[%s0 + $0x318] sm:$0xff]
  %v126 = vld [vmem:[%s0 + $0x320] sm:$0xff]
  %v127 = vld [vmem:[%s0 + $0x328] sm:$0xff]
  %v128 = vld [vmem:[%s0 + $0x330] sm:$0xff]
  %v129 = vld [vmem:[%s0 + $0x338] sm:$0xf]
  %v130 = vld [vmem:[%s0 + $0x33c] sm:$0xff]
  %v131 = vld [vmem:[%s0 + $0x344] sm:$0xff]
  %v132 = vld [vmem:[%s0 + $0x34c] sm:$0xff]
  %v133 = vld [vmem:[%s0 + $0x354] sm:$0xff]
  %v134 = vld [vmem:[%s0 + $0x35c] sm:$0xf]
  %v135 = vld [vmem:[%s0 + $0x360] sm:$0xff]
  %v136 = vld [vmem:[%s0 + $0x368] sm:$0xff]
  %v137 = vld [vmem:[%s0 + $0x370] sm:$0xff]
  %v138 = vld [vmem:[%s0 + $0x378] sm:$0xff]
  %v139 = vld [vmem:[%s0 + $0x380] sm:$0xf]
  %v140 = vld [vmem:[%s0 + $0x384] sm:$0xff]
  %v141 = vld [vmem:[%s0 + $0x38c] sm:$0xff]
  %v142 = vld [vmem:[%s0 + $0x394] sm:$0xff]
  %v143 = vld [vmem:[%s0 + $0x39c] sm:$0xff]
  %v144 = vld [vmem:[%s0 + $0x3a4] sm:$0xf]
  %v145 = vld [vmem:[%s0 + $0x3a8] sm:$0xff]
  %v146 = vld [vmem:[%s0 + $0x3b0] sm:$0xff]
  %v147 = vld [vmem:[%s0 + $0x3b8] sm:$0xff]
  %v148 = vld [vmem:[%s0 + $0x3c0] sm:$0xff]
  %v149 = vld [vmem:[%s0 + $0x3c8] sm:$0xf]
  %v150 = vld [vmem:[%s0 + $0x3cc] sm:$0xff]
  %v151 = vld [vmem:[%s0 + $0x3d4] sm:$0xff]
  %v152 = vld [vmem:[%s0 + $0x3dc] sm:$0xff]
  %v153 = vld [vmem:[%s0 + $0x3e4] sm:$0xff]
  %v154 = vld [vmem:[%s0 + $0x3ec] sm:$0xf]
  %v155 = vld [vmem:[%s0 + $0x3f0] sm:$0xff]
  %v156 = vld [vmem:[%s0 + $0x3f8] sm:$0xff]
  %v157 = vld [vmem:[%s0 + $0x400] sm:$0xff]
  %v158 = vld [vmem:[%s0 + $0x408] sm:$0xff]
  %v159 = vld [vmem:[%s0 + $0x410] sm:$0xf]
  %v160 = vld [vmem:[%s0 + $0x414] sm:$0xff]
  %v161 = vld [vmem:[%s0 + $0x41c] sm:$0xff]
  %v162 = vld [vmem:[%s0 + $0x424] sm:$0xff]
  %v163 = vld [vmem:[%s0 + $0x42c] sm:$0xff]
  %v164 = vld [vmem:[%s0 + $0x434] sm:$0xf]
  %v165 = vld [vmem:[%s0 + $0x438] sm:$0xff]
  %v166 = vld [vmem:[%s0 + $0x440] sm:$0xff]
  %v167 = vld [vmem:[%s0 + $0x448] sm:$0xff]
  %v168 = vld [vmem:[%s0 + $0x450] sm:$0xff]
  %v169 = vld [vmem:[%s0 + $0x458] sm:$0xf]
  %v170 = vld [vmem:[%s0 + $0x45c] sm:$0xff]
  %v171 = vld [vmem:[%s0 + $0x464] sm:$0xff]
  %v172 = vld [vmem:[%s0 + $0x46c] sm:$0xff]
  %v173 = vld [vmem:[%s0 + $0x474] sm:$0xff]
  %v174 = vld [vmem:[%s0 + $0x47c] sm:$0xf]
  %v175 = vld [vmem:[%s0 + $0x480] sm:$0xff]
  %v176 = vld [vmem:[%s0 + $0x488] sm:$0xff]
  %v177 = vld [vmem:[%s0 + $0x490] sm:$0xff]
  %v178 = vld [vmem:[%s0 + $0x498] sm:$0xff]
  %v179 = vld [vmem:[%s0 + $0x4a0] sm:$0xf]
  %v180 = vld [vmem:[%s0 + $0x4a4] sm:$0xff]
  %v181 = vld [vmem:[%s0 + $0x4ac] sm:$0xff]
  %v182 = vld [vmem:[%s0 + $0x4b4] sm:$0xff]
  %v183 = vld [vmem:[%s0 + $0x4bc] sm:$0xff]
  %v184 = vld [vmem:[%s0 + $0x4c4] sm:$0xf]
  %v185 = vld [vmem:[%s0 + $0x4c8] sm:$0xff]
  %v186 = vld [vmem:[%s0 + $0x4d0] sm:$0xff]
  %v187 = vld [vmem:[%s0 + $0x4d8] sm:$0xff]
  %v188 = vld [vmem:[%s0 + $0x4e0] sm:$0xff]
  %v189 = vld [vmem:[%s0 + $0x4e8] sm:$0xf]
  %v190 = vld [vmem:[%s0 + $0x4ec] sm:$0xff]
  %v191 = vld [vmem:[%s0 + $0x4f4] sm:$0xff]
  %v192 = vld [vmem:[%s0 + $0x4fc] sm:$0xff]
  %v193 = vld [vmem:[%s0 + $0x504] sm:$0xff]
  %v194 = vld [vmem:[%s0 + $0x50c] sm:$0xf]
  %v195 = vld [vmem:[%s0 + $0x510] sm:$0xff]
  %v196 = vld [vmem:[%s0 + $0x518] sm:$0xff]
  %v197 = vld [vmem:[%s0 + $0x520] sm:$0xff]
  %v198 = vld [vmem:[%s0 + $0x528] sm:$0xff]
  %v199 = vld [vmem:[%s0 + $0x530] sm:$0xf]
  %v200 = vld [vmem:[%s0 + $0x534] sm:$0xff]
  %v201 = vld [vmem:[%s0 + $0x53c] sm:$0xff]
  %v202 = vld [vmem:[%s0 + $0x544] sm:$0xff]
  %v203 = vld [vmem:[%s0 + $0x54c] sm:$0xff]
  %v204 = vld [vmem:[%s0 + $0x554] sm:$0xf]
  %v205 = vld [vmem:[%s0 + $0x558] sm:$0xff]
  %v206 = vld [vmem:[%s0 + $0x560] sm:$0xff]
  %v207 = vld [vmem:[%s0 + $0x568] sm:$0xff]
  %v208 = vld [vmem:[%s0 + $0x570] sm:$0xff]
  %v209 = vld [vmem:[%s0 + $0x578] sm:$0xf]
  %v210 = vld [vmem:[%s0 + $0x57c] sm:$0xff]
  %v211 = vld [vmem:[%s0 + $0x584] sm:$0xff]
  %v212 = vld [vmem:[%s0 + $0x58c] sm:$0xff]
  %v213 = vld [vmem:[%s0 + $0x594] sm:$0xff]
  %v214 = vld [vmem:[%s0 + $0x59c] sm:$0xf]
  %v215 = vld [vmem:[%s0 + $0x5a0] sm:$0xff]
  %v216 = vld [vmem:[%s0 + $0x5a8] sm:$0xff]
  %v217 = vld [vmem:[%s0 + $0x5b0] sm:$0xff]
  %v218 = vld [vmem:[%s0 + $0x5b8] sm:$0xff]
  %v219 = vld [vmem:[%s0 + $0x5c0] sm:$0xf]
  %v220 = vld [vmem:[%s0 + $0x5c4] sm:$0xff]
  %v221 = vld [vmem:[%s0 + $0x5cc] sm:$0xff]
  %v222 = vld [vmem:[%s0 + $0x5d4] sm:$0xff]
  %v223 = vld [vmem:[%s0 + $0x5dc] sm:$0xff]
  %v224 = vld [vmem:[%s0 + $0x5e4] sm:$0xf]
  %v225 = vld [vmem:[%s0 + $0x5e8] sm:$0xff]
  %v226 = vld [vmem:[%s0 + $0x5f0] sm:$0xff]
  %v227 = vld [vmem:[%s0 + $0x5f8] sm:$0xff]
  %v228 = vld [vmem:[%s0 + $0x600] sm:$0xff]
  %v229 = vld [vmem:[%s0 + $0x608] sm:$0xf]
  %v230 = vld [vmem:[%s0 + $0x60c] sm:$0xff]
  %v231 = vld [vmem:[%s0 + $0x614] sm:$0xff]
  %v232 = vld [vmem:[%s0 + $0x61c] sm:$0xff]
  %v233 = vld [vmem:[%s0 + $0x624] sm:$0xff]
  %v234 = vld [vmem:[%s0 + $0x62c] sm:$0xf]
  %v235 = vld [vmem:[%s0 + $0x630] sm:$0xff]
  %v236 = vld [vmem:[%s0 + $0x638] sm:$0xff]
  %v237 = vld [vmem:[%s0 + $0x640] sm:$0xff]
  %v238 = vld [vmem:[%s0 + $0x648] sm:$0xff]
  %v239 = vld [vmem:[%s0 + $0x650] sm:$0xf]
  %v240 = vld [vmem:[%s0 + $0x654] sm:$0xff]
  %v241 = vld [vmem:[%s0 + $0x65c] sm:$0xff]
  %v242 = vld [vmem:[%s0 + $0x664] sm:$0xff]
  %v243 = vld [vmem:[%s0 + $0x66c] sm:$0xff]
  %v244 = vld [vmem:[%s0 + $0x674] sm:$0xf]
  %v245 = vld [vmem:[%s0 + $0x678] sm:$0xff]
  %v246 = vld [vmem:[%s0 + $0x680] sm:$0xff]
  %v247 = vld [vmem:[%s0 + $0x688] sm:$0xff]
  %v248 = vld [vmem:[%s0 + $0x690] sm:$0xff]
  %v249 = vld [vmem:[%s0 + $0x698] sm:$0xf]
  %v250 = vld [vmem:[%s0 + $0x69c] sm:$0xff]
  %v251 = vld [vmem:[%s0 + $0x6a4] sm:$0xff]
  %v252 = vld [vmem:[%s0 + $0x6ac] sm:$0xff]
  %v253 = vld [vmem:[%s0 + $0x6b4] sm:$0xff]
  %v254 = vld [vmem:[%s0 + $0x6bc] sm:$0xf]
  %v255 = vld [vmem:[%s0 + $0x6c0] sm:$0xff]
  %v256 = vld [vmem:[%s0 + $0x6c8] sm:$0xff]
  %v257 = vld [vmem:[%s0 + $0x6d0] sm:$0xff]
  %v258 = vld [vmem:[%s0 + $0x6d8] sm:$0xff]
  %v259 = vld [vmem:[%s0 + $0x6e0] sm:$0xf]
  %v260 = vld [vmem:[%s0 + $0x6e4] sm:$0xff]
  %v261 = vld [vmem:[%s0 + $0x6ec] sm:$0xff]
  %v262 = vld [vmem:[%s0 + $0x6f4] sm:$0xff]
  %v263 = vld [vmem:[%s0 + $0x6fc] sm:$0xff]
  %v264 = vld [vmem:[%s0 + $0x704] sm:$0xf]
  %v265 = vld [vmem:[%s0 + $0x708] sm:$0xff]
  %v266 = vld [vmem:[%s0 + $0x710] sm:$0xff]
  %v267 = vld [vmem:[%s0 + $0x718] sm:$0xff]
  %v268 = vld [vmem:[%s0 + $0x720] sm:$0xff]
  %v269 = vld [vmem:[%s0 + $0x728] sm:$0xf]
  %v270 = vld [vmem:[%s0 + $0x72c] sm:$0xff]
  %v271 = vld [vmem:[%s0 + $0x734] sm:$0xff]
  %v272 = vld [vmem:[%s0 + $0x73c] sm:$0xff]
  %v273 = vld [vmem:[%s0 + $0x744] sm:$0xff]
  %v274 = vld [vmem:[%s0 + $0x74c] sm:$0xf]
  %v275 = vld [vmem:[%s0 + $0x750] sm:$0xff]
  %v276 = vld [vmem:[%s0 + $0x758] sm:$0xff]
  %v277 = vld [vmem:[%s0 + $0x760] sm:$0xff]
  %v278 = vld [vmem:[%s0 + $0x768] sm:$0xff]
  %v279 = vld [vmem:[%s0 + $0x770] sm:$0xf]
  %v280 = vld [vmem:[%s0 + $0x774] sm:$0xff]
  %v281 = vld [vmem:[%s0 + $0x77c] sm:$0xff]
  %v282 = vld [vmem:[%s0 + $0x784] sm:$0xff]
  %v283 = vld [vmem:[%s0 + $0x78c] sm:$0xff]
  %v284 = vld [vmem:[%s0 + $0x794] sm:$0xf]
  %v285 = vld [vmem:[%s0 + $0x798] sm:$0xff]
  %v286 = vld [vmem:[%s0 + $0x7a0] sm:$0xff]
  %v287 = vld [vmem:[%s0 + $0x7a8] sm:$0xff]
  %v288 = vld [vmem:[%s0 + $0x7b0] sm:$0xff]
  %v289 = vld [vmem:[%s0 + $0x7b8] sm:$0xf]
  %v290 = vld [vmem:[%s0 + $0x7bc] sm:$0xff]
  %v291 = vld [vmem:[%s0 + $0x7c4] sm:$0xff]
  %v292 = vld [vmem:[%s0 + $0x7cc] sm:$0xff]
  %v293 = vld [vmem:[%s0 + $0x7d4] sm:$0xff]
  %v294 = vld [vmem:[%s0 + $0x7dc] sm:$0xf]
  %v295 = vld [vmem:[%s0 + $0x7e0] sm:$0xff]
  %v296 = vld [vmem:[%s0 + $0x7e8] sm:$0xff]
  %v297 = vld [vmem:[%s0 + $0x7f0] sm:$0xff]
  %v298 = vld [vmem:[%s0 + $0x7f8] sm:$0xff]
  %v299 = vld [vmem:[%s0 + $0x800] sm:$0xf]
  %v300 = vld [vmem:[%s0 + $0x804] sm:$0xff]
  %v301 = vld [vmem:[%s0 + $0x80c] sm:$0xff]
  %v302 = vld [vmem:[%s0 + $0x814] sm:$0xff]
  %v303 = vld [vmem:[%s0 + $0x81c] sm:$0xff]
  %v304 = vld [vmem:[%s0 + $0x824] sm:$0xf]
  %v305 = vld [vmem:[%s0 + $0x828] sm:$0xff]
  %v306 = vld [vmem:[%s0 + $0x830] sm:$0xff]
  %v307 = vld [vmem:[%s0 + $0x838] sm:$0xff]
  %v308 = vld [vmem:[%s0 + $0x840] sm:$0xff]
  %v309 = vld [vmem:[%s0 + $0x848] sm:$0xf]
  %v310 = vld [vmem:[%s0 + $0x84c] sm:$0xff]
  %v311 = vld [vmem:[%s0 + $0x854] sm:$0xff]
  %v312 = vld [vmem:[%s0 + $0x85c] sm:$0xff]
  %v313 = vld [vmem:[%s0 + $0x864] sm:$0xff]
  %v314 = vld [vmem:[%s0 + $0x86c] sm:$0xf]
  %v315 = vld [vmem:[%s0 + $0x870] sm:$0xff]
  %v316 = vld [vmem:[%s0 + $0x878] sm:$0xff]
  %v317 = vld [vmem:[%s0 + $0x880] sm:$0xff]
  %v318 = vld [vmem:[%s0 + $0x888] sm:$0xff]
  %v319 = vld [vmem:[%s0 + $0x890] sm:$0xf]
  %v320 = vld [vmem:[%s0 + $0x894] sm:$0xff]
  %v321 = vld [vmem:[%s0 + $0x89c] sm:$0xff]
  %v322 = vld [vmem:[%s0 + $0x8a4] sm:$0xff]
  %v323 = vld [vmem:[%s0 + $0x8ac] sm:$0xff]
  %v324 = vld [vmem:[%s0 + $0x8b4] sm:$0xf]
  %v325 = vld [vmem:[%s0 + $0x8b8] sm:$0xff]
  %v326 = vld [vmem:[%s0 + $0x8c0] sm:$0xff]
  %v327 = vld [vmem:[%s0 + $0x8c8] sm:$0xff]
  %v328 = vld [vmem:[%s0 + $0x8d0] sm:$0xff]
  %v329 = vld [vmem:[%s0 + $0x8d8] sm:$0xf]
  %v330 = vld [vmem:[%s0 + $0x8dc] sm:$0xff]
  %v331 = vld [vmem:[%s0 + $0x8e4] sm:$0xff]
  %v332 = vld [vmem:[%s0 + $0x8ec] sm:$0xff]
  %v333 = vld [vmem:[%s0 + $0x8f4] sm:$0xff]
  %v334 = vld [vmem:[%s0 + $0x8fc] sm:$0xf]
  %v335 = vld [vmem:[%s1] sm:$0xf]
  %v336 = vld [vmem:[%s1 + $0x4] sm:$0xf]
  %v337 = vld [vmem:[%s1 + $0x8] sm:$0xf]
  %v338 = vld [vmem:[%s1 + $0xc] sm:$0xf]
  %v339 = vld [vmem:[%s1 + $0x10] sm:$0xf]
  %v340 = vld [vmem:[%s1 + $0x14] sm:$0xf]
  %v341 = vld [vmem:[%s1 + $0x18] sm:$0xf]
  %v342 = vld [vmem:[%s1 + $0x1c] sm:$0xf]
  %v343 = vld [vmem:[%s1 + $0x20] sm:$0xf]
  %v344 = vld [vmem:[%s1 + $0x24] sm:$0xf]
  %v345 = vld [vmem:[%s1 + $0x28] sm:$0xf]
  %v346 = vld [vmem:[%s1 + $0x2c] sm:$0xf]
  %v347 = vld [vmem:[%s1 + $0x30] sm:$0xf]
  %v348 = vld [vmem:[%s1 + $0x34] sm:$0xf]
  %v349 = vld [vmem:[%s1 + $0x38] sm:$0xf]
  %v350 = vld [vmem:[%s1 + $0x3c] sm:$0xf]
  %v351 = vld [vmem:[%s1 + $0x40] sm:$0xf]
  %v352 = vld [vmem:[%s1 + $0x44] sm:$0xf]
  %v353 = vld [vmem:[%s1 + $0x48] sm:$0xf]
  %v354 = vld [vmem:[%s1 + $0x4c] sm:$0xf]
  %v355 = vld [vmem:[%s1 + $0x50] sm:$0xf]
  %v356 = vld [vmem:[%s1 + $0x54] sm:$0xf]
  %v357 = vld [vmem:[%s1 + $0x58] sm:$0xf]
  %v358 = vld [vmem:[%s1 + $0x5c] sm:$0xf]
  %v359 = vld [vmem:[%s1 + $0x60] sm:$0xf]
  %v360 = vld [vmem:[%s1 + $0x64] sm:$0xf]
  %v361 = vld [vmem:[%s1 + $0x68] sm:$0xf]
  %v362 = vld [vmem:[%s1 + $0x6c] sm:$0xf]
  %v363 = vld [vmem:[%s1 + $0x70] sm:$0xf]
  %v364 = vld [vmem:[%s1 + $0x74] sm:$0xf]
  %v365 = vld [vmem:[%s1 + $0x78] sm:$0xf]
  %v366 = vld [vmem:[%s1 + $0x7c] sm:$0xf]
  %v367 = vld [vmem:[%s1 + $0x80] sm:$0xf]
  %v368 = vld [vmem:[%s1 + $0x84] sm:$0xf]
  %v369 = vld [vmem:[%s1 + $0x88] sm:$0xf]
  %v370 = vld [vmem:[%s1 + $0x8c] sm:$0xf]
  %v371 = vld [vmem:[%s1 + $0x90] sm:$0xf]
  %v372 = vld [vmem:[%s1 + $0x94] sm:$0xf]
  %v373 = vld [vmem:[%s1 + $0x98] sm:$0xf]
  %v374 = vld [vmem:[%s1 + $0x9c] sm:$0xf]
  %v375 = vld [vmem:[%s1 + $0xa0] sm:$0xf]
  %v376 = vld [vmem:[%s1 + $0xa4] sm:$0xf]
  %v377 = vld [vmem:[%s1 + $0xa8] sm:$0xf]
  %v378 = vld [vmem:[%s1 + $0xac] sm:$0xf]
  %v379 = vld [vmem:[%s1 + $0xb0] sm:$0xf]
  %v380 = vld [vmem:[%s1 + $0xb4] sm:$0xf]
  %v381 = vld [vmem:[%s1 + $0xb8] sm:$0xf]
  %v382 = vld [vmem:[%s1 + $0xbc] sm:$0xf]
  %v383 = vld [vmem:[%s1 + $0xc0] sm:$0xf]
  %v384 = vld [vmem:[%s1 + $0xc4] sm:$0xf]
  %v385 = vld [vmem:[%s1 + $0xc8] sm:$0xf]
  %v386 = vld [vmem:[%s1 + $0xcc] sm:$0xf]
  %v387 = vld [vmem:[%s1 + $0xd0] sm:$0xf]
  %v388 = vld [vmem:[%s1 + $0xd4] sm:$0xf]
  %v389 = vld [vmem:[%s1 + $0xd8] sm:$0xf]
  %v390 = vld [vmem:[%s1 + $0xdc] sm:$0xf]
  %v391 = vld [vmem:[%s1 + $0xe0] sm:$0xf]
  %v392 = vld [vmem:[%s1 + $0xe4] sm:$0xf]
  %v393 = vld [vmem:[%s1 + $0xe8] sm:$0xf]
  %v394 = vld [vmem:[%s1 + $0xec] sm:$0xf]
  %v395 = vld [vmem:[%s1 + $0xf0] sm:$0xf]
  %v396 = vld [vmem:[%s1 + $0xf4] sm:$0xf]
  %v397 = vld [vmem:[%s1 + $0xf8] sm:$0xf]
  %v398 = vld [vmem:[%s1 + $0xfc] sm:$0xf]
  %v399 = vld [vmem:[%s1 + $0x100] sm:$0xf]
  %v400 = vld [vmem:[%s1 + $0x104] sm:$0xf]
  %v401 = vld [vmem:[%s1 + $0x108] sm:$0xf]
  %v402 = vld [vmem:[%s1 + $0x10c] sm:$0xf]
  %v403 = vld [vmem:[%s1 + $0x110] sm:$0xf]
  %v404 = vld [vmem:[%s1 + $0x114] sm:$0xf]
  %v405 = vld [vmem:[%s1 + $0x118] sm:$0xf]
  %v406 = vld [vmem:[%s1 + $0x11c] sm:$0xf]
  %v407 = vld [vmem:[%s1 + $0x120] sm:$0xf]
  %v408 = vld [vmem:[%s1 + $0x124] sm:$0xf]
  %v409 = vld [vmem:[%s1 + $0x128] sm:$0xf]
  %v410 = vld [vmem:[%s1 + $0x12c] sm:$0xf]
  %v411 = vld [vmem:[%s1 + $0x130] sm:$0xf]
  %v412 = vld [vmem:[%s1 + $0x134] sm:$0xf]
  %v413 = vld [vmem:[%s1 + $0x138] sm:$0xf]
  %v414 = vld [vmem:[%s1 + $0x13c] sm:$0xf]
  %v415 = vld [vmem:[%s1 + $0x140] sm:$0xf]
  %v416 = vld [vmem:[%s1 + $0x144] sm:$0xf]
  %v417 = vld [vmem:[%s1 + $0x148] sm:$0xf]
  %v418 = vld [vmem:[%s1 + $0x14c] sm:$0xf]
  %v419 = vld [vmem:[%s1 + $0x150] sm:$0xf]
  %v420 = vld [vmem:[%s1 + $0x154] sm:$0xf]
  %v421 = vld [vmem:[%s1 + $0x158] sm:$0xf]
  %v422 = vld [vmem:[%s1 + $0x15c] sm:$0xf]
  %v423 = vld [vmem:[%s1 + $0x160] sm:$0xf]
  %v424 = vld [vmem:[%s1 + $0x164] sm:$0xf]
  %v425 = vld [vmem:[%s1 + $0x168] sm:$0xf]
  %v426 = vld [vmem:[%s1 + $0x16c] sm:$0xf]
  %v427 = vld [vmem:[%s1 + $0x170] sm:$0xf]
  %v428 = vld [vmem:[%s1 + $0x174] sm:$0xf]
  %v429 = vld [vmem:[%s1 + $0x178] sm:$0xf]
  %v430 = vld [vmem:[%s1 + $0x17c] sm:$0xf]
  %v431 = vld [vmem:[%s1 + $0x180] sm:$0xf]
  %v432 = vld [vmem:[%s1 + $0x184] sm:$0xf]
  %v433 = vld [vmem:[%s1 + $0x188] sm:$0xf]
  %v434 = vld [vmem:[%s1 + $0x18c] sm:$0xf]
  %v435 = vld [vmem:[%s1 + $0x190] sm:$0xf]
  %v436 = vld [vmem:[%s1 + $0x194] sm:$0xf]
  %v437 = vld [vmem:[%s1 + $0x198] sm:$0xf]
  %v438 = vld [vmem:[%s1 + $0x19c] sm:$0xf]
  %v439 = vld [vmem:[%s1 + $0x1a0] sm:$0xf]
  %v440 = vld [vmem:[%s1 + $0x1a4] sm:$0xf]
  %v441 = vld [vmem:[%s1 + $0x1a8] sm:$0xf]
  %v442 = vld [vmem:[%s1 + $0x1ac] sm:$0xf]
  %v443 = vld [vmem:[%s1 + $0x1b0] sm:$0xf]
  %v444 = vld [vmem:[%s1 + $0x1b4] sm:$0xf]
  %v445 = vld [vmem:[%s1 + $0x1b8] sm:$0xf]
  %v446 = vld [vmem:[%s1 + $0x1bc] sm:$0xf]
  %v447 = vld [vmem:[%s1 + $0x1c0] sm:$0xf]
  %v448 = vld [vmem:[%s1 + $0x1c4] sm:$0xf]
  %v449 = vld [vmem:[%s1 + $0x1c8] sm:$0xf]
  %v450 = vld [vmem:[%s1 + $0x1cc] sm:$0xf]
  %v451 = vld [vmem:[%s1 + $0x1d0] sm:$0xf]
  %v452 = vld [vmem:[%s1 + $0x1d4] sm:$0xf]
  %v453 = vld [vmem:[%s1 + $0x1d8] sm:$0xf]
  %v454 = vld [vmem:[%s1 + $0x1dc] sm:$0xf]
  %v455 = vld [vmem:[%s1 + $0x1e0] sm:$0xf]
  %v456 = vld [vmem:[%s1 + $0x1e4] sm:$0xf]
  %v457 = vld [vmem:[%s1 + $0x1e8] sm:$0xf]
  %v458 = vld [vmem:[%s1 + $0x1ec] sm:$0xf]
  %v459 = vld [vmem:[%s1 + $0x1f0] sm:$0xf]
  %v460 = vld [vmem:[%s1 + $0x1f4] sm:$0xf]
  %v461 = vld [vmem:[%s1 + $0x1f8] sm:$0xf]
  %v462 = vld [vmem:[%s1 + $0x1fc] sm:$0xf]
  %v463 = vld [vmem:[%s1 + $0x200] sm:$0xf]
  %v464 = vld [vmem:[%s1 + $0x204] sm:$0xf]
  %v465 = vld [vmem:[%s1 + $0x208] sm:$0xf]
  %v466 = vld [vmem:[%s1 + $0x20c] sm:$0xf]
  %v467 = vld [vmem:[%s1 + $0x210] sm:$0xf]
  %v468 = vld [vmem:[%s1 + $0x214] sm:$0xf]
  %v469 = vld [vmem:[%s1 + $0x218] sm:$0xf]
  %v470 = vld [vmem:[%s1 + $0x21c] sm:$0xf]
  %v471 = vld [vmem:[%s1 + $0x220] sm:$0xf]
  %v472 = vld [vmem:[%s1 + $0x224] sm:$0xf]
  %v473 = vld [vmem:[%s1 + $0x228] sm:$0xf]
  %v474 = vld [vmem:[%s1 + $0x22c] sm:$0xf]
  %v475 = vld [vmem:[%s1 + $0x230] sm:$0xf]
  %v476 = vld [vmem:[%s1 + $0x234] sm:$0xf]
  %v477 = vld [vmem:[%s1 + $0x238] sm:$0xf]
  %v478 = vld [vmem:[%s1 + $0x23c] sm:$0xf]
  %v479 = vld [vmem:[%s2] sm:$0x1]
  %v481 = vlaneseq
  %v482 = vshrl.u32 %v481, 7
  %v483 = vsub.s32 0, %v482
  %v484 = vrot.slane %v479, %v483
  %v806 = vunpack.c.l.b16 %v15
  %v807 = vunpack.c.h.b16 %v15
  %v808 = vunpack.c.l.b16 %v16
  %v809 = vunpack.c.h.b16 %v16
  %v810 = vunpack.c.l.b16 %v17
  %v811 = vunpack.c.h.b16 %v17
  %v812 = vunpack.c.l.b16 %v18
  %v813 = vunpack.c.h.b16 %v18
  %v814 = vunpack.c.l.b16 %v19
  %v815 = vunpack.c.l.b16 %v20
  %v816 = vunpack.c.h.b16 %v20
  %v817 = vunpack.c.l.b16 %v21
  %v818 = vunpack.c.h.b16 %v21
  %v819 = vunpack.c.l.b16 %v22
  %v820 = vunpack.c.h.b16 %v22
  %v821 = vunpack.c.l.b16 %v23
  %v822 = vunpack.c.h.b16 %v23
  %v823 = vunpack.c.l.b16 %v24
  %v824 = vunpack.c.l.b16 %v25
  %v825 = vunpack.c.h.b16 %v25
  %v826 = vunpack.c.l.b16 %v26
  %v827 = vunpack.c.h.b16 %v26
  %v828 = vunpack.c.l.b16 %v27
  %v829 = vunpack.c.h.b16 %v27
  %v830 = vunpack.c.l.b16 %v28
  %v831 = vunpack.c.h.b16 %v28
  %v832 = vunpack.c.l.b16 %v29
  %v833 = vunpack.c.l.b16 %v30
  %v834 = vunpack.c.h.b16 %v30
  %v835 = vunpack.c.l.b16 %v31
  %v836 = vunpack.c.h.b16 %v31
  %v837 = vunpack.c.l.b16 %v32
  %v838 = vunpack.c.h.b16 %v32
  %v839 = vunpack.c.l.b16 %v33
  %v840 = vunpack.c.h.b16 %v33
  %v841 = vunpack.c.l.b16 %v34
  %v842 = vunpack.c.l.b16 %v35
  %v843 = vunpack.c.h.b16 %v35
  %v844 = vunpack.c.l.b16 %v36
  %v845 = vunpack.c.h.b16 %v36
  %v846 = vunpack.c.l.b16 %v37
  %v847 = vunpack.c.h.b16 %v37
  %v848 = vunpack.c.l.b16 %v38
  %v849 = vunpack.c.h.b16 %v38
  %v850 = vunpack.c.l.b16 %v39
  %v851 = vunpack.c.l.b16 %v40
  %v852 = vunpack.c.h.b16 %v40
  %v853 = vunpack.c.l.b16 %v41
  %v854 = vunpack.c.h.b16 %v41
  %v855 = vunpack.c.l.b16 %v42
  %v856 = vunpack.c.h.b16 %v42
  %v857 = vunpack.c.l.b16 %v43
  %v858 = vunpack.c.h.b16 %v43
  %v859 = vunpack.c.l.b16 %v44
  %v860 = vunpack.c.l.b16 %v45
  %v861 = vunpack.c.h.b16 %v45
  %v862 = vunpack.c.l.b16 %v46
  %v863 = vunpack.c.h.b16 %v46
  %v864 = vunpack.c.l.b16 %v47
  %v865 = vunpack.c.h.b16 %v47
  %v866 = vunpack.c.l.b16 %v48
  %v867 = vunpack.c.h.b16 %v48
  %v868 = vunpack.c.l.b16 %v49
  %v869 = vunpack.c.l.b16 %v50
  %v870 = vunpack.c.h.b16 %v50
  %v871 = vunpack.c.l.b16 %v51
  %v872 = vunpack.c.h.b16 %v51
  %v873 = vunpack.c.l.b16 %v52
  %v874 = vunpack.c.h.b16 %v52
  %v875 = vunpack.c.l.b16 %v53
  %v876 = vunpack.c.h.b16 %v53
  %v877 = vunpack.c.l.b16 %v54
  %v878 = vunpack.c.l.b16 %v55
  %v879 = vunpack.c.h.b16 %v55
  %v880 = vunpack.c.l.b16 %v56
  %v881 = vunpack.c.h.b16 %v56
  %v882 = vunpack.c.l.b16 %v57
  %v883 = vunpack.c.h.b16 %v57
  %v884 = vunpack.c.l.b16 %v58
  %v885 = vunpack.c.h.b16 %v58
  %v886 = vunpack.c.l.b16 %v59
  %v887 = vunpack.c.l.b16 %v60
  %v888 = vunpack.c.h.b16 %v60
  %v889 = vunpack.c.l.b16 %v61
  %v890 = vunpack.c.h.b16 %v61
  %v891 = vunpack.c.l.b16 %v62
  %v892 = vunpack.c.h.b16 %v62
  %v893 = vunpack.c.l.b16 %v63
  %v894 = vunpack.c.h.b16 %v63
  %v895 = vunpack.c.l.b16 %v64
  %v896 = vunpack.c.l.b16 %v65
  %v897 = vunpack.c.h.b16 %v65
  %v898 = vunpack.c.l.b16 %v66
  %v899 = vunpack.c.h.b16 %v66
  %v900 = vunpack.c.l.b16 %v67
  %v901 = vunpack.c.h.b16 %v67
  %v902 = vunpack.c.l.b16 %v68
  %v903 = vunpack.c.h.b16 %v68
  %v904 = vunpack.c.l.b16 %v69
  %v905 = vunpack.c.l.b16 %v70
  %v906 = vunpack.c.h.b16 %v70
  %v907 = vunpack.c.l.b16 %v71
  %v908 = vunpack.c.h.b16 %v71
  %v909 = vunpack.c.l.b16 %v72
  %v910 = vunpack.c.h.b16 %v72
  %v911 = vunpack.c.l.b16 %v73
  %v912 = vunpack.c.h.b16 %v73
  %v913 = vunpack.c.l.b16 %v74
  %v914 = vunpack.c.l.b16 %v75
  %v915 = vunpack.c.h.b16 %v75
  %v916 = vunpack.c.l.b16 %v76
  %v917 = vunpack.c.h.b16 %v76
  %v918 = vunpack.c.l.b16 %v77
  %v919 = vunpack.c.h.b16 %v77
  %v920 = vunpack.c.l.b16 %v78
  %v921 = vunpack.c.h.b16 %v78
  %v922 = vunpack.c.l.b16 %v79
  %v923 = vunpack.c.l.b16 %v80
  %v924 = vunpack.c.h.b16 %v80
  %v925 = vunpack.c.l.b16 %v81
  %v926 = vunpack.c.h.b16 %v81
  %v927 = vunpack.c.l.b16 %v82
  %v928 = vunpack.c.h.b16 %v82
  %v929 = vunpack.c.l.b16 %v83
  %v930 = vunpack.c.h.b16 %v83
  %v931 = vunpack.c.l.b16 %v84
  %v932 = vunpack.c.l.b16 %v85
  %v933 = vunpack.c.h.b16 %v85
  %v934 = vunpack.c.l.b16 %v86
  %v935 = vunpack.c.h.b16 %v86
  %v936 = vunpack.c.l.b16 %v87
  %v937 = vunpack.c.h.b16 %v87
  %v938 = vunpack.c.l.b16 %v88
  %v939 = vunpack.c.h.b16 %v88
  %v940 = vunpack.c.l.b16 %v89
  %v941 = vunpack.c.l.b16 %v90
  %v942 = vunpack.c.h.b16 %v90
  %v943 = vunpack.c.l.b16 %v91
  %v944 = vunpack.c.h.b16 %v91
  %v945 = vunpack.c.l.b16 %v92
  %v946 = vunpack.c.h.b16 %v92
  %v947 = vunpack.c.l.b16 %v93
  %v948 = vunpack.c.h.b16 %v93
  %v949 = vunpack.c.l.b16 %v94
  %v950 = vunpack.c.l.b16 %v95
  %v951 = vunpack.c.h.b16 %v95
  %v952 = vunpack.c.l.b16 %v96
  %v953 = vunpack.c.h.b16 %v96
  %v954 = vunpack.c.l.b16 %v97
  %v955 = vunpack.c.h.b16 %v97
  %v956 = vunpack.c.l.b16 %v98
  %v957 = vunpack.c.h.b16 %v98
  %v958 = vunpack.c.l.b16 %v99
  %v959 = vunpack.c.l.b16 %v100
  %v960 = vunpack.c.h.b16 %v100
  %v961 = vunpack.c.l.b16 %v101
  %v962 = vunpack.c.h.b16 %v101
  %v963 = vunpack.c.l.b16 %v102
  %v964 = vunpack.c.h.b16 %v102
  %v965 = vunpack.c.l.b16 %v103
  %v966 = vunpack.c.h.b16 %v103
  %v967 = vunpack.c.l.b16 %v104
  %v968 = vunpack.c.l.b16 %v105
  %v969 = vunpack.c.h.b16 %v105
  %v970 = vunpack.c.l.b16 %v106
  %v971 = vunpack.c.h.b16 %v106
  %v972 = vunpack.c.l.b16 %v107
  %v973 = vunpack.c.h.b16 %v107
  %v974 = vunpack.c.l.b16 %v108
  %v975 = vunpack.c.h.b16 %v108
  %v976 = vunpack.c.l.b16 %v109
  %v977 = vunpack.c.l.b16 %v110
  %v978 = vunpack.c.h.b16 %v110
  %v979 = vunpack.c.l.b16 %v111
  %v980 = vunpack.c.h.b16 %v111
  %v981 = vunpack.c.l.b16 %v112
  %v982 = vunpack.c.h.b16 %v112
  %v983 = vunpack.c.l.b16 %v113
  %v984 = vunpack.c.h.b16 %v113
  %v985 = vunpack.c.l.b16 %v114
  %v986 = vunpack.c.l.b16 %v115
  %v987 = vunpack.c.h.b16 %v115
  %v988 = vunpack.c.l.b16 %v116
  %v989 = vunpack.c.h.b16 %v116
  %v990 = vunpack.c.l.b16 %v117
  %v991 = vunpack.c.h.b16 %v117
  %v992 = vunpack.c.l.b16 %v118
  %v993 = vunpack.c.h.b16 %v118
  %v994 = vunpack.c.l.b16 %v119
  %v995 = vunpack.c.l.b16 %v120
  %v996 = vunpack.c.h.b16 %v120
  %v997 = vunpack.c.l.b16 %v121
  %v998 = vunpack.c.h.b16 %v121
  %v999 = vunpack.c.l.b16 %v122
  %v1000 = vunpack.c.h.b16 %v122
  %v1001 = vunpack.c.l.b16 %v123
  %v1002 = vunpack.c.h.b16 %v123
  %v1003 = vunpack.c.l.b16 %v124
  %v1004 = vunpack.c.l.b16 %v125
  %v1005 = vunpack.c.h.b16 %v125
  %v1006 = vunpack.c.l.b16 %v126
  %v1007 = vunpack.c.h.b16 %v126
  %v1008 = vunpack.c.l.b16 %v127
  %v1009 = vunpack.c.h.b16 %v127
  %v1010 = vunpack.c.l.b16 %v128
  %v1011 = vunpack.c.h.b16 %v128
  %v1012 = vunpack.c.l.b16 %v129
  %v1013 = vunpack.c.l.b16 %v130
  %v1014 = vunpack.c.h.b16 %v130
  %v1015 = vunpack.c.l.b16 %v131
  %v1016 = vunpack.c.h.b16 %v131
  %v1017 = vunpack.c.l.b16 %v132
  %v1018 = vunpack.c.h.b16 %v132
  %v1019 = vunpack.c.l.b16 %v133
  %v1020 = vunpack.c.h.b16 %v133
  %v1021 = vunpack.c.l.b16 %v134
  %v1022 = vunpack.c.l.b16 %v135
  %v1023 = vunpack.c.h.b16 %v135
  %v1024 = vunpack.c.l.b16 %v136
  %v1025 = vunpack.c.h.b16 %v136
  %v1026 = vunpack.c.l.b16 %v137
  %v1027 = vunpack.c.h.b16 %v137
  %v1028 = vunpack.c.l.b16 %v138
  %v1029 = vunpack.c.h.b16 %v138
  %v1030 = vunpack.c.l.b16 %v139
  %v1031 = vunpack.c.l.b16 %v140
  %v1032 = vunpack.c.h.b16 %v140
  %v1033 = vunpack.c.l.b16 %v141
  %v1034 = vunpack.c.h.b16 %v141
  %v1035 = vunpack.c.l.b16 %v142
  %v1036 = vunpack.c.h.b16 %v142
  %v1037 = vunpack.c.l.b16 %v143
  %v1038 = vunpack.c.h.b16 %v143
  %v1039 = vunpack.c.l.b16 %v144
  %v1040 = vunpack.c.l.b16 %v145
  %v1041 = vunpack.c.h.b16 %v145
  %v1042 = vunpack.c.l.b16 %v146
  %v1043 = vunpack.c.h.b16 %v146
  %v1044 = vunpack.c.l.b16 %v147
  %v1045 = vunpack.c.h.b16 %v147
  %v1046 = vunpack.c.l.b16 %v148
  %v1047 = vunpack.c.h.b16 %v148
  %v1048 = vunpack.c.l.b16 %v149
  %v1049 = vunpack.c.l.b16 %v150
  %v1050 = vunpack.c.h.b16 %v150
  %v1051 = vunpack.c.l.b16 %v151
  %v1052 = vunpack.c.h.b16 %v151
  %v1053 = vunpack.c.l.b16 %v152
  %v1054 = vunpack.c.h.b16 %v152
  %v1055 = vunpack.c.l.b16 %v153
  %v1056 = vunpack.c.h.b16 %v153
  %v1057 = vunpack.c.l.b16 %v154
  %v1058 = vunpack.c.l.b16 %v155
  %v1059 = vunpack.c.h.b16 %v155
  %v1060 = vunpack.c.l.b16 %v156
  %v1061 = vunpack.c.h.b16 %v156
  %v1062 = vunpack.c.l.b16 %v157
  %v1063 = vunpack.c.h.b16 %v157
  %v1064 = vunpack.c.l.b16 %v158
  %v1065 = vunpack.c.h.b16 %v158
  %v1066 = vunpack.c.l.b16 %v159
  %v1067 = vunpack.c.l.b16 %v160
  %v1068 = vunpack.c.h.b16 %v160
  %v1069 = vunpack.c.l.b16 %v161
  %v1070 = vunpack.c.h.b16 %v161
  %v1071 = vunpack.c.l.b16 %v162
  %v1072 = vunpack.c.h.b16 %v162
  %v1073 = vunpack.c.l.b16 %v163
  %v1074 = vunpack.c.h.b16 %v163
  %v1075 = vunpack.c.l.b16 %v164
  %v1076 = vunpack.c.l.b16 %v165
  %v1077 = vunpack.c.h.b16 %v165
  %v1078 = vunpack.c.l.b16 %v166
  %v1079 = vunpack.c.h.b16 %v166
  %v1080 = vunpack.c.l.b16 %v167
  %v1081 = vunpack.c.h.b16 %v167
  %v1082 = vunpack.c.l.b16 %v168
  %v1083 = vunpack.c.h.b16 %v168
  %v1084 = vunpack.c.l.b16 %v169
  %v1085 = vunpack.c.l.b16 %v170
  %v1086 = vunpack.c.h.b16 %v170
  %v1087 = vunpack.c.l.b16 %v171
  %v1088 = vunpack.c.h.b16 %v171
  %v1089 = vunpack.c.l.b16 %v172
  %v1090 = vunpack.c.h.b16 %v172
  %v1091 = vunpack.c.l.b16 %v173
  %v1092 = vunpack.c.h.b16 %v173
  %v1093 = vunpack.c.l.b16 %v174
  %v1094 = vunpack.c.l.b16 %v175
  %v1095 = vunpack.c.h.b16 %v175
  %v1096 = vunpack.c.l.b16 %v176
  %v1097 = vunpack.c.h.b16 %v176
  %v1098 = vunpack.c.l.b16 %v177
  %v1099 = vunpack.c.h.b16 %v177
  %v1100 = vunpack.c.l.b16 %v178
  %v1101 = vunpack.c.h.b16 %v178
  %v1102 = vunpack.c.l.b16 %v179
  %v1103 = vunpack.c.l.b16 %v180
  %v1104 = vunpack.c.h.b16 %v180
  %v1105 = vunpack.c.l.b16 %v181
  %v1106 = vunpack.c.h.b16 %v181
  %v1107 = vunpack.c.l.b16 %v182
  %v1108 = vunpack.c.h.b16 %v182
  %v1109 = vunpack.c.l.b16 %v183
  %v1110 = vunpack.c.h.b16 %v183
  %v1111 = vunpack.c.l.b16 %v184
  %v1112 = vunpack.c.l.b16 %v185
  %v1113 = vunpack.c.h.b16 %v185
  %v1114 = vunpack.c.l.b16 %v186
  %v1115 = vunpack.c.h.b16 %v186
  %v1116 = vunpack.c.l.b16 %v187
  %v1117 = vunpack.c.h.b16 %v187
  %v1118 = vunpack.c.l.b16 %v188
  %v1119 = vunpack.c.h.b16 %v188
  %v1120 = vunpack.c.l.b16 %v189
  %v1121 = vunpack.c.l.b16 %v190
  %v1122 = vunpack.c.h.b16 %v190
  %v1123 = vunpack.c.l.b16 %v191
  %v1124 = vunpack.c.h.b16 %v191
  %v1125 = vunpack.c.l.b16 %v192
  %v1126 = vunpack.c.h.b16 %v192
  %v1127 = vunpack.c.l.b16 %v193
  %v1128 = vunpack.c.h.b16 %v193
  %v1129 = vunpack.c.l.b16 %v194
  %v1130 = vunpack.c.l.b16 %v195
  %v1131 = vunpack.c.h.b16 %v195
  %v1132 = vunpack.c.l.b16 %v196
  %v1133 = vunpack.c.h.b16 %v196
  %v1134 = vunpack.c.l.b16 %v197
  %v1135 = vunpack.c.h.b16 %v197
  %v1136 = vunpack.c.l.b16 %v198
  %v1137 = vunpack.c.h.b16 %v198
  %v1138 = vunpack.c.l.b16 %v199
  %v1139 = vunpack.c.l.b16 %v200
  %v1140 = vunpack.c.h.b16 %v200
  %v1141 = vunpack.c.l.b16 %v201
  %v1142 = vunpack.c.h.b16 %v201
  %v1143 = vunpack.c.l.b16 %v202
  %v1144 = vunpack.c.h.b16 %v202
  %v1145 = vunpack.c.l.b16 %v203
  %v1146 = vunpack.c.h.b16 %v203
  %v1147 = vunpack.c.l.b16 %v204
  %v1148 = vunpack.c.l.b16 %v205
  %v1149 = vunpack.c.h.b16 %v205
  %v1150 = vunpack.c.l.b16 %v206
  %v1151 = vunpack.c.h.b16 %v206
  %v1152 = vunpack.c.l.b16 %v207
  %v1153 = vunpack.c.h.b16 %v207
  %v1154 = vunpack.c.l.b16 %v208
  %v1155 = vunpack.c.h.b16 %v208
  %v1156 = vunpack.c.l.b16 %v209
  %v1157 = vunpack.c.l.b16 %v210
  %v1158 = vunpack.c.h.b16 %v210
  %v1159 = vunpack.c.l.b16 %v211
  %v1160 = vunpack.c.h.b16 %v211
  %v1161 = vunpack.c.l.b16 %v212
  %v1162 = vunpack.c.h.b16 %v212
  %v1163 = vunpack.c.l.b16 %v213
  %v1164 = vunpack.c.h.b16 %v213
  %v1165 = vunpack.c.l.b16 %v214
  %v1166 = vunpack.c.l.b16 %v215
  %v1167 = vunpack.c.h.b16 %v215
  %v1168 = vunpack.c.l.b16 %v216
  %v1169 = vunpack.c.h.b16 %v216
  %v1170 = vunpack.c.l.b16 %v217
  %v1171 = vunpack.c.h.b16 %v217
  %v1172 = vunpack.c.l.b16 %v218
  %v1173 = vunpack.c.h.b16 %v218
  %v1174 = vunpack.c.l.b16 %v219
  %v1175 = vunpack.c.l.b16 %v220
  %v1176 = vunpack.c.h.b16 %v220
  %v1177 = vunpack.c.l.b16 %v221
  %v1178 = vunpack.c.h.b16 %v221
  %v1179 = vunpack.c.l.b16 %v222
  %v1180 = vunpack.c.h.b16 %v222
  %v1181 = vunpack.c.l.b16 %v223
  %v1182 = vunpack.c.h.b16 %v223
  %v1183 = vunpack.c.l.b16 %v224
  %v1184 = vunpack.c.l.b16 %v225
  %v1185 = vunpack.c.h.b16 %v225
  %v1186 = vunpack.c.l.b16 %v226
  %v1187 = vunpack.c.h.b16 %v226
  %v1188 = vunpack.c.l.b16 %v227
  %v1189 = vunpack.c.h.b16 %v227
  %v1190 = vunpack.c.l.b16 %v228
  %v1191 = vunpack.c.h.b16 %v228
  %v1192 = vunpack.c.l.b16 %v229
  %v1193 = vunpack.c.l.b16 %v230
  %v1194 = vunpack.c.h.b16 %v230
  %v1195 = vunpack.c.l.b16 %v231
  %v1196 = vunpack.c.h.b16 %v231
  %v1197 = vunpack.c.l.b16 %v232
  %v1198 = vunpack.c.h.b16 %v232
  %v1199 = vunpack.c.l.b16 %v233
  %v1200 = vunpack.c.h.b16 %v233
  %v1201 = vunpack.c.l.b16 %v234
  %v1202 = vunpack.c.l.b16 %v235
  %v1203 = vunpack.c.h.b16 %v235
  %v1204 = vunpack.c.l.b16 %v236
  %v1205 = vunpack.c.h.b16 %v236
  %v1206 = vunpack.c.l.b16 %v237
  %v1207 = vunpack.c.h.b16 %v237
  %v1208 = vunpack.c.l.b16 %v238
  %v1209 = vunpack.c.h.b16 %v238
  %v1210 = vunpack.c.l.b16 %v239
  %v1211 = vunpack.c.l.b16 %v240
  %v1212 = vunpack.c.h.b16 %v240
  %v1213 = vunpack.c.l.b16 %v241
  %v1214 = vunpack.c.h.b16 %v241
  %v1215 = vunpack.c.l.b16 %v242
  %v1216 = vunpack.c.h.b16 %v242
  %v1217 = vunpack.c.l.b16 %v243
  %v1218 = vunpack.c.h.b16 %v243
  %v1219 = vunpack.c.l.b16 %v244
  %v1220 = vunpack.c.l.b16 %v245
  %v1221 = vunpack.c.h.b16 %v245
  %v1222 = vunpack.c.l.b16 %v246
  %v1223 = vunpack.c.h.b16 %v246
  %v1224 = vunpack.c.l.b16 %v247
  %v1225 = vunpack.c.h.b16 %v247
  %v1226 = vunpack.c.l.b16 %v248
  %v1227 = vunpack.c.h.b16 %v248
  %v1228 = vunpack.c.l.b16 %v249
  %v1229 = vunpack.c.l.b16 %v250
  %v1230 = vunpack.c.h.b16 %v250
  %v1231 = vunpack.c.l.b16 %v251
  %v1232 = vunpack.c.h.b16 %v251
  %v1233 = vunpack.c.l.b16 %v252
  %v1234 = vunpack.c.h.b16 %v252
  %v1235 = vunpack.c.l.b16 %v253
  %v1236 = vunpack.c.h.b16 %v253
  %v1237 = vunpack.c.l.b16 %v254
  %v1238 = vunpack.c.l.b16 %v255
  %v1239 = vunpack.c.h.b16 %v255
  %v1240 = vunpack.c.l.b16 %v256
  %v1241 = vunpack.c.h.b16 %v256
  %v1242 = vunpack.c.l.b16 %v257
  %v1243 = vunpack.c.h.b16 %v257
  %v1244 = vunpack.c.l.b16 %v258
  %v1245 = vunpack.c.h.b16 %v258
  %v1246 = vunpack.c.l.b16 %v259
  %v1247 = vunpack.c.l.b16 %v260
  %v1248 = vunpack.c.h.b16 %v260
  %v1249 = vunpack.c.l.b16 %v261
  %v1250 = vunpack.c.h.b16 %v261
  %v1251 = vunpack.c.l.b16 %v262
  %v1252 = vunpack.c.h.b16 %v262
  %v1253 = vunpack.c.l.b16 %v263
  %v1254 = vunpack.c.h.b16 %v263
  %v1255 = vunpack.c.l.b16 %v264
  %v1256 = vunpack.c.l.b16 %v265
  %v1257 = vunpack.c.h.b16 %v265
  %v1258 = vunpack.c.l.b16 %v266
  %v1259 = vunpack.c.h.b16 %v266
  %v1260 = vunpack.c.l.b16 %v267
  %v1261 = vunpack.c.h.b16 %v267
  %v1262 = vunpack.c.l.b16 %v268
  %v1263 = vunpack.c.h.b16 %v268
  %v1264 = vunpack.c.l.b16 %v269
  %v1265 = vunpack.c.l.b16 %v270
  %v1266 = vunpack.c.h.b16 %v270
  %v1267 = vunpack.c.l.b16 %v271
  %v1268 = vunpack.c.h.b16 %v271
  %v1269 = vunpack.c.l.b16 %v272
  %v1270 = vunpack.c.h.b16 %v272
  %v1271 = vunpack.c.l.b16 %v273
  %v1272 = vunpack.c.h.b16 %v273
  %v1273 = vunpack.c.l.b16 %v274
  %v1274 = vunpack.c.l.b16 %v275
  %v1275 = vunpack.c.h.b16 %v275
  %v1276 = vunpack.c.l.b16 %v276
  %v1277 = vunpack.c.h.b16 %v276
  %v1278 = vunpack.c.l.b16 %v277
  %v1279 = vunpack.c.h.b16 %v277
  %v1280 = vunpack.c.l.b16 %v278
  %v1281 = vunpack.c.h.b16 %v278
  %v1282 = vunpack.c.l.b16 %v279
  %v1283 = vunpack.c.l.b16 %v280
  %v1284 = vunpack.c.h.b16 %v280
  %v1285 = vunpack.c.l.b16 %v281
  %v1286 = vunpack.c.h.b16 %v281
  %v1287 = vunpack.c.l.b16 %v282
  %v1288 = vunpack.c.h.b16 %v282
  %v1289 = vunpack.c.l.b16 %v283
  %v1290 = vunpack.c.h.b16 %v283
  %v1291 = vunpack.c.l.b16 %v284
  %v1292 = vunpack.c.l.b16 %v285
  %v1293 = vunpack.c.h.b16 %v285
  %v1294 = vunpack.c.l.b16 %v286
  %v1295 = vunpack.c.h.b16 %v286
  %v1296 = vunpack.c.l.b16 %v287
  %v1297 = vunpack.c.h.b16 %v287
  %v1298 = vunpack.c.l.b16 %v288
  %v1299 = vunpack.c.h.b16 %v288
  %v1300 = vunpack.c.l.b16 %v289
  %v1301 = vunpack.c.l.b16 %v290
  %v1302 = vunpack.c.h.b16 %v290
  %v1303 = vunpack.c.l.b16 %v291
  %v1304 = vunpack.c.h.b16 %v291
  %v1305 = vunpack.c.l.b16 %v292
  %v1306 = vunpack.c.h.b16 %v292
  %v1307 = vunpack.c.l.b16 %v293
  %v1308 = vunpack.c.h.b16 %v293
  %v1309 = vunpack.c.l.b16 %v294
  %v1310 = vunpack.c.l.b16 %v295
  %v1311 = vunpack.c.h.b16 %v295
  %v1312 = vunpack.c.l.b16 %v296
  %v1313 = vunpack.c.h.b16 %v296
  %v1314 = vunpack.c.l.b16 %v297
  %v1315 = vunpack.c.h.b16 %v297
  %v1316 = vunpack.c.l.b16 %v298
  %v1317 = vunpack.c.h.b16 %v298
  %v1318 = vunpack.c.l.b16 %v299
  %v1319 = vunpack.c.l.b16 %v300
  %v1320 = vunpack.c.h.b16 %v300
  %v1321 = vunpack.c.l.b16 %v301
  %v1322 = vunpack.c.h.b16 %v301
  %v1323 = vunpack.c.l.b16 %v302
  %v1324 = vunpack.c.h.b16 %v302
  %v1325 = vunpack.c.l.b16 %v303
  %v1326 = vunpack.c.h.b16 %v303
  %v1327 = vunpack.c.l.b16 %v304
  %v1328 = vunpack.c.l.b16 %v305
  %v1329 = vunpack.c.h.b16 %v305
  %v1330 = vunpack.c.l.b16 %v306
  %v1331 = vunpack.c.h.b16 %v306
  %v1332 = vunpack.c.l.b16 %v307
  %v1333 = vunpack.c.h.b16 %v307
  %v1334 = vunpack.c.l.b16 %v308
  %v1335 = vunpack.c.h.b16 %v308
  %v1336 = vunpack.c.l.b16 %v309
  %v1337 = vunpack.c.l.b16 %v310
  %v1338 = vunpack.c.h.b16 %v310
  %v1339 = vunpack.c.l.b16 %v311
  %v1340 = vunpack.c.h.b16 %v311
  %v1341 = vunpack.c.l.b16 %v312
  %v1342 = vunpack.c.h.b16 %v312
  %v1343 = vunpack.c.l.b16 %v313
  %v1344 = vunpack.c.h.b16 %v313
  %v1345 = vunpack.c.l.b16 %v314
  %v1346 = vunpack.c.l.b16 %v315
  %v1347 = vunpack.c.h.b16 %v315
  %v1348 = vunpack.c.l.b16 %v316
  %v1349 = vunpack.c.h.b16 %v316
  %v1350 = vunpack.c.l.b16 %v317
  %v1351 = vunpack.c.h.b16 %v317
  %v1352 = vunpack.c.l.b16 %v318
  %v1353 = vunpack.c.h.b16 %v318
  %v1354 = vunpack.c.l.b16 %v319
  %v1355 = vunpack.c.l.b16 %v320
  %v1356 = vunpack.c.h.b16 %v320
  %v1357 = vunpack.c.l.b16 %v321
  %v1358 = vunpack.c.h.b16 %v321
  %v1359 = vunpack.c.l.b16 %v322
  %v1360 = vunpack.c.h.b16 %v322
  %v1361 = vunpack.c.l.b16 %v323
  %v1362 = vunpack.c.h.b16 %v323
  %v1363 = vunpack.c.l.b16 %v324
  %v1364 = vunpack.c.l.b16 %v325
  %v1365 = vunpack.c.h.b16 %v325
  %v1366 = vunpack.c.l.b16 %v326
  %v1367 = vunpack.c.h.b16 %v326
  %v1368 = vunpack.c.l.b16 %v327
  %v1369 = vunpack.c.h.b16 %v327
  %v1370 = vunpack.c.l.b16 %v328
  %v1371 = vunpack.c.h.b16 %v328
  %v1372 = vunpack.c.l.b16 %v329
  %v1373 = vunpack.c.l.b16 %v330
  %v1374 = vunpack.c.h.b16 %v330
  %v1375 = vunpack.c.l.b16 %v331
  %v1376 = vunpack.c.h.b16 %v331
  %v1377 = vunpack.c.l.b16 %v332
  %v1378 = vunpack.c.h.b16 %v332
  %v1379 = vunpack.c.l.b16 %v333
  %v1380 = vunpack.c.h.b16 %v333
  %v1381 = vunpack.c.l.b16 %v334
  %v1382 = vpack.c.b16 %v815, %v806
  %v1383 = vpack.c.b16 %v816, %v807
  %v1384 = vpack.c.b16 %v817, %v808
  %v1385 = vpack.c.b16 %v818, %v809
  %v1386 = vpack.c.b16 %v819, %v810
  %v1387 = vpack.c.b16 %v820, %v811
  %v1388 = vpack.c.b16 %v821, %v812
  %v1389 = vpack.c.b16 %v822, %v813
  %v1390 = vpack.c.b16 %v823, %v814
  %v1391 = vpack.c.b16 %v833, %v824
  %v1392 = vpack.c.b16 %v834, %v825
  %v1393 = vpack.c.b16 %v835, %v826
  %v1394 = vpack.c.b16 %v836, %v827
  %v1395 = vpack.c.b16 %v837, %v828
  %v1396 = vpack.c.b16 %v838, %v829
  %v1397 = vpack.c.b16 %v839, %v830
  %v1398 = vpack.c.b16 %v840, %v831
  %v1399 = vpack.c.b16 %v841, %v832
  %v1400 = vpack.c.b16 %v851, %v842
  %v1401 = vpack.c.b16 %v852, %v843
  %v1402 = vpack.c.b16 %v853, %v844
  %v1403 = vpack.c.b16 %v854, %v845
  %v1404 = vpack.c.b16 %v855, %v846
  %v1405 = vpack.c.b16 %v856, %v847
  %v1406 = vpack.c.b16 %v857, %v848
  %v1407 = vpack.c.b16 %v858, %v849
  %v1408 = vpack.c.b16 %v859, %v850
  %v1409 = vpack.c.b16 %v869, %v860
  %v1410 = vpack.c.b16 %v870, %v861
  %v1411 = vpack.c.b16 %v871, %v862
  %v1412 = vpack.c.b16 %v872, %v863
  %v1413 = vpack.c.b16 %v873, %v864
  %v1414 = vpack.c.b16 %v874, %v865
  %v1415 = vpack.c.b16 %v875, %v866
  %v1416 = vpack.c.b16 %v876, %v867
  %v1417 = vpack.c.b16 %v877, %v868
  %v1418 = vpack.c.b16 %v887, %v878
  %v1419 = vpack.c.b16 %v888, %v879
  %v1420 = vpack.c.b16 %v889, %v880
  %v1421 = vpack.c.b16 %v890, %v881
  %v1422 = vpack.c.b16 %v891, %v882
  %v1423 = vpack.c.b16 %v892, %v883
  %v1424 = vpack.c.b16 %v893, %v884
  %v1425 = vpack.c.b16 %v894, %v885
  %v1426 = vpack.c.b16 %v895, %v886
  %v1427 = vpack.c.b16 %v905, %v896
  %v1428 = vpack.c.b16 %v906, %v897
  %v1429 = vpack.c.b16 %v907, %v898
  %v1430 = vpack.c.b16 %v908, %v899
  %v1431 = vpack.c.b16 %v909, %v900
  %v1432 = vpack.c.b16 %v910, %v901
  %v1433 = vpack.c.b16 %v911, %v902
  %v1434 = vpack.c.b16 %v912, %v903
  %v1435 = vpack.c.b16 %v913, %v904
  %v1436 = vpack.c.b16 %v923, %v914
  %v1437 = vpack.c.b16 %v924, %v915
  %v1438 = vpack.c.b16 %v925, %v916
  %v1439 = vpack.c.b16 %v926, %v917
  %v1440 = vpack.c.b16 %v927, %v918
  %v1441 = vpack.c.b16 %v928, %v919
  %v1442 = vpack.c.b16 %v929, %v920
  %v1443 = vpack.c.b16 %v930, %v921
  %v1444 = vpack.c.b16 %v931, %v922
  %v1445 = vpack.c.b16 %v941, %v932
  %v1446 = vpack.c.b16 %v942, %v933
  %v1447 = vpack.c.b16 %v943, %v934
  %v1448 = vpack.c.b16 %v944, %v935
  %v1449 = vpack.c.b16 %v945, %v936
  %v1450 = vpack.c.b16 %v946, %v937
  %v1451 = vpack.c.b16 %v947, %v938
  %v1452 = vpack.c.b16 %v948, %v939
  %v1453 = vpack.c.b16 %v949, %v940
  %v1454 = vpack.c.b16 %v959, %v950
  %v1455 = vpack.c.b16 %v960, %v951
  %v1456 = vpack.c.b16 %v961, %v952
  %v1457 = vpack.c.b16 %v962, %v953
  %v1458 = vpack.c.b16 %v963, %v954
  %v1459 = vpack.c.b16 %v964, %v955
  %v1460 = vpack.c.b16 %v965, %v956
  %v1461 = vpack.c.b16 %v966, %v957
  %v1462 = vpack.c.b16 %v967, %v958
  %v1463 = vpack.c.b16 %v977, %v968
  %v1464 = vpack.c.b16 %v978, %v969
  %v1465 = vpack.c.b16 %v979, %v970
  %v1466 = vpack.c.b16 %v980, %v971
  %v1467 = vpack.c.b16 %v981, %v972
  %v1468 = vpack.c.b16 %v982, %v973
  %v1469 = vpack.c.b16 %v983, %v974
  %v1470 = vpack.c.b16 %v984, %v975
  %v1471 = vpack.c.b16 %v985, %v976
  %v1472 = vpack.c.b16 %v995, %v986
  %v1473 = vpack.c.b16 %v996, %v987
  %v1474 = vpack.c.b16 %v997, %v988
  %v1475 = vpack.c.b16 %v998, %v989
  %v1476 = vpack.c.b16 %v999, %v990
  %v1477 = vpack.c.b16 %v1000, %v991
  %v1478 = vpack.c.b16 %v1001, %v992
  %v1479 = vpack.c.b16 %v1002, %v993
  %v1480 = vpack.c.b16 %v1003, %v994
  %v1481 = vpack.c.b16 %v1013, %v1004
  %v1482 = vpack.c.b16 %v1014, %v1005
  %v1483 = vpack.c.b16 %v1015, %v1006
  %v1484 = vpack.c.b16 %v1016, %v1007
  %v1485 = vpack.c.b16 %v1017, %v1008
  %v1486 = vpack.c.b16 %v1018, %v1009
  %v1487 = vpack.c.b16 %v1019, %v1010
  %v1488 = vpack.c.b16 %v1020, %v1011
  %v1489 = vpack.c.b16 %v1021, %v1012
  %v1490 = vpack.c.b16 %v1031, %v1022
  %v1491 = vpack.c.b16 %v1032, %v1023
  %v1492 = vpack.c.b16 %v1033, %v1024
  %v1493 = vpack.c.b16 %v1034, %v1025
  %v1494 = vpack.c.b16 %v1035, %v1026
  %v1495 = vpack.c.b16 %v1036, %v1027
  %v1496 = vpack.c.b16 %v1037, %v1028
  %v1497 = vpack.c.b16 %v1038, %v1029
  %v1498 = vpack.c.b16 %v1039, %v1030
  %v1499 = vpack.c.b16 %v1049, %v1040
  %v1500 = vpack.c.b16 %v1050, %v1041
  %v1501 = vpack.c.b16 %v1051, %v1042
  %v1502 = vpack.c.b16 %v1052, %v1043
  %v1503 = vpack.c.b16 %v1053, %v1044
  %v1504 = vpack.c.b16 %v1054, %v1045
  %v1505 = vpack.c.b16 %v1055, %v1046
  %v1506 = vpack.c.b16 %v1056, %v1047
  %v1507 = vpack.c.b16 %v1057, %v1048
  %v1508 = vpack.c.b16 %v1067, %v1058
  %v1509 = vpack.c.b16 %v1068, %v1059
  %v1510 = vpack.c.b16 %v1069, %v1060
  %v1511 = vpack.c.b16 %v1070, %v1061
  %v1512 = vpack.c.b16 %v1071, %v1062
  %v1513 = vpack.c.b16 %v1072, %v1063
  %v1514 = vpack.c.b16 %v1073, %v1064
  %v1515 = vpack.c.b16 %v1074, %v1065
  %v1516 = vpack.c.b16 %v1075, %v1066
  %v1517 = vpack.c.b16 %v1085, %v1076
  %v1518 = vpack.c.b16 %v1086, %v1077
  %v1519 = vpack.c.b16 %v1087, %v1078
  %v1520 = vpack.c.b16 %v1088, %v1079
  %v1521 = vpack.c.b16 %v1089, %v1080
  %v1522 = vpack.c.b16 %v1090, %v1081
  %v1523 = vpack.c.b16 %v1091, %v1082
  %v1524 = vpack.c.b16 %v1092, %v1083
  %v1525 = vpack.c.b16 %v1093, %v1084
  %v1526 = vpack.c.b16 %v1103, %v1094
  %v1527 = vpack.c.b16 %v1104, %v1095
  %v1528 = vpack.c.b16 %v1105, %v1096
  %v1529 = vpack.c.b16 %v1106, %v1097
  %v1530 = vpack.c.b16 %v1107, %v1098
  %v1531 = vpack.c.b16 %v1108, %v1099
  %v1532 = vpack.c.b16 %v1109, %v1100
  %v1533 = vpack.c.b16 %v1110, %v1101
  %v1534 = vpack.c.b16 %v1111, %v1102
  %v1535 = vpack.c.b16 %v1121, %v1112
  %v1536 = vpack.c.b16 %v1122, %v1113
  %v1537 = vpack.c.b16 %v1123, %v1114
  %v1538 = vpack.c.b16 %v1124, %v1115
  %v1539 = vpack.c.b16 %v1125, %v1116
  %v1540 = vpack.c.b16 %v1126, %v1117
  %v1541 = vpack.c.b16 %v1127, %v1118
  %v1542 = vpack.c.b16 %v1128, %v1119
  %v1543 = vpack.c.b16 %v1129, %v1120
  %v1544 = vpack.c.b16 %v1139, %v1130
  %v1545 = vpack.c.b16 %v1140, %v1131
  %v1546 = vpack.c.b16 %v1141, %v1132
  %v1547 = vpack.c.b16 %v1142, %v1133
  %v1548 = vpack.c.b16 %v1143, %v1134
  %v1549 = vpack.c.b16 %v1144, %v1135
  %v1550 = vpack.c.b16 %v1145, %v1136
  %v1551 = vpack.c.b16 %v1146, %v1137
  %v1552 = vpack.c.b16 %v1147, %v1138
  %v1553 = vpack.c.b16 %v1157, %v1148
  %v1554 = vpack.c.b16 %v1158, %v1149
  %v1555 = vpack.c.b16 %v1159, %v1150
  %v1556 = vpack.c.b16 %v1160, %v1151
  %v1557 = vpack.c.b16 %v1161, %v1152
  %v1558 = vpack.c.b16 %v1162, %v1153
  %v1559 = vpack.c.b16 %v1163, %v1154
  %v1560 = vpack.c.b16 %v1164, %v1155
  %v1561 = vpack.c.b16 %v1165, %v1156
  %v1562 = vpack.c.b16 %v1175, %v1166
  %v1563 = vpack.c.b16 %v1176, %v1167
  %v1564 = vpack.c.b16 %v1177, %v1168
  %v1565 = vpack.c.b16 %v1178, %v1169
  %v1566 = vpack.c.b16 %v1179, %v1170
  %v1567 = vpack.c.b16 %v1180, %v1171
  %v1568 = vpack.c.b16 %v1181, %v1172
  %v1569 = vpack.c.b16 %v1182, %v1173
  %v1570 = vpack.c.b16 %v1183, %v1174
  %v1571 = vpack.c.b16 %v1193, %v1184
  %v1572 = vpack.c.b16 %v1194, %v1185
  %v1573 = vpack.c.b16 %v1195, %v1186
  %v1574 = vpack.c.b16 %v1196, %v1187
  %v1575 = vpack.c.b16 %v1197, %v1188
  %v1576 = vpack.c.b16 %v1198, %v1189
  %v1577 = vpack.c.b16 %v1199, %v1190
  %v1578 = vpack.c.b16 %v1200, %v1191
  %v1579 = vpack.c.b16 %v1201, %v1192
  %v1580 = vpack.c.b16 %v1211, %v1202
  %v1581 = vpack.c.b16 %v1212, %v1203
  %v1582 = vpack.c.b16 %v1213, %v1204
  %v1583 = vpack.c.b16 %v1214, %v1205
  %v1584 = vpack.c.b16 %v1215, %v1206
  %v1585 = vpack.c.b16 %v1216, %v1207
  %v1586 = vpack.c.b16 %v1217, %v1208
  %v1587 = vpack.c.b16 %v1218, %v1209
  %v1588 = vpack.c.b16 %v1219, %v1210
  %v1589 = vpack.c.b16 %v1229, %v1220
  %v1590 = vpack.c.b16 %v1230, %v1221
  %v1591 = vpack.c.b16 %v1231, %v1222
  %v1592 = vpack.c.b16 %v1232, %v1223
  %v1593 = vpack.c.b16 %v1233, %v1224
  %v1594 = vpack.c.b16 %v1234, %v1225
  %v1595 = vpack.c.b16 %v1235, %v1226
  %v1596 = vpack.c.b16 %v1236, %v1227
  %v1597 = vpack.c.b16 %v1237, %v1228
  %v1598 = vpack.c.b16 %v1247, %v1238
  %v1599 = vpack.c.b16 %v1248, %v1239
  %v1600 = vpack.c.b16 %v1249, %v1240
  %v1601 = vpack.c.b16 %v1250, %v1241
  %v1602 = vpack.c.b16 %v1251, %v1242
  %v1603 = vpack.c.b16 %v1252, %v1243
  %v1604 = vpack.c.b16 %v1253, %v1244
  %v1605 = vpack.c.b16 %v1254, %v1245
  %v1606 = vpack.c.b16 %v1255, %v1246
  %v1607 = vpack.c.b16 %v1265, %v1256
  %v1608 = vpack.c.b16 %v1266, %v1257
  %v1609 = vpack.c.b16 %v1267, %v1258
  %v1610 = vpack.c.b16 %v1268, %v1259
  %v1611 = vpack.c.b16 %v1269, %v1260
  %v1612 = vpack.c.b16 %v1270, %v1261
  %v1613 = vpack.c.b16 %v1271, %v1262
  %v1614 = vpack.c.b16 %v1272, %v1263
  %v1615 = vpack.c.b16 %v1273, %v1264
  %v1616 = vpack.c.b16 %v1283, %v1274
  %v1617 = vpack.c.b16 %v1284, %v1275
  %v1618 = vpack.c.b16 %v1285, %v1276
  %v1619 = vpack.c.b16 %v1286, %v1277
  %v1620 = vpack.c.b16 %v1287, %v1278
  %v1621 = vpack.c.b16 %v1288, %v1279
  %v1622 = vpack.c.b16 %v1289, %v1280
  %v1623 = vpack.c.b16 %v1290, %v1281
  %v1624 = vpack.c.b16 %v1291, %v1282
  %v1625 = vpack.c.b16 %v1301, %v1292
  %v1626 = vpack.c.b16 %v1302, %v1293
  %v1627 = vpack.c.b16 %v1303, %v1294
  %v1628 = vpack.c.b16 %v1304, %v1295
  %v1629 = vpack.c.b16 %v1305, %v1296
  %v1630 = vpack.c.b16 %v1306, %v1297
  %v1631 = vpack.c.b16 %v1307, %v1298
  %v1632 = vpack.c.b16 %v1308, %v1299
  %v1633 = vpack.c.b16 %v1309, %v1300
  %v1634 = vpack.c.b16 %v1319, %v1310
  %v1635 = vpack.c.b16 %v1320, %v1311
  %v1636 = vpack.c.b16 %v1321, %v1312
  %v1637 = vpack.c.b16 %v1322, %v1313
  %v1638 = vpack.c.b16 %v1323, %v1314
  %v1639 = vpack.c.b16 %v1324, %v1315
  %v1640 = vpack.c.b16 %v1325, %v1316
  %v1641 = vpack.c.b16 %v1326, %v1317
  %v1642 = vpack.c.b16 %v1327, %v1318
  %v1643 = vpack.c.b16 %v1337, %v1328
  %v1644 = vpack.c.b16 %v1338, %v1329
  %v1645 = vpack.c.b16 %v1339, %v1330
  %v1646 = vpack.c.b16 %v1340, %v1331
  %v1647 = vpack.c.b16 %v1341, %v1332
  %v1648 = vpack.c.b16 %v1342, %v1333
  %v1649 = vpack.c.b16 %v1343, %v1334
  %v1650 = vpack.c.b16 %v1344, %v1335
  %v1651 = vpack.c.b16 %v1345, %v1336
  %v1652 = vpack.c.b16 %v1355, %v1346
  %v1653 = vpack.c.b16 %v1356, %v1347
  %v1654 = vpack.c.b16 %v1357, %v1348
  %v1655 = vpack.c.b16 %v1358, %v1349
  %v1656 = vpack.c.b16 %v1359, %v1350
  %v1657 = vpack.c.b16 %v1360, %v1351
  %v1658 = vpack.c.b16 %v1361, %v1352
  %v1659 = vpack.c.b16 %v1362, %v1353
  %v1660 = vpack.c.b16 %v1363, %v1354
  %v1661 = vpack.c.b16 %v1373, %v1364
  %v1662 = vpack.c.b16 %v1374, %v1365
  %v1663 = vpack.c.b16 %v1375, %v1366
  %v1664 = vpack.c.b16 %v1376, %v1367
  %v1665 = vpack.c.b16 %v1377, %v1368
  %v1666 = vpack.c.b16 %v1378, %v1369
  %v1667 = vpack.c.b16 %v1379, %v1370
  %v1668 = vpack.c.b16 %v1380, %v1371
  %v1669 = vpack.c.b16 %v1381, %v1372
  %v2102 = vunpack.c.l.b16 %v335
  %v2103 = vunpack.c.l.b16 %v336
  %v2104 = vunpack.c.l.b16 %v337
  %v2105 = vunpack.c.l.b16 %v338
  %v2106 = vunpack.c.l.b16 %v339
  %v2107 = vunpack.c.l.b16 %v340
  %v2108 = vunpack.c.l.b16 %v341
  %v2109 = vunpack.c.l.b16 %v342
  %v2110 = vunpack.c.l.b16 %v343
  %v2111 = vunpack.c.l.b16 %v344
  %v2112 = vunpack.c.l.b16 %v345
  %v2113 = vunpack.c.l.b16 %v346
  %v2114 = vunpack.c.l.b16 %v347
  %v2115 = vunpack.c.l.b16 %v348
  %v2116 = vunpack.c.l.b16 %v349
  %v2117 = vunpack.c.l.b16 %v350
  %v2118 = vunpack.c.l.b16 %v351
  %v2119 = vunpack.c.l.b16 %v352
  %v2120 = vunpack.c.l.b16 %v353
  %v2121 = vunpack.c.l.b16 %v354
  %v2122 = vunpack.c.l.b16 %v355
  %v2123 = vunpack.c.l.b16 %v356
  %v2124 = vunpack.c.l.b16 %v357
  %v2125 = vunpack.c.l.b16 %v358
  %v2126 = vunpack.c.l.b16 %v359
  %v2127 = vunpack.c.l.b16 %v360
  %v2128 = vunpack.c.l.b16 %v361
  %v2129 = vunpack.c.l.b16 %v362
  %v2130 = vunpack.c.l.b16 %v363
  %v2131 = vunpack.c.l.b16 %v364
  %v2132 = vunpack.c.l.b16 %v365
  %v2133 = vunpack.c.l.b16 %v366
  %v2134 = vunpack.c.l.b16 %v367
  %v2135 = vunpack.c.l.b16 %v368
  %v2136 = vunpack.c.l.b16 %v369
  %v2137 = vunpack.c.l.b16 %v370
  %v2138 = vunpack.c.l.b16 %v371
  %v2139 = vunpack.c.l.b16 %v372
  %v2140 = vunpack.c.l.b16 %v373
  %v2141 = vunpack.c.l.b16 %v374
  %v2142 = vunpack.c.l.b16 %v375
  %v2143 = vunpack.c.l.b16 %v376
  %v2144 = vunpack.c.l.b16 %v377
  %v2145 = vunpack.c.l.b16 %v378
  %v2146 = vunpack.c.l.b16 %v379
  %v2147 = vunpack.c.l.b16 %v380
  %v2148 = vunpack.c.l.b16 %v381
  %v2149 = vunpack.c.l.b16 %v382
  %v2150 = vunpack.c.l.b16 %v383
  %v2151 = vunpack.c.l.b16 %v384
  %v2152 = vunpack.c.l.b16 %v385
  %v2153 = vunpack.c.l.b16 %v386
  %v2154 = vunpack.c.l.b16 %v387
  %v2155 = vunpack.c.l.b16 %v388
  %v2156 = vunpack.c.l.b16 %v389
  %v2157 = vunpack.c.l.b16 %v390
  %v2158 = vunpack.c.l.b16 %v391
  %v2159 = vunpack.c.l.b16 %v392
  %v2160 = vunpack.c.l.b16 %v393
  %v2161 = vunpack.c.l.b16 %v394
  %v2162 = vunpack.c.l.b16 %v395
  %v2163 = vunpack.c.l.b16 %v396
  %v2164 = vunpack.c.l.b16 %v397
  %v2165 = vunpack.c.l.b16 %v398
  %v2166 = vunpack.c.l.b16 %v399
  %v2167 = vunpack.c.l.b16 %v400
  %v2168 = vunpack.c.l.b16 %v401
  %v2169 = vunpack.c.l.b16 %v402
  %v2170 = vunpack.c.l.b16 %v403
  %v2171 = vunpack.c.l.b16 %v404
  %v2172 = vunpack.c.l.b16 %v405
  %v2173 = vunpack.c.l.b16 %v406
  %v2174 = vunpack.c.l.b16 %v407
  %v2175 = vunpack.c.l.b16 %v408
  %v2176 = vunpack.c.l.b16 %v409
  %v2177 = vunpack.c.l.b16 %v410
  %v2178 = vunpack.c.l.b16 %v411
  %v2179 = vunpack.c.l.b16 %v412
  %v2180 = vunpack.c.l.b16 %v413
  %v2181 = vunpack.c.l.b16 %v414
  %v2182 = vunpack.c.l.b16 %v415
  %v2183 = vunpack.c.l.b16 %v416
  %v2184 = vunpack.c.l.b16 %v417
  %v2185 = vunpack.c.l.b16 %v418
  %v2186 = vunpack.c.l.b16 %v419
  %v2187 = vunpack.c.l.b16 %v420
  %v2188 = vunpack.c.l.b16 %v421
  %v2189 = vunpack.c.l.b16 %v422
  %v2190 = vunpack.c.l.b16 %v423
  %v2191 = vunpack.c.l.b16 %v424
  %v2192 = vunpack.c.l.b16 %v425
  %v2193 = vunpack.c.l.b16 %v426
  %v2194 = vunpack.c.l.b16 %v427
  %v2195 = vunpack.c.l.b16 %v428
  %v2196 = vunpack.c.l.b16 %v429
  %v2197 = vunpack.c.l.b16 %v430
  %v2198 = vunpack.c.l.b16 %v431
  %v2199 = vunpack.c.l.b16 %v432
  %v2200 = vunpack.c.l.b16 %v433
  %v2201 = vunpack.c.l.b16 %v434
  %v2202 = vunpack.c.l.b16 %v435
  %v2203 = vunpack.c.l.b16 %v436
  %v2204 = vunpack.c.l.b16 %v437
  %v2205 = vunpack.c.l.b16 %v438
  %v2206 = vunpack.c.l.b16 %v439
  %v2207 = vunpack.c.l.b16 %v440
  %v2208 = vunpack.c.l.b16 %v441
  %v2209 = vunpack.c.l.b16 %v442
  %v2210 = vunpack.c.l.b16 %v443
  %v2211 = vunpack.c.l.b16 %v444
  %v2212 = vunpack.c.l.b16 %v445
  %v2213 = vunpack.c.l.b16 %v446
  %v2214 = vunpack.c.l.b16 %v447
  %v2215 = vunpack.c.l.b16 %v448
  %v2216 = vunpack.c.l.b16 %v449
  %v2217 = vunpack.c.l.b16 %v450
  %v2218 = vunpack.c.l.b16 %v451
  %v2219 = vunpack.c.l.b16 %v452
  %v2220 = vunpack.c.l.b16 %v453
  %v2221 = vunpack.c.l.b16 %v454
  %v2222 = vunpack.c.l.b16 %v455
  %v2223 = vunpack.c.l.b16 %v456
  %v2224 = vunpack.c.l.b16 %v457
  %v2225 = vunpack.c.l.b16 %v458
  %v2226 = vunpack.c.l.b16 %v459
  %v2227 = vunpack.c.l.b16 %v460
  %v2228 = vunpack.c.l.b16 %v461
  %v2229 = vunpack.c.l.b16 %v462
  %v2230 = vunpack.c.l.b16 %v463
  %v2231 = vunpack.c.l.b16 %v464
  %v2232 = vunpack.c.l.b16 %v465
  %v2233 = vunpack.c.l.b16 %v466
  %v2234 = vunpack.c.l.b16 %v467
  %v2235 = vunpack.c.l.b16 %v468
  %v2236 = vunpack.c.l.b16 %v469
  %v2237 = vunpack.c.l.b16 %v470
  %v2238 = vunpack.c.l.b16 %v471
  %v2239 = vunpack.c.l.b16 %v472
  %v2240 = vunpack.c.l.b16 %v473
  %v2241 = vunpack.c.l.b16 %v474
  %v2242 = vunpack.c.l.b16 %v475
  %v2243 = vunpack.c.l.b16 %v476
  %v2244 = vunpack.c.l.b16 %v477
  %v2245 = vunpack.c.l.b16 %v478
  %v2246 = vpack.c.b16 %v2103, %v2102
  %v2247 = vpack.c.b16 %v2105, %v2104
  %v2248 = vpack.c.b16 %v2107, %v2106
  %v2249 = vpack.c.b16 %v2109, %v2108
  %v2250 = vpack.c.b16 %v2111, %v2110
  %v2251 = vpack.c.b16 %v2113, %v2112
  %v2252 = vpack.c.b16 %v2115, %v2114
  %v2253 = vpack.c.b16 %v2117, %v2116
  %v2254 = vpack.c.b16 %v2119, %v2118
  %v2255 = vpack.c.b16 %v2121, %v2120
  %v2256 = vpack.c.b16 %v2123, %v2122
  %v2257 = vpack.c.b16 %v2125, %v2124
  %v2258 = vpack.c.b16 %v2127, %v2126
  %v2259 = vpack.c.b16 %v2129, %v2128
  %v2260 = vpack.c.b16 %v2131, %v2130
  %v2261 = vpack.c.b16 %v2133, %v2132
  %v2262 = vpack.c.b16 %v2135, %v2134
  %v2263 = vpack.c.b16 %v2137, %v2136
  %v2264 = vpack.c.b16 %v2139, %v2138
  %v2265 = vpack.c.b16 %v2141, %v2140
  %v2266 = vpack.c.b16 %v2143, %v2142
  %v2267 = vpack.c.b16 %v2145, %v2144
  %v2268 = vpack.c.b16 %v2147, %v2146
  %v2269 = vpack.c.b16 %v2149, %v2148
  %v2270 = vpack.c.b16 %v2151, %v2150
  %v2271 = vpack.c.b16 %v2153, %v2152
  %v2272 = vpack.c.b16 %v2155, %v2154
  %v2273 = vpack.c.b16 %v2157, %v2156
  %v2274 = vpack.c.b16 %v2159, %v2158
  %v2275 = vpack.c.b16 %v2161, %v2160
  %v2276 = vpack.c.b16 %v2163, %v2162
  %v2277 = vpack.c.b16 %v2165, %v2164
  %v2278 = vpack.c.b16 %v2167, %v2166
  %v2279 = vpack.c.b16 %v2169, %v2168
  %v2280 = vpack.c.b16 %v2171, %v2170
  %v2281 = vpack.c.b16 %v2173, %v2172
  %v2282 = vpack.c.b16 %v2175, %v2174
  %v2283 = vpack.c.b16 %v2177, %v2176
  %v2284 = vpack.c.b16 %v2179, %v2178
  %v2285 = vpack.c.b16 %v2181, %v2180
  %v2286 = vpack.c.b16 %v2183, %v2182
  %v2287 = vpack.c.b16 %v2185, %v2184
  %v2288 = vpack.c.b16 %v2187, %v2186
  %v2289 = vpack.c.b16 %v2189, %v2188
  %v2290 = vpack.c.b16 %v2191, %v2190
  %v2291 = vpack.c.b16 %v2193, %v2192
  %v2292 = vpack.c.b16 %v2195, %v2194
  %v2293 = vpack.c.b16 %v2197, %v2196
  %v2294 = vpack.c.b16 %v2199, %v2198
  %v2295 = vpack.c.b16 %v2201, %v2200
  %v2296 = vpack.c.b16 %v2203, %v2202
  %v2297 = vpack.c.b16 %v2205, %v2204
  %v2298 = vpack.c.b16 %v2207, %v2206
  %v2299 = vpack.c.b16 %v2209, %v2208
  %v2300 = vpack.c.b16 %v2211, %v2210
  %v2301 = vpack.c.b16 %v2213, %v2212
  %v2302 = vpack.c.b16 %v2215, %v2214
  %v2303 = vpack.c.b16 %v2217, %v2216
  %v2304 = vpack.c.b16 %v2219, %v2218
  %v2305 = vpack.c.b16 %v2221, %v2220
  %v2306 = vpack.c.b16 %v2223, %v2222
  %v2307 = vpack.c.b16 %v2225, %v2224
  %v2308 = vpack.c.b16 %v2227, %v2226
  %v2309 = vpack.c.b16 %v2229, %v2228
  %v2310 = vpack.c.b16 %v2231, %v2230
  %v2311 = vpack.c.b16 %v2233, %v2232
  %v2312 = vpack.c.b16 %v2235, %v2234
  %v2313 = vpack.c.b16 %v2237, %v2236
  %v2314 = vpack.c.b16 %v2239, %v2238
  %v2315 = vpack.c.b16 %v2241, %v2240
  %v2316 = vpack.c.b16 %v2243, %v2242
  %v2317 = vpack.c.b16 %v2245, %v2244
  %2390 = vmatprep.subr.bf16.mxu0 0
  %2391 = vmatpush1.bf16.msra.mxu0 %v2246
  %2392 = vmatprep.subr.bf16.mxu0 0
  %2393 = vmatpush1.bf16.msra.mxu0 %v2247
  %2394 = vmatprep.subr.bf16.mxu0 0
  %2395 = vmatpush1.bf16.msra.mxu0 %v2248
  %2396 = vmatprep.subr.bf16.mxu0 0
  %2397 = vmatpush1.bf16.msra.mxu0 %v2249
  %2398 = vmatprep.subr.bf16.mxu0 0
  %2399 = vmatpush1.bf16.msra.mxu0 %v2250
  %2400 = vmatprep.subr.bf16.mxu0 0
  %2401 = vmatpush1.bf16.msra.mxu0 %v2251
  %2402 = vmatprep.subr.bf16.mxu0 0
  %2403 = vmatpush1.bf16.msra.mxu0 %v2252
  %2404 = vmatprep.subr.bf16.mxu0 0
  %2405 = vmatpush1.bf16.msra.mxu0 %v2253
  %2406 = vmatprep.subr.bf16.mxu0 0
  %2407 = vmatpush1.bf16.msra.mxu0 %v2254
  %2408 = vmatprep.subr.bf16.mxu0 0
  %2409 = vmatpush1.bf16.msra.mxu0 %v2255
  %2410 = vmatprep.subr.bf16.mxu0 0
  %2411 = vmatpush1.bf16.msra.mxu0 %v2256
  %2412 = vmatprep.subr.bf16.mxu0 0
  %2413 = vmatpush1.bf16.msra.mxu0 %v2257
  %2414 = vmatprep.subr.bf16.mxu0 0
  %2415 = vmatpush1.bf16.msra.mxu0 %v2258
  %2416 = vmatprep.subr.bf16.mxu0 0
  %2417 = vmatpush1.bf16.msra.mxu0 %v2259
  %2418 = vmatprep.subr.bf16.mxu0 0
  %2419 = vmatpush1.bf16.msra.mxu0 %v2260
  %2420 = vmatprep.subr.bf16.mxu0 0
  %2421 = vmatpush1.bf16.msra.mxu0 %v2261
  %2422 = vmatprep.mubr.bf16.mxu0 %v1383
  %2423 = vmatmul.mubr.bf16.gmra.mrb[0].mxu0 %v1382
  %v2424 = vpop.f32.mrb[0].mxu0
  %v2425 = vadd.f32 %v484, %v2424
  %v2426 = vpop.f32.mrb[0].mxu0
  %v2427 = vpop.f32.mrb[0].mxu0
  %v2428 = vadd.f32 %v484, %v2427
  %v2429 = vpop.f32.mrb[0].mxu0
  %2430 = vmatprep.mubr.bf16.mxu0 %v1392
  %2431 = vmatmul.mubr.bf16.gmra.mrb[0].mxu0 %v1391
  %v2432 = vpop.f32.mrb[0].mxu0
  %v2433 = vadd.f32 %v484, %v2432
  %v2434 = vpop.f32.mrb[0].mxu0
  %v2435 = vpop.f32.mrb[0].mxu0
  %v2436 = vadd.f32 %v484, %v2435
  %v2437 = vpop.f32.mrb[0].mxu0
  %2438 = vmatprep.mubr.bf16.mxu0 %v1401
  %2439 = vmatmul.mubr.bf16.gmra.mrb[0].mxu0 %v1400
  %v2440 = vpop.f32.mrb[0].mxu0
  %v2441 = vadd.f32 %v484, %v2440
  %v2442 = vpop.f32.mrb[0].mxu0
  %v2443 = vpop.f32.mrb[0].mxu0
  %v2444 = vadd.f32 %v484, %v2443
  %v2445 = vpop.f32.mrb[0].mxu0
  %2446 = vmatprep.mubr.bf16.mxu0 %v1410
  %2447 = vmatmul.mubr.bf16.gmra.mrb[0].mxu0 %v1409
  %v2448 = vpop.f32.mrb[0].mxu0
  %v2449 = vadd.f32 %v484, %v2448
  %v2450 = vpop.f32.mrb[0].mxu0
  %v2451 = vpop.f32.mrb[0].mxu0
  %v2452 = vadd.f32 %v484, %v2451
  %v2453 = vpop.f32.mrb[0].mxu0
  %2454 = vmatprep.mubr.bf16.mxu0 %v1419
  %2455 = vmatmul.mubr.bf16.gmra.mrb[0].mxu0 %v1418
  %v2456 = vpop.f32.mrb[0].mxu0
  %v2457 = vadd.f32 %v484, %v2456
  %v2458 = vpop.f32.mrb[0].mxu0
  %v2459 = vpop.f32.mrb[0].mxu0
  %v2460 = vadd.f32 %v484, %v2459
  %v2461 = vpop.f32.mrb[0].mxu0
  %2462 = vmatprep.mubr.bf16.mxu0 %v1428
  %2463 = vmatmul.mubr.bf16.gmra.mrb[0].mxu0 %v1427
  %v2464 = vpop.f32.mrb[0].mxu0
  %v2465 = vadd.f32 %v484, %v2464
  %v2466 = vpop.f32.mrb[0].mxu0
  %v2467 = vpop.f32.mrb[0].mxu0
  %v2468 = vadd.f32 %v484, %v2467
  %v2469 = vpop.f32.mrb[0].mxu0
  %2470 = vmatprep.mubr.bf16.mxu0 %v1437
  %2471 = vmatmul.mubr.bf16.gmra.mrb[0].mxu0 %v1436
  %v2472 = vpop.f32.mrb[0].mxu0
  %v2473 = vadd.f32 %v484, %v2472
  %v2474 = vpop.f32.mrb[0].mxu0
  %v2475 = vpop.f32.mrb[0].mxu0
  %v2476 = vadd.f32 %v484, %v2475
  %v2477 = vpop.f32.mrb[0].mxu0
  %2478 = vmatprep.mubr.bf16.mxu0 %v1446
  %2479 = vmatmul.mubr.bf16.gmra.mrb[0].mxu0 %v1445
  %v2480 = vpop.f32.mrb[0].mxu0
  %v2481 = vadd.f32 %v484, %v2480
  %v2482 = vpop.f32.mrb[0].mxu0
  %v2483 = vpop.f32.mrb[0].mxu0
  %v2484 = vadd.f32 %v484, %v2483
  %v2485 = vpop.f32.mrb[0].mxu0
  %2486 = vmatprep.mubr.bf16.mxu0 %v1455
  %2487 = vmatmul.mubr.bf16.gmra.mrb[0].mxu0 %v1454
  %v2488 = vpop.f32.mrb[0].mxu0
  %v2489 = vadd.f32 %v484, %v2488
  %v2490 = vpop.f32.mrb[0].mxu0
  %v2491 = vpop.f32.mrb[0].mxu0
  %v2492 = vadd.f32 %v484, %v2491
  %v2493 = vpop.f32.mrb[0].mxu0
  %2494 = vmatprep.mubr.bf16.mxu0 %v1464
  %2495 = vmatmul.mubr.bf16.gmra.mrb[0].mxu0 %v1463
  %v2496 = vpop.f32.mrb[0].mxu0
  %v2497 = vadd.f32 %v484, %v2496
  %v2498 = vpop.f32.mrb[0].mxu0
  %v2499 = vpop.f32.mrb[0].mxu0
  %v2500 = vadd.f32 %v484, %v2499
  %v2501 = vpop.f32.mrb[0].mxu0
  %2502 = vmatprep.mubr.bf16.mxu0 %v1473
  %2503 = vmatmul.mubr.bf16.gmra.mrb[0].mxu0 %v1472
  %v2504 = vpop.f32.mrb[0].mxu0
  %v2505 = vadd.f32 %v484, %v2504
  %v2506 = vpop.f32.mrb[0].mxu0
  %v2507 = vpop.f32.mrb[0].mxu0
  %v2508 = vadd.f32 %v484, %v2507
  %v2509 = vpop.f32.mrb[0].mxu0
  %2510 = vmatprep.mubr.bf16.mxu0 %v1482
  %2511 = vmatmul.mubr.bf16.gmra.mrb[0].mxu0 %v1481
  %v2512 = vpop.f32.mrb[0].mxu0
  %v2513 = vadd.f32 %v484, %v2512
  %v2514 = vpop.f32.mrb[0].mxu0
  %v2515 = vpop.f32.mrb[0].mxu0
  %v2516 = vadd.f32 %v484, %v2515
  %v2517 = vpop.f32.mrb[0].mxu0
  %2518 = vmatprep.mubr.bf16.mxu0 %v1491
  %2519 = vmatmul.mubr.bf16.gmra.mrb[0].mxu0 %v1490
  %v2520 = vpop.f32.mrb[0].mxu0
  %v2521 = vadd.f32 %v484, %v2520
  %v2522 = vpop.f32.mrb[0].mxu0
  %v2523 = vpop.f32.mrb[0].mxu0
  %v2524 = vadd.f32 %v484, %v2523
  %v2525 = vpop.f32.mrb[0].mxu0
  %2526 = vmatprep.mubr.bf16.mxu0 %v1500
  %2527 = vmatmul.mubr.bf16.gmra.mrb[0].mxu0 %v1499
  %v2528 = vpop.f32.mrb[0].mxu0
  %v2529 = vadd.f32 %v484, %v2528
  %v2530 = vpop.f32.mrb[0].mxu0
  %v2531 = vpop.f32.mrb[0].mxu0
  %v2532 = vadd.f32 %v484, %v2531
  %v2533 = vpop.f32.mrb[0].mxu0
  %2534 = vmatprep.mubr.bf16.mxu0 %v1509
  %2535 = vmatmul.mubr.bf16.gmra.mrb[0].mxu0 %v1508
  %v2536 = vpop.f32.mrb[0].mxu0
  %v2537 = vadd.f32 %v484, %v2536
  %v2538 = vpop.f32.mrb[0].mxu0
  %v2539 = vpop.f32.mrb[0].mxu0
  %v2540 = vadd.f32 %v484, %v2539
  %v2541 = vpop.f32.mrb[0].mxu0
  %2542 = vmatprep.mubr.bf16.mxu0 %v1518
  %2543 = vmatmul.mubr.bf16.gmra.mrb[0].mxu0 %v1517
  %v2544 = vpop.f32.mrb[0].mxu0
  %v2545 = vadd.f32 %v484, %v2544
  %v2546 = vpop.f32.mrb[0].mxu0
  %v2547 = vpop.f32.mrb[0].mxu0
  %v2548 = vadd.f32 %v484, %v2547
  %v2549 = vpop.f32.mrb[0].mxu0
  %2550 = vmatprep.mubr.bf16.mxu0 %v1527
  %2551 = vmatmul.mubr.bf16.gmra.mrb[0].mxu0 %v1526
  %v2552 = vpop.f32.mrb[0].mxu0
  %v2553 = vadd.f32 %v484, %v2552
  %v2554 = vpop.f32.mrb[0].mxu0
  %v2555 = vpop.f32.mrb[0].mxu0
  %v2556 = vadd.f32 %v484, %v2555
  %v2557 = vpop.f32.mrb[0].mxu0
  %2558 = vmatprep.mubr.bf16.mxu0 %v1536
  %2559 = vmatmul.mubr.bf16.gmra.mrb[0].mxu0 %v1535
  %v2560 = vpop.f32.mrb[0].mxu0
  %v2561 = vadd.f32 %v484, %v2560
  %v2562 = vpop.f32.mrb[0].mxu0
  %v2563 = vpop.f32.mrb[0].mxu0
  %v2564 = vadd.f32 %v484, %v2563
  %v2565 = vpop.f32.mrb[0].mxu0
  %2566 = vmatprep.mubr.bf16.mxu0 %v1545
  %2567 = vmatmul.mubr.bf16.gmra.mrb[0].mxu0 %v1544
  %v2568 = vpop.f32.mrb[0].mxu0
  %v2569 = vadd.f32 %v484, %v2568
  %v2570 = vpop.f32.mrb[0].mxu0
  %v2571 = vpop.f32.mrb[0].mxu0
  %v2572 = vadd.f32 %v484, %v2571
  %v2573 = vpop.f32.mrb[0].mxu0
  %2574 = vmatprep.mubr.bf16.mxu0 %v1554
  %2575 = vmatmul.mubr.bf16.gmra.mrb[0].mxu0 %v1553
  %v2576 = vpop.f32.mrb[0].mxu0
  %v2577 = vadd.f32 %v484, %v2576
  %v2578 = vpop.f32.mrb[0].mxu0
  %v2579 = vpop.f32.mrb[0].mxu0
  %v2580 = vadd.f32 %v484, %v2579
  %v2581 = vpop.f32.mrb[0].mxu0
  %2582 = vmatprep.mubr.bf16.mxu0 %v1563
  %2583 = vmatmul.mubr.bf16.gmra.mrb[0].mxu0 %v1562
  %v2584 = vpop.f32.mrb[0].mxu0
  %v2585 = vadd.f32 %v484, %v2584
  %v2586 = vpop.f32.mrb[0].mxu0
  %v2587 = vpop.f32.mrb[0].mxu0
  %v2588 = vadd.f32 %v484, %v2587
  %v2589 = vpop.f32.mrb[0].mxu0
  %2590 = vmatprep.mubr.bf16.mxu0 %v1572
  %2591 = vmatmul.mubr.bf16.gmra.mrb[0].mxu0 %v1571
  %v2592 = vpop.f32.mrb[0].mxu0
  %v2593 = vadd.f32 %v484, %v2592
  %v2594 = vpop.f32.mrb[0].mxu0
  %v2595 = vpop.f32.mrb[0].mxu0
  %v2596 = vadd.f32 %v484, %v2595
  %v2597 = vpop.f32.mrb[0].mxu0
  %2598 = vmatprep.mubr.bf16.mxu0 %v1581
  %2599 = vmatmul.mubr.bf16.gmra.mrb[0].mxu0 %v1580
  %v2600 = vpop.f32.mrb[0].mxu0
  %v2601 = vadd.f32 %v484, %v2600
  %v2602 = vpop.f32.mrb[0].mxu0
  %v2603 = vpop.f32.mrb[0].mxu0
  %v2604 = vadd.f32 %v484, %v2603
  %v2605 = vpop.f32.mrb[0].mxu0
  %2606 = vmatprep.mubr.bf16.mxu0 %v1590
  %2607 = vmatmul.mubr.bf16.gmra.mrb[0].mxu0 %v1589
  %v2608 = vpop.f32.mrb[0].mxu0
  %v2609 = vadd.f32 %v484, %v2608
  %v2610 = vpop.f32.mrb[0].mxu0
  %v2611 = vpop.f32.mrb[0].mxu0
  %v2612 = vadd.f32 %v484, %v2611
  %v2613 = vpop.f32.mrb[0].mxu0
  %2614 = vmatprep.mubr.bf16.mxu0 %v1599
  %2615 = vmatmul.mubr.bf16.gmra.mrb[0].mxu0 %v1598
  %v2616 = vpop.f32.mrb[0].mxu0
  %v2617 = vadd.f32 %v484, %v2616
  %v2618 = vpop.f32.mrb[0].mxu0
  %v2619 = vpop.f32.mrb[0].mxu0
  %v2620 = vadd.f32 %v484, %v2619
  %v2621 = vpop.f32.mrb[0].mxu0
  %2622 = vmatprep.mubr.bf16.mxu0 %v1608
  %2623 = vmatmul.mubr.bf16.gmra.mrb[0].mxu0 %v1607
  %v2624 = vpop.f32.mrb[0].mxu0
  %v2625 = vadd.f32 %v484, %v2624
  %v2626 = vpop.f32.mrb[0].mxu0
  %v2627 = vpop.f32.mrb[0].mxu0
  %v2628 = vadd.f32 %v484, %v2627
  %v2629 = vpop.f32.mrb[0].mxu0
  %2630 = vmatprep.mubr.bf16.mxu0 %v1617
  %2631 = vmatmul.mubr.bf16.gmra.mrb[0].mxu0 %v1616
  %v2632 = vpop.f32.mrb[0].mxu0
  %v2633 = vadd.f32 %v484, %v2632
  %v2634 = vpop.f32.mrb[0].mxu0
  %v2635 = vpop.f32.mrb[0].mxu0
  %v2636 = vadd.f32 %v484, %v2635
  %v2637 = vpop.f32.mrb[0].mxu0
  %2638 = vmatprep.mubr.bf16.mxu0 %v1626
  %2639 = vmatmul.mubr.bf16.gmra.mrb[0].mxu0 %v1625
  %v2640 = vpop.f32.mrb[0].mxu0
  %v2641 = vadd.f32 %v484, %v2640
  %v2642 = vpop.f32.mrb[0].mxu0
  %v2643 = vpop.f32.mrb[0].mxu0
  %v2644 = vadd.f32 %v484, %v2643
  %v2645 = vpop.f32.mrb[0].mxu0
  %2646 = vmatprep.mubr.bf16.mxu0 %v1635
  %2647 = vmatmul.mubr.bf16.gmra.mrb[0].mxu0 %v1634
  %v2648 = vpop.f32.mrb[0].mxu0
  %v2649 = vadd.f32 %v484, %v2648
  %v2650 = vpop.f32.mrb[0].mxu0
  %v2651 = vpop.f32.mrb[0].mxu0
  %v2652 = vadd.f32 %v484, %v2651
  %v2653 = vpop.f32.mrb[0].mxu0
  %2654 = vmatprep.mubr.bf16.mxu0 %v1644
  %2655 = vmatmul.mubr.bf16.gmra.mrb[0].mxu0 %v1643
  %v2656 = vpop.f32.mrb[0].mxu0
  %v2657 = vadd.f32 %v484, %v2656
  %v2658 = vpop.f32.mrb[0].mxu0
  %v2659 = vpop.f32.mrb[0].mxu0
  %v2660 = vadd.f32 %v484, %v2659
  %v2661 = vpop.f32.mrb[0].mxu0
  %2662 = vmatprep.mubr.bf16.mxu0 %v1653
  %2663 = vmatmul.mubr.bf16.gmra.mrb[0].mxu0 %v1652
  %v2664 = vpop.f32.mrb[0].mxu0
  %v2665 = vadd.f32 %v484, %v2664
  %v2666 = vpop.f32.mrb[0].mxu0
  %v2667 = vpop.f32.mrb[0].mxu0
  %v2668 = vadd.f32 %v484, %v2667
  %v2669 = vpop.f32.mrb[0].mxu0
  %2670 = vmatprep.mubr.bf16.mxu0 %v1662
  %2671 = vmatmul.mubr.bf16.gmra.mrb[0].mxu0 %v1661
  %v2672 = vpop.f32.mrb[0].mxu0
  %v2673 = vadd.f32 %v484, %v2672
  %v2674 = vpop.f32.mrb[0].mxu0
  %v2675 = vpop.f32.mrb[0].mxu0
  %v2676 = vadd.f32 %v484, %v2675
  %v2677 = vpop.f32.mrb[0].mxu0
  %2678 = vdwg.mxu0
  %2679 = vmatprep.subr.bf16.mxu0 0
  %2680 = vmatpush1.bf16.msra.mxu0 %v2262
  %2681 = vmatprep.subr.bf16.mxu0 0
  %2682 = vmatpush1.bf16.msra.mxu0 %v2263
  %2683 = vmatprep.subr.bf16.mxu0 0
  %2684 = vmatpush1.bf16.msra.mxu0 %v2264
  %2685 = vmatprep.subr.bf16.mxu0 0
  %2686 = vmatpush1.bf16.msra.mxu0 %v2265
  %2687 = vmatprep.subr.bf16.mxu0 0
  %2688 = vmatpush1.bf16.msra.mxu0 %v2266
  %2689 = vmatprep.subr.bf16.mxu0 0
  %2690 = vmatpush1.bf16.msra.mxu0 %v2267
  %2691 = vmatprep.subr.bf16.mxu0 0
  %2692 = vmatpush1.bf16.msra.mxu0 %v2268
  %2693 = vmatprep.subr.bf16.mxu0 0
  %2694 = vmatpush1.bf16.msra.mxu0 %v2269
  %2695 = vmatprep.subr.bf16.mxu0 0
  %2696 = vmatpush1.bf16.msra.mxu0 %v2270
  %2697 = vmatprep.subr.bf16.mxu0 0
  %2698 = vmatpush1.bf16.msra.mxu0 %v2271
  %2699 = vmatprep.subr.bf16.mxu0 0
  %2700 = vmatpush1.bf16.msra.mxu0 %v2272
  %2701 = vmatprep.subr.bf16.mxu0 0
  %2702 = vmatpush1.bf16.msra.mxu0 %v2273
  %2703 = vmatprep.subr.bf16.mxu0 0
  %2704 = vmatpush1.bf16.msra.mxu0 %v2274
  %2705 = vmatprep.subr.bf16.mxu0 0
  %2706 = vmatpush1.bf16.msra.mxu0 %v2275
  %2707 = vmatprep.subr.bf16.mxu0 0
  %2708 = vmatpush1.bf16.msra.mxu0 %v2276
  %2709 = vmatprep.subr.bf16.mxu0 0
  %2710 = vmatpush1.bf16.msra.mxu0 %v2277
  %2711 = vmatprep.mubr.bf16.mxu0 %v1385
  %2712 = vmatmul.mubr.bf16.gmra.mrb[0].mxu0 %v1384
  %v2713 = vpop.f32.mrb[0].mxu0
  %v2714 = vadd.f32 %v2425, %v2713
  %v2715 = vpop.f32.mrb[0].mxu0
  %v2716 = vpop.f32.mrb[0].mxu0
  %v2717 = vadd.f32 %v2428, %v2716
  %v2718 = vpop.f32.mrb[0].mxu0
  %2719 = vmatprep.mubr.bf16.mxu0 %v1394
  %2720 = vmatmul.mubr.bf16.gmra.mrb[0].mxu0 %v1393
  %v2721 = vpop.f32.mrb[0].mxu0
  %v2722 = vadd.f32 %v2433, %v2721
  %v2723 = vpop.f32.mrb[0].mxu0
  %v2724 = vpop.f32.mrb[0].mxu0
  %v2725 = vadd.f32 %v2436, %v2724
  %v2726 = vpop.f32.mrb[0].mxu0
  %2727 = vmatprep.mubr.bf16.mxu0 %v1403
  %2728 = vmatmul.mubr.bf16.gmra.mrb[0].mxu0 %v1402
  %v2729 = vpop.f32.mrb[0].mxu0
  %v2730 = vadd.f32 %v2441, %v2729
  %v2731 = vpop.f32.mrb[0].mxu0
  %v2732 = vpop.f32.mrb[0].mxu0
  %v2733 = vadd.f32 %v2444, %v2732
  %v2734 = vpop.f32.mrb[0].mxu0
  %2735 = vmatprep.mubr.bf16.mxu0 %v1412
  %2736 = vmatmul.mubr.bf16.gmra.mrb[0].mxu0 %v1411
  %v2737 = vpop.f32.mrb[0].mxu0
  %v2738 = vadd.f32 %v2449, %v2737
  %v2739 = vpop.f32.mrb[0].mxu0
  %v2740 = vpop.f32.mrb[0].mxu0
  %v2741 = vadd.f32 %v2452, %v2740
  %v2742 = vpop.f32.mrb[0].mxu0
  %2743 = vmatprep.mubr.bf16.mxu0 %v1421
  %2744 = vmatmul.mubr.bf16.gmra.mrb[0].mxu0 %v1420
  %v2745 = vpop.f32.mrb[0].mxu0
  %v2746 = vadd.f32 %v2457, %v2745
  %v2747 = vpop.f32.mrb[0].mxu0
  %v2748 = vpop.f32.mrb[0].mxu0
  %v2749 = vadd.f32 %v2460, %v2748
  %v2750 = vpop.f32.mrb[0].mxu0
  %2751 = vmatprep.mubr.bf16.mxu0 %v1430
  %2752 = vmatmul.mubr.bf16.gmra.mrb[0].mxu0 %v1429
  %v2753 = vpop.f32.mrb[0].mxu0
  %v2754 = vadd.f32 %v2465, %v2753
  %v2755 = vpop.f32.mrb[0].mxu0
  %v2756 = vpop.f32.mrb[0].mxu0
  %v2757 = vadd.f32 %v2468, %v2756
  %v2758 = vpop.f32.mrb[0].mxu0
  %2759 = vmatprep.mubr.bf16.mxu0 %v1439
  %2760 = vmatmul.mubr.bf16.gmra.mrb[0].mxu0 %v1438
  %v2761 = vpop.f32.mrb[0].mxu0
  %v2762 = vadd.f32 %v2473, %v2761
  %v2763 = vpop.f32.mrb[0].mxu0
  %v2764 = vpop.f32.mrb[0].mxu0
  %v2765 = vadd.f32 %v2476, %v2764
  %v2766 = vpop.f32.mrb[0].mxu0
  %2767 = vmatprep.mubr.bf16.mxu0 %v1448
  %2768 = vmatmul.mubr.bf16.gmra.mrb[0].mxu0 %v1447
  %v2769 = vpop.f32.mrb[0].mxu0
  %v2770 = vadd.f32 %v2481, %v2769
  %v2771 = vpop.f32.mrb[0].mxu0
  %v2772 = vpop.f32.mrb[0].mxu0
  %v2773 = vadd.f32 %v2484, %v2772
  %v2774 = vpop.f32.mrb[0].mxu0
  %2775 = vmatprep.mubr.bf16.mxu0 %v1457
  %2776 = vmatmul.mubr.bf16.gmra.mrb[0].mxu0 %v1456
  %v2777 = vpop.f32.mrb[0].mxu0
  %v2778 = vadd.f32 %v2489, %v2777
  %v2779 = vpop.f32.mrb[0].mxu0
  %v2780 = vpop.f32.mrb[0].mxu0
  %v2781 = vadd.f32 %v2492, %v2780
  %v2782 = vpop.f32.mrb[0].mxu0
  %2783 = vmatprep.mubr.bf16.mxu0 %v1466
  %2784 = vmatmul.mubr.bf16.gmra.mrb[0].mxu0 %v1465
  %v2785 = vpop.f32.mrb[0].mxu0
  %v2786 = vadd.f32 %v2497, %v2785
  %v2787 = vpop.f32.mrb[0].mxu0
  %v2788 = vpop.f32.mrb[0].mxu0
  %v2789 = vadd.f32 %v2500, %v2788
  %v2790 = vpop.f32.mrb[0].mxu0
  %2791 = vmatprep.mubr.bf16.mxu0 %v1475
  %2792 = vmatmul.mubr.bf16.gmra.mrb[0].mxu0 %v1474
  %v2793 = vpop.f32.mrb[0].mxu0
  %v2794 = vadd.f32 %v2505, %v2793
  %v2795 = vpop.f32.mrb[0].mxu0
  %v2796 = vpop.f32.mrb[0].mxu0
  %v2797 = vadd.f32 %v2508, %v2796
  %v2798 = vpop.f32.mrb[0].mxu0
  %2799 = vmatprep.mubr.bf16.mxu0 %v1484
  %2800 = vmatmul.mubr.bf16.gmra.mrb[0].mxu0 %v1483
  %v2801 = vpop.f32.mrb[0].mxu0
  %v2802 = vadd.f32 %v2513, %v2801
  %v2803 = vpop.f32.mrb[0].mxu0
  %v2804 = vpop.f32.mrb[0].mxu0
  %v2805 = vadd.f32 %v2516, %v2804
  %v2806 = vpop.f32.mrb[0].mxu0
  %2807 = vmatprep.mubr.bf16.mxu0 %v1493
  %2808 = vmatmul.mubr.bf16.gmra.mrb[0].mxu0 %v1492
  %v2809 = vpop.f32.mrb[0].mxu0
  %v2810 = vadd.f32 %v2521, %v2809
  %v2811 = vpop.f32.mrb[0].mxu0
  %v2812 = vpop.f32.mrb[0].mxu0
  %v2813 = vadd.f32 %v2524, %v2812
  %v2814 = vpop.f32.mrb[0].mxu0
  %2815 = vmatprep.mubr.bf16.mxu0 %v1502
  %2816 = vmatmul.mubr.bf16.gmra.mrb[0].mxu0 %v1501
  %v2817 = vpop.f32.mrb[0].mxu0
  %v2818 = vadd.f32 %v2529, %v2817
  %v2819 = vpop.f32.mrb[0].mxu0
  %v2820 = vpop.f32.mrb[0].mxu0
  %v2821 = vadd.f32 %v2532, %v2820
  %v2822 = vpop.f32.mrb[0].mxu0
  %2823 = vmatprep.mubr.bf16.mxu0 %v1511
  %2824 = vmatmul.mubr.bf16.gmra.mrb[0].mxu0 %v1510
  %v2825 = vpop.f32.mrb[0].mxu0
  %v2826 = vadd.f32 %v2537, %v2825
  %v2827 = vpop.f32.mrb[0].mxu0
  %v2828 = vpop.f32.mrb[0].mxu0
  %v2829 = vadd.f32 %v2540, %v2828
  %v2830 = vpop.f32.mrb[0].mxu0
  %2831 = vmatprep.mubr.bf16.mxu0 %v1520
  %2832 = vmatmul.mubr.bf16.gmra.mrb[0].mxu0 %v1519
  %v2833 = vpop.f32.mrb[0].mxu0
  %v2834 = vadd.f32 %v2545, %v2833
  %v2835 = vpop.f32.mrb[0].mxu0
  %v2836 = vpop.f32.mrb[0].mxu0
  %v2837 = vadd.f32 %v2548, %v2836
  %v2838 = vpop.f32.mrb[0].mxu0
  %2839 = vmatprep.mubr.bf16.mxu0 %v1529
  %2840 = vmatmul.mubr.bf16.gmra.mrb[0].mxu0 %v1528
  %v2841 = vpop.f32.mrb[0].mxu0
  %v2842 = vadd.f32 %v2553, %v2841
  %v2843 = vpop.f32.mrb[0].mxu0
  %v2844 = vpop.f32.mrb[0].mxu0
  %v2845 = vadd.f32 %v2556, %v2844
  %v2846 = vpop.f32.mrb[0].mxu0
  %2847 = vmatprep.mubr.bf16.mxu0 %v1538
  %2848 = vmatmul.mubr.bf16.gmra.mrb[0].mxu0 %v1537
  %v2849 = vpop.f32.mrb[0].mxu0
  %v2850 = vadd.f32 %v2561, %v2849
  %v2851 = vpop.f32.mrb[0].mxu0
  %v2852 = vpop.f32.mrb[0].mxu0
  %v2853 = vadd.f32 %v2564, %v2852
  %v2854 = vpop.f32.mrb[0].mxu0
  %2855 = vmatprep.mubr.bf16.mxu0 %v1547
  %2856 = vmatmul.mubr.bf16.gmra.mrb[0].mxu0 %v1546
  %v2857 = vpop.f32.mrb[0].mxu0
  %v2858 = vadd.f32 %v2569, %v2857
  %v2859 = vpop.f32.mrb[0].mxu0
  %v2860 = vpop.f32.mrb[0].mxu0
  %v2861 = vadd.f32 %v2572, %v2860
  %v2862 = vpop.f32.mrb[0].mxu0
  %2863 = vmatprep.mubr.bf16.mxu0 %v1556
  %2864 = vmatmul.mubr.bf16.gmra.mrb[0].mxu0 %v1555
  %v2865 = vpop.f32.mrb[0].mxu0
  %v2866 = vadd.f32 %v2577, %v2865
  %v2867 = vpop.f32.mrb[0].mxu0
  %v2868 = vpop.f32.mrb[0].mxu0
  %v2869 = vadd.f32 %v2580, %v2868
  %v2870 = vpop.f32.mrb[0].mxu0
  %2871 = vmatprep.mubr.bf16.mxu0 %v1565
  %2872 = vmatmul.mubr.bf16.gmra.mrb[0].mxu0 %v1564
  %v2873 = vpop.f32.mrb[0].mxu0
  %v2874 = vadd.f32 %v2585, %v2873
  %v2875 = vpop.f32.mrb[0].mxu0
  %v2876 = vpop.f32.mrb[0].mxu0
  %v2877 = vadd.f32 %v2588, %v2876
  %v2878 = vpop.f32.mrb[0].mxu0
  %2879 = vmatprep.mubr.bf16.mxu0 %v1574
  %2880 = vmatmul.mubr.bf16.gmra.mrb[0].mxu0 %v1573
  %v2881 = vpop.f32.mrb[0].mxu0
  %v2882 = vadd.f32 %v2593, %v2881
  %v2883 = vpop.f32.mrb[0].mxu0
  %v2884 = vpop.f32.mrb[0].mxu0
  %v2885 = vadd.f32 %v2596, %v2884
  %v2886 = vpop.f32.mrb[0].mxu0
  %2887 = vmatprep.mubr.bf16.mxu0 %v1583
  %2888 = vmatmul.mubr.bf16.gmra.mrb[0].mxu0 %v1582
  %v2889 = vpop.f32.mrb[0].mxu0
  %v2890 = vadd.f32 %v2601, %v2889
  %v2891 = vpop.f32.mrb[0].mxu0
  %v2892 = vpop.f32.mrb[0].mxu0
  %v2893 = vadd.f32 %v2604, %v2892
  %v2894 = vpop.f32.mrb[0].mxu0
  %2895 = vmatprep.mubr.bf16.mxu0 %v1592
  %2896 = vmatmul.mubr.bf16.gmra.mrb[0].mxu0 %v1591
  %v2897 = vpop.f32.mrb[0].mxu0
  %v2898 = vadd.f32 %v2609, %v2897
  %v2899 = vpop.f32.mrb[0].mxu0
  %v2900 = vpop.f32.mrb[0].mxu0
  %v2901 = vadd.f32 %v2612, %v2900
  %v2902 = vpop.f32.mrb[0].mxu0
  %2903 = vmatprep.mubr.bf16.mxu0 %v1601
  %2904 = vmatmul.mubr.bf16.gmra.mrb[0].mxu0 %v1600
  %v2905 = vpop.f32.mrb[0].mxu0
  %v2906 = vadd.f32 %v2617, %v2905
  %v2907 = vpop.f32.mrb[0].mxu0
  %v2908 = vpop.f32.mrb[0].mxu0
  %v2909 = vadd.f32 %v2620, %v2908
  %v2910 = vpop.f32.mrb[0].mxu0
  %2911 = vmatprep.mubr.bf16.mxu0 %v1610
  %2912 = vmatmul.mubr.bf16.gmra.mrb[0].mxu0 %v1609
  %v2913 = vpop.f32.mrb[0].mxu0
  %v2914 = vadd.f32 %v2625, %v2913
  %v2915 = vpop.f32.mrb[0].mxu0
  %v2916 = vpop.f32.mrb[0].mxu0
  %v2917 = vadd.f32 %v2628, %v2916
  %v2918 = vpop.f32.mrb[0].mxu0
  %2919 = vmatprep.mubr.bf16.mxu0 %v1619
  %2920 = vmatmul.mubr.bf16.gmra.mrb[0].mxu0 %v1618
  %v2921 = vpop.f32.mrb[0].mxu0
  %v2922 = vadd.f32 %v2633, %v2921
  %v2923 = vpop.f32.mrb[0].mxu0
  %v2924 = vpop.f32.mrb[0].mxu0
  %v2925 = vadd.f32 %v2636, %v2924
  %v2926 = vpop.f32.mrb[0].mxu0
  %2927 = vmatprep.mubr.bf16.mxu0 %v1628
  %2928 = vmatmul.mubr.bf16.gmra.mrb[0].mxu0 %v1627
  %v2929 = vpop.f32.mrb[0].mxu0
  %v2930 = vadd.f32 %v2641, %v2929
  %v2931 = vpop.f32.mrb[0].mxu0
  %v2932 = vpop.f32.mrb[0].mxu0
  %v2933 = vadd.f32 %v2644, %v2932
  %v2934 = vpop.f32.mrb[0].mxu0
  %2935 = vmatprep.mubr.bf16.mxu0 %v1637
  %2936 = vmatmul.mubr.bf16.gmra.mrb[0].mxu0 %v1636
  %v2937 = vpop.f32.mrb[0].mxu0
  %v2938 = vadd.f32 %v2649, %v2937
  %v2939 = vpop.f32.mrb[0].mxu0
  %v2940 = vpop.f32.mrb[0].mxu0
  %v2941 = vadd.f32 %v2652, %v2940
  %v2942 = vpop.f32.mrb[0].mxu0
  %2943 = vmatprep.mubr.bf16.mxu0 %v1646
  %2944 = vmatmul.mubr.bf16.gmra.mrb[0].mxu0 %v1645
  %v2945 = vpop.f32.mrb[0].mxu0
  %v2946 = vadd.f32 %v2657, %v2945
  %v2947 = vpop.f32.mrb[0].mxu0
  %v2948 = vpop.f32.mrb[0].mxu0
  %v2949 = vadd.f32 %v2660, %v2948
  %v2950 = vpop.f32.mrb[0].mxu0
  %2951 = vmatprep.mubr.bf16.mxu0 %v1655
  %2952 = vmatmul.mubr.bf16.gmra.mrb[0].mxu0 %v1654
  %v2953 = vpop.f32.mrb[0].mxu0
  %v2954 = vadd.f32 %v2665, %v2953
  %v2955 = vpop.f32.mrb[0].mxu0
  %v2956 = vpop.f32.mrb[0].mxu0
  %v2957 = vadd.f32 %v2668, %v2956
  %v2958 = vpop.f32.mrb[0].mxu0
  %2959 = vmatprep.mubr.bf16.mxu0 %v1664
  %2960 = vmatmul.mubr.bf16.gmra.mrb[0].mxu0 %v1663
  %v2961 = vpop.f32.mrb[0].mxu0
  %v2962 = vadd.f32 %v2673, %v2961
  %v2963 = vpop.f32.mrb[0].mxu0
  %v2964 = vpop.f32.mrb[0].mxu0
  %v2965 = vadd.f32 %v2676, %v2964
  %v2966 = vpop.f32.mrb[0].mxu0
  %2967 = vdwg.mxu0
  %2968 = vmatprep.subr.bf16.mxu0 0
  %2969 = vmatpush1.bf16.msra.mxu0 %v2278
  %2970 = vmatprep.subr.bf16.mxu0 0
  %2971 = vmatpush1.bf16.msra.mxu0 %v2279
  %2972 = vmatprep.subr.bf16.mxu0 0
  %2973 = vmatpush1.bf16.msra.mxu0 %v2280
  %2974 = vmatprep.subr.bf16.mxu0 0
  %2975 = vmatpush1.bf16.msra.mxu0 %v2281
  %2976 = vmatprep.subr.bf16.mxu0 0
  %2977 = vmatpush1.bf16.msra.mxu0 %v2282
  %2978 = vmatprep.subr.bf16.mxu0 0
  %2979 = vmatpush1.bf16.msra.mxu0 %v2283
  %2980 = vmatprep.subr.bf16.mxu0 0
  %2981 = vmatpush1.bf16.msra.mxu0 %v2284
  %2982 = vmatprep.subr.bf16.mxu0 0
  %2983 = vmatpush1.bf16.msra.mxu0 %v2285
  %2984 = vmatprep.subr.bf16.mxu0 0
  %2985 = vmatpush1.bf16.msra.mxu0 %v2286
  %2986 = vmatprep.subr.bf16.mxu0 0
  %2987 = vmatpush1.bf16.msra.mxu0 %v2287
  %2988 = vmatprep.subr.bf16.mxu0 0
  %2989 = vmatpush1.bf16.msra.mxu0 %v2288
  %2990 = vmatprep.subr.bf16.mxu0 0
  %2991 = vmatpush1.bf16.msra.mxu0 %v2289
  %2992 = vmatprep.subr.bf16.mxu0 0
  %2993 = vmatpush1.bf16.msra.mxu0 %v2290
  %2994 = vmatprep.subr.bf16.mxu0 0
  %2995 = vmatpush1.bf16.msra.mxu0 %v2291
  %2996 = vmatprep.subr.bf16.mxu0 0
  %2997 = vmatpush1.bf16.msra.mxu0 %v2292
  %2998 = vmatprep.subr.bf16.mxu0 0
  %2999 = vmatpush1.bf16.msra.mxu0 %v2293
  %3000 = vmatprep.mubr.bf16.mxu0 %v1387
  %3001 = vmatmul.mubr.bf16.gmra.mrb[0].mxu0 %v1386
  %v3002 = vpop.f32.mrb[0].mxu0
  %v3003 = vadd.f32 %v2714, %v3002
  %v3004 = vpop.f32.mrb[0].mxu0
  %v3005 = vpop.f32.mrb[0].mxu0
  %v3006 = vadd.f32 %v2717, %v3005
  %v3007 = vpop.f32.mrb[0].mxu0
  %3008 = vmatprep.mubr.bf16.mxu0 %v1396
  %3009 = vmatmul.mubr.bf16.gmra.mrb[0].mxu0 %v1395
  %v3010 = vpop.f32.mrb[0].mxu0
  %v3011 = vadd.f32 %v2722, %v3010
  %v3012 = vpop.f32.mrb[0].mxu0
  %v3013 = vpop.f32.mrb[0].mxu0
  %v3014 = vadd.f32 %v2725, %v3013
  %v3015 = vpop.f32.mrb[0].mxu0
  %3016 = vmatprep.mubr.bf16.mxu0 %v1405
  %3017 = vmatmul.mubr.bf16.gmra.mrb[0].mxu0 %v1404
  %v3018 = vpop.f32.mrb[0].mxu0
  %v3019 = vadd.f32 %v2730, %v3018
  %v3020 = vpop.f32.mrb[0].mxu0
  %v3021 = vpop.f32.mrb[0].mxu0
  %v3022 = vadd.f32 %v2733, %v3021
  %v3023 = vpop.f32.mrb[0].mxu0
  %3024 = vmatprep.mubr.bf16.mxu0 %v1414
  %3025 = vmatmul.mubr.bf16.gmra.mrb[0].mxu0 %v1413
  %v3026 = vpop.f32.mrb[0].mxu0
  %v3027 = vadd.f32 %v2738, %v3026
  %v3028 = vpop.f32.mrb[0].mxu0
  %v3029 = vpop.f32.mrb[0].mxu0
  %v3030 = vadd.f32 %v2741, %v3029
  %v3031 = vpop.f32.mrb[0].mxu0
  %3032 = vmatprep.mubr.bf16.mxu0 %v1423
  %3033 = vmatmul.mubr.bf16.gmra.mrb[0].mxu0 %v1422
  %v3034 = vpop.f32.mrb[0].mxu0
  %v3035 = vadd.f32 %v2746, %v3034
  %v3036 = vpop.f32.mrb[0].mxu0
  %v3037 = vpop.f32.mrb[0].mxu0
  %v3038 = vadd.f32 %v2749, %v3037
  %v3039 = vpop.f32.mrb[0].mxu0
  %3040 = vmatprep.mubr.bf16.mxu0 %v1432
  %3041 = vmatmul.mubr.bf16.gmra.mrb[0].mxu0 %v1431
  %v3042 = vpop.f32.mrb[0].mxu0
  %v3043 = vadd.f32 %v2754, %v3042
  %v3044 = vpop.f32.mrb[0].mxu0
  %v3045 = vpop.f32.mrb[0].mxu0
  %v3046 = vadd.f32 %v2757, %v3045
  %v3047 = vpop.f32.mrb[0].mxu0
  %3048 = vmatprep.mubr.bf16.mxu0 %v1441
  %3049 = vmatmul.mubr.bf16.gmra.mrb[0].mxu0 %v1440
  %v3050 = vpop.f32.mrb[0].mxu0
  %v3051 = vadd.f32 %v2762, %v3050
  %v3052 = vpop.f32.mrb[0].mxu0
  %v3053 = vpop.f32.mrb[0].mxu0
  %v3054 = vadd.f32 %v2765, %v3053
  %v3055 = vpop.f32.mrb[0].mxu0
  %3056 = vmatprep.mubr.bf16.mxu0 %v1450
  %3057 = vmatmul.mubr.bf16.gmra.mrb[0].mxu0 %v1449
  %v3058 = vpop.f32.mrb[0].mxu0
  %v3059 = vadd.f32 %v2770, %v3058
  %v3060 = vpop.f32.mrb[0].mxu0
  %v3061 = vpop.f32.mrb[0].mxu0
  %v3062 = vadd.f32 %v2773, %v3061
  %v3063 = vpop.f32.mrb[0].mxu0
  %3064 = vmatprep.mubr.bf16.mxu0 %v1459
  %3065 = vmatmul.mubr.bf16.gmra.mrb[0].mxu0 %v1458
  %v3066 = vpop.f32.mrb[0].mxu0
  %v3067 = vadd.f32 %v2778, %v3066
  %v3068 = vpop.f32.mrb[0].mxu0
  %v3069 = vpop.f32.mrb[0].mxu0
  %v3070 = vadd.f32 %v2781, %v3069
  %v3071 = vpop.f32.mrb[0].mxu0
  %3072 = vmatprep.mubr.bf16.mxu0 %v1468
  %3073 = vmatmul.mubr.bf16.gmra.mrb[0].mxu0 %v1467
  %v3074 = vpop.f32.mrb[0].mxu0
  %v3075 = vadd.f32 %v2786, %v3074
  %v3076 = vpop.f32.mrb[0].mxu0
  %v3077 = vpop.f32.mrb[0].mxu0
  %v3078 = vadd.f32 %v2789, %v3077
  %v3079 = vpop.f32.mrb[0].mxu0
  %3080 = vmatprep.mubr.bf16.mxu0 %v1477
  %3081 = vmatmul.mubr.bf16.gmra.mrb[0].mxu0 %v1476
  %v3082 = vpop.f32.mrb[0].mxu0
  %v3083 = vadd.f32 %v2794, %v3082
  %v3084 = vpop.f32.mrb[0].mxu0
  %v3085 = vpop.f32.mrb[0].mxu0
  %v3086 = vadd.f32 %v2797, %v3085
  %v3087 = vpop.f32.mrb[0].mxu0
  %3088 = vmatprep.mubr.bf16.mxu0 %v1486
  %3089 = vmatmul.mubr.bf16.gmra.mrb[0].mxu0 %v1485
  %v3090 = vpop.f32.mrb[0].mxu0
  %v3091 = vadd.f32 %v2802, %v3090
  %v3092 = vpop.f32.mrb[0].mxu0
  %v3093 = vpop.f32.mrb[0].mxu0
  %v3094 = vadd.f32 %v2805, %v3093
  %v3095 = vpop.f32.mrb[0].mxu0
  %3096 = vmatprep.mubr.bf16.mxu0 %v1495
  %3097 = vmatmul.mubr.bf16.gmra.mrb[0].mxu0 %v1494
  %v3098 = vpop.f32.mrb[0].mxu0
  %v3099 = vadd.f32 %v2810, %v3098
  %v3100 = vpop.f32.mrb[0].mxu0
  %v3101 = vpop.f32.mrb[0].mxu0
  %v3102 = vadd.f32 %v2813, %v3101
  %v3103 = vpop.f32.mrb[0].mxu0
  %3104 = vmatprep.mubr.bf16.mxu0 %v1504
  %3105 = vmatmul.mubr.bf16.gmra.mrb[0].mxu0 %v1503
  %v3106 = vpop.f32.mrb[0].mxu0
  %v3107 = vadd.f32 %v2818, %v3106
  %v3108 = vpop.f32.mrb[0].mxu0
  %v3109 = vpop.f32.mrb[0].mxu0
  %v3110 = vadd.f32 %v2821, %v3109
  %v3111 = vpop.f32.mrb[0].mxu0
  %3112 = vmatprep.mubr.bf16.mxu0 %v1513
  %3113 = vmatmul.mubr.bf16.gmra.mrb[0].mxu0 %v1512
  %v3114 = vpop.f32.mrb[0].mxu0
  %v3115 = vadd.f32 %v2826, %v3114
  %v3116 = vpop.f32.mrb[0].mxu0
  %v3117 = vpop.f32.mrb[0].mxu0
  %v3118 = vadd.f32 %v2829, %v3117
  %v3119 = vpop.f32.mrb[0].mxu0
  %3120 = vmatprep.mubr.bf16.mxu0 %v1522
  %3121 = vmatmul.mubr.bf16.gmra.mrb[0].mxu0 %v1521
  %v3122 = vpop.f32.mrb[0].mxu0
  %v3123 = vadd.f32 %v2834, %v3122
  %v3124 = vpop.f32.mrb[0].mxu0
  %v3125 = vpop.f32.mrb[0].mxu0
  %v3126 = vadd.f32 %v2837, %v3125
  %v3127 = vpop.f32.mrb[0].mxu0
  %3128 = vmatprep.mubr.bf16.mxu0 %v1531
  %3129 = vmatmul.mubr.bf16.gmra.mrb[0].mxu0 %v1530
  %v3130 = vpop.f32.mrb[0].mxu0
  %v3131 = vadd.f32 %v2842, %v3130
  %v3132 = vpop.f32.mrb[0].mxu0
  %v3133 = vpop.f32.mrb[0].mxu0
  %v3134 = vadd.f32 %v2845, %v3133
  %v3135 = vpop.f32.mrb[0].mxu0
  %3136 = vmatprep.mubr.bf16.mxu0 %v1540
  %3137 = vmatmul.mubr.bf16.gmra.mrb[0].mxu0 %v1539
  %v3138 = vpop.f32.mrb[0].mxu0
  %v3139 = vadd.f32 %v2850, %v3138
  %v3140 = vpop.f32.mrb[0].mxu0
  %v3141 = vpop.f32.mrb[0].mxu0
  %v3142 = vadd.f32 %v2853, %v3141
  %v3143 = vpop.f32.mrb[0].mxu0
  %3144 = vmatprep.mubr.bf16.mxu0 %v1549
  %3145 = vmatmul.mubr.bf16.gmra.mrb[0].mxu0 %v1548
  %v3146 = vpop.f32.mrb[0].mxu0
  %v3147 = vadd.f32 %v2858, %v3146
  %v3148 = vpop.f32.mrb[0].mxu0
  %v3149 = vpop.f32.mrb[0].mxu0
  %v3150 = vadd.f32 %v2861, %v3149
  %v3151 = vpop.f32.mrb[0].mxu0
  %3152 = vmatprep.mubr.bf16.mxu0 %v1558
  %3153 = vmatmul.mubr.bf16.gmra.mrb[0].mxu0 %v1557
  %v3154 = vpop.f32.mrb[0].mxu0
  %v3155 = vadd.f32 %v2866, %v3154
  %v3156 = vpop.f32.mrb[0].mxu0
  %v3157 = vpop.f32.mrb[0].mxu0
  %v3158 = vadd.f32 %v2869, %v3157
  %v3159 = vpop.f32.mrb[0].mxu0
  %3160 = vmatprep.mubr.bf16.mxu0 %v1567
  %3161 = vmatmul.mubr.bf16.gmra.mrb[0].mxu0 %v1566
  %v3162 = vpop.f32.mrb[0].mxu0
  %v3163 = vadd.f32 %v2874, %v3162
  %v3164 = vpop.f32.mrb[0].mxu0
  %v3165 = vpop.f32.mrb[0].mxu0
  %v3166 = vadd.f32 %v2877, %v3165
  %v3167 = vpop.f32.mrb[0].mxu0
  %3168 = vmatprep.mubr.bf16.mxu0 %v1576
  %3169 = vmatmul.mubr.bf16.gmra.mrb[0].mxu0 %v1575
  %v3170 = vpop.f32.mrb[0].mxu0
  %v3171 = vadd.f32 %v2882, %v3170
  %v3172 = vpop.f32.mrb[0].mxu0
  %v3173 = vpop.f32.mrb[0].mxu0
  %v3174 = vadd.f32 %v2885, %v3173
  %v3175 = vpop.f32.mrb[0].mxu0
  %3176 = vmatprep.mubr.bf16.mxu0 %v1585
  %3177 = vmatmul.mubr.bf16.gmra.mrb[0].mxu0 %v1584
  %v3178 = vpop.f32.mrb[0].mxu0
  %v3179 = vadd.f32 %v2890, %v3178
  %v3180 = vpop.f32.mrb[0].mxu0
  %v3181 = vpop.f32.mrb[0].mxu0
  %v3182 = vadd.f32 %v2893, %v3181
  %v3183 = vpop.f32.mrb[0].mxu0
  %3184 = vmatprep.mubr.bf16.mxu0 %v1594
  %3185 = vmatmul.mubr.bf16.gmra.mrb[0].mxu0 %v1593
  %v3186 = vpop.f32.mrb[0].mxu0
  %v3187 = vadd.f32 %v2898, %v3186
  %v3188 = vpop.f32.mrb[0].mxu0
  %v3189 = vpop.f32.mrb[0].mxu0
  %v3190 = vadd.f32 %v2901, %v3189
  %v3191 = vpop.f32.mrb[0].mxu0
  %3192 = vmatprep.mubr.bf16.mxu0 %v1603
  %3193 = vmatmul.mubr.bf16.gmra.mrb[0].mxu0 %v1602
  %v3194 = vpop.f32.mrb[0].mxu0
  %v3195 = vadd.f32 %v2906, %v3194
  %v3196 = vpop.f32.mrb[0].mxu0
  %v3197 = vpop.f32.mrb[0].mxu0
  %v3198 = vadd.f32 %v2909, %v3197
  %v3199 = vpop.f32.mrb[0].mxu0
  %3200 = vmatprep.mubr.bf16.mxu0 %v1612
  %3201 = vmatmul.mubr.bf16.gmra.mrb[0].mxu0 %v1611
  %v3202 = vpop.f32.mrb[0].mxu0
  %v3203 = vadd.f32 %v2914, %v3202
  %v3204 = vpop.f32.mrb[0].mxu0
  %v3205 = vpop.f32.mrb[0].mxu0
  %v3206 = vadd.f32 %v2917, %v3205
  %v3207 = vpop.f32.mrb[0].mxu0
  %3208 = vmatprep.mubr.bf16.mxu0 %v1621
  %3209 = vmatmul.mubr.bf16.gmra.mrb[0].mxu0 %v1620
  %v3210 = vpop.f32.mrb[0].mxu0
  %v3211 = vadd.f32 %v2922, %v3210
  %v3212 = vpop.f32.mrb[0].mxu0
  %v3213 = vpop.f32.mrb[0].mxu0
  %v3214 = vadd.f32 %v2925, %v3213
  %v3215 = vpop.f32.mrb[0].mxu0
  %3216 = vmatprep.mubr.bf16.mxu0 %v1630
  %3217 = vmatmul.mubr.bf16.gmra.mrb[0].mxu0 %v1629
  %v3218 = vpop.f32.mrb[0].mxu0
  %v3219 = vadd.f32 %v2930, %v3218
  %v3220 = vpop.f32.mrb[0].mxu0
  %v3221 = vpop.f32.mrb[0].mxu0
  %v3222 = vadd.f32 %v2933, %v3221
  %v3223 = vpop.f32.mrb[0].mxu0
  %3224 = vmatprep.mubr.bf16.mxu0 %v1639
  %3225 = vmatmul.mubr.bf16.gmra.mrb[0].mxu0 %v1638
  %v3226 = vpop.f32.mrb[0].mxu0
  %v3227 = vadd.f32 %v2938, %v3226
  %v3228 = vpop.f32.mrb[0].mxu0
  %v3229 = vpop.f32.mrb[0].mxu0
  %v3230 = vadd.f32 %v2941, %v3229
  %v3231 = vpop.f32.mrb[0].mxu0
  %3232 = vmatprep.mubr.bf16.mxu0 %v1648
  %3233 = vmatmul.mubr.bf16.gmra.mrb[0].mxu0 %v1647
  %v3234 = vpop.f32.mrb[0].mxu0
  %v3235 = vadd.f32 %v2946, %v3234
  %v3236 = vpop.f32.mrb[0].mxu0
  %v3237 = vpop.f32.mrb[0].mxu0
  %v3238 = vadd.f32 %v2949, %v3237
  %v3239 = vpop.f32.mrb[0].mxu0
  %3240 = vmatprep.mubr.bf16.mxu0 %v1657
  %3241 = vmatmul.mubr.bf16.gmra.mrb[0].mxu0 %v1656
  %v3242 = vpop.f32.mrb[0].mxu0
  %v3243 = vadd.f32 %v2954, %v3242
  %v3244 = vpop.f32.mrb[0].mxu0
  %v3245 = vpop.f32.mrb[0].mxu0
  %v3246 = vadd.f32 %v2957, %v3245
  %v3247 = vpop.f32.mrb[0].mxu0
  %3248 = vmatprep.mubr.bf16.mxu0 %v1666
  %3249 = vmatmul.mubr.bf16.gmra.mrb[0].mxu0 %v1665
  %v3250 = vpop.f32.mrb[0].mxu0
  %v3251 = vadd.f32 %v2962, %v3250
  %v3252 = vpop.f32.mrb[0].mxu0
  %v3253 = vpop.f32.mrb[0].mxu0
  %v3254 = vadd.f32 %v2965, %v3253
  %v3255 = vpop.f32.mrb[0].mxu0
  %3256 = vdwg.mxu0
  %3257 = vmatprep.subr.bf16.mxu0 0
  %3258 = vmatpush1.bf16.msra.mxu0 %v2294
  %3259 = vmatprep.subr.bf16.mxu0 0
  %3260 = vmatpush1.bf16.msra.mxu0 %v2295
  %3261 = vmatprep.subr.bf16.mxu0 0
  %3262 = vmatpush1.bf16.msra.mxu0 %v2296
  %3263 = vmatprep.subr.bf16.mxu0 0
  %3264 = vmatpush1.bf16.msra.mxu0 %v2297
  %3265 = vmatprep.subr.bf16.mxu0 0
  %3266 = vmatpush1.bf16.msra.mxu0 %v2298
  %3267 = vmatprep.subr.bf16.mxu0 0
  %3268 = vmatpush1.bf16.msra.mxu0 %v2299
  %3269 = vmatprep.subr.bf16.mxu0 0
  %3270 = vmatpush1.bf16.msra.mxu0 %v2300
  %3271 = vmatprep.subr.bf16.mxu0 0
  %3272 = vmatpush1.bf16.msra.mxu0 %v2301
  %3273 = vmatprep.subr.bf16.mxu0 0
  %3274 = vmatpush1.bf16.msra.mxu0 %v2302
  %3275 = vmatprep.subr.bf16.mxu0 0
  %3276 = vmatpush1.bf16.msra.mxu0 %v2303
  %3277 = vmatprep.subr.bf16.mxu0 0
  %3278 = vmatpush1.bf16.msra.mxu0 %v2304
  %3279 = vmatprep.subr.bf16.mxu0 0
  %3280 = vmatpush1.bf16.msra.mxu0 %v2305
  %3281 = vmatprep.subr.bf16.mxu0 0
  %3282 = vmatpush1.bf16.msra.mxu0 %v2306
  %3283 = vmatprep.subr.bf16.mxu0 0
  %3284 = vmatpush1.bf16.msra.mxu0 %v2307
  %3285 = vmatprep.subr.bf16.mxu0 0
  %3286 = vmatpush1.bf16.msra.mxu0 %v2308
  %3287 = vmatprep.subr.bf16.mxu0 0
  %3288 = vmatpush1.bf16.msra.mxu0 %v2309
  %3289 = vmatprep.mubr.bf16.mxu0 %v1389
  %3290 = vmatmul.mubr.bf16.gmra.mrb[0].mxu0 %v1388
  %v3291 = vpop.f32.mrb[0].mxu0
  %v3292 = vadd.f32 %v3003, %v3291
  %v3293 = vpop.f32.mrb[0].mxu0
  %v3294 = vpop.f32.mrb[0].mxu0
  %v3295 = vadd.f32 %v3006, %v3294
  %v3296 = vpop.f32.mrb[0].mxu0
  %3297 = vmatprep.mubr.bf16.mxu0 %v1398
  %3298 = vmatmul.mubr.bf16.gmra.mrb[0].mxu0 %v1397
  %v3299 = vpop.f32.mrb[0].mxu0
  %v3300 = vadd.f32 %v3011, %v3299
  %v3301 = vpop.f32.mrb[0].mxu0
  %v3302 = vpop.f32.mrb[0].mxu0
  %v3303 = vadd.f32 %v3014, %v3302
  %v3304 = vpop.f32.mrb[0].mxu0
  %3305 = vmatprep.mubr.bf16.mxu0 %v1407
  %3306 = vmatmul.mubr.bf16.gmra.mrb[0].mxu0 %v1406
  %v3307 = vpop.f32.mrb[0].mxu0
  %v3308 = vadd.f32 %v3019, %v3307
  %v3309 = vpop.f32.mrb[0].mxu0
  %v3310 = vpop.f32.mrb[0].mxu0
  %v3311 = vadd.f32 %v3022, %v3310
  %v3312 = vpop.f32.mrb[0].mxu0
  %3313 = vmatprep.mubr.bf16.mxu0 %v1416
  %3314 = vmatmul.mubr.bf16.gmra.mrb[0].mxu0 %v1415
  %v3315 = vpop.f32.mrb[0].mxu0
  %v3316 = vadd.f32 %v3027, %v3315
  %v3317 = vpop.f32.mrb[0].mxu0
  %v3318 = vpop.f32.mrb[0].mxu0
  %v3319 = vadd.f32 %v3030, %v3318
  %v3320 = vpop.f32.mrb[0].mxu0
  %3321 = vmatprep.mubr.bf16.mxu0 %v1425
  %3322 = vmatmul.mubr.bf16.gmra.mrb[0].mxu0 %v1424
  %v3323 = vpop.f32.mrb[0].mxu0
  %v3324 = vadd.f32 %v3035, %v3323
  %v3325 = vpop.f32.mrb[0].mxu0
  %v3326 = vpop.f32.mrb[0].mxu0
  %v3327 = vadd.f32 %v3038, %v3326
  %v3328 = vpop.f32.mrb[0].mxu0
  %3329 = vmatprep.mubr.bf16.mxu0 %v1434
  %3330 = vmatmul.mubr.bf16.gmra.mrb[0].mxu0 %v1433
  %v3331 = vpop.f32.mrb[0].mxu0
  %v3332 = vadd.f32 %v3043, %v3331
  %v3333 = vpop.f32.mrb[0].mxu0
  %v3334 = vpop.f32.mrb[0].mxu0
  %v3335 = vadd.f32 %v3046, %v3334
  %v3336 = vpop.f32.mrb[0].mxu0
  %3337 = vmatprep.mubr.bf16.mxu0 %v1443
  %3338 = vmatmul.mubr.bf16.gmra.mrb[0].mxu0 %v1442
  %v3339 = vpop.f32.mrb[0].mxu0
  %v3340 = vadd.f32 %v3051, %v3339
  %v3341 = vpop.f32.mrb[0].mxu0
  %v3342 = vpop.f32.mrb[0].mxu0
  %v3343 = vadd.f32 %v3054, %v3342
  %v3344 = vpop.f32.mrb[0].mxu0
  %3345 = vmatprep.mubr.bf16.mxu0 %v1452
  %3346 = vmatmul.mubr.bf16.gmra.mrb[0].mxu0 %v1451
  %v3347 = vpop.f32.mrb[0].mxu0
  %v3348 = vadd.f32 %v3059, %v3347
  %v3349 = vpop.f32.mrb[0].mxu0
  %v3350 = vpop.f32.mrb[0].mxu0
  %v3351 = vadd.f32 %v3062, %v3350
  %v3352 = vpop.f32.mrb[0].mxu0
  %3353 = vmatprep.mubr.bf16.mxu0 %v1461
  %3354 = vmatmul.mubr.bf16.gmra.mrb[0].mxu0 %v1460
  %v3355 = vpop.f32.mrb[0].mxu0
  %v3356 = vadd.f32 %v3067, %v3355
  %v3357 = vpop.f32.mrb[0].mxu0
  %v3358 = vpop.f32.mrb[0].mxu0
  %v3359 = vadd.f32 %v3070, %v3358
  %v3360 = vpop.f32.mrb[0].mxu0
  %3361 = vmatprep.mubr.bf16.mxu0 %v1470
  %3362 = vmatmul.mubr.bf16.gmra.mrb[0].mxu0 %v1469
  %v3363 = vpop.f32.mrb[0].mxu0
  %v3364 = vadd.f32 %v3075, %v3363
  %v3365 = vpop.f32.mrb[0].mxu0
  %v3366 = vpop.f32.mrb[0].mxu0
  %v3367 = vadd.f32 %v3078, %v3366
  %v3368 = vpop.f32.mrb[0].mxu0
  %3369 = vmatprep.mubr.bf16.mxu0 %v1479
  %3370 = vmatmul.mubr.bf16.gmra.mrb[0].mxu0 %v1478
  %v3371 = vpop.f32.mrb[0].mxu0
  %v3372 = vadd.f32 %v3083, %v3371
  %v3373 = vpop.f32.mrb[0].mxu0
  %v3374 = vpop.f32.mrb[0].mxu0
  %v3375 = vadd.f32 %v3086, %v3374
  %v3376 = vpop.f32.mrb[0].mxu0
  %3377 = vmatprep.mubr.bf16.mxu0 %v1488
  %3378 = vmatmul.mubr.bf16.gmra.mrb[0].mxu0 %v1487
  %v3379 = vpop.f32.mrb[0].mxu0
  %v3380 = vadd.f32 %v3091, %v3379
  %v3381 = vpop.f32.mrb[0].mxu0
  %v3382 = vpop.f32.mrb[0].mxu0
  %v3383 = vadd.f32 %v3094, %v3382
  %v3384 = vpop.f32.mrb[0].mxu0
  %3385 = vmatprep.mubr.bf16.mxu0 %v1497
  %3386 = vmatmul.mubr.bf16.gmra.mrb[0].mxu0 %v1496
  %v3387 = vpop.f32.mrb[0].mxu0
  %v3388 = vadd.f32 %v3099, %v3387
  %v3389 = vpop.f32.mrb[0].mxu0
  %v3390 = vpop.f32.mrb[0].mxu0
  %v3391 = vadd.f32 %v3102, %v3390
  %v3392 = vpop.f32.mrb[0].mxu0
  %3393 = vmatprep.mubr.bf16.mxu0 %v1506
  %3394 = vmatmul.mubr.bf16.gmra.mrb[0].mxu0 %v1505
  %v3395 = vpop.f32.mrb[0].mxu0
  %v3396 = vadd.f32 %v3107, %v3395
  %v3397 = vpop.f32.mrb[0].mxu0
  %v3398 = vpop.f32.mrb[0].mxu0
  %v3399 = vadd.f32 %v3110, %v3398
  %v3400 = vpop.f32.mrb[0].mxu0
  %3401 = vmatprep.mubr.bf16.mxu0 %v1515
  %3402 = vmatmul.mubr.bf16.gmra.mrb[0].mxu0 %v1514
  %v3403 = vpop.f32.mrb[0].mxu0
  %v3404 = vadd.f32 %v3115, %v3403
  %v3405 = vpop.f32.mrb[0].mxu0
  %v3406 = vpop.f32.mrb[0].mxu0
  %v3407 = vadd.f32 %v3118, %v3406
  %v3408 = vpop.f32.mrb[0].mxu0
  %3409 = vmatprep.mubr.bf16.mxu0 %v1524
  %3410 = vmatmul.mubr.bf16.gmra.mrb[0].mxu0 %v1523
  %v3411 = vpop.f32.mrb[0].mxu0
  %v3412 = vadd.f32 %v3123, %v3411
  %v3413 = vpop.f32.mrb[0].mxu0
  %v3414 = vpop.f32.mrb[0].mxu0
  %v3415 = vadd.f32 %v3126, %v3414
  %v3416 = vpop.f32.mrb[0].mxu0
  %3417 = vmatprep.mubr.bf16.mxu0 %v1533
  %3418 = vmatmul.mubr.bf16.gmra.mrb[0].mxu0 %v1532
  %v3419 = vpop.f32.mrb[0].mxu0
  %v3420 = vadd.f32 %v3131, %v3419
  %v3421 = vpop.f32.mrb[0].mxu0
  %v3422 = vpop.f32.mrb[0].mxu0
  %v3423 = vadd.f32 %v3134, %v3422
  %v3424 = vpop.f32.mrb[0].mxu0
  %3425 = vmatprep.mubr.bf16.mxu0 %v1542
  %3426 = vmatmul.mubr.bf16.gmra.mrb[0].mxu0 %v1541
  %v3427 = vpop.f32.mrb[0].mxu0
  %v3428 = vadd.f32 %v3139, %v3427
  %v3429 = vpop.f32.mrb[0].mxu0
  %v3430 = vpop.f32.mrb[0].mxu0
  %v3431 = vadd.f32 %v3142, %v3430
  %v3432 = vpop.f32.mrb[0].mxu0
  %3433 = vmatprep.mubr.bf16.mxu0 %v1551
  %3434 = vmatmul.mubr.bf16.gmra.mrb[0].mxu0 %v1550
  %v3435 = vpop.f32.mrb[0].mxu0
  %v3436 = vadd.f32 %v3147, %v3435
  %v3437 = vpop.f32.mrb[0].mxu0
  %v3438 = vpop.f32.mrb[0].mxu0
  %v3439 = vadd.f32 %v3150, %v3438
  %v3440 = vpop.f32.mrb[0].mxu0
  %3441 = vmatprep.mubr.bf16.mxu0 %v1560
  %3442 = vmatmul.mubr.bf16.gmra.mrb[0].mxu0 %v1559
  %v3443 = vpop.f32.mrb[0].mxu0
  %v3444 = vadd.f32 %v3155, %v3443
  %v3445 = vpop.f32.mrb[0].mxu0
  %v3446 = vpop.f32.mrb[0].mxu0
  %v3447 = vadd.f32 %v3158, %v3446
  %v3448 = vpop.f32.mrb[0].mxu0
  %3449 = vmatprep.mubr.bf16.mxu0 %v1569
  %3450 = vmatmul.mubr.bf16.gmra.mrb[0].mxu0 %v1568
  %v3451 = vpop.f32.mrb[0].mxu0
  %v3452 = vadd.f32 %v3163, %v3451
  %v3453 = vpop.f32.mrb[0].mxu0
  %v3454 = vpop.f32.mrb[0].mxu0
  %v3455 = vadd.f32 %v3166, %v3454
  %v3456 = vpop.f32.mrb[0].mxu0
  %3457 = vmatprep.mubr.bf16.mxu0 %v1578
  %3458 = vmatmul.mubr.bf16.gmra.mrb[0].mxu0 %v1577
  %v3459 = vpop.f32.mrb[0].mxu0
  %v3460 = vadd.f32 %v3171, %v3459
  %v3461 = vpop.f32.mrb[0].mxu0
  %v3462 = vpop.f32.mrb[0].mxu0
  %v3463 = vadd.f32 %v3174, %v3462
  %v3464 = vpop.f32.mrb[0].mxu0
  %3465 = vmatprep.mubr.bf16.mxu0 %v1587
  %3466 = vmatmul.mubr.bf16.gmra.mrb[0].mxu0 %v1586
  %v3467 = vpop.f32.mrb[0].mxu0
  %v3468 = vadd.f32 %v3179, %v3467
  %v3469 = vpop.f32.mrb[0].mxu0
  %v3470 = vpop.f32.mrb[0].mxu0
  %v3471 = vadd.f32 %v3182, %v3470
  %v3472 = vpop.f32.mrb[0].mxu0
  %3473 = vmatprep.mubr.bf16.mxu0 %v1596
  %3474 = vmatmul.mubr.bf16.gmra.mrb[0].mxu0 %v1595
  %v3475 = vpop.f32.mrb[0].mxu0
  %v3476 = vadd.f32 %v3187, %v3475
  %v3477 = vpop.f32.mrb[0].mxu0
  %v3478 = vpop.f32.mrb[0].mxu0
  %v3479 = vadd.f32 %v3190, %v3478
  %v3480 = vpop.f32.mrb[0].mxu0
  %3481 = vmatprep.mubr.bf16.mxu0 %v1605
  %3482 = vmatmul.mubr.bf16.gmra.mrb[0].mxu0 %v1604
  %v3483 = vpop.f32.mrb[0].mxu0
  %v3484 = vadd.f32 %v3195, %v3483
  %v3485 = vpop.f32.mrb[0].mxu0
  %v3486 = vpop.f32.mrb[0].mxu0
  %v3487 = vadd.f32 %v3198, %v3486
  %v3488 = vpop.f32.mrb[0].mxu0
  %3489 = vmatprep.mubr.bf16.mxu0 %v1614
  %3490 = vmatmul.mubr.bf16.gmra.mrb[0].mxu0 %v1613
  %v3491 = vpop.f32.mrb[0].mxu0
  %v3492 = vadd.f32 %v3203, %v3491
  %v3493 = vpop.f32.mrb[0].mxu0
  %v3494 = vpop.f32.mrb[0].mxu0
  %v3495 = vadd.f32 %v3206, %v3494
  %v3496 = vpop.f32.mrb[0].mxu0
  %3497 = vmatprep.mubr.bf16.mxu0 %v1623
  %3498 = vmatmul.mubr.bf16.gmra.mrb[0].mxu0 %v1622
  %v3499 = vpop.f32.mrb[0].mxu0
  %v3500 = vadd.f32 %v3211, %v3499
  %v3501 = vpop.f32.mrb[0].mxu0
  %v3502 = vpop.f32.mrb[0].mxu0
  %v3503 = vadd.f32 %v3214, %v3502
  %v3504 = vpop.f32.mrb[0].mxu0
  %3505 = vmatprep.mubr.bf16.mxu0 %v1632
  %3506 = vmatmul.mubr.bf16.gmra.mrb[0].mxu0 %v1631
  %v3507 = vpop.f32.mrb[0].mxu0
  %v3508 = vadd.f32 %v3219, %v3507
  %v3509 = vpop.f32.mrb[0].mxu0
  %v3510 = vpop.f32.mrb[0].mxu0
  %v3511 = vadd.f32 %v3222, %v3510
  %v3512 = vpop.f32.mrb[0].mxu0
  %3513 = vmatprep.mubr.bf16.mxu0 %v1641
  %3514 = vmatmul.mubr.bf16.gmra.mrb[0].mxu0 %v1640
  %v3515 = vpop.f32.mrb[0].mxu0
  %v3516 = vadd.f32 %v3227, %v3515
  %v3517 = vpop.f32.mrb[0].mxu0
  %v3518 = vpop.f32.mrb[0].mxu0
  %v3519 = vadd.f32 %v3230, %v3518
  %v3520 = vpop.f32.mrb[0].mxu0
  %3521 = vmatprep.mubr.bf16.mxu0 %v1650
  %3522 = vmatmul.mubr.bf16.gmra.mrb[0].mxu0 %v1649
  %v3523 = vpop.f32.mrb[0].mxu0
  %v3524 = vadd.f32 %v3235, %v3523
  %v3525 = vpop.f32.mrb[0].mxu0
  %v3526 = vpop.f32.mrb[0].mxu0
  %v3527 = vadd.f32 %v3238, %v3526
  %v3528 = vpop.f32.mrb[0].mxu0
  %3529 = vmatprep.mubr.bf16.mxu0 %v1659
  %3530 = vmatmul.mubr.bf16.gmra.mrb[0].mxu0 %v1658
  %v3531 = vpop.f32.mrb[0].mxu0
  %v3532 = vadd.f32 %v3243, %v3531
  %v3533 = vpop.f32.mrb[0].mxu0
  %v3534 = vpop.f32.mrb[0].mxu0
  %v3535 = vadd.f32 %v3246, %v3534
  %v3536 = vpop.f32.mrb[0].mxu0
  %3537 = vmatprep.mubr.bf16.mxu0 %v1668
  %3538 = vmatmul.mubr.bf16.gmra.mrb[0].mxu0 %v1667
  %v3539 = vpop.f32.mrb[0].mxu0
  %v3540 = vadd.f32 %v3251, %v3539
  %v3541 = vpop.f32.mrb[0].mxu0
  %v3542 = vpop.f32.mrb[0].mxu0
  %v3543 = vadd.f32 %v3254, %v3542
  %v3544 = vpop.f32.mrb[0].mxu0
  %3545 = vdwg.mxu0
  %3546 = vmatprep.subr.bf16.mxu0 0
  %3547 = vmatpush1.bf16.msra.mxu0 %v2310
  %3548 = vmatprep.subr.bf16.mxu0 0
  %3549 = vmatpush1.bf16.msra.mxu0 %v2311
  %3550 = vmatprep.subr.bf16.mxu0 0
  %3551 = vmatpush1.bf16.msra.mxu0 %v2312
  %3552 = vmatprep.subr.bf16.mxu0 0
  %3553 = vmatpush1.bf16.msra.mxu0 %v2313
  %3554 = vmatprep.subr.bf16.mxu0 0
  %3555 = vmatpush1.bf16.msra.mxu0 %v2314
  %3556 = vmatprep.subr.bf16.mxu0 0
  %3557 = vmatpush1.bf16.msra.mxu0 %v2315
  %3558 = vmatprep.subr.bf16.mxu0 0
  %3559 = vmatpush1.bf16.msra.mxu0 %v2316
  %3560 = vmatprep.subr.bf16.mxu0 0
  %3561 = vmatpush1.bf16.msra.mxu0 %v2317
  %3562 = vmatprep.subr.bf16.mxu0 0
  %3563 = vmatpush1.bf16.msra.mxu0 0
  %3564 = vmatprep.subr.bf16.mxu0 0
  %3565 = vmatpush1.bf16.msra.mxu0 0
  %3566 = vmatprep.subr.bf16.mxu0 0
  %3567 = vmatpush1.bf16.msra.mxu0 0
  %3568 = vmatprep.subr.bf16.mxu0 0
  %3569 = vmatpush1.bf16.msra.mxu0 0
  %3570 = vmatprep.subr.bf16.mxu0 0
  %3571 = vmatpush1.bf16.msra.mxu0 0
  %3572 = vmatprep.subr.bf16.mxu0 0
  %3573 = vmatpush1.bf16.msra.mxu0 0
  %3574 = vmatprep.subr.bf16.mxu0 0
  %3575 = vmatpush1.bf16.msra.mxu0 0
  %3576 = vmatprep.subr.bf16.mxu0 0
  %3577 = vmatpush1.bf16.msra.mxu0 0
  %3578 = vmatprep.mubr.bf16.mxu0 0
  %3579 = vmatmul.mubr.bf16.gmra.mrb[0].mxu0 %v1390
  %v3580 = vpop.f32.mrb[0].mxu0
  %v3581 = vadd.f32 %v3292, %v3580
  %v3582 = vpop.f32.mrb[0].mxu0
  %v3583 = vpop.f32.mrb[0].mxu0
  %v3584 = vadd.f32 %v3295, %v3583
  %v3585 = vpop.f32.mrb[0].mxu0
  %3586 = vmatprep.mubr.bf16.mxu0 0
  %3587 = vmatmul.mubr.bf16.gmra.mrb[0].mxu0 %v1399
  %v3588 = vpop.f32.mrb[0].mxu0
  %v3589 = vadd.f32 %v3300, %v3588
  %v3590 = vpop.f32.mrb[0].mxu0
  %v3591 = vpop.f32.mrb[0].mxu0
  %v3592 = vadd.f32 %v3303, %v3591
  %v3593 = vpop.f32.mrb[0].mxu0
  %3594 = vmatprep.mubr.bf16.mxu0 0
  %3595 = vmatmul.mubr.bf16.gmra.mrb[0].mxu0 %v1408
  %v3596 = vpop.f32.mrb[0].mxu0
  %v3597 = vadd.f32 %v3308, %v3596
  %v3598 = vpop.f32.mrb[0].mxu0
  %v3599 = vpop.f32.mrb[0].mxu0
  %v3600 = vadd.f32 %v3311, %v3599
  %v3601 = vpop.f32.mrb[0].mxu0
  %3602 = vmatprep.mubr.bf16.mxu0 0
  %3603 = vmatmul.mubr.bf16.gmra.mrb[0].mxu0 %v1417
  %v3604 = vpop.f32.mrb[0].mxu0
  %v3605 = vadd.f32 %v3316, %v3604
  %v3606 = vpop.f32.mrb[0].mxu0
  %v3607 = vpop.f32.mrb[0].mxu0
  %v3608 = vadd.f32 %v3319, %v3607
  %v3609 = vpop.f32.mrb[0].mxu0
  %3610 = vmatprep.mubr.bf16.mxu0 0
  %3611 = vmatmul.mubr.bf16.gmra.mrb[0].mxu0 %v1426
  %v3612 = vpop.f32.mrb[0].mxu0
  %v3613 = vadd.f32 %v3324, %v3612
  %v3614 = vpop.f32.mrb[0].mxu0
  %v3615 = vpop.f32.mrb[0].mxu0
  %v3616 = vadd.f32 %v3327, %v3615
  %v3617 = vpop.f32.mrb[0].mxu0
  %3618 = vmatprep.mubr.bf16.mxu0 0
  %3619 = vmatmul.mubr.bf16.gmra.mrb[0].mxu0 %v1435
  %v3620 = vpop.f32.mrb[0].mxu0
  %v3621 = vadd.f32 %v3332, %v3620
  %v3622 = vpop.f32.mrb[0].mxu0
  %v3623 = vpop.f32.mrb[0].mxu0
  %v3624 = vadd.f32 %v3335, %v3623
  %v3625 = vpop.f32.mrb[0].mxu0
  %3626 = vmatprep.mubr.bf16.mxu0 0
  %3627 = vmatmul.mubr.bf16.gmra.mrb[0].mxu0 %v1444
  %v3628 = vpop.f32.mrb[0].mxu0
  %v3629 = vadd.f32 %v3340, %v3628
  %v3630 = vpop.f32.mrb[0].mxu0
  %v3631 = vpop.f32.mrb[0].mxu0
  %v3632 = vadd.f32 %v3343, %v3631
  %v3633 = vpop.f32.mrb[0].mxu0
  %3634 = vmatprep.mubr.bf16.mxu0 0
  %3635 = vmatmul.mubr.bf16.gmra.mrb[0].mxu0 %v1453
  %v3636 = vpop.f32.mrb[0].mxu0
  %v3637 = vadd.f32 %v3348, %v3636
  %v3638 = vpop.f32.mrb[0].mxu0
  %v3639 = vpop.f32.mrb[0].mxu0
  %v3640 = vadd.f32 %v3351, %v3639
  %v3641 = vpop.f32.mrb[0].mxu0
  %3642 = vmatprep.mubr.bf16.mxu0 0
  %3643 = vmatmul.mubr.bf16.gmra.mrb[0].mxu0 %v1462
  %v3644 = vpop.f32.mrb[0].mxu0
  %v3645 = vadd.f32 %v3356, %v3644
  %v3646 = vpop.f32.mrb[0].mxu0
  %v3647 = vpop.f32.mrb[0].mxu0
  %v3648 = vadd.f32 %v3359, %v3647
  %v3649 = vpop.f32.mrb[0].mxu0
  %3650 = vmatprep.mubr.bf16.mxu0 0
  %3651 = vmatmul.mubr.bf16.gmra.mrb[0].mxu0 %v1471
  %v3652 = vpop.f32.mrb[0].mxu0
  %v3653 = vadd.f32 %v3364, %v3652
  %v3654 = vpop.f32.mrb[0].mxu0
  %v3655 = vpop.f32.mrb[0].mxu0
  %v3656 = vadd.f32 %v3367, %v3655
  %v3657 = vpop.f32.mrb[0].mxu0
  %3658 = vmatprep.mubr.bf16.mxu0 0
  %3659 = vmatmul.mubr.bf16.gmra.mrb[0].mxu0 %v1480
  %v3660 = vpop.f32.mrb[0].mxu0
  %v3661 = vadd.f32 %v3372, %v3660
  %v3662 = vpop.f32.mrb[0].mxu0
  %v3663 = vpop.f32.mrb[0].mxu0
  %v3664 = vadd.f32 %v3375, %v3663
  %v3665 = vpop.f32.mrb[0].mxu0
  %3666 = vmatprep.mubr.bf16.mxu0 0
  %3667 = vmatmul.mubr.bf16.gmra.mrb[0].mxu0 %v1489
  %v3668 = vpop.f32.mrb[0].mxu0
  %v3669 = vadd.f32 %v3380, %v3668
  %v3670 = vpop.f32.mrb[0].mxu0
  %v3671 = vpop.f32.mrb[0].mxu0
  %v3672 = vadd.f32 %v3383, %v3671
  %v3673 = vpop.f32.mrb[0].mxu0
  %3674 = vmatprep.mubr.bf16.mxu0 0
  %3675 = vmatmul.mubr.bf16.gmra.mrb[0].mxu0 %v1498
  %v3676 = vpop.f32.mrb[0].mxu0
  %v3677 = vadd.f32 %v3388, %v3676
  %v3678 = vpop.f32.mrb[0].mxu0
  %v3679 = vpop.f32.mrb[0].mxu0
  %v3680 = vadd.f32 %v3391, %v3679
  %v3681 = vpop.f32.mrb[0].mxu0
  %3682 = vmatprep.mubr.bf16.mxu0 0
  %3683 = vmatmul.mubr.bf16.gmra.mrb[0].mxu0 %v1507
  %v3684 = vpop.f32.mrb[0].mxu0
  %v3685 = vadd.f32 %v3396, %v3684
  %v3686 = vpop.f32.mrb[0].mxu0
  %v3687 = vpop.f32.mrb[0].mxu0
  %v3688 = vadd.f32 %v3399, %v3687
  %v3689 = vpop.f32.mrb[0].mxu0
  %3690 = vmatprep.mubr.bf16.mxu0 0
  %3691 = vmatmul.mubr.bf16.gmra.mrb[0].mxu0 %v1516
  %v3692 = vpop.f32.mrb[0].mxu0
  %v3693 = vadd.f32 %v3404, %v3692
  %v3694 = vpop.f32.mrb[0].mxu0
  %v3695 = vpop.f32.mrb[0].mxu0
  %v3696 = vadd.f32 %v3407, %v3695
  %v3697 = vpop.f32.mrb[0].mxu0
  %3698 = vmatprep.mubr.bf16.mxu0 0
  %3699 = vmatmul.mubr.bf16.gmra.mrb[0].mxu0 %v1525
  %v3700 = vpop.f32.mrb[0].mxu0
  %v3701 = vadd.f32 %v3412, %v3700
  %v3702 = vpop.f32.mrb[0].mxu0
  %v3703 = vpop.f32.mrb[0].mxu0
  %v3704 = vadd.f32 %v3415, %v3703
  %v3705 = vpop.f32.mrb[0].mxu0
  %3706 = vmatprep.mubr.bf16.mxu0 0
  %3707 = vmatmul.mubr.bf16.gmra.mrb[0].mxu0 %v1534
  %v3708 = vpop.f32.mrb[0].mxu0
  %v3709 = vadd.f32 %v3420, %v3708
  %v3710 = vpop.f32.mrb[0].mxu0
  %v3711 = vpop.f32.mrb[0].mxu0
  %v3712 = vadd.f32 %v3423, %v3711
  %v3713 = vpop.f32.mrb[0].mxu0
  %3714 = vmatprep.mubr.bf16.mxu0 0
  %3715 = vmatmul.mubr.bf16.gmra.mrb[0].mxu0 %v1543
  %v3716 = vpop.f32.mrb[0].mxu0
  %v3717 = vadd.f32 %v3428, %v3716
  %v3718 = vpop.f32.mrb[0].mxu0
  %v3719 = vpop.f32.mrb[0].mxu0
  %v3720 = vadd.f32 %v3431, %v3719
  %v3721 = vpop.f32.mrb[0].mxu0
  %3722 = vmatprep.mubr.bf16.mxu0 0
  %3723 = vmatmul.mubr.bf16.gmra.mrb[0].mxu0 %v1552
  %v3724 = vpop.f32.mrb[0].mxu0
  %v3725 = vadd.f32 %v3436, %v3724
  %v3726 = vpop.f32.mrb[0].mxu0
  %v3727 = vpop.f32.mrb[0].mxu0
  %v3728 = vadd.f32 %v3439, %v3727
  %v3729 = vpop.f32.mrb[0].mxu0
  %3730 = vmatprep.mubr.bf16.mxu0 0
  %3731 = vmatmul.mubr.bf16.gmra.mrb[0].mxu0 %v1561
  %v3732 = vpop.f32.mrb[0].mxu0
  %v3733 = vadd.f32 %v3444, %v3732
  %v3734 = vpop.f32.mrb[0].mxu0
  %v3735 = vpop.f32.mrb[0].mxu0
  %v3736 = vadd.f32 %v3447, %v3735
  %v3737 = vpop.f32.mrb[0].mxu0
  %3738 = vmatprep.mubr.bf16.mxu0 0
  %3739 = vmatmul.mubr.bf16.gmra.mrb[0].mxu0 %v1570
  %v3740 = vpop.f32.mrb[0].mxu0
  %v3741 = vadd.f32 %v3452, %v3740
  %v3742 = vpop.f32.mrb[0].mxu0
  %v3743 = vpop.f32.mrb[0].mxu0
  %v3744 = vadd.f32 %v3455, %v3743
  %v3745 = vpop.f32.mrb[0].mxu0
  %3746 = vmatprep.mubr.bf16.mxu0 0
  %3747 = vmatmul.mubr.bf16.gmra.mrb[0].mxu0 %v1579
  %v3748 = vpop.f32.mrb[0].mxu0
  %v3749 = vadd.f32 %v3460, %v3748
  %v3750 = vpop.f32.mrb[0].mxu0
  %v3751 = vpop.f32.mrb[0].mxu0
  %v3752 = vadd.f32 %v3463, %v3751
  %v3753 = vpop.f32.mrb[0].mxu0
  %3754 = vmatprep.mubr.bf16.mxu0 0
  %3755 = vmatmul.mubr.bf16.gmra.mrb[0].mxu0 %v1588
  %v3756 = vpop.f32.mrb[0].mxu0
  %v3757 = vadd.f32 %v3468, %v3756
  %v3758 = vpop.f32.mrb[0].mxu0
  %v3759 = vpop.f32.mrb[0].mxu0
  %v3760 = vadd.f32 %v3471, %v3759
  %v3761 = vpop.f32.mrb[0].mxu0
  %3762 = vmatprep.mubr.bf16.mxu0 0
  %3763 = vmatmul.mubr.bf16.gmra.mrb[0].mxu0 %v1597
  %v3764 = vpop.f32.mrb[0].mxu0
  %v3765 = vadd.f32 %v3476, %v3764
  %v3766 = vpop.f32.mrb[0].mxu0
  %v3767 = vpop.f32.mrb[0].mxu0
  %v3768 = vadd.f32 %v3479, %v3767
  %v3769 = vpop.f32.mrb[0].mxu0
  %3770 = vmatprep.mubr.bf16.mxu0 0
  %3771 = vmatmul.mubr.bf16.gmra.mrb[0].mxu0 %v1606
  %v3772 = vpop.f32.mrb[0].mxu0
  %v3773 = vadd.f32 %v3484, %v3772
  %v3774 = vpop.f32.mrb[0].mxu0
  %v3775 = vpop.f32.mrb[0].mxu0
  %v3776 = vadd.f32 %v3487, %v3775
  %v3777 = vpop.f32.mrb[0].mxu0
  %3778 = vmatprep.mubr.bf16.mxu0 0
  %3779 = vmatmul.mubr.bf16.gmra.mrb[0].mxu0 %v1615
  %v3780 = vpop.f32.mrb[0].mxu0
  %v3781 = vadd.f32 %v3492, %v3780
  %v3782 = vpop.f32.mrb[0].mxu0
  %v3783 = vpop.f32.mrb[0].mxu0
  %v3784 = vadd.f32 %v3495, %v3783
  %v3785 = vpop.f32.mrb[0].mxu0
  %3786 = vmatprep.mubr.bf16.mxu0 0
  %3787 = vmatmul.mubr.bf16.gmra.mrb[0].mxu0 %v1624
  %v3788 = vpop.f32.mrb[0].mxu0
  %v3789 = vadd.f32 %v3500, %v3788
  %v3790 = vpop.f32.mrb[0].mxu0
  %v3791 = vpop.f32.mrb[0].mxu0
  %v3792 = vadd.f32 %v3503, %v3791
  %v3793 = vpop.f32.mrb[0].mxu0
  %3794 = vmatprep.mubr.bf16.mxu0 0
  %3795 = vmatmul.mubr.bf16.gmra.mrb[0].mxu0 %v1633
  %v3796 = vpop.f32.mrb[0].mxu0
  %v3797 = vadd.f32 %v3508, %v3796
  %v3798 = vpop.f32.mrb[0].mxu0
  %v3799 = vpop.f32.mrb[0].mxu0
  %v3800 = vadd.f32 %v3511, %v3799
  %v3801 = vpop.f32.mrb[0].mxu0
  %3802 = vmatprep.mubr.bf16.mxu0 0
  %3803 = vmatmul.mubr.bf16.gmra.mrb[0].mxu0 %v1642
  %v3804 = vpop.f32.mrb[0].mxu0
  %v3805 = vadd.f32 %v3516, %v3804
  %v3806 = vpop.f32.mrb[0].mxu0
  %v3807 = vpop.f32.mrb[0].mxu0
  %v3808 = vadd.f32 %v3519, %v3807
  %v3809 = vpop.f32.mrb[0].mxu0
  %3810 = vmatprep.mubr.bf16.mxu0 0
  %3811 = vmatmul.mubr.bf16.gmra.mrb[0].mxu0 %v1651
  %v3812 = vpop.f32.mrb[0].mxu0
  %v3813 = vadd.f32 %v3524, %v3812
  %v3814 = vpop.f32.mrb[0].mxu0
  %v3815 = vpop.f32.mrb[0].mxu0
  %v3816 = vadd.f32 %v3527, %v3815
  %v3817 = vpop.f32.mrb[0].mxu0
  %3818 = vmatprep.mubr.bf16.mxu0 0
  %3819 = vmatmul.mubr.bf16.gmra.mrb[0].mxu0 %v1660
  %v3820 = vpop.f32.mrb[0].mxu0
  %v3821 = vadd.f32 %v3532, %v3820
  %v3822 = vpop.f32.mrb[0].mxu0
  %v3823 = vpop.f32.mrb[0].mxu0
  %v3824 = vadd.f32 %v3535, %v3823
  %v3825 = vpop.f32.mrb[0].mxu0
  %3826 = vmatprep.mubr.bf16.mxu0 0
  %3827 = vmatmul.mubr.bf16.gmra.mrb[0].mxu0 %v1669
  %v3828 = vpop.f32.mrb[0].mxu0
  %v3829 = vadd.f32 %v3540, %v3828
  %v3830 = vpop.f32.mrb[0].mxu0
  %v3831 = vpop.f32.mrb[0].mxu0
  %v3832 = vadd.f32 %v3543, %v3831
  %v3833 = vpop.f32.mrb[0].mxu0
  %3834 = vdwg.mxu0
  %v3835 = vmax.f32 %v3581, 0.0
  %v3836 = vmax.f32 %v3584, 0.0
  %v3837 = vmax.f32 %v3589, 0.0
  %v3838 = vmax.f32 %v3592, 0.0
  %v3839 = vmax.f32 %v3597, 0.0
  %v3840 = vmax.f32 %v3600, 0.0
  %v3841 = vmax.f32 %v3605, 0.0
  %v3842 = vmax.f32 %v3608, 0.0
  %v3843 = vmax.f32 %v3613, 0.0
  %v3844 = vmax.f32 %v3616, 0.0
  %v3845 = vmax.f32 %v3621, 0.0
  %v3846 = vmax.f32 %v3624, 0.0
  %v3847 = vmax.f32 %v3629, 0.0
  %v3848 = vmax.f32 %v3632, 0.0
  %v3849 = vmax.f32 %v3637, 0.0
  %v3850 = vmax.f32 %v3640, 0.0
  %v3851 = vmax.f32 %v3645, 0.0
  %v3852 = vmax.f32 %v3648, 0.0
  %v3853 = vmax.f32 %v3653, 0.0
  %v3854 = vmax.f32 %v3656, 0.0
  %v3855 = vmax.f32 %v3661, 0.0
  %v3856 = vmax.f32 %v3664, 0.0
  %v3857 = vmax.f32 %v3669, 0.0
  %v3858 = vmax.f32 %v3672, 0.0
  %v3859 = vmax.f32 %v3677, 0.0
  %v3860 = vmax.f32 %v3680, 0.0
  %v3861 = vmax.f32 %v3685, 0.0
  %v3862 = vmax.f32 %v3688, 0.0
  %v3863 = vmax.f32 %v3693, 0.0
  %v3864 = vmax.f32 %v3696, 0.0
  %v3865 = vmax.f32 %v3701, 0.0
  %v3866 = vmax.f32 %v3704, 0.0
  %v3867 = vmax.f32 %v3709, 0.0
  %v3868 = vmax.f32 %v3712, 0.0
  %v3869 = vmax.f32 %v3717, 0.0
  %v3870 = vmax.f32 %v3720, 0.0
  %v3871 = vmax.f32 %v3725, 0.0
  %v3872 = vmax.f32 %v3728, 0.0
  %v3873 = vmax.f32 %v3733, 0.0
  %v3874 = vmax.f32 %v3736, 0.0
  %v3875 = vmax.f32 %v3741, 0.0
  %v3876 = vmax.f32 %v3744, 0.0
  %v3877 = vmax.f32 %v3749, 0.0
  %v3878 = vmax.f32 %v3752, 0.0
  %v3879 = vmax.f32 %v3757, 0.0
  %v3880 = vmax.f32 %v3760, 0.0
  %v3881 = vmax.f32 %v3765, 0.0
  %v3882 = vmax.f32 %v3768, 0.0
  %v3883 = vmax.f32 %v3773, 0.0
  %v3884 = vmax.f32 %v3776, 0.0
  %v3885 = vmax.f32 %v3781, 0.0
  %v3886 = vmax.f32 %v3784, 0.0
  %v3887 = vmax.f32 %v3789, 0.0
  %v3888 = vmax.f32 %v3792, 0.0
  %v3889 = vmax.f32 %v3797, 0.0
  %v3890 = vmax.f32 %v3800, 0.0
  %v3891 = vmax.f32 %v3805, 0.0
  %v3892 = vmax.f32 %v3808, 0.0
  %v3893 = vmax.f32 %v3813, 0.0
  %v3894 = vmax.f32 %v3816, 0.0
  %v3895 = vmax.f32 %v3821, 0.0
  %v3896 = vmax.f32 %v3824, 0.0
  %v3897 = vmax.f32 %v3829, 0.0
  %v3898 = vmax.f32 %v3832, 0.0
  %v3899 = vmax.f32 %v3835, %v3836
  %v3900 = vmax.f32 %v3837, %v3838
  %v3901 = vmax.f32 %v3839, %v3840
  %v3902 = vmax.f32 %v3841, %v3842
  %v3903 = vmax.f32 %v3843, %v3844
  %v3904 = vmax.f32 %v3845, %v3846
  %v3905 = vmax.f32 %v3847, %v3848
  %v3906 = vmax.f32 %v3849, %v3850
  %v3907 = vmax.f32 %v3851, %v3852
  %v3908 = vmax.f32 %v3853, %v3854
  %v3909 = vmax.f32 %v3855, %v3856
  %v3910 = vmax.f32 %v3857, %v3858
  %v3911 = vmax.f32 %v3859, %v3860
  %v3912 = vmax.f32 %v3861, %v3862
  %v3913 = vmax.f32 %v3863, %v3864
  %v3914 = vmax.f32 %v3865, %v3866
  %v3915 = vmax.f32 %v3867, %v3868
  %v3916 = vmax.f32 %v3869, %v3870
  %v3917 = vmax.f32 %v3871, %v3872
  %v3918 = vmax.f32 %v3873, %v3874
  %v3919 = vmax.f32 %v3875, %v3876
  %v3920 = vmax.f32 %v3877, %v3878
  %v3921 = vmax.f32 %v3879, %v3880
  %v3922 = vmax.f32 %v3881, %v3882
  %v3923 = vmax.f32 %v3883, %v3884
  %v3924 = vmax.f32 %v3885, %v3886
  %v3925 = vmax.f32 %v3887, %v3888
  %v3926 = vmax.f32 %v3889, %v3890
  %v3927 = vmax.f32 %v3891, %v3892
  %v3928 = vmax.f32 %v3893, %v3894
  %v3929 = vmax.f32 %v3895, %v3896
  %v3930 = vmax.f32 %v3897, %v3898
  %v3963 = vrot.slane %v3899, 4
  %v3964 = vrot.slane %v3900, 4
  %v3965 = vrot.slane %v3901, 4
  %v3966 = vrot.slane %v3902, 4
  %v3967 = vrot.slane %v3903, 4
  %v3968 = vrot.slane %v3904, 4
  %v3969 = vrot.slane %v3905, 4
  %v3970 = vrot.slane %v3906, 4
  %v3971 = vrot.slane %v3907, 4
  %v3972 = vrot.slane %v3908, 4
  %v3973 = vrot.slane %v3909, 4
  %v3974 = vrot.slane %v3910, 4
  %v3975 = vrot.slane %v3911, 4
  %v3976 = vrot.slane %v3912, 4
  %v3977 = vrot.slane %v3913, 4
  %v3978 = vrot.slane %v3914, 4
  %v3979 = vrot.slane %v3915, 4
  %v3980 = vrot.slane %v3916, 4
  %v3981 = vrot.slane %v3917, 4
  %v3982 = vrot.slane %v3918, 4
  %v3983 = vrot.slane %v3919, 4
  %v3984 = vrot.slane %v3920, 4
  %v3985 = vrot.slane %v3921, 4
  %v3986 = vrot.slane %v3922, 4
  %v3987 = vrot.slane %v3923, 4
  %v3988 = vrot.slane %v3924, 4
  %v3989 = vrot.slane %v3925, 4
  %v3990 = vrot.slane %v3926, 4
  %v3991 = vrot.slane %v3927, 4
  %v3992 = vrot.slane %v3928, 4
  %v3993 = vrot.slane %v3929, 4
  %v3994 = vrot.slane %v3930, 4
  %v4027 = vmax.f32 %v3899, %v3963
  %v4028 = vmax.f32 %v3900, %v3964
  %v4029 = vmax.f32 %v3901, %v3965
  %v4030 = vmax.f32 %v3902, %v3966
  %v4031 = vmax.f32 %v3903, %v3967
  %v4032 = vmax.f32 %v3904, %v3968
  %v4033 = vmax.f32 %v3905, %v3969
  %v4034 = vmax.f32 %v3906, %v3970
  %v4035 = vmax.f32 %v3907, %v3971
  %v4036 = vmax.f32 %v3908, %v3972
  %v4037 = vmax.f32 %v3909, %v3973
  %v4038 = vmax.f32 %v3910, %v3974
  %v4039 = vmax.f32 %v3911, %v3975
  %v4040 = vmax.f32 %v3912, %v3976
  %v4041 = vmax.f32 %v3913, %v3977
  %v4042 = vmax.f32 %v3914, %v3978
  %v4043 = vmax.f32 %v3915, %v3979
  %v4044 = vmax.f32 %v3916, %v3980
  %v4045 = vmax.f32 %v3917, %v3981
  %v4046 = vmax.f32 %v3918, %v3982
  %v4047 = vmax.f32 %v3919, %v3983
  %v4048 = vmax.f32 %v3920, %v3984
  %v4049 = vmax.f32 %v3921, %v3985
  %v4050 = vmax.f32 %v3922, %v3986
  %v4051 = vmax.f32 %v3923, %v3987
  %v4052 = vmax.f32 %v3924, %v3988
  %v4053 = vmax.f32 %v3925, %v3989
  %v4054 = vmax.f32 %v3926, %v3990
  %v4055 = vmax.f32 %v3927, %v3991
  %v4056 = vmax.f32 %v3928, %v3992
  %v4057 = vmax.f32 %v3929, %v3993
  %v4058 = vmax.f32 %v3930, %v3994
  %v4091 = vrot.slane %v4027, 2
  %v4092 = vrot.slane %v4028, 2
  %v4093 = vrot.slane %v4029, 2
  %v4094 = vrot.slane %v4030, 2
  %v4095 = vrot.slane %v4031, 2
  %v4096 = vrot.slane %v4032, 2
  %v4097 = vrot.slane %v4033, 2
  %v4098 = vrot.slane %v4034, 2
  %v4099 = vrot.slane %v4035, 2
  %v4100 = vrot.slane %v4036, 2
  %v4101 = vrot.slane %v4037, 2
  %v4102 = vrot.slane %v4038, 2
  %v4103 = vrot.slane %v4039, 2
  %v4104 = vrot.slane %v4040, 2
  %v4105 = vrot.slane %v4041, 2
  %v4106 = vrot.slane %v4042, 2
  %v4107 = vrot.slane %v4043, 2
  %v4108 = vrot.slane %v4044, 2
  %v4109 = vrot.slane %v4045, 2
  %v4110 = vrot.slane %v4046, 2
  %v4111 = vrot.slane %v4047, 2
  %v4112 = vrot.slane %v4048, 2
  %v4113 = vrot.slane %v4049, 2
  %v4114 = vrot.slane %v4050, 2
  %v4115 = vrot.slane %v4051, 2
  %v4116 = vrot.slane %v4052, 2
  %v4117 = vrot.slane %v4053, 2
  %v4118 = vrot.slane %v4054, 2
  %v4119 = vrot.slane %v4055, 2
  %v4120 = vrot.slane %v4056, 2
  %v4121 = vrot.slane %v4057, 2
  %v4122 = vrot.slane %v4058, 2
  %v4155 = vmax.f32 %v4027, %v4091
  %v4156 = vmax.f32 %v4028, %v4092
  %v4157 = vmax.f32 %v4029, %v4093
  %v4158 = vmax.f32 %v4030, %v4094
  %v4159 = vmax.f32 %v4031, %v4095
  %v4160 = vmax.f32 %v4032, %v4096
  %v4161 = vmax.f32 %v4033, %v4097
  %v4162 = vmax.f32 %v4034, %v4098
  %v4163 = vmax.f32 %v4035, %v4099
  %v4164 = vmax.f32 %v4036, %v4100
  %v4165 = vmax.f32 %v4037, %v4101
  %v4166 = vmax.f32 %v4038, %v4102
  %v4167 = vmax.f32 %v4039, %v4103
  %v4168 = vmax.f32 %v4040, %v4104
  %v4169 = vmax.f32 %v4041, %v4105
  %v4170 = vmax.f32 %v4042, %v4106
  %v4171 = vmax.f32 %v4043, %v4107
  %v4172 = vmax.f32 %v4044, %v4108
  %v4173 = vmax.f32 %v4045, %v4109
  %v4174 = vmax.f32 %v4046, %v4110
  %v4175 = vmax.f32 %v4047, %v4111
  %v4176 = vmax.f32 %v4048, %v4112
  %v4177 = vmax.f32 %v4049, %v4113
  %v4178 = vmax.f32 %v4050, %v4114
  %v4179 = vmax.f32 %v4051, %v4115
  %v4180 = vmax.f32 %v4052, %v4116
  %v4181 = vmax.f32 %v4053, %v4117
  %v4182 = vmax.f32 %v4054, %v4118
  %v4183 = vmax.f32 %v4055, %v4119
  %v4184 = vmax.f32 %v4056, %v4120
  %v4185 = vmax.f32 %v4057, %v4121
  %v4186 = vmax.f32 %v4058, %v4122
  %v4219 = vrot.slane %v4155, 1
  %v4220 = vrot.slane %v4156, 1
  %v4221 = vrot.slane %v4157, 1
  %v4222 = vrot.slane %v4158, 1
  %v4223 = vrot.slane %v4159, 1
  %v4224 = vrot.slane %v4160, 1
  %v4225 = vrot.slane %v4161, 1
  %v4226 = vrot.slane %v4162, 1
  %v4227 = vrot.slane %v4163, 1
  %v4228 = vrot.slane %v4164, 1
  %v4229 = vrot.slane %v4165, 1
  %v4230 = vrot.slane %v4166, 1
  %v4231 = vrot.slane %v4167, 1
  %v4232 = vrot.slane %v4168, 1
  %v4233 = vrot.slane %v4169, 1
  %v4234 = vrot.slane %v4170, 1
  %v4235 = vrot.slane %v4171, 1
  %v4236 = vrot.slane %v4172, 1
  %v4237 = vrot.slane %v4173, 1
  %v4238 = vrot.slane %v4174, 1
  %v4239 = vrot.slane %v4175, 1
  %v4240 = vrot.slane %v4176, 1
  %v4241 = vrot.slane %v4177, 1
  %v4242 = vrot.slane %v4178, 1
  %v4243 = vrot.slane %v4179, 1
  %v4244 = vrot.slane %v4180, 1
  %v4245 = vrot.slane %v4181, 1
  %v4246 = vrot.slane %v4182, 1
  %v4247 = vrot.slane %v4183, 1
  %v4248 = vrot.slane %v4184, 1
  %v4249 = vrot.slane %v4185, 1
  %v4250 = vrot.slane %v4186, 1
  %v4283 = vmax.f32 %v4155, %v4219
  %v4284 = vmax.f32 %v4156, %v4220
  %v4285 = vmax.f32 %v4157, %v4221
  %v4286 = vmax.f32 %v4158, %v4222
  %v4287 = vmax.f32 %v4159, %v4223
  %v4288 = vmax.f32 %v4160, %v4224
  %v4289 = vmax.f32 %v4161, %v4225
  %v4290 = vmax.f32 %v4162, %v4226
  %v4291 = vmax.f32 %v4163, %v4227
  %v4292 = vmax.f32 %v4164, %v4228
  %v4293 = vmax.f32 %v4165, %v4229
  %v4294 = vmax.f32 %v4166, %v4230
  %v4295 = vmax.f32 %v4167, %v4231
  %v4296 = vmax.f32 %v4168, %v4232
  %v4297 = vmax.f32 %v4169, %v4233
  %v4298 = vmax.f32 %v4170, %v4234
  %v4299 = vmax.f32 %v4171, %v4235
  %v4300 = vmax.f32 %v4172, %v4236
  %v4301 = vmax.f32 %v4173, %v4237
  %v4302 = vmax.f32 %v4174, %v4238
  %v4303 = vmax.f32 %v4175, %v4239
  %v4304 = vmax.f32 %v4176, %v4240
  %v4305 = vmax.f32 %v4177, %v4241
  %v4306 = vmax.f32 %v4178, %v4242
  %v4307 = vmax.f32 %v4179, %v4243
  %v4308 = vmax.f32 %v4180, %v4244
  %v4309 = vmax.f32 %v4181, %v4245
  %v4310 = vmax.f32 %v4182, %v4246
  %v4311 = vmax.f32 %v4183, %v4247
  %v4312 = vmax.f32 %v4184, %v4248
  %v4313 = vmax.f32 %v4185, %v4249
  %v4314 = vmax.f32 %v4186, %v4250
  %v4347 = vrot.slane %v4284, 7
  %vm4348 = vcmask 1041409
  %v4349 = vsel %vm4348, %v4347, %v4283
  %v4350 = vrot.slane %v4285, 6
  %vm4351 = vcmask 1042434
  %v4352 = vsel %vm4351, %v4350, %v4349
  %v4353 = vrot.slane %v4286, 5
  %vm4354 = vcmask 1043459
  %v4355 = vsel %vm4354, %v4353, %v4352
  %v4356 = vrot.slane %v4287, 4
  %vm4357 = vcmask 1044484
  %v4358 = vsel %vm4357, %v4356, %v4355
  %v4359 = vrot.slane %v4288, 3
  %vm4360 = vcmask 1045509
  %v4361 = vsel %vm4360, %v4359, %v4358
  %v4362 = vrot.slane %v4289, 2
  %vm4363 = vcmask 1046534
  %v4364 = vsel %vm4363, %v4362, %v4361
  %v4365 = vrot.slane %v4290, 1
  %vm4366 = vcmask 1047559
  %v4367 = vsel %vm4366, %v4365, %v4364
  %v4368 = vrot.slane %v4292, 7
  %v4369 = vsel %vm4348, %v4368, %v4291
  %v4370 = vrot.slane %v4293, 6
  %v4371 = vsel %vm4351, %v4370, %v4369
  %v4372 = vrot.slane %v4294, 5
  %v4373 = vsel %vm4354, %v4372, %v4371
  %v4374 = vrot.slane %v4295, 4
  %v4375 = vsel %vm4357, %v4374, %v4373
  %v4376 = vrot.slane %v4296, 3
  %v4377 = vsel %vm4360, %v4376, %v4375
  %v4378 = vrot.slane %v4297, 2
  %v4379 = vsel %vm4363, %v4378, %v4377
  %v4380 = vrot.slane %v4298, 1
  %v4381 = vsel %vm4366, %v4380, %v4379
  %v4382 = vrot.slane %v4300, 7
  %v4383 = vsel %vm4348, %v4382, %v4299
  %v4384 = vrot.slane %v4301, 6
  %v4385 = vsel %vm4351, %v4384, %v4383
  %v4386 = vrot.slane %v4302, 5
  %v4387 = vsel %vm4354, %v4386, %v4385
  %v4388 = vrot.slane %v4303, 4
  %v4389 = vsel %vm4357, %v4388, %v4387
  %v4390 = vrot.slane %v4304, 3
  %v4391 = vsel %vm4360, %v4390, %v4389
  %v4392 = vrot.slane %v4305, 2
  %v4393 = vsel %vm4363, %v4392, %v4391
  %v4394 = vrot.slane %v4306, 1
  %v4395 = vsel %vm4366, %v4394, %v4393
  %v4396 = vrot.slane %v4308, 7
  %v4397 = vsel %vm4348, %v4396, %v4307
  %v4398 = vrot.slane %v4309, 6
  %v4399 = vsel %vm4351, %v4398, %v4397
  %v4400 = vrot.slane %v4310, 5
  %v4401 = vsel %vm4354, %v4400, %v4399
  %v4402 = vrot.slane %v4311, 4
  %v4403 = vsel %vm4357, %v4402, %v4401
  %v4404 = vrot.slane %v4312, 3
  %v4405 = vsel %vm4360, %v4404, %v4403
  %v4406 = vrot.slane %v4313, 2
  %v4407 = vsel %vm4363, %v4406, %v4405
  %v4408 = vrot.slane %v4314, 1
  %v4409 = vsel %vm4366, %v4408, %v4407
  %4414 = vst [vmem:[%s3] sm:$0xff] %v4367
  %4415 = vst [vmem:[%s3 + $0x8] sm:$0xff] %v4381
  %4416 = vst [vmem:[%s3 + $0x10] sm:$0xff] %v4395
  %4417 = vst [vmem:[%s3 + $0x18] sm:$0xff] %v4409
  // Predicated region
  $region14: #{_lambda_.4} parent=0 // pred_check
    _
  $region15: #{_lambda_.4} parent=0 // pred_check_branch
    %4419 = sbr.rel (0) target = $region17
  $region16: #{_lambda_.4} parent=0 // pred_region
    _
  $region17: #{_lambda_.4} parent=0 // pred_fallthru
    _
  // Predicated region
  $region18: #{_lambda_.4} parent=0 // pred_check
    _
  $region19: #{_lambda_.4} parent=0 // pred_check_branch
    %4421 = sbr.rel (0) target = $region21
  $region20: #{_lambda_.4} parent=0 // pred_region
    _
  $region21: #{_lambda_.4} parent=0 // pred_fallthru
    _

// kernel: _lambda_.5
$region0: #{_lambda_.5}
  #allocation0 [shape = 'u32[]', space=smem, size = 0x4, offset = 0x4, fixed_abs, tag = 'smem constant byte address 0x4 - core index']
  #allocation1 [shape = 'u32[144,128]{1,0:T(1,128)}', space=vmem, size = 0x12000, scoped, tag = 'internal scratch']
  %s0 = inlined_call_operand.vmem [shape: bf16[32,1152], index: 0, kind: input, shape index: {}]
  %s1 = inlined_call_operand.vmem [shape: bf16[1152,128], index: 1, kind: input, shape index: {}]
  %s2 = inlined_call_operand.vmem [shape: f32[1,128], index: 2, kind: input, shape index: {}]
  %s3 = inlined_call_operand.vmem [shape: f32[128,5], index: 3, kind: input, shape index: {}]
  %s4 = inlined_call_operand.vmem [shape: f32[1,5], index: 4, kind: input, shape index: {}]
  %s5 = inlined_call_operand.hbm [shape: f32[2,5], index: 5, kind: output, shape index: {}]
  %s6 = sld [smem:[#allocation0]]
  $region30: #{_lambda_.5} parent=0
    _
  %s8 = ssub.s32 1, %s6
  %s9 = scalar_select 0, %s8, %s6
  $region1: #{_lambda_.5} parent=0
    #allocation2 [shape = 'u8[1024]{0}', space=vmem, size = 0x400, scoped, tag = 'output window, operand 0, single buffered']
    #allocation3 [shape = 's32[1]{0}', space=sflag, size = 0x4, scoped, tag = 'scoped memory for _lambda_.5']
    %10 = vsyncpa [#allocation3], 0
    // Predicated region
    $region2: #{_lambda_.5} parent=1 // pred_check
      _
    $region3: #{_lambda_.5} parent=1 // pred_check_branch
      %12 = sbr.rel (0) target = $region5
    $region4: #{_lambda_.5} parent=1 // pred_region
      _
    $region5: #{_lambda_.5} parent=1 // pred_fallthru
      _
    // Predicated region
    $region6: #{_lambda_.5} parent=1 // pred_check
      _
    $region7: #{_lambda_.5} parent=1 // pred_check_branch
      %14 = sbr.rel (0) target = $region9
    $region8: #{_lambda_.5} parent=1 // pred_region
      _
    $region9: #{_lambda_.5} parent=1 // pred_fallthru
      _
    // Predicated region
    $region10: #{_lambda_.5} parent=1 // pred_check
      _
    $region11: #{_lambda_.5} parent=1 // pred_check_branch
      %16 = sbr.rel (0) target = $region13
    $region12: #{_lambda_.5} parent=1 // pred_region
      _
    $region13: #{_lambda_.5} parent=1 // pred_fallthru
      _
    // Predicated region
    $region14: #{_lambda_.5} parent=1 // pred_check
      _
    $region15: #{_lambda_.5} parent=1 // pred_check_branch
      %18 = sbr.rel (0) target = $region17
    $region16: #{_lambda_.5} parent=1 // pred_region
      _
    $region17: #{_lambda_.5} parent=1 // pred_fallthru
      _
    // Predicated region
    $region18: #{_lambda_.5} parent=1 // pred_check
      _
    $region19: #{_lambda_.5} parent=1 // pred_check_branch
      %20 = sbr.rel (0) target = $region21
    $region20: #{_lambda_.5} parent=1 // pred_region
      _
    $region21: #{_lambda_.5} parent=1 // pred_fallthru
      _
    %v22 = vld [vmem:[%s0] sm:$0xff]
    %v23 = vld [vmem:[%s0 + $0x8] sm:$0xff]
    %v24 = vld [vmem:[%s0 + $0x10] sm:$0xff]
    %v25 = vld [vmem:[%s0 + $0x18] sm:$0xff]
    %v26 = vld [vmem:[%s0 + $0x20] sm:$0xf]
    %v27 = vld [vmem:[%s0 + $0x24] sm:$0xff]
    %v28 = vld [vmem:[%s0 + $0x2c] sm:$0xff]
    %v29 = vld [vmem:[%s0 + $0x34] sm:$0xff]
    %v30 = vld [vmem:[%s0 + $0x3c] sm:$0xff]
    %v31 = vld [vmem:[%s0 + $0x44] sm:$0xf]
    %v32 = vld [vmem:[%s0 + $0x48] sm:$0xff]
    %v33 = vld [vmem:[%s0 + $0x50] sm:$0xff]
    %v34 = vld [vmem:[%s0 + $0x58] sm:$0xff]
    %v35 = vld [vmem:[%s0 + $0x60] sm:$0xff]
    %v36 = vld [vmem:[%s0 + $0x68] sm:$0xf]
    %v37 = vld [vmem:[%s0 + $0x6c] sm:$0xff]
    %v38 = vld [vmem:[%s0 + $0x74] sm:$0xff]
    %v39 = vld [vmem:[%s0 + $0x7c] sm:$0xff]
    %v40 = vld [vmem:[%s0 + $0x84] sm:$0xff]
    %v41 = vld [vmem:[%s0 + $0x8c] sm:$0xf]
    %v42 = vld [vmem:[%s1] sm:$0xf]
    %v43 = vld [vmem:[%s1 + $0x4] sm:$0xf]
    %v44 = vld [vmem:[%s1 + $0x8] sm:$0xf]
    %v45 = vld [vmem:[%s1 + $0xc] sm:$0xf]
    %v46 = vld [vmem:[%s1 + $0x10] sm:$0xf]
    %v47 = vld [vmem:[%s1 + $0x14] sm:$0xf]
    %v48 = vld [vmem:[%s1 + $0x18] sm:$0xf]
    %v49 = vld [vmem:[%s1 + $0x1c] sm:$0xf]
    %v50 = vld [vmem:[%s1 + $0x20] sm:$0xf]
    %v51 = vld [vmem:[%s1 + $0x24] sm:$0xf]
    %v52 = vld [vmem:[%s1 + $0x28] sm:$0xf]
    %v53 = vld [vmem:[%s1 + $0x2c] sm:$0xf]
    %v54 = vld [vmem:[%s1 + $0x30] sm:$0xf]
    %v55 = vld [vmem:[%s1 + $0x34] sm:$0xf]
    %v56 = vld [vmem:[%s1 + $0x38] sm:$0xf]
    %v57 = vld [vmem:[%s1 + $0x3c] sm:$0xf]
    %v58 = vld [vmem:[%s1 + $0x40] sm:$0xf]
    %v59 = vld [vmem:[%s1 + $0x44] sm:$0xf]
    %v60 = vld [vmem:[%s1 + $0x48] sm:$0xf]
    %v61 = vld [vmem:[%s1 + $0x4c] sm:$0xf]
    %v62 = vld [vmem:[%s1 + $0x50] sm:$0xf]
    %v63 = vld [vmem:[%s1 + $0x54] sm:$0xf]
    %v64 = vld [vmem:[%s1 + $0x58] sm:$0xf]
    %v65 = vld [vmem:[%s1 + $0x5c] sm:$0xf]
    %v66 = vld [vmem:[%s1 + $0x60] sm:$0xf]
    %v67 = vld [vmem:[%s1 + $0x64] sm:$0xf]
    %v68 = vld [vmem:[%s1 + $0x68] sm:$0xf]
    %v69 = vld [vmem:[%s1 + $0x6c] sm:$0xf]
    %v70 = vld [vmem:[%s1 + $0x70] sm:$0xf]
    %v71 = vld [vmem:[%s1 + $0x74] sm:$0xf]
    %v72 = vld [vmem:[%s1 + $0x78] sm:$0xf]
    %v73 = vld [vmem:[%s1 + $0x7c] sm:$0xf]
    %v74 = vld [vmem:[%s1 + $0x80] sm:$0xf]
    %v75 = vld [vmem:[%s1 + $0x84] sm:$0xf]
    %v76 = vld [vmem:[%s1 + $0x88] sm:$0xf]
    %v77 = vld [vmem:[%s1 + $0x8c] sm:$0xf]
    %v78 = vld [vmem:[%s1 + $0x90] sm:$0xf]
    %v79 = vld [vmem:[%s1 + $0x94] sm:$0xf]
    %v80 = vld [vmem:[%s1 + $0x98] sm:$0xf]
    %v81 = vld [vmem:[%s1 + $0x9c] sm:$0xf]
    %v82 = vld [vmem:[%s1 + $0xa0] sm:$0xf]
    %v83 = vld [vmem:[%s1 + $0xa4] sm:$0xf]
    %v84 = vld [vmem:[%s1 + $0xa8] sm:$0xf]
    %v85 = vld [vmem:[%s1 + $0xac] sm:$0xf]
    %v86 = vld [vmem:[%s1 + $0xb0] sm:$0xf]
    %v87 = vld [vmem:[%s1 + $0xb4] sm:$0xf]
    %v88 = vld [vmem:[%s1 + $0xb8] sm:$0xf]
    %v89 = vld [vmem:[%s1 + $0xbc] sm:$0xf]
    %v90 = vld [vmem:[%s1 + $0xc0] sm:$0xf]
    %v91 = vld [vmem:[%s1 + $0xc4] sm:$0xf]
    %v92 = vld [vmem:[%s1 + $0xc8] sm:$0xf]
    %v93 = vld [vmem:[%s1 + $0xcc] sm:$0xf]
    %v94 = vld [vmem:[%s1 + $0xd0] sm:$0xf]
    %v95 = vld [vmem:[%s1 + $0xd4] sm:$0xf]
    %v96 = vld [vmem:[%s1 + $0xd8] sm:$0xf]
    %v97 = vld [vmem:[%s1 + $0xdc] sm:$0xf]
    %v98 = vld [vmem:[%s1 + $0xe0] sm:$0xf]
    %v99 = vld [vmem:[%s1 + $0xe4] sm:$0xf]
    %v100 = vld [vmem:[%s1 + $0xe8] sm:$0xf]
    %v101 = vld [vmem:[%s1 + $0xec] sm:$0xf]
    %v102 = vld [vmem:[%s1 + $0xf0] sm:$0xf]
    %v103 = vld [vmem:[%s1 + $0xf4] sm:$0xf]
    %v104 = vld [vmem:[%s1 + $0xf8] sm:$0xf]
    %v105 = vld [vmem:[%s1 + $0xfc] sm:$0xf]
    %v106 = vld [vmem:[%s1 + $0x100] sm:$0xf]
    %v107 = vld [vmem:[%s1 + $0x104] sm:$0xf]
    %v108 = vld [vmem:[%s1 + $0x108] sm:$0xf]
    %v109 = vld [vmem:[%s1 + $0x10c] sm:$0xf]
    %v110 = vld [vmem:[%s1 + $0x110] sm:$0xf]
    %v111 = vld [vmem:[%s1 + $0x114] sm:$0xf]
    %v112 = vld [vmem:[%s1 + $0x118] sm:$0xf]
    %v113 = vld [vmem:[%s1 + $0x11c] sm:$0xf]
    %v114 = vld [vmem:[%s1 + $0x120] sm:$0xf]
    %v115 = vld [vmem:[%s1 + $0x124] sm:$0xf]
    %v116 = vld [vmem:[%s1 + $0x128] sm:$0xf]
    %v117 = vld [vmem:[%s1 + $0x12c] sm:$0xf]
    %v118 = vld [vmem:[%s1 + $0x130] sm:$0xf]
    %v119 = vld [vmem:[%s1 + $0x134] sm:$0xf]
    %v120 = vld [vmem:[%s1 + $0x138] sm:$0xf]
    %v121 = vld [vmem:[%s1 + $0x13c] sm:$0xf]
    %v122 = vld [vmem:[%s1 + $0x140] sm:$0xf]
    %v123 = vld [vmem:[%s1 + $0x144] sm:$0xf]
    %v124 = vld [vmem:[%s1 + $0x148] sm:$0xf]
    %v125 = vld [vmem:[%s1 + $0x14c] sm:$0xf]
    %v126 = vld [vmem:[%s1 + $0x150] sm:$0xf]
    %v127 = vld [vmem:[%s1 + $0x154] sm:$0xf]
    %v128 = vld [vmem:[%s1 + $0x158] sm:$0xf]
    %v129 = vld [vmem:[%s1 + $0x15c] sm:$0xf]
    %v130 = vld [vmem:[%s1 + $0x160] sm:$0xf]
    %v131 = vld [vmem:[%s1 + $0x164] sm:$0xf]
    %v132 = vld [vmem:[%s1 + $0x168] sm:$0xf]
    %v133 = vld [vmem:[%s1 + $0x16c] sm:$0xf]
    %v134 = vld [vmem:[%s1 + $0x170] sm:$0xf]
    %v135 = vld [vmem:[%s1 + $0x174] sm:$0xf]
    %v136 = vld [vmem:[%s1 + $0x178] sm:$0xf]
    %v137 = vld [vmem:[%s1 + $0x17c] sm:$0xf]
    %v138 = vld [vmem:[%s1 + $0x180] sm:$0xf]
    %v139 = vld [vmem:[%s1 + $0x184] sm:$0xf]
    %v140 = vld [vmem:[%s1 + $0x188] sm:$0xf]
    %v141 = vld [vmem:[%s1 + $0x18c] sm:$0xf]
    %v142 = vld [vmem:[%s1 + $0x190] sm:$0xf]
    %v143 = vld [vmem:[%s1 + $0x194] sm:$0xf]
    %v144 = vld [vmem:[%s1 + $0x198] sm:$0xf]
    %v145 = vld [vmem:[%s1 + $0x19c] sm:$0xf]
    %v146 = vld [vmem:[%s1 + $0x1a0] sm:$0xf]
    %v147 = vld [vmem:[%s1 + $0x1a4] sm:$0xf]
    %v148 = vld [vmem:[%s1 + $0x1a8] sm:$0xf]
    %v149 = vld [vmem:[%s1 + $0x1ac] sm:$0xf]
    %v150 = vld [vmem:[%s1 + $0x1b0] sm:$0xf]
    %v151 = vld [vmem:[%s1 + $0x1b4] sm:$0xf]
    %v152 = vld [vmem:[%s1 + $0x1b8] sm:$0xf]
    %v153 = vld [vmem:[%s1 + $0x1bc] sm:$0xf]
    %v154 = vld [vmem:[%s1 + $0x1c0] sm:$0xf]
    %v155 = vld [vmem:[%s1 + $0x1c4] sm:$0xf]
    %v156 = vld [vmem:[%s1 + $0x1c8] sm:$0xf]
    %v157 = vld [vmem:[%s1 + $0x1cc] sm:$0xf]
    %v158 = vld [vmem:[%s1 + $0x1d0] sm:$0xf]
    %v159 = vld [vmem:[%s1 + $0x1d4] sm:$0xf]
    %v160 = vld [vmem:[%s1 + $0x1d8] sm:$0xf]
    %v161 = vld [vmem:[%s1 + $0x1dc] sm:$0xf]
    %v162 = vld [vmem:[%s1 + $0x1e0] sm:$0xf]
    %v163 = vld [vmem:[%s1 + $0x1e4] sm:$0xf]
    %v164 = vld [vmem:[%s1 + $0x1e8] sm:$0xf]
    %v165 = vld [vmem:[%s1 + $0x1ec] sm:$0xf]
    %v166 = vld [vmem:[%s1 + $0x1f0] sm:$0xf]
    %v167 = vld [vmem:[%s1 + $0x1f4] sm:$0xf]
    %v168 = vld [vmem:[%s1 + $0x1f8] sm:$0xf]
    %v169 = vld [vmem:[%s1 + $0x1fc] sm:$0xf]
    %v170 = vld [vmem:[%s1 + $0x200] sm:$0xf]
    %v171 = vld [vmem:[%s1 + $0x204] sm:$0xf]
    %v172 = vld [vmem:[%s1 + $0x208] sm:$0xf]
    %v173 = vld [vmem:[%s1 + $0x20c] sm:$0xf]
    %v174 = vld [vmem:[%s1 + $0x210] sm:$0xf]
    %v175 = vld [vmem:[%s1 + $0x214] sm:$0xf]
    %v176 = vld [vmem:[%s1 + $0x218] sm:$0xf]
    %v177 = vld [vmem:[%s1 + $0x21c] sm:$0xf]
    %v178 = vld [vmem:[%s1 + $0x220] sm:$0xf]
    %v179 = vld [vmem:[%s1 + $0x224] sm:$0xf]
    %v180 = vld [vmem:[%s1 + $0x228] sm:$0xf]
    %v181 = vld [vmem:[%s1 + $0x22c] sm:$0xf]
    %v182 = vld [vmem:[%s1 + $0x230] sm:$0xf]
    %v183 = vld [vmem:[%s1 + $0x234] sm:$0xf]
    %v184 = vld [vmem:[%s1 + $0x238] sm:$0xf]
    %v185 = vld [vmem:[%s1 + $0x23c] sm:$0xf]
    %v186 = vld [vmem:[%s2] sm:$0x1]
    %v188 = vlaneseq
    %v189 = vshrl.u32 %v188, 7
    %v190 = vsub.s32 0, %v189
    %v191 = vrot.slane %v186, %v190
    %v213 = vunpack.c.l.b16 %v22
    %v214 = vunpack.c.h.b16 %v22
    %v215 = vunpack.c.l.b16 %v23
    %v216 = vunpack.c.h.b16 %v23
    %v217 = vunpack.c.l.b16 %v24
    %v218 = vunpack.c.h.b16 %v24
    %v219 = vunpack.c.l.b16 %v25
    %v220 = vunpack.c.h.b16 %v25
    %v221 = vunpack.c.l.b16 %v26
    %v222 = vunpack.c.l.b16 %v27
    %v223 = vunpack.c.h.b16 %v27
    %v224 = vunpack.c.l.b16 %v28
    %v225 = vunpack.c.h.b16 %v28
    %v226 = vunpack.c.l.b16 %v29
    %v227 = vunpack.c.h.b16 %v29
    %v228 = vunpack.c.l.b16 %v30
    %v229 = vunpack.c.h.b16 %v30
    %v230 = vunpack.c.l.b16 %v31
    %v231 = vunpack.c.l.b16 %v32
    %v232 = vunpack.c.h.b16 %v32
    %v233 = vunpack.c.l.b16 %v33
    %v234 = vunpack.c.h.b16 %v33
    %v235 = vunpack.c.l.b16 %v34
    %v236 = vunpack.c.h.b16 %v34
    %v237 = vunpack.c.l.b16 %v35
    %v238 = vunpack.c.h.b16 %v35
    %v239 = vunpack.c.l.b16 %v36
    %v240 = vunpack.c.l.b16 %v37
    %v241 = vunpack.c.h.b16 %v37
    %v242 = vunpack.c.l.b16 %v38
    %v243 = vunpack.c.h.b16 %v38
    %v244 = vunpack.c.l.b16 %v39
    %v245 = vunpack.c.h.b16 %v39
    %v246 = vunpack.c.l.b16 %v40
    %v247 = vunpack.c.h.b16 %v40
    %v248 = vunpack.c.l.b16 %v41
    %v249 = vpack.c.b16 %v222, %v213
    %v250 = vpack.c.b16 %v223, %v214
    %v251 = vpack.c.b16 %v224, %v215
    %v252 = vpack.c.b16 %v225, %v216
    %v253 = vpack.c.b16 %v226, %v217
    %v254 = vpack.c.b16 %v227, %v218
    %v255 = vpack.c.b16 %v228, %v219
    %v256 = vpack.c.b16 %v229, %v220
    %v257 = vpack.c.b16 %v230, %v221
    %v258 = vpack.c.b16 %v240, %v231
    %v259 = vpack.c.b16 %v241, %v232
    %v260 = vpack.c.b16 %v242, %v233
    %v261 = vpack.c.b16 %v243, %v234
    %v262 = vpack.c.b16 %v244, %v235
    %v263 = vpack.c.b16 %v245, %v236
    %v264 = vpack.c.b16 %v246, %v237
    %v265 = vpack.c.b16 %v247, %v238
    %v266 = vpack.c.b16 %v248, %v239
    %v429 = vunpack.c.l.b16 %v42
    %v430 = vunpack.c.l.b16 %v43
    %v431 = vunpack.c.l.b16 %v44
    %v432 = vunpack.c.l.b16 %v45
    %v433 = vunpack.c.l.b16 %v46
    %v434 = vunpack.c.l.b16 %v47
    %v435 = vunpack.c.l.b16 %v48
    %v436 = vunpack.c.l.b16 %v49
    %v437 = vunpack.c.l.b16 %v50
    %v438 = vunpack.c.l.b16 %v51
    %v439 = vunpack.c.l.b16 %v52
    %v440 = vunpack.c.l.b16 %v53
    %v441 = vunpack.c.l.b16 %v54
    %v442 = vunpack.c.l.b16 %v55
    %v443 = vunpack.c.l.b16 %v56
    %v444 = vunpack.c.l.b16 %v57
    %v445 = vunpack.c.l.b16 %v58
    %v446 = vunpack.c.l.b16 %v59
    %v447 = vunpack.c.l.b16 %v60
    %v448 = vunpack.c.l.b16 %v61
    %v449 = vunpack.c.l.b16 %v62
    %v450 = vunpack.c.l.b16 %v63
    %v451 = vunpack.c.l.b16 %v64
    %v452 = vunpack.c.l.b16 %v65
    %v453 = vunpack.c.l.b16 %v66
    %v454 = vunpack.c.l.b16 %v67
    %v455 = vunpack.c.l.b16 %v68
    %v456 = vunpack.c.l.b16 %v69
    %v457 = vunpack.c.l.b16 %v70
    %v458 = vunpack.c.l.b16 %v71
    %v459 = vunpack.c.l.b16 %v72
    %v460 = vunpack.c.l.b16 %v73
    %v461 = vunpack.c.l.b16 %v74
    %v462 = vunpack.c.l.b16 %v75
    %v463 = vunpack.c.l.b16 %v76
    %v464 = vunpack.c.l.b16 %v77
    %v465 = vunpack.c.l.b16 %v78
    %v466 = vunpack.c.l.b16 %v79
    %v467 = vunpack.c.l.b16 %v80
    %v468 = vunpack.c.l.b16 %v81
    %v469 = vunpack.c.l.b16 %v82
    %v470 = vunpack.c.l.b16 %v83
    %v471 = vunpack.c.l.b16 %v84
    %v472 = vunpack.c.l.b16 %v85
    %v473 = vunpack.c.l.b16 %v86
    %v474 = vunpack.c.l.b16 %v87
    %v475 = vunpack.c.l.b16 %v88
    %v476 = vunpack.c.l.b16 %v89
    %v477 = vunpack.c.l.b16 %v90
    %v478 = vunpack.c.l.b16 %v91
    %v479 = vunpack.c.l.b16 %v92
    %v480 = vunpack.c.l.b16 %v93
    %v481 = vunpack.c.l.b16 %v94
    %v482 = vunpack.c.l.b16 %v95
    %v483 = vunpack.c.l.b16 %v96
    %v484 = vunpack.c.l.b16 %v97
    %v485 = vunpack.c.l.b16 %v98
    %v486 = vunpack.c.l.b16 %v99
    %v487 = vunpack.c.l.b16 %v100
    %v488 = vunpack.c.l.b16 %v101
    %v489 = vunpack.c.l.b16 %v102
    %v490 = vunpack.c.l.b16 %v103
    %v491 = vunpack.c.l.b16 %v104
    %v492 = vunpack.c.l.b16 %v105
    %v493 = vunpack.c.l.b16 %v106
    %v494 = vunpack.c.l.b16 %v107
    %v495 = vunpack.c.l.b16 %v108
    %v496 = vunpack.c.l.b16 %v109
    %v497 = vunpack.c.l.b16 %v110
    %v498 = vunpack.c.l.b16 %v111
    %v499 = vunpack.c.l.b16 %v112
    %v500 = vunpack.c.l.b16 %v113
    %v501 = vunpack.c.l.b16 %v114
    %v502 = vunpack.c.l.b16 %v115
    %v503 = vunpack.c.l.b16 %v116
    %v504 = vunpack.c.l.b16 %v117
    %v505 = vunpack.c.l.b16 %v118
    %v506 = vunpack.c.l.b16 %v119
    %v507 = vunpack.c.l.b16 %v120
    %v508 = vunpack.c.l.b16 %v121
    %v509 = vunpack.c.l.b16 %v122
    %v510 = vunpack.c.l.b16 %v123
    %v511 = vunpack.c.l.b16 %v124
    %v512 = vunpack.c.l.b16 %v125
    %v513 = vunpack.c.l.b16 %v126
    %v514 = vunpack.c.l.b16 %v127
    %v515 = vunpack.c.l.b16 %v128
    %v516 = vunpack.c.l.b16 %v129
    %v517 = vunpack.c.l.b16 %v130
    %v518 = vunpack.c.l.b16 %v131
    %v519 = vunpack.c.l.b16 %v132
    %v520 = vunpack.c.l.b16 %v133
    %v521 = vunpack.c.l.b16 %v134
    %v522 = vunpack.c.l.b16 %v135
    %v523 = vunpack.c.l.b16 %v136
    %v524 = vunpack.c.l.b16 %v137
    %v525 = vunpack.c.l.b16 %v138
    %v526 = vunpack.c.l.b16 %v139
    %v527 = vunpack.c.l.b16 %v140
    %v528 = vunpack.c.l.b16 %v141
    %v529 = vunpack.c.l.b16 %v142
    %v530 = vunpack.c.l.b16 %v143
    %v531 = vunpack.c.l.b16 %v144
    %v532 = vunpack.c.l.b16 %v145
    %v533 = vunpack.c.l.b16 %v146
    %v534 = vunpack.c.l.b16 %v147
    %v535 = vunpack.c.l.b16 %v148
    %v536 = vunpack.c.l.b16 %v149
    %v537 = vunpack.c.l.b16 %v150
    %v538 = vunpack.c.l.b16 %v151
    %v539 = vunpack.c.l.b16 %v152
    %v540 = vunpack.c.l.b16 %v153
    %v541 = vunpack.c.l.b16 %v154
    %v542 = vunpack.c.l.b16 %v155
    %v543 = vunpack.c.l.b16 %v156
    %v544 = vunpack.c.l.b16 %v157
    %v545 = vunpack.c.l.b16 %v158
    %v546 = vunpack.c.l.b16 %v159
    %v547 = vunpack.c.l.b16 %v160
    %v548 = vunpack.c.l.b16 %v161
    %v549 = vunpack.c.l.b16 %v162
    %v550 = vunpack.c.l.b16 %v163
    %v551 = vunpack.c.l.b16 %v164
    %v552 = vunpack.c.l.b16 %v165
    %v553 = vunpack.c.l.b16 %v166
    %v554 = vunpack.c.l.b16 %v167
    %v555 = vunpack.c.l.b16 %v168
    %v556 = vunpack.c.l.b16 %v169
    %v557 = vunpack.c.l.b16 %v170
    %v558 = vunpack.c.l.b16 %v171
    %v559 = vunpack.c.l.b16 %v172
    %v560 = vunpack.c.l.b16 %v173
    %v561 = vunpack.c.l.b16 %v174
    %v562 = vunpack.c.l.b16 %v175
    %v563 = vunpack.c.l.b16 %v176
    %v564 = vunpack.c.l.b16 %v177
    %v565 = vunpack.c.l.b16 %v178
    %v566 = vunpack.c.l.b16 %v179
    %v567 = vunpack.c.l.b16 %v180
    %v568 = vunpack.c.l.b16 %v181
    %v569 = vunpack.c.l.b16 %v182
    %v570 = vunpack.c.l.b16 %v183
    %v571 = vunpack.c.l.b16 %v184
    %v572 = vunpack.c.l.b16 %v185
    %v573 = vpack.c.b16 %v430, %v429
    %v574 = vpack.c.b16 %v432, %v431
    %v575 = vpack.c.b16 %v434, %v433
    %v576 = vpack.c.b16 %v436, %v435
    %v577 = vpack.c.b16 %v438, %v437
    %v578 = vpack.c.b16 %v440, %v439
    %v579 = vpack.c.b16 %v442, %v441
    %v580 = vpack.c.b16 %v444, %v443
    %v581 = vpack.c.b16 %v446, %v445
    %v582 = vpack.c.b16 %v448, %v447
    %v583 = vpack.c.b16 %v450, %v449
    %v584 = vpack.c.b16 %v452, %v451
    %v585 = vpack.c.b16 %v454, %v453
    %v586 = vpack.c.b16 %v456, %v455
    %v587 = vpack.c.b16 %v458, %v457
    %v588 = vpack.c.b16 %v460, %v459
    %v589 = vpack.c.b16 %v462, %v461
    %v590 = vpack.c.b16 %v464, %v463
    %v591 = vpack.c.b16 %v466, %v465
    %v592 = vpack.c.b16 %v468, %v467
    %v593 = vpack.c.b16 %v470, %v469
    %v594 = vpack.c.b16 %v472, %v471
    %v595 = vpack.c.b16 %v474, %v473
    %v596 = vpack.c.b16 %v476, %v475
    %v597 = vpack.c.b16 %v478, %v477
    %v598 = vpack.c.b16 %v480, %v479
    %v599 = vpack.c.b16 %v482, %v481
    %v600 = vpack.c.b16 %v484, %v483
    %v601 = vpack.c.b16 %v486, %v485
    %v602 = vpack.c.b16 %v488, %v487
    %v603 = vpack.c.b16 %v490, %v489
    %v604 = vpack.c.b16 %v492, %v491
    %v605 = vpack.c.b16 %v494, %v493
    %v606 = vpack.c.b16 %v496, %v495
    %v607 = vpack.c.b16 %v498, %v497
    %v608 = vpack.c.b16 %v500, %v499
    %v609 = vpack.c.b16 %v502, %v501
    %v610 = vpack.c.b16 %v504, %v503
    %v611 = vpack.c.b16 %v506, %v505
    %v612 = vpack.c.b16 %v508, %v507
    %v613 = vpack.c.b16 %v510, %v509
    %v614 = vpack.c.b16 %v512, %v511
    %v615 = vpack.c.b16 %v514, %v513
    %v616 = vpack.c.b16 %v516, %v515
    %v617 = vpack.c.b16 %v518, %v517
    %v618 = vpack.c.b16 %v520, %v519
    %v619 = vpack.c.b16 %v522, %v521
    %v620 = vpack.c.b16 %v524, %v523
    %v621 = vpack.c.b16 %v526, %v525
    %v622 = vpack.c.b16 %v528, %v527
    %v623 = vpack.c.b16 %v530, %v529
    %v624 = vpack.c.b16 %v532, %v531
    %v625 = vpack.c.b16 %v534, %v533
    %v626 = vpack.c.b16 %v536, %v535
    %v627 = vpack.c.b16 %v538, %v537
    %v628 = vpack.c.b16 %v540, %v539
    %v629 = vpack.c.b16 %v542, %v541
    %v630 = vpack.c.b16 %v544, %v543
    %v631 = vpack.c.b16 %v546, %v545
    %v632 = vpack.c.b16 %v548, %v547
    %v633 = vpack.c.b16 %v550, %v549
    %v634 = vpack.c.b16 %v552, %v551
    %v635 = vpack.c.b16 %v554, %v553
    %v636 = vpack.c.b16 %v556, %v555
    %v637 = vpack.c.b16 %v558, %v557
    %v638 = vpack.c.b16 %v560, %v559
    %v639 = vpack.c.b16 %v562, %v561
    %v640 = vpack.c.b16 %v564, %v563
    %v641 = vpack.c.b16 %v566, %v565
    %v642 = vpack.c.b16 %v568, %v567
    %v643 = vpack.c.b16 %v570, %v569
    %v644 = vpack.c.b16 %v572, %v571
    %717 = vmatprep.subr.bf16.mxu0 0
    %718 = vmatpush1.bf16.msra.mxu0 %v573
    %719 = vmatprep.subr.bf16.mxu0 0
    %720 = vmatpush1.bf16.msra.mxu0 %v574
    %721 = vmatprep.subr.bf16.mxu0 0
    %722 = vmatpush1.bf16.msra.mxu0 %v575
    %723 = vmatprep.subr.bf16.mxu0 0
    %724 = vmatpush1.bf16.msra.mxu0 %v576
    %725 = vmatprep.subr.bf16.mxu0 0
    %726 = vmatpush1.bf16.msra.mxu0 %v577
    %727 = vmatprep.subr.bf16.mxu0 0
    %728 = vmatpush1.bf16.msra.mxu0 %v578
    %729 = vmatprep.subr.bf16.mxu0 0
    %730 = vmatpush1.bf16.msra.mxu0 %v579
    %731 = vmatprep.subr.bf16.mxu0 0
    %732 = vmatpush1.bf16.msra.mxu0 %v580
    %733 = vmatprep.subr.bf16.mxu0 0
    %734 = vmatpush1.bf16.msra.mxu0 %v581
    %735 = vmatprep.subr.bf16.mxu0 0
    %736 = vmatpush1.bf16.msra.mxu0 %v582
    %737 = vmatprep.subr.bf16.mxu0 0
    %738 = vmatpush1.bf16.msra.mxu0 %v583
    %739 = vmatprep.subr.bf16.mxu0 0
    %740 = vmatpush1.bf16.msra.mxu0 %v584
    %741 = vmatprep.subr.bf16.mxu0 0
    %742 = vmatpush1.bf16.msra.mxu0 %v585
    %743 = vmatprep.subr.bf16.mxu0 0
    %744 = vmatpush1.bf16.msra.mxu0 %v586
    %745 = vmatprep.subr.bf16.mxu0 0
    %746 = vmatpush1.bf16.msra.mxu0 %v587
    %747 = vmatprep.subr.bf16.mxu0 0
    %748 = vmatpush1.bf16.msra.mxu0 %v588
    %749 = vmatprep.mubr.bf16.mxu0 %v250
    %750 = vmatmul.mubr.bf16.gmra.mrb[0].mxu0 %v249
    %v751 = vpop.f32.mrb[0].mxu0
    %v752 = vadd.f32 %v191, %v751
    %v753 = vpop.f32.mrb[0].mxu0
    %v754 = vpop.f32.mrb[0].mxu0
    %v755 = vadd.f32 %v191, %v754
    %v756 = vpop.f32.mrb[0].mxu0
    %757 = vmatprep.mubr.bf16.mxu0 %v259
    %758 = vmatmul.mubr.bf16.gmra.mrb[0].mxu0 %v258
    %v759 = vpop.f32.mrb[0].mxu0
    %v760 = vadd.f32 %v191, %v759
    %v761 = vpop.f32.mrb[0].mxu0
    %v762 = vpop.f32.mrb[0].mxu0
    %v763 = vadd.f32 %v191, %v762
    %v764 = vpop.f32.mrb[0].mxu0
    %765 = vdwg.mxu0
    %766 = vmatprep.subr.bf16.mxu0 0
    %767 = vmatpush1.bf16.msra.mxu0 %v589
    %768 = vmatprep.subr.bf16.mxu0 0
    %769 = vmatpush1.bf16.msra.mxu0 %v590
    %770 = vmatprep.subr.bf16.mxu0 0
    %771 = vmatpush1.bf16.msra.mxu0 %v591
    %772 = vmatprep.subr.bf16.mxu0 0
    %773 = vmatpush1.bf16.msra.mxu0 %v592
    %774 = vmatprep.subr.bf16.mxu0 0
    %775 = vmatpush1.bf16.msra.mxu0 %v593
    %776 = vmatprep.subr.bf16.mxu0 0
    %777 = vmatpush1.bf16.msra.mxu0 %v594
    %778 = vmatprep.subr.bf16.mxu0 0
    %779 = vmatpush1.bf16.msra.mxu0 %v595
    %780 = vmatprep.subr.bf16.mxu0 0
    %781 = vmatpush1.bf16.msra.mxu0 %v596
    %782 = vmatprep.subr.bf16.mxu0 0
    %783 = vmatpush1.bf16.msra.mxu0 %v597
    %784 = vmatprep.subr.bf16.mxu0 0
    %785 = vmatpush1.bf16.msra.mxu0 %v598
    %786 = vmatprep.subr.bf16.mxu0 0
    %787 = vmatpush1.bf16.msra.mxu0 %v599
    %788 = vmatprep.subr.bf16.mxu0 0
    %789 = vmatpush1.bf16.msra.mxu0 %v600
    %790 = vmatprep.subr.bf16.mxu0 0
    %791 = vmatpush1.bf16.msra.mxu0 %v601
    %792 = vmatprep.subr.bf16.mxu0 0
    %793 = vmatpush1.bf16.msra.mxu0 %v602
    %794 = vmatprep.subr.bf16.mxu0 0
    %795 = vmatpush1.bf16.msra.mxu0 %v603
    %796 = vmatprep.subr.bf16.mxu0 0
    %797 = vmatpush1.bf16.msra.mxu0 %v604
    %798 = vmatprep.mubr.bf16.mxu0 %v252
    %799 = vmatmul.mubr.bf16.gmra.mrb[0].mxu0 %v251
    %v800 = vpop.f32.mrb[0].mxu0
    %v801 = vadd.f32 %v752, %v800
    %v802 = vpop.f32.mrb[0].mxu0
    %v803 = vpop.f32.mrb[0].mxu0
    %v804 = vadd.f32 %v755, %v803
    %v805 = vpop.f32.mrb[0].mxu0
    %806 = vmatprep.mubr.bf16.mxu0 %v261
    %807 = vmatmul.mubr.bf16.gmra.mrb[0].mxu0 %v260
    %v808 = vpop.f32.mrb[0].mxu0
    %v809 = vadd.f32 %v760, %v808
    %v810 = vpop.f32.mrb[0].mxu0
    %v811 = vpop.f32.mrb[0].mxu0
    %v812 = vadd.f32 %v763, %v811
    %v813 = vpop.f32.mrb[0].mxu0
    %814 = vdwg.mxu0
    %815 = vmatprep.subr.bf16.mxu0 0
    %816 = vmatpush1.bf16.msra.mxu0 %v605
    %817 = vmatprep.subr.bf16.mxu0 0
    %818 = vmatpush1.bf16.msra.mxu0 %v606
    %819 = vmatprep.subr.bf16.mxu0 0
    %820 = vmatpush1.bf16.msra.mxu0 %v607
    %821 = vmatprep.subr.bf16.mxu0 0
    %822 = vmatpush1.bf16.msra.mxu0 %v608
    %823 = vmatprep.subr.bf16.mxu0 0
    %824 = vmatpush1.bf16.msra.mxu0 %v609
    %825 = vmatprep.subr.bf16.mxu0 0
    %826 = vmatpush1.bf16.msra.mxu0 %v610
    %827 = vmatprep.subr.bf16.mxu0 0
    %828 = vmatpush1.bf16.msra.mxu0 %v611
    %829 = vmatprep.subr.bf16.mxu0 0
    %830 = vmatpush1.bf16.msra.mxu0 %v612
    %831 = vmatprep.subr.bf16.mxu0 0
    %832 = vmatpush1.bf16.msra.mxu0 %v613
    %833 = vmatprep.subr.bf16.mxu0 0
    %834 = vmatpush1.bf16.msra.mxu0 %v614
    %835 = vmatprep.subr.bf16.mxu0 0
    %836 = vmatpush1.bf16.msra.mxu0 %v615
    %837 = vmatprep.subr.bf16.mxu0 0
    %838 = vmatpush1.bf16.msra.mxu0 %v616
    %839 = vmatprep.subr.bf16.mxu0 0
    %840 = vmatpush1.bf16.msra.mxu0 %v617
    %841 = vmatprep.subr.bf16.mxu0 0
    %842 = vmatpush1.bf16.msra.mxu0 %v618
    %843 = vmatprep.subr.bf16.mxu0 0
    %844 = vmatpush1.bf16.msra.mxu0 %v619
    %845 = vmatprep.subr.bf16.mxu0 0
    %846 = vmatpush1.bf16.msra.mxu0 %v620
    %847 = vmatprep.mubr.bf16.mxu0 %v254
    %848 = vmatmul.mubr.bf16.gmra.mrb[0].mxu0 %v253
    %v849 = vpop.f32.mrb[0].mxu0
    %v850 = vadd.f32 %v801, %v849
    %v851 = vpop.f32.mrb[0].mxu0
    %v852 = vpop.f32.mrb[0].mxu0
    %v853 = vadd.f32 %v804, %v852
    %v854 = vpop.f32.mrb[0].mxu0
    %855 = vmatprep.mubr.bf16.mxu0 %v263
    %856 = vmatmul.mubr.bf16.gmra.mrb[0].mxu0 %v262
    %v857 = vpop.f32.mrb[0].mxu0
    %v858 = vadd.f32 %v809, %v857
    %v859 = vpop.f32.mrb[0].mxu0
    %v860 = vpop.f32.mrb[0].mxu0
    %v861 = vadd.f32 %v812, %v860
    %v862 = vpop.f32.mrb[0].mxu0
    %863 = vdwg.mxu0
    %864 = vmatprep.subr.bf16.mxu0 0
    %865 = vmatpush1.bf16.msra.mxu0 %v621
    %866 = vmatprep.subr.bf16.mxu0 0
    %867 = vmatpush1.bf16.msra.mxu0 %v622
    %868 = vmatprep.subr.bf16.mxu0 0
    %869 = vmatpush1.bf16.msra.mxu0 %v623
    %870 = vmatprep.subr.bf16.mxu0 0
    %871 = vmatpush1.bf16.msra.mxu0 %v624
    %872 = vmatprep.subr.bf16.mxu0 0
    %873 = vmatpush1.bf16.msra.mxu0 %v625
    %874 = vmatprep.subr.bf16.mxu0 0
    %875 = vmatpush1.bf16.msra.mxu0 %v626
    %876 = vmatprep.subr.bf16.mxu0 0
    %877 = vmatpush1.bf16.msra.mxu0 %v627
    %878 = vmatprep.subr.bf16.mxu0 0
    %879 = vmatpush1.bf16.msra.mxu0 %v628
    %880 = vmatprep.subr.bf16.mxu0 0
    %881 = vmatpush1.bf16.msra.mxu0 %v629
    %882 = vmatprep.subr.bf16.mxu0 0
    %883 = vmatpush1.bf16.msra.mxu0 %v630
    %884 = vmatprep.subr.bf16.mxu0 0
    %885 = vmatpush1.bf16.msra.mxu0 %v631
    %886 = vmatprep.subr.bf16.mxu0 0
    %887 = vmatpush1.bf16.msra.mxu0 %v632
    %888 = vmatprep.subr.bf16.mxu0 0
    %889 = vmatpush1.bf16.msra.mxu0 %v633
    %890 = vmatprep.subr.bf16.mxu0 0
    %891 = vmatpush1.bf16.msra.mxu0 %v634
    %892 = vmatprep.subr.bf16.mxu0 0
    %893 = vmatpush1.bf16.msra.mxu0 %v635
    %894 = vmatprep.subr.bf16.mxu0 0
    %895 = vmatpush1.bf16.msra.mxu0 %v636
    %896 = vmatprep.mubr.bf16.mxu0 %v256
    %897 = vmatmul.mubr.bf16.gmra.mrb[0].mxu0 %v255
    %v898 = vpop.f32.mrb[0].mxu0
    %v899 = vadd.f32 %v850, %v898
    %v900 = vpop.f32.mrb[0].mxu0
    %v901 = vpop.f32.mrb[0].mxu0
    %v902 = vadd.f32 %v853, %v901
    %v903 = vpop.f32.mrb[0].mxu0
    %904 = vmatprep.mubr.bf16.mxu0 %v265
    %905 = vmatmul.mubr.bf16.gmra.mrb[0].mxu0 %v264
    %v906 = vpop.f32.mrb[0].mxu0
    %v907 = vadd.f32 %v858, %v906
    %v908 = vpop.f32.mrb[0].mxu0
    %v909 = vpop.f32.mrb[0].mxu0
    %v910 = vadd.f32 %v861, %v909
    %v911 = vpop.f32.mrb[0].mxu0
    %912 = vdwg.mxu0
    %913 = vmatprep.subr.bf16.mxu0 0
    %914 = vmatpush1.bf16.msra.mxu0 %v637
    %915 = vmatprep.subr.bf16.mxu0 0
    %916 = vmatpush1.bf16.msra.mxu0 %v638
    %917 = vmatprep.subr.bf16.mxu0 0
    %918 = vmatpush1.bf16.msra.mxu0 %v639
    %919 = vmatprep.subr.bf16.mxu0 0
    %920 = vmatpush1.bf16.msra.mxu0 %v640
    %921 = vmatprep.subr.bf16.mxu0 0
    %922 = vmatpush1.bf16.msra.mxu0 %v641
    %923 = vmatprep.subr.bf16.mxu0 0
    %924 = vmatpush1.bf16.msra.mxu0 %v642
    %925 = vmatprep.subr.bf16.mxu0 0
    %926 = vmatpush1.bf16.msra.mxu0 %v643
    %927 = vmatprep.subr.bf16.mxu0 0
    %928 = vmatpush1.bf16.msra.mxu0 %v644
    %929 = vmatprep.subr.bf16.mxu0 0
    %930 = vmatpush1.bf16.msra.mxu0 0
    %931 = vmatprep.subr.bf16.mxu0 0
    %932 = vmatpush1.bf16.msra.mxu0 0
    %933 = vmatprep.subr.bf16.mxu0 0
    %934 = vmatpush1.bf16.msra.mxu0 0
    %935 = vmatprep.subr.bf16.mxu0 0
    %936 = vmatpush1.bf16.msra.mxu0 0
    %937 = vmatprep.subr.bf16.mxu0 0
    %938 = vmatpush1.bf16.msra.mxu0 0
    %939 = vmatprep.subr.bf16.mxu0 0
    %940 = vmatpush1.bf16.msra.mxu0 0
    %941 = vmatprep.subr.bf16.mxu0 0
    %942 = vmatpush1.bf16.msra.mxu0 0
    %943 = vmatprep.subr.bf16.mxu0 0
    %944 = vmatpush1.bf16.msra.mxu0 0
    %945 = vmatprep.mubr.bf16.mxu0 0
    %946 = vmatmul.mubr.bf16.gmra.mrb[0].mxu0 %v257
    %v947 = vpop.f32.mrb[0].mxu0
    %v948 = vadd.f32 %v899, %v947
    %v949 = vpop.f32.mrb[0].mxu0
    %v950 = vpop.f32.mrb[0].mxu0
    %v951 = vadd.f32 %v902, %v950
    %v952 = vpop.f32.mrb[0].mxu0
    %953 = vmatprep.mubr.bf16.mxu0 0
    %954 = vmatmul.mubr.bf16.gmra.mrb[0].mxu0 %v266
    %v955 = vpop.f32.mrb[0].mxu0
    %v956 = vadd.f32 %v907, %v955
    %v957 = vpop.f32.mrb[0].mxu0
    %v958 = vpop.f32.mrb[0].mxu0
    %v959 = vadd.f32 %v910, %v958
    %v960 = vpop.f32.mrb[0].mxu0
    %961 = vdwg.mxu0
    %v962 = vmax.f32 %v948, 0.0
    %v963 = vmax.f32 %v951, 0.0
    %v964 = vmax.f32 %v956, 0.0
    %v965 = vmax.f32 %v959, 0.0
    %v966 = vmax.f32 %v962, %v963
    %v967 = vmax.f32 %v964, %v965
    %v970 = vrot.slane %v966, 4
    %v971 = vrot.slane %v967, 4
    %v974 = vmax.f32 %v966, %v970
    %v975 = vmax.f32 %v967, %v971
    %v978 = vrot.slane %v974, 2
    %v979 = vrot.slane %v975, 2
    %v982 = vmax.f32 %v974, %v978
    %v983 = vmax.f32 %v975, %v979
    %v986 = vrot.slane %v982, 1
    %v987 = vrot.slane %v983, 1
    %v990 = vmax.f32 %v982, %v986
    %v991 = vmax.f32 %v983, %v987
    %v992 = vld [vmem:[%s3] sm:$0xff]
    %v993 = vld [vmem:[%s3 + $0x8] sm:$0xff]
    %v994 = vld [vmem:[%s3 + $0x10] sm:$0xff]
    %v995 = vld [vmem:[%s3 + $0x18] sm:$0xff]
    %v996 = vld [vmem:[%s3 + $0x20] sm:$0xff]
    %v997 = vld [vmem:[%s3 + $0x28] sm:$0xff]
    %v998 = vld [vmem:[%s3 + $0x30] sm:$0xff]
    %v999 = vld [vmem:[%s3 + $0x38] sm:$0xff]
    %v1000 = vld [vmem:[%s3 + $0x40] sm:$0xff]
    %v1001 = vld [vmem:[%s3 + $0x48] sm:$0xff]
    %v1002 = vld [vmem:[%s3 + $0x50] sm:$0xff]
    %v1003 = vld [vmem:[%s3 + $0x58] sm:$0xff]
    %v1004 = vld [vmem:[%s3 + $0x60] sm:$0xff]
    %v1005 = vld [vmem:[%s3 + $0x68] sm:$0xff]
    %v1006 = vld [vmem:[%s3 + $0x70] sm:$0xff]
    %v1007 = vld [vmem:[%s3 + $0x78] sm:$0xff]
    %v1008 = vld [vmem:[%s4] sm:$0x1]
    %v1010 = vlaneseq
    %v1011 = vshrl.u32 %v1010, 7
    %v1012 = vsub.s32 0, %v1011
    %v1013 = vrot.slane %v1008, %v1012
    %v1017 = vrot.slane %v991, 7
    %vm1018 = vcmask 1041409
    %v1019 = vsel %vm1018, %v1017, %v990
    %1021 = vmatprep.subr.mxu0 0.0
    %1022 = vmatpush1.msra.mxu0 %v992
    %1023 = vmatprep.subr.mxu0 0.0
    %1024 = vmatpush1.msra.mxu0 %v993
    %1025 = vmatprep.subr.mxu0 0.0
    %1026 = vmatpush1.msra.mxu0 %v994
    %1027 = vmatprep.subr.mxu0 0.0
    %1028 = vmatpush1.msra.mxu0 %v995
    %1029 = vmatprep.subr.mxu0 0.0
    %1030 = vmatpush1.msra.mxu0 %v996
    %1031 = vmatprep.subr.mxu0 0.0
    %1032 = vmatpush1.msra.mxu0 %v997
    %1033 = vmatprep.subr.mxu0 0.0
    %1034 = vmatpush1.msra.mxu0 %v998
    %1035 = vmatprep.subr.mxu0 0.0
    %1036 = vmatpush1.msra.mxu0 %v999
    %1037 = vmatprep.subr.mxu0 0.0
    %1038 = vmatpush1.msra.mxu0 %v1000
    %1039 = vmatprep.subr.mxu0 0.0
    %1040 = vmatpush1.msra.mxu0 %v1001
    %1041 = vmatprep.subr.mxu0 0.0
    %1042 = vmatpush1.msra.mxu0 %v1002
    %1043 = vmatprep.subr.mxu0 0.0
    %1044 = vmatpush1.msra.mxu0 %v1003
    %1045 = vmatprep.subr.mxu0 0.0
    %1046 = vmatpush1.msra.mxu0 %v1004
    %1047 = vmatprep.subr.mxu0 0.0
    %1048 = vmatpush1.msra.mxu0 %v1005
    %1049 = vmatprep.subr.mxu0 0.0
    %1050 = vmatpush1.msra.mxu0 %v1006
    %1051 = vmatprep.subr.mxu0 0.0
    %1052 = vmatpush1.msra.mxu0 %v1007
    %1053 = vmatprep.subr.mxu0 0.0
    %1054 = vmatpush1.msra.mxu0 0.0
    %1055 = vmatprep.subr.mxu0 0.0
    %1056 = vmatpush1.msra.mxu0 0.0
    %1057 = vmatprep.subr.mxu0 0.0
    %1058 = vmatpush1.msra.mxu0 0.0
    %1059 = vmatprep.subr.mxu0 0.0
    %1060 = vmatpush1.msra.mxu0 0.0
    %1061 = vmatprep.subr.mxu0 0.0
    %1062 = vmatpush1.msra.mxu0 0.0
    %1063 = vmatprep.subr.mxu0 0.0
    %1064 = vmatpush1.msra.mxu0 0.0
    %1065 = vmatprep.subr.mxu0 0.0
    %1066 = vmatpush1.msra.mxu0 0.0
    %1067 = vmatprep.subr.mxu0 0.0
    %1068 = vmatpush1.msra.mxu0 0.0
    %1069 = vmatprep.subr.mxu0 0.0
    %1070 = vmatpush1.msra.mxu0 0.0
    %1071 = vmatprep.subr.mxu0 0.0
    %1072 = vmatpush1.msra.mxu0 0.0
    %1073 = vmatprep.subr.mxu0 0.0
    %1074 = vmatpush1.msra.mxu0 0.0
    %1075 = vmatprep.subr.mxu0 0.0
    %1076 = vmatpush1.msra.mxu0 0.0
    %1077 = vmatprep.subr.mxu0 0.0
    %1078 = vmatpush1.msra.mxu0 0.0
    %1079 = vmatprep.subr.mxu0 0.0
    %1080 = vmatpush1.msra.mxu0 0.0
    %1081 = vmatprep.subr.mxu0 0.0
    %1082 = vmatpush1.msra.mxu0 0.0
    %1083 = vmatprep.subr.mxu0 0.0
    %1084 = vmatpush1.msra.mxu0 0.0
    %1085 = vmatprep.mubr.f32.mxu0 0.0
    %1086 = vmatmul.mubr.f32.gmra.mrb[0].mxu0 %v1019
    %v1087 = vpop.f32.mrb[0].mxu0
    %v1088 = vadd.f32 %v1013, %v1087
    %v1089 = vpop.f32.mrb[0].mxu0
    %1090 = vdwg.mxu0
    %vm1091 = vcmask 33792
    %v1092 = vsel %vm1091, %v1088, -inf
    %1093 = vmax.xlane.f32.xlu0 %v1092
    %v1094 = vpop.xlane.xlu0 %1093
    %v1095 = vsub.f32 %v1088, %v1094
    %v1096 = vmul.f32 %v1095, 1.442695
    %v1097 = vpow.pop %v1096
    %v1098 = vsel %vm1091, %v1097, 0.0
    %1099 = vadd.xlane.f32.xlu0 %v1098
    %v1100 = vpop.xlane.xlu0 %1099
    %v1101 = vlog2.pop %v1100
    %v1102 = vmul.f32 %v1101, 0.6931472
    %v1103 = vsub.f32 %v1095, %v1102
    %1104 = vst.msk [vmem:[#allocation2] sm:$0x3] %vm1091, %v1103
    // Predicated region
    $region22: #{_lambda_.5} parent=1 // pred_check
      _
    $region23: #{_lambda_.5} parent=1 // pred_check_branch
      %1106 = sbr.rel (0) target = $region25
    $region24: #{_lambda_.5} parent=1 // pred_region
      %s1108 = ssub.s32 32, 32
      %1109 = vsyncadd [#allocation3], %s1108
      %s1111 = sshll.u32 [#allocation2], 4
      %s1112 = int_to_ptr.vmem [resolvable:$true] %s1111
      %1114 = dma.vmem_to_hbm [thread:$0]  %s1112, 32, %s5, [#allocation3]
    $region25: #{_lambda_.5} parent=1 // pred_fallthru
      _
    // Predicated region
    $region26: #{_lambda_.5} parent=1 // pred_check
      _
    $region27: #{_lambda_.5} parent=1 // pred_check_branch
      %1116 = sbr.rel (0) target = $region29
    $region28: #{_lambda_.5} parent=1 // pred_region
      %1117 = dma.done [#allocation3], 32
    $region29: #{_lambda_.5} parent=1 // pred_fallthru
      _
    %1118 = vsyncpa [#allocation3], 1

</llo_original>
